<compile_context>
chip_gen: v5e
topology: v5e:2x2
jax: 0.10.0
libtpu: 0.0.40
codegen_flags: <defaults>
</compile_context>

<pallas_src>
import jax
import jax.numpy as jnp
from jax import lax
from jax.experimental import pallas as pl
from jax.experimental.pallas import tpu as pltpu

POOL_KS = (5, 9, 13)                 # SPP pool kernel sizes (stride 1, pad k//2)
HALO = max(POOL_KS) // 2             # 6 rows of halo for the largest pool
NEG = -1e30                          # "-inf" for max-pool padding (SiLU out > -0.3)
BN_EPS = 1e-5


def _pick_tile_h(H, W):
    """Row tile: divides H, tile_h*W sublane-aligned and reasonably large."""
    for th in range(1, H + 1):
        if H % th:
            continue
        if (th * W) % 8:
            continue
        if th * W >= 128 and H // th >= 2:
            return th
    return H


def _spp_pallas(x_flat, wcol, w1, b1, w2, b2, *, N, H, W, C1, Cm, C2, tile_h):
    n_t = H // tile_h
    Hs = tile_h + 2 * HALO           # rows of cv1 output needed per tile (with halo)
    hs_rows = Hs * W
    pad_rows = 8                     # sublane-aligned -inf pad for W-direction shifts
    Hp_rows = (H + 2 * HALO) * W     # flattened rows of the H-padded input image

    def kernel(x_ref, wcol_ref, w1_ref, b1_ref, w2_ref, b2_ref, o_ref):
        t = pl.program_id(1)
        row0 = pl.multiple_of(t * (tile_h * W), tile_h * W)

        # Haloed slice of the (H-padded) image: flattened pixels x channels.
        xs = x_ref[0, pl.ds(row0, hs_rows), :].astype(jnp.float32)    # (Hs*W, C1)
        wcol_t = wcol_ref[pl.ds(row0, hs_rows), :]                    # (Hs*W, 1) int32

        # ---- cv1: folded 1x1 conv + BN + SiLU (MXU) ----
        y1 = jnp.dot(xs, w1_ref[...].astype(jnp.float32),
                     preferred_element_type=jnp.float32)
        y1 = y1 + b1_ref[...].astype(jnp.float32)
        y1 = y1 * jax.nn.sigmoid(y1)                                  # (Hs*W, Cm)

        # ---- mask halo rows (outside the real image) for pooling ----
        f = lax.broadcasted_iota(jnp.int32, (hs_rows, 1), 0)
        g = f + row0                                # flat index in the H-padded image
        row_ok = (g >= HALO * W) & (g < (HALO + H) * W)
        y1m = jnp.where(row_ok, y1, NEG)

        pad = jnp.full((pad_rows, Cm), NEG, jnp.float32)
        ypad = jnp.concatenate([pad, y1m, pad], axis=0)

        def shifted(dw):
            # Neighbour at column offset dw (same image row), NEG outside the row.
            s = ypad[pad_rows + dw: pad_rows + dw + hs_rows, :]
            ok = (wcol_t < (W - dw)) if dw > 0 else (wcol_t >= (-dw))
            return jnp.where(ok, s, NEG)

        def center(a):
            # Drop the H halo -> rows belonging to this output tile.
            return a[HALO * W: HALO * W + tile_h * W, :]

        # ---- W-direction running maxima, shared across k (5 ⊂ 9 ⊂ 13 windows) ----
        w_pooled = {}
        mw = y1m
        prev_p = 0
        for k in POOL_KS:
            p = k // 2
            for dw in range(prev_p + 1, p + 1):
                mw = jnp.maximum(mw, shifted(dw))
                mw = jnp.maximum(mw, shifted(-dw))
            w_pooled[k] = mw
            prev_p = p

        # ---- H-direction maxima: whole-row shifts = static sublane slices ----
        def h_pool(m, k):
            p = k // 2
            out = center(m)
            for dh in range(-p, p + 1):
                if dh == 0:
                    continue
                s = (HALO + dh) * W
                out = jnp.maximum(out, m[s: s + tile_h * W, :])
            return out

        branches = [center(y1)] + [h_pool(w_pooled[k], k) for k in POOL_KS]

        # ---- cv2: folded 1x1 conv + BN + SiLU over the 4 concatenated branches ----
        acc = b2_ref[...].astype(jnp.float32)
        for j, br in enumerate(branches):
            acc = acc + jnp.dot(br, w2_ref[j].astype(jnp.float32),
                                preferred_element_type=jnp.float32)
        out = acc * jax.nn.sigmoid(acc)
        o_ref[0] = out.astype(o_ref.dtype)

    return pl.pallas_call(
        kernel,
        out_shape=jax.ShapeDtypeStruct((N, H * W, C2), x_flat.dtype),
        grid_spec=pltpu.PrefetchScalarGridSpec(
            num_scalar_prefetch=0,
            grid=(N, n_t),
            in_specs=[
                # padded image: resident per batch element (constant along t)
                pl.BlockSpec((1, Hp_rows, C1), lambda n, t: (n, 0, 0)),
                pl.BlockSpec((Hp_rows, 1), lambda n, t: (0, 0)),       # column indices
                pl.BlockSpec((C1, Cm), lambda n, t: (0, 0)),           # folded cv1 W
                pl.BlockSpec((1, Cm), lambda n, t: (0, 0)),            # folded cv1 b
                pl.BlockSpec((4, Cm, C2), lambda n, t: (0, 0, 0)),     # folded cv2 W
                pl.BlockSpec((1, C2), lambda n, t: (0, 0)),            # folded cv2 b
            ],
            out_specs=pl.BlockSpec((1, tile_h * W, C2), lambda n, t: (n, t, 0)),
        ),
        compiler_params=pltpu.CompilerParams(
            dimension_semantics=("parallel", "parallel")),
    )(x_flat, wcol, w1, b1, w2, b2)


def spp_forward(x_nchw, params):
    """SPP forward: NCHW in / NCHW out. BatchNorm folded (inference semantics)."""
    w1, g1, be1, m1, v1, w2, g2, be2, m2, v2 = params
    N, C1, H, W = x_nchw.shape
    Cm = w1.shape[0]
    C2 = w2.shape[0]

    # TODO(synk): BatchNorm is folded using running statistics (eval semantics);
    # training-mode batch-statistic computation/updates are not implemented.
    s1 = g1 / jnp.sqrt(v1 + BN_EPS)
    w1f = (w1.reshape(Cm, C1) * s1[:, None]).T                       # (C1, Cm)
    b1f = (be1 - m1 * s1).reshape(1, Cm)
    s2 = g2 / jnp.sqrt(v2 + BN_EPS)
    w2f = (w2.reshape(C2, 4 * Cm) * s2[:, None]).T                   # (4*Cm, C2)
    w2f = w2f.reshape(4, Cm, C2)                                     # [x, p5, p9, p13]
    b2f = (be2 - m2 * s2).reshape(1, C2)

    # NCHW -> NHWC, pad H by the pooling halo, flatten pixels (channels on lanes).
    x = jnp.transpose(x_nchw, (0, 2, 3, 1))
    xp = jnp.pad(x, ((0, 0), (HALO, HALO), (0, 0), (0, 0)))
    Hp_rows = (H + 2 * HALO) * W
    x_flat = xp.reshape(N, Hp_rows, C1)

    # Per-pixel column index (precomputed so the kernel needs no integer mod).
    wcol = (jnp.arange(Hp_rows, dtype=jnp.int32) % W).reshape(Hp_rows, 1)

    tile_h = _pick_tile_h(H, W)
    out_flat = _spp_pallas(x_flat, wcol, w1f, b1f, w2f, b2f,
                           N=N, H=H, W=W, C1=C1, Cm=Cm, C2=C2, tile_h=tile_h)
    out = out_flat.reshape(N, H, W, C2)
    return jnp.transpose(out, (0, 3, 1, 2))


# ----------------------------------------------------------------------------
# Pure-JAX reference mirroring the PyTorch op sequence (for verification).
# ----------------------------------------------------------------------------
def spp_reference(x, params):
    w1, g1, be1, m1, v1, w2, g2, be2, m2, v2 = params
    dn = ('NCHW', 'OIHW', 'NCHW')

    def conv_bn_silu(z, w, g, b, mu, var):
        y = lax.conv_general_dilated(z, w, (1, 1), 'VALID', dimension_numbers=dn)
        y = (y - mu[None, :, None, None]) / jnp.sqrt(var + BN_EPS)[None, :, None, None]
        y = y * g[None, :, None, None] + b[None, :, None, None]
        return y * jax.nn.sigmoid(y)

    y = conv_bn_silu(x, w1, g1, be1, m1, v1)
    pools = []
    for k in POOL_KS:
        p = k // 2
        pools.append(lax.reduce_window(y, -jnp.inf, lax.max,
                                       (1, 1, k, k), (1, 1, 1, 1),
                                       ((0, 0), (0, 0), (p, p), (p, p))))
    cat = jnp.concatenate([y] + pools, axis=1)
    return conv_bn_silu(cat, w2, g2, be2, m2, v2)


def _bn_params(key, c):
    k1, k2, k3, k4 = jax.random.split(key, 4)
    gamma = 1.0 + 0.1 * jax.random.normal(k1, (c,), jnp.float32)
    beta = 0.1 * jax.random.normal(k2, (c,), jnp.float32)
    mean = 0.1 * jax.random.normal(k3, (c,), jnp.float32)
    var = 0.5 + jax.random.uniform(k4, (c,), jnp.float32)
    return gamma, beta, mean, var


if __name__ == "__main__":
    N, c1, c2 = 2, 8, 8
    H = W = 16
    cm = c1 // 2

    key = jax.random.PRNGKey(0)
    k_w1, k_bn1, k_w2, k_bn2, k_x = jax.random.split(key, 5)

    w1 = jax.random.normal(k_w1, (cm, c1, 1, 1), jnp.float32) / jnp.sqrt(1.0 * c1)
    g1, be1, m1, v1 = _bn_params(k_bn1, cm)
    w2 = jax.random.normal(k_w2, (c2, 4 * cm, 1, 1), jnp.float32) / jnp.sqrt(4.0 * cm)
    g2, be2, m2, v2 = _bn_params(k_bn2, c2)
    params = (w1, g1, be1, m1, v1, w2, g2, be2, m2, v2)

    x = jax.random.normal(k_x, (N, c1, H, W), jnp.float32)

    out = jax.block_until_ready(jax.jit(spp_forward)(x, params))
    ref = jax.block_until_ready(jax.jit(spp_reference)(x, params))

    assert out.shape == (N, c2, H, W), out.shape
    max_err = float(jnp.max(jnp.abs(out - ref)))
    assert jnp.allclose(out, ref, atol=2e-4, rtol=2e-4), max_err
    print("KERNEL_OK")
</pallas_src>

<mosaic_0001>
module attributes {stable_mosaic.version = 11 : i64} {
  func.func @kernel(%arg0: i32, %arg1: i32, %arg2: memref<1x448x8xf32, #tpu.memory_space<vmem>>, %arg3: memref<448x1xi32, #tpu.memory_space<vmem>>, %arg4: memref<8x4xf32, #tpu.memory_space<vmem>>, %arg5: memref<1x4xf32, #tpu.memory_space<vmem>>, %arg6: memref<4x4x8xf32, #tpu.memory_space<vmem>>, %arg7: memref<1x8xf32, #tpu.memory_space<vmem>>, %arg8: memref<1x128x8xf32, #tpu.memory_space<vmem>>) attributes {dimension_semantics = [#tpu.dimension_semantics<parallel>, #tpu.dimension_semantics<parallel>], iteration_bounds = array<i64: 2, 2>, scalar_prefetch = 0 : i64, scratch_operands = 0 : i64, tpu.core_type = #tpu.core_type<tc>, window_params = [{transform_indices = @transform_0, window_bounds = array<i64: 1, 448, 8>}, {pipeline_mode = #tpu.pipeline_mode<synchronous>, transform_indices = @transform_1, window_bounds = array<i64: 448, 1>}, {pipeline_mode = #tpu.pipeline_mode<synchronous>, transform_indices = @transform_2, window_bounds = array<i64: 8, 4>}, {pipeline_mode = #tpu.pipeline_mode<synchronous>, transform_indices = @transform_3, window_bounds = array<i64: 1, 4>}, {pipeline_mode = #tpu.pipeline_mode<synchronous>, transform_indices = @transform_4, window_bounds = array<i64: 4, 4, 8>}, {pipeline_mode = #tpu.pipeline_mode<synchronous>, transform_indices = @transform_5, window_bounds = array<i64: 1, 8>}, {transform_indices = @transform_6, window_bounds = array<i64: 1, 128, 8>}]} {
    %c128_i32 = arith.constant 128 : i32
    %0 = arith.muli %arg1, %c128_i32 : i32
    %1 = tpu.assume_multiple %0, 128 : i32
    %c0 = arith.constant 0 : index
    %2 = arith.index_cast %1 : i32 to index
    %c0_0 = arith.constant 0 : index
    %3 = vector.load %arg2[%c0, %2, %c0_0] : memref<1x448x8xf32, #tpu.memory_space<vmem>>, vector<1x320x8xf32>
    %4 = vector.shape_cast %3 : vector<1x320x8xf32> to vector<320x8xf32>
    %5 = arith.index_cast %1 : i32 to index
    %c0_1 = arith.constant 0 : index
    %6 = vector.load %arg3[%5, %c0_1] : memref<448x1xi32, #tpu.memory_space<vmem>>, vector<320x1xi32>
    %c0_2 = arith.constant 0 : index
    %c0_3 = arith.constant 0 : index
    %7 = vector.load %arg4[%c0_2, %c0_3] : memref<8x4xf32, #tpu.memory_space<vmem>>, vector<8x4xf32>
    %cst = arith.constant dense<0.000000e+00> : vector<320x4xf32>
    %8 = tpu.matmul %4, %7, %cst {dimension_numbers = #tpu.dot_dimension_numbers<[1], [0], [0], [1], [0, 0, 1, 1], [], []>} : vector<320x8xf32>, vector<8x4xf32>, vector<320x4xf32> -> vector<320x4xf32>
    %c0_4 = arith.constant 0 : index
    %c0_5 = arith.constant 0 : index
    %9 = vector.load %arg5[%c0_4, %c0_5] : memref<1x4xf32, #tpu.memory_space<vmem>>, vector<1x4xf32>
    %10 = vector.broadcast %9 : vector<1x4xf32> to vector<320x4xf32>
    %11 = arith.addf %8, %10 : vector<320x4xf32>
    %12 = arith.negf %11 : vector<320x4xf32>
    %13 = math.exp %12 : vector<320x4xf32>
    %cst_6 = arith.constant 1.000000e+00 : f32
    %14 = vector.broadcast %cst_6 : f32 to vector<320x4xf32>
    %15 = arith.addf %14, %13 : vector<320x4xf32>
    %16 = arith.divf %14, %15 : vector<320x4xf32>
    %17 = arith.mulf %11, %16 : vector<320x4xf32>
    %18 = tpu.iota {dimensions = array<i32: 0>} : vector<320x1xi32>
    %19 = vector.broadcast %1 : i32 to vector<320x1xi32>
    %20 = arith.addi %18, %19 : vector<320x1xi32>
    %c96_i32 = arith.constant 96 : i32
    %21 = vector.broadcast %c96_i32 : i32 to vector<320x1xi32>
    %22 = arith.cmpi sge, %20, %21 : vector<320x1xi32>
    %c352_i32 = arith.constant 352 : i32
    %23 = vector.broadcast %c352_i32 : i32 to vector<320x1xi32>
    %24 = arith.cmpi slt, %20, %23 : vector<320x1xi32>
    %25 = arith.andi %22, %24 : vector<320x1xi1>
    %cst_7 = arith.constant -1.000000e+30 : f32
    %26 = vector.shape_cast %25 : vector<320x1xi1> to vector<320x1xi1>
    %27 = vector.broadcast %26 : vector<320x1xi1> to vector<320x4xi1>
    %28 = vector.broadcast %cst_7 : f32 to vector<320x4xf32>
    %29 = arith.select %27, %17, %28 : vector<320x4xi1>, vector<320x4xf32>
    %cst_8 = arith.constant -1.000000e+30 : f32
    %30 = vector.broadcast %cst_8 : f32 to vector<8x4xf32>
    %31 = tpu.concatenate %30, %29, %30 in 0 : vector<8x4xf32>, vector<320x4xf32>, vector<8x4xf32> -> vector<336x4xf32>
    %32 = vector.extract_strided_slice %31 {offsets = [9, 0], sizes = [320, 4], strides = [1, 1]} : vector<336x4xf32> to vector<320x4xf32>
    %c15_i32 = arith.constant 15 : i32
    %33 = vector.broadcast %c15_i32 : i32 to vector<320x1xi32>
    %34 = arith.cmpi slt, %6, %33 : vector<320x1xi32>
    %cst_9 = arith.constant -1.000000e+30 : f32
    %35 = vector.shape_cast %34 : vector<320x1xi1> to vector<320x1xi1>
    %36 = vector.broadcast %35 : vector<320x1xi1> to vector<320x4xi1>
    %37 = vector.broadcast %cst_9 : f32 to vector<320x4xf32>
    %38 = arith.select %36, %32, %37 : vector<320x4xi1>, vector<320x4xf32>
    %39 = arith.maximumf %29, %38 : vector<320x4xf32>
    %40 = vector.extract_strided_slice %31 {offsets = [7, 0], sizes = [320, 4], strides = [1, 1]} : vector<336x4xf32> to vector<320x4xf32>
    %c1_i32 = arith.constant 1 : i32
    %41 = vector.broadcast %c1_i32 : i32 to vector<320x1xi32>
    %42 = arith.cmpi sge, %6, %41 : vector<320x1xi32>
    %cst_10 = arith.constant -1.000000e+30 : f32
    %43 = vector.shape_cast %42 : vector<320x1xi1> to vector<320x1xi1>
    %44 = vector.broadcast %43 : vector<320x1xi1> to vector<320x4xi1>
    %45 = vector.broadcast %cst_10 : f32 to vector<320x4xf32>
    %46 = arith.select %44, %40, %45 : vector<320x4xi1>, vector<320x4xf32>
    %47 = arith.maximumf %39, %46 : vector<320x4xf32>
    %48 = vector.extract_strided_slice %31 {offsets = [10, 0], sizes = [320, 4], strides = [1, 1]} : vector<336x4xf32> to vector<320x4xf32>
    %c14_i32 = arith.constant 14 : i32
    %49 = vector.broadcast %c14_i32 : i32 to vector<320x1xi32>
    %50 = arith.cmpi slt, %6, %49 : vector<320x1xi32>
    %cst_11 = arith.constant -1.000000e+30 : f32
    %51 = vector.shape_cast %50 : vector<320x1xi1> to vector<320x1xi1>
    %52 = vector.broadcast %51 : vector<320x1xi1> to vector<320x4xi1>
    %53 = vector.broadcast %cst_11 : f32 to vector<320x4xf32>
    %54 = arith.select %52, %48, %53 : vector<320x4xi1>, vector<320x4xf32>
    %55 = arith.maximumf %47, %54 : vector<320x4xf32>
    %56 = vector.extract_strided_slice %31 {offsets = [6, 0], sizes = [320, 4], strides = [1, 1]} : vector<336x4xf32> to vector<320x4xf32>
    %c2_i32 = arith.constant 2 : i32
    %57 = vector.broadcast %c2_i32 : i32 to vector<320x1xi32>
    %58 = arith.cmpi sge, %6, %57 : vector<320x1xi32>
    %cst_12 = arith.constant -1.000000e+30 : f32
    %59 = vector.shape_cast %58 : vector<320x1xi1> to vector<320x1xi1>
    %60 = vector.broadcast %59 : vector<320x1xi1> to vector<320x4xi1>
    %61 = vector.broadcast %cst_12 : f32 to vector<320x4xf32>
    %62 = arith.select %60, %56, %61 : vector<320x4xi1>, vector<320x4xf32>
    %63 = arith.maximumf %55, %62 : vector<320x4xf32>
    %64 = vector.extract_strided_slice %31 {offsets = [11, 0], sizes = [320, 4], strides = [1, 1]} : vector<336x4xf32> to vector<320x4xf32>
    %c13_i32 = arith.constant 13 : i32
    %65 = vector.broadcast %c13_i32 : i32 to vector<320x1xi32>
    %66 = arith.cmpi slt, %6, %65 : vector<320x1xi32>
    %cst_13 = arith.constant -1.000000e+30 : f32
    %67 = vector.shape_cast %66 : vector<320x1xi1> to vector<320x1xi1>
    %68 = vector.broadcast %67 : vector<320x1xi1> to vector<320x4xi1>
    %69 = vector.broadcast %cst_13 : f32 to vector<320x4xf32>
    %70 = arith.select %68, %64, %69 : vector<320x4xi1>, vector<320x4xf32>
    %71 = arith.maximumf %63, %70 : vector<320x4xf32>
    %72 = vector.extract_strided_slice %31 {offsets = [5, 0], sizes = [320, 4], strides = [1, 1]} : vector<336x4xf32> to vector<320x4xf32>
    %c3_i32 = arith.constant 3 : i32
    %73 = vector.broadcast %c3_i32 : i32 to vector<320x1xi32>
    %74 = arith.cmpi sge, %6, %73 : vector<320x1xi32>
    %cst_14 = arith.constant -1.000000e+30 : f32
    %75 = vector.shape_cast %74 : vector<320x1xi1> to vector<320x1xi1>
    %76 = vector.broadcast %75 : vector<320x1xi1> to vector<320x4xi1>
    %77 = vector.broadcast %cst_14 : f32 to vector<320x4xf32>
    %78 = arith.select %76, %72, %77 : vector<320x4xi1>, vector<320x4xf32>
    %79 = arith.maximumf %71, %78 : vector<320x4xf32>
    %80 = vector.extract_strided_slice %31 {offsets = [12, 0], sizes = [320, 4], strides = [1, 1]} : vector<336x4xf32> to vector<320x4xf32>
    %c12_i32 = arith.constant 12 : i32
    %81 = vector.broadcast %c12_i32 : i32 to vector<320x1xi32>
    %82 = arith.cmpi slt, %6, %81 : vector<320x1xi32>
    %cst_15 = arith.constant -1.000000e+30 : f32
    %83 = vector.shape_cast %82 : vector<320x1xi1> to vector<320x1xi1>
    %84 = vector.broadcast %83 : vector<320x1xi1> to vector<320x4xi1>
    %85 = vector.broadcast %cst_15 : f32 to vector<320x4xf32>
    %86 = arith.select %84, %80, %85 : vector<320x4xi1>, vector<320x4xf32>
    %87 = arith.maximumf %79, %86 : vector<320x4xf32>
    %88 = vector.extract_strided_slice %31 {offsets = [4, 0], sizes = [320, 4], strides = [1, 1]} : vector<336x4xf32> to vector<320x4xf32>
    %c4_i32 = arith.constant 4 : i32
    %89 = vector.broadcast %c4_i32 : i32 to vector<320x1xi32>
    %90 = arith.cmpi sge, %6, %89 : vector<320x1xi32>
    %cst_16 = arith.constant -1.000000e+30 : f32
    %91 = vector.shape_cast %90 : vector<320x1xi1> to vector<320x1xi1>
    %92 = vector.broadcast %91 : vector<320x1xi1> to vector<320x4xi1>
    %93 = vector.broadcast %cst_16 : f32 to vector<320x4xf32>
    %94 = arith.select %92, %88, %93 : vector<320x4xi1>, vector<320x4xf32>
    %95 = arith.maximumf %87, %94 : vector<320x4xf32>
    %96 = vector.extract_strided_slice %31 {offsets = [13, 0], sizes = [320, 4], strides = [1, 1]} : vector<336x4xf32> to vector<320x4xf32>
    %c11_i32 = arith.constant 11 : i32
    %97 = vector.broadcast %c11_i32 : i32 to vector<320x1xi32>
    %98 = arith.cmpi slt, %6, %97 : vector<320x1xi32>
    %cst_17 = arith.constant -1.000000e+30 : f32
    %99 = vector.shape_cast %98 : vector<320x1xi1> to vector<320x1xi1>
    %100 = vector.broadcast %99 : vector<320x1xi1> to vector<320x4xi1>
    %101 = vector.broadcast %cst_17 : f32 to vector<320x4xf32>
    %102 = arith.select %100, %96, %101 : vector<320x4xi1>, vector<320x4xf32>
    %103 = arith.maximumf %95, %102 : vector<320x4xf32>
    %104 = vector.extract_strided_slice %31 {offsets = [3, 0], sizes = [320, 4], strides = [1, 1]} : vector<336x4xf32> to vector<320x4xf32>
    %c5_i32 = arith.constant 5 : i32
    %105 = vector.broadcast %c5_i32 : i32 to vector<320x1xi32>
    %106 = arith.cmpi sge, %6, %105 : vector<320x1xi32>
    %cst_18 = arith.constant -1.000000e+30 : f32
    %107 = vector.shape_cast %106 : vector<320x1xi1> to vector<320x1xi1>
    %108 = vector.broadcast %107 : vector<320x1xi1> to vector<320x4xi1>
    %109 = vector.broadcast %cst_18 : f32 to vector<320x4xf32>
    %110 = arith.select %108, %104, %109 : vector<320x4xi1>, vector<320x4xf32>
    %111 = arith.maximumf %103, %110 : vector<320x4xf32>
    %112 = vector.extract_strided_slice %31 {offsets = [14, 0], sizes = [320, 4], strides = [1, 1]} : vector<336x4xf32> to vector<320x4xf32>
    %c10_i32 = arith.constant 10 : i32
    %113 = vector.broadcast %c10_i32 : i32 to vector<320x1xi32>
    %114 = arith.cmpi slt, %6, %113 : vector<320x1xi32>
    %cst_19 = arith.constant -1.000000e+30 : f32
    %115 = vector.shape_cast %114 : vector<320x1xi1> to vector<320x1xi1>
    %116 = vector.broadcast %115 : vector<320x1xi1> to vector<320x4xi1>
    %117 = vector.broadcast %cst_19 : f32 to vector<320x4xf32>
    %118 = arith.select %116, %112, %117 : vector<320x4xi1>, vector<320x4xf32>
    %119 = arith.maximumf %111, %118 : vector<320x4xf32>
    %120 = vector.extract_strided_slice %31 {offsets = [2, 0], sizes = [320, 4], strides = [1, 1]} : vector<336x4xf32> to vector<320x4xf32>
    %c6_i32 = arith.constant 6 : i32
    %121 = vector.broadcast %c6_i32 : i32 to vector<320x1xi32>
    %122 = arith.cmpi sge, %6, %121 : vector<320x1xi32>
    %cst_20 = arith.constant -1.000000e+30 : f32
    %123 = vector.shape_cast %122 : vector<320x1xi1> to vector<320x1xi1>
    %124 = vector.broadcast %123 : vector<320x1xi1> to vector<320x4xi1>
    %125 = vector.broadcast %cst_20 : f32 to vector<320x4xf32>
    %126 = arith.select %124, %120, %125 : vector<320x4xi1>, vector<320x4xf32>
    %127 = arith.maximumf %119, %126 : vector<320x4xf32>
    %128 = vector.extract_strided_slice %17 {offsets = [96, 0], sizes = [128, 4], strides = [1, 1]} : vector<320x4xf32> to vector<128x4xf32>
    %129 = vector.extract_strided_slice %63 {offsets = [96, 0], sizes = [128, 4], strides = [1, 1]} : vector<320x4xf32> to vector<128x4xf32>
    %130 = vector.extract_strided_slice %63 {offsets = [64, 0], sizes = [128, 4], strides = [1, 1]} : vector<320x4xf32> to vector<128x4xf32>
    %131 = arith.maximumf %129, %130 : vector<128x4xf32>
    %132 = vector.extract_strided_slice %63 {offsets = [80, 0], sizes = [128, 4], strides = [1, 1]} : vector<320x4xf32> to vector<128x4xf32>
    %133 = arith.maximumf %131, %132 : vector<128x4xf32>
    %134 = vector.extract_strided_slice %63 {offsets = [112, 0], sizes = [128, 4], strides = [1, 1]} : vector<320x4xf32> to vector<128x4xf32>
    %135 = arith.maximumf %133, %134 : vector<128x4xf32>
    %136 = vector.extract_strided_slice %63 {offsets = [128, 0], sizes = [128, 4], strides = [1, 1]} : vector<320x4xf32> to vector<128x4xf32>
    %137 = arith.maximumf %135, %136 : vector<128x4xf32>
    %138 = vector.extract_strided_slice %95 {offsets = [96, 0], sizes = [128, 4], strides = [1, 1]} : vector<320x4xf32> to vector<128x4xf32>
    %139 = vector.extract_strided_slice %95 {offsets = [32, 0], sizes = [128, 4], strides = [1, 1]} : vector<320x4xf32> to vector<128x4xf32>
    %140 = arith.maximumf %138, %139 : vector<128x4xf32>
    %141 = vector.extract_strided_slice %95 {offsets = [48, 0], sizes = [128, 4], strides = [1, 1]} : vector<320x4xf32> to vector<128x4xf32>
    %142 = arith.maximumf %140, %141 : vector<128x4xf32>
    %143 = vector.extract_strided_slice %95 {offsets = [64, 0], sizes = [128, 4], strides = [1, 1]} : vector<320x4xf32> to vector<128x4xf32>
    %144 = arith.maximumf %142, %143 : vector<128x4xf32>
    %145 = vector.extract_strided_slice %95 {offsets = [80, 0], sizes = [128, 4], strides = [1, 1]} : vector<320x4xf32> to vector<128x4xf32>
    %146 = arith.maximumf %144, %145 : vector<128x4xf32>
    %147 = vector.extract_strided_slice %95 {offsets = [112, 0], sizes = [128, 4], strides = [1, 1]} : vector<320x4xf32> to vector<128x4xf32>
    %148 = arith.maximumf %146, %147 : vector<128x4xf32>
    %149 = vector.extract_strided_slice %95 {offsets = [128, 0], sizes = [128, 4], strides = [1, 1]} : vector<320x4xf32> to vector<128x4xf32>
    %150 = arith.maximumf %148, %149 : vector<128x4xf32>
    %151 = vector.extract_strided_slice %95 {offsets = [144, 0], sizes = [128, 4], strides = [1, 1]} : vector<320x4xf32> to vector<128x4xf32>
    %152 = arith.maximumf %150, %151 : vector<128x4xf32>
    %153 = vector.extract_strided_slice %95 {offsets = [160, 0], sizes = [128, 4], strides = [1, 1]} : vector<320x4xf32> to vector<128x4xf32>
    %154 = arith.maximumf %152, %153 : vector<128x4xf32>
    %155 = vector.extract_strided_slice %127 {offsets = [96, 0], sizes = [128, 4], strides = [1, 1]} : vector<320x4xf32> to vector<128x4xf32>
    %156 = vector.extract_strided_slice %127 {offsets = [0, 0], sizes = [128, 4], strides = [1, 1]} : vector<320x4xf32> to vector<128x4xf32>
    %157 = arith.maximumf %155, %156 : vector<128x4xf32>
    %158 = vector.extract_strided_slice %127 {offsets = [16, 0], sizes = [128, 4], strides = [1, 1]} : vector<320x4xf32> to vector<128x4xf32>
    %159 = arith.maximumf %157, %158 : vector<128x4xf32>
    %160 = vector.extract_strided_slice %127 {offsets = [32, 0], sizes = [128, 4], strides = [1, 1]} : vector<320x4xf32> to vector<128x4xf32>
    %161 = arith.maximumf %159, %160 : vector<128x4xf32>
    %162 = vector.extract_strided_slice %127 {offsets = [48, 0], sizes = [128, 4], strides = [1, 1]} : vector<320x4xf32> to vector<128x4xf32>
    %163 = arith.maximumf %161, %162 : vector<128x4xf32>
    %164 = vector.extract_strided_slice %127 {offsets = [64, 0], sizes = [128, 4], strides = [1, 1]} : vector<320x4xf32> to vector<128x4xf32>
    %165 = arith.maximumf %163, %164 : vector<128x4xf32>
    %166 = vector.extract_strided_slice %127 {offsets = [80, 0], sizes = [128, 4], strides = [1, 1]} : vector<320x4xf32> to vector<128x4xf32>
    %167 = arith.maximumf %165, %166 : vector<128x4xf32>
    %168 = vector.extract_strided_slice %127 {offsets = [112, 0], sizes = [128, 4], strides = [1, 1]} : vector<320x4xf32> to vector<128x4xf32>
    %169 = arith.maximumf %167, %168 : vector<128x4xf32>
    %170 = vector.extract_strided_slice %127 {offsets = [128, 0], sizes = [128, 4], strides = [1, 1]} : vector<320x4xf32> to vector<128x4xf32>
    %171 = arith.maximumf %169, %170 : vector<128x4xf32>
    %172 = vector.extract_strided_slice %127 {offsets = [144, 0], sizes = [128, 4], strides = [1, 1]} : vector<320x4xf32> to vector<128x4xf32>
    %173 = arith.maximumf %171, %172 : vector<128x4xf32>
    %174 = vector.extract_strided_slice %127 {offsets = [160, 0], sizes = [128, 4], strides = [1, 1]} : vector<320x4xf32> to vector<128x4xf32>
    %175 = arith.maximumf %173, %174 : vector<128x4xf32>
    %176 = vector.extract_strided_slice %127 {offsets = [176, 0], sizes = [128, 4], strides = [1, 1]} : vector<320x4xf32> to vector<128x4xf32>
    %177 = arith.maximumf %175, %176 : vector<128x4xf32>
    %178 = vector.extract_strided_slice %127 {offsets = [192, 0], sizes = [128, 4], strides = [1, 1]} : vector<320x4xf32> to vector<128x4xf32>
    %179 = arith.maximumf %177, %178 : vector<128x4xf32>
    %c0_21 = arith.constant 0 : index
    %c0_22 = arith.constant 0 : index
    %180 = vector.load %arg7[%c0_21, %c0_22] : memref<1x8xf32, #tpu.memory_space<vmem>>, vector<1x8xf32>
    %c0_23 = arith.constant 0 : index
    %c0_24 = arith.constant 0 : index
    %c0_25 = arith.constant 0 : index
    %181 = vector.load %arg6[%c0_23, %c0_24, %c0_25] : memref<4x4x8xf32, #tpu.memory_space<vmem>>, vector<1x4x8xf32>
    %182 = vector.shape_cast %181 : vector<1x4x8xf32> to vector<4x8xf32>
    %cst_26 = arith.constant dense<0.000000e+00> : vector<128x8xf32>
    %183 = tpu.matmul %128, %182, %cst_26 {dimension_numbers = #tpu.dot_dimension_numbers<[1], [0], [0], [1], [0, 0, 1, 1], [], []>} : vector<128x4xf32>, vector<4x8xf32>, vector<128x8xf32> -> vector<128x8xf32>
    %184 = vector.broadcast %180 : vector<1x8xf32> to vector<128x8xf32>
    %185 = arith.addf %184, %183 : vector<128x8xf32>
    %c1 = arith.constant 1 : index
    %c0_27 = arith.constant 0 : index
    %c0_28 = arith.constant 0 : index
    %186 = vector.load %arg6[%c1, %c0_27, %c0_28] : memref<4x4x8xf32, #tpu.memory_space<vmem>>, vector<1x4x8xf32>
    %187 = vector.shape_cast %186 : vector<1x4x8xf32> to vector<4x8xf32>
    %cst_29 = arith.constant dense<0.000000e+00> : vector<128x8xf32>
    %188 = tpu.matmul %137, %187, %cst_29 {dimension_numbers = #tpu.dot_dimension_numbers<[1], [0], [0], [1], [0, 0, 1, 1], [], []>} : vector<128x4xf32>, vector<4x8xf32>, vector<128x8xf32> -> vector<128x8xf32>
    %189 = arith.addf %185, %188 : vector<128x8xf32>
    %c2 = arith.constant 2 : index
    %c0_30 = arith.constant 0 : index
    %c0_31 = arith.constant 0 : index
    %190 = vector.load %arg6[%c2, %c0_30, %c0_31] : memref<4x4x8xf32, #tpu.memory_space<vmem>>, vector<1x4x8xf32>
    %191 = vector.shape_cast %190 : vector<1x4x8xf32> to vector<4x8xf32>
    %cst_32 = arith.constant dense<0.000000e+00> : vector<128x8xf32>
    %192 = tpu.matmul %154, %191, %cst_32 {dimension_numbers = #tpu.dot_dimension_numbers<[1], [0], [0], [1], [0, 0, 1, 1], [], []>} : vector<128x4xf32>, vector<4x8xf32>, vector<128x8xf32> -> vector<128x8xf32>
    %193 = arith.addf %189, %192 : vector<128x8xf32>
    %c3 = arith.constant 3 : index
    %c0_33 = arith.constant 0 : index
    %c0_34 = arith.constant 0 : index
    %194 = vector.load %arg6[%c3, %c0_33, %c0_34] : memref<4x4x8xf32, #tpu.memory_space<vmem>>, vector<1x4x8xf32>
    %195 = vector.shape_cast %194 : vector<1x4x8xf32> to vector<4x8xf32>
    %cst_35 = arith.constant dense<0.000000e+00> : vector<128x8xf32>
    %196 = tpu.matmul %179, %195, %cst_35 {dimension_numbers = #tpu.dot_dimension_numbers<[1], [0], [0], [1], [0, 0, 1, 1], [], []>} : vector<128x4xf32>, vector<4x8xf32>, vector<128x8xf32> -> vector<128x8xf32>
    %197 = arith.addf %193, %196 : vector<128x8xf32>
    %198 = arith.negf %197 : vector<128x8xf32>
    %199 = math.exp %198 : vector<128x8xf32>
    %cst_36 = arith.constant 1.000000e+00 : f32
    %200 = vector.broadcast %cst_36 : f32 to vector<128x8xf32>
    %201 = arith.addf %200, %199 : vector<128x8xf32>
    %202 = arith.divf %200, %201 : vector<128x8xf32>
    %203 = arith.mulf %197, %202 : vector<128x8xf32>
    %c0_37 = arith.constant 0 : index
    %c0_38 = arith.constant 0 : index
    %c0_39 = arith.constant 0 : index
    %204 = vector.load %arg8[%c0_37, %c0_38, %c0_39] : memref<1x128x8xf32, #tpu.memory_space<vmem>>, vector<1x128x8xf32>
    %205 = vector.shape_cast %204 : vector<1x128x8xf32> to vector<128x8xf32>
    %206 = vector.shape_cast %203 : vector<128x8xf32> to vector<1x128x8xf32>
    tpu.vector_store %arg8[%c0_37, %c0_38, %c0_39], %206 {strides = array<i32>} : memref<1x128x8xf32, #tpu.memory_space<vmem>>, vector<1x128x8xf32>,
    return
  }
  func.func @transform_0(%arg0: i32, %arg1: i32) -> (i32, i32, i32) {
    %c0_i32 = arith.constant 0 : i32
    %c0_i32_0 = arith.constant 0 : i32
    %c0_i32_1 = arith.constant 0 : i32
    return %arg0, %c0_i32, %c0_i32_0 : i32, i32, i32
  }
  func.func @transform_1(%arg0: i32, %arg1: i32) -> (i32, i32) {
    %c0_i32 = arith.constant 0 : i32
    %c0_i32_0 = arith.constant 0 : i32
    %c0_i32_1 = arith.constant 0 : i32
    return %c0_i32, %c0_i32_0 : i32, i32
  }
  func.func @transform_2(%arg0: i32, %arg1: i32) -> (i32, i32) {
    %c0_i32 = arith.constant 0 : i32
    %c0_i32_0 = arith.constant 0 : i32
    %c0_i32_1 = arith.constant 0 : i32
    return %c0_i32, %c0_i32_0 : i32, i32
  }
  func.func @transform_3(%arg0: i32, %arg1: i32) -> (i32, i32) {
    %c0_i32 = arith.constant 0 : i32
    %c0_i32_0 = arith.constant 0 : i32
    %c0_i32_1 = arith.constant 0 : i32
    return %c0_i32, %c0_i32_0 : i32, i32
  }
  func.func @transform_4(%arg0: i32, %arg1: i32) -> (i32, i32, i32) {
    %c0_i32 = arith.constant 0 : i32
    %c0_i32_0 = arith.constant 0 : i32
    %c0_i32_1 = arith.constant 0 : i32
    %c0_i32_2 = arith.constant 0 : i32
    return %c0_i32, %c0_i32_0, %c0_i32_1 : i32, i32, i32
  }
  func.func @transform_5(%arg0: i32, %arg1: i32) -> (i32, i32) {
    %c0_i32 = arith.constant 0 : i32
    %c0_i32_0 = arith.constant 0 : i32
    %c0_i32_1 = arith.constant 0 : i32
    return %c0_i32, %c0_i32_0 : i32, i32
  }
  func.func @transform_6(%arg0: i32, %arg1: i32) -> (i32, i32, i32) {
    %c0_i32 = arith.constant 0 : i32
    %c0_i32_0 = arith.constant 0 : i32
    return %arg0, %arg1, %c0_i32 : i32, i32, i32
  }
}

</mosaic_0001>

<llo_original>
// kernel: spp_forward.1
$region0: #{spp_forward.1}
  #allocation0 [shape = 'u32[]', space=smem, size = 0x4, offset = 0x4, fixed_abs, tag = 'smem constant byte address 0x4 - core index']
  #allocation1 [shape = 'u32[72,128]{1,0:T(1,128)}', space=vmem, size = 0x9000, scoped, tag = 'internal scratch']
  %s0 = inlined_call_operand.vmem [shape: f32[2,448,8], index: 0, kind: input, shape index: {}]
  %s1 = inlined_call_operand.vmem [shape: s32[448,1], index: 1, kind: input, shape index: {}]
  %s2 = inlined_call_operand.vmem [shape: f32[8,4], index: 2, kind: input, shape index: {}]
  %s3 = inlined_call_operand.vmem [shape: f32[1,4], index: 3, kind: input, shape index: {}]
  %s4 = inlined_call_operand.vmem [shape: f32[4,4,8], index: 4, kind: input, shape index: {}]
  %s5 = inlined_call_operand.vmem [shape: f32[1,8], index: 5, kind: input, shape index: {}]
  %s6 = inlined_call_operand.vmem [shape: f32[2,256,8], index: 6, kind: output, shape index: {}]
  %s7 = sld [smem:[#allocation0]]
  $region57: #{spp_forward.1} parent=0
    _
  %s9 = ssub.s32 1, %s7
  %s10 = scalar_select 0, %s9, %s7
  loop: start=0, step=1, limit=6
  $region2: #{spp_forward.1} parent=0 // loop_pre_header
    _
  $region3: #{spp_forward.1} parent=0 // loop_header
    %s12 = sphi 0, %s16
    %p13 = scmp.ge.s32.totalorder %s12, 6
    %s19 = sphi 0, %s31
    %s20 = sphi 0, %s27
    %s21 = sphi 0, %s19
    %s22 = sphi 0, %s20
    %s23 = sphi 0, %s21
    %s24 = sphi 0, %s22
    %s34 = sphi 0, %s36
    %s37 = sphi 0, %s34
    %s38 = sphi 0, %s37
    %s54 = sphi 0, %s38
    %s58 = sphi 0, %s58
    %s60 = sphi 0, %s58
    %s61 = sphi 0, %s60
    %s75 = sphi 0, %s61
    %s79 = sphi 0, %s79
    %s81 = sphi 0, %s79
    %s82 = sphi 0, %s81
    %s96 = sphi 0, %s82
    %s100 = sphi 0, %s100
    %s102 = sphi 0, %s100
    %s103 = sphi 0, %s102
    %s117 = sphi 0, %s103
    %s121 = sphi 0, %s121
    %s123 = sphi 0, %s121
    %s124 = sphi 0, %s123
    %s138 = sphi 0, %s124
    %s142 = sphi 0, %s142
    %s144 = sphi 0, %s142
    %s145 = sphi 0, %s144
    %s159 = sphi 0, %s145
    %s167 = sphi 0, %s169
    %s170 = sphi 0, %s167
    %s171 = sphi 0, %s170
    %s187 = sphi 0, %s171
  $region4: #{spp_forward.1} parent=0 // loop_header_branch
    %15 = sbr.rel (%p13) target = $region8
  $region5: #{spp_forward.1} parent=0 // loop_body
    %s17 = ssub.s32 %s12, 1
    %s18 = ssub.s32 %s12, 2
    %s25 = sadd.s32 1, %s20
    %p26 = scmp.ge.s32.totalorder %s25, 2
    %s27 = scalar_select %p26, 0, %s25
    %s28 = sadd.s32 1, %s19
    %s29 = scalar_select %p26, %s28, %s19
    %p30 = scmp.ge.s32.totalorder %s29, 2
    %s31 = scalar_select %p30, 0, %s29
    %s32 = ssub.s32 %s19, %s31
    %p33 = scmp.eq.s32.totalorder %s32, 0
    %s35 = sadd.s32 %s34, 1
    %s36 = scalar_select %p33, %s34, %s35
    %p39 = pneg %p33
    %p40 = scmp.eq.s32.totalorder %s12, 3
    %p41 = por %p39, %p40
    %p42 = scmp.ne.s32.totalorder %s34, %s37
    %p43 = scmp.eq.s32.totalorder %s12, 0
    %p44 = por %p42, %p43
    %p45 = scmp.ne.s32.totalorder %s34, %s37
    %p46 = scmp.eq.s32.totalorder %s17, 3
    %p47 = por %p45, %p46
    %p48 = scmp.ne.s32.totalorder %s37, %s38
    %p49 = scmp.eq.s32.totalorder %s17, 0
    %p50 = por %p48, %p49
    %p51 = scmp.ne.s32.totalorder %s37, %s38
    %p52 = scmp.eq.s32.totalorder %s18, 3
    %p53 = por %p51, %p52
    %p55 = scmp.ne.s32.totalorder %s38, %s54
    %p56 = scmp.eq.s32.totalorder %s18, 0
    %p57 = por %p55, %p56
    %s59 = sadd.s32 %s58, 1
    %p62 = scmp.eq.s32.totalorder %s12, 3
    %p63 = scmp.ne.s32.totalorder %s58, %s60
    %p64 = scmp.eq.s32.totalorder %s12, 0
    %p65 = por %p63, %p64
    %p66 = scmp.ne.s32.totalorder %s58, %s60
    %p67 = scmp.eq.s32.totalorder %s17, 3
    %p68 = por %p66, %p67
    %p69 = scmp.ne.s32.totalorder %s60, %s61
    %p70 = scmp.eq.s32.totalorder %s17, 0
    %p71 = por %p69, %p70
    %p72 = scmp.ne.s32.totalorder %s60, %s61
    %p73 = scmp.eq.s32.totalorder %s18, 3
    %p74 = por %p72, %p73
    %p76 = scmp.ne.s32.totalorder %s61, %s75
    %p77 = scmp.eq.s32.totalorder %s18, 0
    %p78 = por %p76, %p77
    %s80 = sadd.s32 %s79, 1
    %p83 = scmp.eq.s32.totalorder %s12, 3
    %p84 = scmp.ne.s32.totalorder %s79, %s81
    %p85 = scmp.eq.s32.totalorder %s12, 0
    %p86 = por %p84, %p85
    %p87 = scmp.ne.s32.totalorder %s79, %s81
    %p88 = scmp.eq.s32.totalorder %s17, 3
    %p89 = por %p87, %p88
    %p90 = scmp.ne.s32.totalorder %s81, %s82
    %p91 = scmp.eq.s32.totalorder %s17, 0
    %p92 = por %p90, %p91
    %p93 = scmp.ne.s32.totalorder %s81, %s82
    %p94 = scmp.eq.s32.totalorder %s18, 3
    %p95 = por %p93, %p94
    %p97 = scmp.ne.s32.totalorder %s82, %s96
    %p98 = scmp.eq.s32.totalorder %s18, 0
    %p99 = por %p97, %p98
    %s101 = sadd.s32 %s100, 1
    %p104 = scmp.eq.s32.totalorder %s12, 3
    %p105 = scmp.ne.s32.totalorder %s100, %s102
    %p106 = scmp.eq.s32.totalorder %s12, 0
    %p107 = por %p105, %p106
    %p108 = scmp.ne.s32.totalorder %s100, %s102
    %p109 = scmp.eq.s32.totalorder %s17, 3
    %p110 = por %p108, %p109
    %p111 = scmp.ne.s32.totalorder %s102, %s103
    %p112 = scmp.eq.s32.totalorder %s17, 0
    %p113 = por %p111, %p112
    %p114 = scmp.ne.s32.totalorder %s102, %s103
    %p115 = scmp.eq.s32.totalorder %s18, 3
    %p116 = por %p114, %p115
    %p118 = scmp.ne.s32.totalorder %s103, %s117
    %p119 = scmp.eq.s32.totalorder %s18, 0
    %p120 = por %p118, %p119
    %s122 = sadd.s32 %s121, 1
    %p125 = scmp.eq.s32.totalorder %s12, 3
    %p126 = scmp.ne.s32.totalorder %s121, %s123
    %p127 = scmp.eq.s32.totalorder %s12, 0
    %p128 = por %p126, %p127
    %p129 = scmp.ne.s32.totalorder %s121, %s123
    %p130 = scmp.eq.s32.totalorder %s17, 3
    %p131 = por %p129, %p130
    %p132 = scmp.ne.s32.totalorder %s123, %s124
    %p133 = scmp.eq.s32.totalorder %s17, 0
    %p134 = por %p132, %p133
    %p135 = scmp.ne.s32.totalorder %s123, %s124
    %p136 = scmp.eq.s32.totalorder %s18, 3
    %p137 = por %p135, %p136
    %p139 = scmp.ne.s32.totalorder %s124, %s138
    %p140 = scmp.eq.s32.totalorder %s18, 0
    %p141 = por %p139, %p140
    %s143 = sadd.s32 %s142, 1
    %p146 = scmp.eq.s32.totalorder %s12, 3
    %p147 = scmp.ne.s32.totalorder %s142, %s144
    %p148 = scmp.eq.s32.totalorder %s12, 0
    %p149 = por %p147, %p148
    %p150 = scmp.ne.s32.totalorder %s142, %s144
    %p151 = scmp.eq.s32.totalorder %s17, 3
    %p152 = por %p150, %p151
    %p153 = scmp.ne.s32.totalorder %s144, %s145
    %p154 = scmp.eq.s32.totalorder %s17, 0
    %p155 = por %p153, %p154
    %p156 = scmp.ne.s32.totalorder %s144, %s145
    %p157 = scmp.eq.s32.totalorder %s18, 3
    %p158 = por %p156, %p157
    %p160 = scmp.ne.s32.totalorder %s145, %s159
    %p161 = scmp.eq.s32.totalorder %s18, 0
    %p162 = por %p160, %p161
    %s163 = ssub.s32 %s19, %s31
    %s164 = ssub.s32 %s20, %s27
    %s165 = sor.u32 %s163, %s164
    %p166 = scmp.eq.s32.totalorder %s165, 0
    %s168 = sadd.s32 %s167, 1
    %s169 = scalar_select %p166, %s167, %s168
    %p172 = pneg %p166
    %p173 = scmp.eq.s32.totalorder %s12, 3
    %p174 = por %p172, %p173
    %p175 = scmp.ne.s32.totalorder %s167, %s170
    %p176 = scmp.eq.s32.totalorder %s12, 0
    %p177 = por %p175, %p176
    %p178 = scmp.ne.s32.totalorder %s167, %s170
    %p179 = scmp.eq.s32.totalorder %s17, 3
    %p180 = por %p178, %p179
    %p181 = scmp.ne.s32.totalorder %s170, %s171
    %p182 = scmp.eq.s32.totalorder %s17, 0
    %p183 = por %p181, %p182
    %p184 = scmp.ne.s32.totalorder %s170, %s171
    %p185 = scmp.eq.s32.totalorder %s18, 3
    %p186 = por %p184, %p185
    %p188 = scmp.ne.s32.totalorder %s171, %s187
    %p189 = scmp.eq.s32.totalorder %s18, 0
    %p190 = por %p188, %p189
    %p191 = scmp.le.s32.totalorder 1, %s12
    %p192 = scmp.lt.s32.totalorder %s12, 5
    %p193 = pnand %p191, %p192
    %p194 = pneg %p193
    // Predicated region
    $region9: #{spp_forward.1} parent=5 // pred_check
      _
    $region10: #{spp_forward.1} parent=5 // pred_check_branch
      %196 = sbr.rel (%p193) target = $region12
    $region11: #{spp_forward.1} parent=5 // pred_region
      %s197 = ssub.s32 %s12, 1
      // Predicated region
      $region13: #{spp_forward.1} parent=11 // pred_check
        %p198 = pneg %p71
      $region14: #{spp_forward.1} parent=11 // pred_check_branch
        %200 = sbr.rel (%p198) target = $region16
      $region15: #{spp_forward.1} parent=11 // pred_region
        _
      $region16: #{spp_forward.1} parent=11 // pred_fallthru
        _
      // Predicated region
      $region17: #{spp_forward.1} parent=11 // pred_check
        %p201 = pneg %p92
      $region18: #{spp_forward.1} parent=11 // pred_check_branch
        %203 = sbr.rel (%p201) target = $region20
      $region19: #{spp_forward.1} parent=11 // pred_region
        _
      $region20: #{spp_forward.1} parent=11 // pred_fallthru
        _
      // Predicated region
      $region21: #{spp_forward.1} parent=11 // pred_check
        %p204 = pneg %p113
      $region22: #{spp_forward.1} parent=11 // pred_check_branch
        %206 = sbr.rel (%p204) target = $region24
      $region23: #{spp_forward.1} parent=11 // pred_region
        _
      $region24: #{spp_forward.1} parent=11 // pred_fallthru
        _
      // Predicated region
      $region25: #{spp_forward.1} parent=11 // pred_check
        %p207 = pneg %p134
      $region26: #{spp_forward.1} parent=11 // pred_check_branch
        %209 = sbr.rel (%p207) target = $region28
      $region27: #{spp_forward.1} parent=11 // pred_region
        _
      $region28: #{spp_forward.1} parent=11 // pred_fallthru
        _
      // Predicated region
      $region29: #{spp_forward.1} parent=11 // pred_check
        %p210 = pneg %p155
      $region30: #{spp_forward.1} parent=11 // pred_check_branch
        %212 = sbr.rel (%p210) target = $region32
      $region31: #{spp_forward.1} parent=11 // pred_region
        _
      $region32: #{spp_forward.1} parent=11 // pred_fallthru
        _
    $region12: #{spp_forward.1} parent=5 // pred_fallthru
      _
    %p213 = scmp.lt.s32.totalorder %s12, 4
    // Predicated region
    $region33: #{spp_forward.1} parent=5 // pred_check
      %p214 = pneg %p213
    $region34: #{spp_forward.1} parent=5 // pred_check_branch
      %216 = sbr.rel (%p214) target = $region36
    $region35: #{spp_forward.1} parent=5 // pred_region
      // Predicated region
      $region37: #{spp_forward.1} parent=35 // pred_check
        %p217 = pneg %p44
      $region38: #{spp_forward.1} parent=35 // pred_check_branch
        %219 = sbr.rel (%p217) target = $region40
      $region39: #{spp_forward.1} parent=35 // pred_region
        %p220 = scmp.lt.s32.totalorder %s19, 1
        %s221 = scalar_select %p220, %s19, 1
        %s222 = smul.addr %s221, 56
        %s223 = smul.addr %s222, 8
        %s224 = scalar_lea.vmem %s0, %s223
      $region40: #{spp_forward.1} parent=35 // pred_fallthru
        _
    $region36: #{spp_forward.1} parent=5 // pred_fallthru
      _
    %p225 = scmp.le.s32.totalorder 1, %s12
    %p226 = scmp.lt.s32.totalorder %s12, 5
    %p227 = pnand %p225, %p226
    %p228 = pneg %p227
    // Predicated region
    $region41: #{spp_forward.1} parent=5 // pred_check
      _
    $region42: #{spp_forward.1} parent=5 // pred_check_branch
      %230 = sbr.rel (%p227) target = $region44
    $region43: #{spp_forward.1} parent=5 // pred_region
      %s231 = ssub.s32 %s12, 1
      %p232 = scmp.lt.s32.totalorder %s21, 1
      %s233 = scalar_select %p232, %s21, 1
      %s234 = smul.addr %s233, 56
      %s235 = smul.addr %s234, 8
      %s236 = scalar_lea.vmem %s0, %s235
      %p237 = pneg %p50
      %p238 = pneg %p47
      %p239 = pneg %p71
      %p240 = pneg %p68
      %p241 = pneg %p92
      %p242 = pneg %p89
      %p243 = pneg %p113
      %p244 = pneg %p110
      %p245 = pneg %p134
      %p246 = pneg %p131
      %p247 = pneg %p155
      %p248 = pneg %p152
      %p249 = pneg %p183
      %p250 = pneg %p180
      %s251 = smul.u32 16, %s22
      %p252 = scmp.lt.s32.totalorder %s21, 1
      %s253 = scalar_select %p252, %s21, 1
      %p254 = scmp.lt.s32.totalorder %s251, 31
      %s255 = scalar_select %p254, %s251, 31
      %s256 = smul.addr %s253, 32
      %s257 = sadd.s32 %s255, %s256
      %s258 = smul.addr %s257, 8
      %s259 = scalar_lea.vmem %s6, %s258
      %p260 = scmp.lt.s32.totalorder %s21, 1
      %s261 = scalar_select %p260, %s21, 1
      %s262 = smul.addr %s261, 56
      %s263 = smul.addr %s262, 8
      %s264 = scalar_lea.vmem %s0, %s263
      %s265 = smul.u32 16, %s22
      %p266 = scmp.lt.s32.totalorder %s21, 1
      %s267 = scalar_select %p266, %s21, 1
      %p268 = scmp.lt.s32.totalorder %s265, 31
      %s269 = scalar_select %p268, %s265, 31
      %s270 = smul.addr %s267, 32
      %s271 = sadd.s32 %s269, %s270
      %s272 = smul.addr %s271, 8
      %s273 = scalar_lea.vmem %s6, %s272
      %s274 = smul.u32 16, %s22
      %s275 = smul.u32 %s22, 128
      %s276 = scalar_lea.vmem %s264, %s275
      %v277 = vld [vmem:[%s276] sm:$0xff]
      %v278 = vld [vmem:[%s276 + $0x8] sm:$0xff]
      %v279 = vld [vmem:[%s276 + $0x10] sm:$0xff]
      %v280 = vld [vmem:[%s276 + $0x18] sm:$0xff]
      %v281 = vld [vmem:[%s276 + $0x20] sm:$0xff]
      %v282 = vld [vmem:[%s276 + $0x28] sm:$0xff]
      %v283 = vld [vmem:[%s276 + $0x30] sm:$0xff]
      %v284 = vld [vmem:[%s276 + $0x38] sm:$0xff]
      %v285 = vld [vmem:[%s276 + $0x40] sm:$0xff]
      %v286 = vld [vmem:[%s276 + $0x48] sm:$0xff]
      %v287 = vld [vmem:[%s276 + $0x50] sm:$0xff]
      %v288 = vld [vmem:[%s276 + $0x58] sm:$0xff]
      %v289 = vld [vmem:[%s276 + $0x60] sm:$0xff]
      %v290 = vld [vmem:[%s276 + $0x68] sm:$0xff]
      %v291 = vld [vmem:[%s276 + $0x70] sm:$0xff]
      %v292 = vld [vmem:[%s276 + $0x78] sm:$0xff]
      %v293 = vld [vmem:[%s276 + $0x80] sm:$0xff]
      %v294 = vld [vmem:[%s276 + $0x88] sm:$0xff]
      %v295 = vld [vmem:[%s276 + $0x90] sm:$0xff]
      %v296 = vld [vmem:[%s276 + $0x98] sm:$0xff]
      %v297 = vld [vmem:[%s276 + $0xa0] sm:$0xff]
      %v298 = vld [vmem:[%s276 + $0xa8] sm:$0xff]
      %v299 = vld [vmem:[%s276 + $0xb0] sm:$0xff]
      %v300 = vld [vmem:[%s276 + $0xb8] sm:$0xff]
      %v301 = vld [vmem:[%s276 + $0xc0] sm:$0xff]
      %v302 = vld [vmem:[%s276 + $0xc8] sm:$0xff]
      %v303 = vld [vmem:[%s276 + $0xd0] sm:$0xff]
      %v304 = vld [vmem:[%s276 + $0xd8] sm:$0xff]
      %v305 = vld [vmem:[%s276 + $0xe0] sm:$0xff]
      %v306 = vld [vmem:[%s276 + $0xe8] sm:$0xff]
      %v307 = vld [vmem:[%s276 + $0xf0] sm:$0xff]
      %v308 = vld [vmem:[%s276 + $0xf8] sm:$0xff]
      %v309 = vld [vmem:[%s276 + $0x100] sm:$0xff]
      %v310 = vld [vmem:[%s276 + $0x108] sm:$0xff]
      %v311 = vld [vmem:[%s276 + $0x110] sm:$0xff]
      %v312 = vld [vmem:[%s276 + $0x118] sm:$0xff]
      %v313 = vld [vmem:[%s276 + $0x120] sm:$0xff]
      %v314 = vld [vmem:[%s276 + $0x128] sm:$0xff]
      %v315 = vld [vmem:[%s276 + $0x130] sm:$0xff]
      %v316 = vld [vmem:[%s276 + $0x138] sm:$0xff]
      %s317 = scalar_lea.vmem %s1, %s275
      %v318 = vld [vmem:[%s317] sm:$0xff]
      %v319 = vld [vmem:[%s317 + $0x8] sm:$0xff]
      %v320 = vld [vmem:[%s317 + $0x10] sm:$0xff]
      %v321 = vld [vmem:[%s317 + $0x18] sm:$0xff]
      %v322 = vld [vmem:[%s317 + $0x20] sm:$0xff]
      %v323 = vld [vmem:[%s317 + $0x28] sm:$0xff]
      %v324 = vld [vmem:[%s317 + $0x30] sm:$0xff]
      %v325 = vld [vmem:[%s317 + $0x38] sm:$0xff]
      %v326 = vld [vmem:[%s317 + $0x40] sm:$0xff]
      %v327 = vld [vmem:[%s317 + $0x48] sm:$0xff]
      %v328 = vld [vmem:[%s317 + $0x50] sm:$0xff]
      %v329 = vld [vmem:[%s317 + $0x58] sm:$0xff]
      %v330 = vld [vmem:[%s317 + $0x60] sm:$0xff]
      %v331 = vld [vmem:[%s317 + $0x68] sm:$0xff]
      %v332 = vld [vmem:[%s317 + $0x70] sm:$0xff]
      %v333 = vld [vmem:[%s317 + $0x78] sm:$0xff]
      %v334 = vld [vmem:[%s317 + $0x80] sm:$0xff]
      %v335 = vld [vmem:[%s317 + $0x88] sm:$0xff]
      %v336 = vld [vmem:[%s317 + $0x90] sm:$0xff]
      %v337 = vld [vmem:[%s317 + $0x98] sm:$0xff]
      %v338 = vld [vmem:[%s317 + $0xa0] sm:$0xff]
      %v339 = vld [vmem:[%s317 + $0xa8] sm:$0xff]
      %v340 = vld [vmem:[%s317 + $0xb0] sm:$0xff]
      %v341 = vld [vmem:[%s317 + $0xb8] sm:$0xff]
      %v342 = vld [vmem:[%s317 + $0xc0] sm:$0xff]
      %v343 = vld [vmem:[%s317 + $0xc8] sm:$0xff]
      %v344 = vld [vmem:[%s317 + $0xd0] sm:$0xff]
      %v345 = vld [vmem:[%s317 + $0xd8] sm:$0xff]
      %v346 = vld [vmem:[%s317 + $0xe0] sm:$0xff]
      %v347 = vld [vmem:[%s317 + $0xe8] sm:$0xff]
      %v348 = vld [vmem:[%s317 + $0xf0] sm:$0xff]
      %v349 = vld [vmem:[%s317 + $0xf8] sm:$0xff]
      %v350 = vld [vmem:[%s317 + $0x100] sm:$0xff]
      %v351 = vld [vmem:[%s317 + $0x108] sm:$0xff]
      %v352 = vld [vmem:[%s317 + $0x110] sm:$0xff]
      %v353 = vld [vmem:[%s317 + $0x118] sm:$0xff]
      %v354 = vld [vmem:[%s317 + $0x120] sm:$0xff]
      %v355 = vld [vmem:[%s317 + $0x128] sm:$0xff]
      %v356 = vld [vmem:[%s317 + $0x130] sm:$0xff]
      %v357 = vld [vmem:[%s317 + $0x138] sm:$0xff]
      %v358 = vld [vmem:[%s2] sm:$0xff]
      %v359 = vld [vmem:[%s3] sm:$0x1]
      %v361 = vperm.slane %v359, 0
      %vm363 = vcmask 64512
      %v365 = vsel %vm363, %v277, 0
      %v368 = vsel %vm363, %v278, 0
      %v371 = vsel %vm363, %v279, 0
      %v374 = vsel %vm363, %v280, 0
      %v377 = vsel %vm363, %v281, 0
      %v380 = vsel %vm363, %v282, 0
      %v383 = vsel %vm363, %v283, 0
      %v386 = vsel %vm363, %v284, 0
      %v389 = vsel %vm363, %v285, 0
      %v392 = vsel %vm363, %v286, 0
      %v395 = vsel %vm363, %v287, 0
      %v398 = vsel %vm363, %v288, 0
      %v401 = vsel %vm363, %v289, 0
      %v404 = vsel %vm363, %v290, 0
      %v407 = vsel %vm363, %v291, 0
      %v410 = vsel %vm363, %v292, 0
      %v413 = vsel %vm363, %v293, 0
      %v416 = vsel %vm363, %v294, 0
      %v419 = vsel %vm363, %v295, 0
      %v422 = vsel %vm363, %v296, 0
      %v425 = vsel %vm363, %v297, 0
      %v428 = vsel %vm363, %v298, 0
      %v431 = vsel %vm363, %v299, 0
      %v434 = vsel %vm363, %v300, 0
      %v437 = vsel %vm363, %v301, 0
      %v440 = vsel %vm363, %v302, 0
      %v443 = vsel %vm363, %v303, 0
      %v446 = vsel %vm363, %v304, 0
      %v449 = vsel %vm363, %v305, 0
      %v452 = vsel %vm363, %v306, 0
      %v455 = vsel %vm363, %v307, 0
      %v458 = vsel %vm363, %v308, 0
      %v461 = vsel %vm363, %v309, 0
      %v464 = vsel %vm363, %v310, 0
      %v467 = vsel %vm363, %v311, 0
      %v470 = vsel %vm363, %v312, 0
      %v473 = vsel %vm363, %v313, 0
      %v476 = vsel %vm363, %v314, 0
      %v479 = vsel %vm363, %v315, 0
      %v482 = vsel %vm363, %v316, 0
      %484 = vmatpush.msra.mxu0 0.0
      %485 = vmatpush.msra.mxu0 0.0
      %486 = vmatpush.msra.mxu0 0.0
      %487 = vmatpush.msra.mxu0 0.0
      %488 = vmatpush.msra.mxu0 0.0
      %489 = vmatpush.msra.mxu0 0.0
      %490 = vmatpush.msra.mxu0 0.0
      %491 = vmatpush.msra.mxu0 0.0
      %492 = vmatpush.msra.mxu0 0.0
      %493 = vmatpush.msra.mxu0 0.0
      %494 = vmatpush.msra.mxu0 0.0
      %495 = vmatpush.msra.mxu0 0.0
      %496 = vmatpush.msra.mxu0 0.0
      %497 = vmatpush.msra.mxu0 0.0
      %498 = vmatpush.msra.mxu0 0.0
      %499 = vmatpush.msra.mxu0 %v358
      %500 = vmatmul.f32.gmra.mxu0 %v365
      %v501 = vpop.f32.mrf.mxu0
      %v502 = vadd.f32 %v361, %v501
      %503 = vmatmul.f32.gmra.mxu0 %v368
      %v504 = vpop.f32.mrf.mxu0
      %v505 = vadd.f32 %v361, %v504
      %506 = vmatmul.f32.gmra.mxu0 %v371
      %v507 = vpop.f32.mrf.mxu0
      %v508 = vadd.f32 %v361, %v507
      %509 = vmatmul.f32.gmra.mxu0 %v374
      %v510 = vpop.f32.mrf.mxu0
      %v511 = vadd.f32 %v361, %v510
      %512 = vmatmul.f32.gmra.mxu0 %v377
      %v513 = vpop.f32.mrf.mxu0
      %v514 = vadd.f32 %v361, %v513
      %515 = vmatmul.f32.gmra.mxu0 %v380
      %v516 = vpop.f32.mrf.mxu0
      %v517 = vadd.f32 %v361, %v516
      %518 = vmatmul.f32.gmra.mxu0 %v383
      %v519 = vpop.f32.mrf.mxu0
      %v520 = vadd.f32 %v361, %v519
      %521 = vmatmul.f32.gmra.mxu0 %v386
      %v522 = vpop.f32.mrf.mxu0
      %v523 = vadd.f32 %v361, %v522
      %524 = vmatmul.f32.gmra.mxu0 %v389
      %v525 = vpop.f32.mrf.mxu0
      %v526 = vadd.f32 %v361, %v525
      %527 = vmatmul.f32.gmra.mxu0 %v392
      %v528 = vpop.f32.mrf.mxu0
      %v529 = vadd.f32 %v361, %v528
      %530 = vmatmul.f32.gmra.mxu0 %v395
      %v531 = vpop.f32.mrf.mxu0
      %v532 = vadd.f32 %v361, %v531
      %533 = vmatmul.f32.gmra.mxu0 %v398
      %v534 = vpop.f32.mrf.mxu0
      %v535 = vadd.f32 %v361, %v534
      %536 = vmatmul.f32.gmra.mxu0 %v401
      %v537 = vpop.f32.mrf.mxu0
      %v538 = vadd.f32 %v361, %v537
      %539 = vmatmul.f32.gmra.mxu0 %v404
      %v540 = vpop.f32.mrf.mxu0
      %v541 = vadd.f32 %v361, %v540
      %542 = vmatmul.f32.gmra.mxu0 %v407
      %v543 = vpop.f32.mrf.mxu0
      %v544 = vadd.f32 %v361, %v543
      %545 = vmatmul.f32.gmra.mxu0 %v410
      %v546 = vpop.f32.mrf.mxu0
      %v547 = vadd.f32 %v361, %v546
      %548 = vmatmul.f32.gmra.mxu0 %v413
      %v549 = vpop.f32.mrf.mxu0
      %v550 = vadd.f32 %v361, %v549
      %551 = vmatmul.f32.gmra.mxu0 %v416
      %v552 = vpop.f32.mrf.mxu0
      %v553 = vadd.f32 %v361, %v552
      %554 = vmatmul.f32.gmra.mxu0 %v419
      %v555 = vpop.f32.mrf.mxu0
      %v556 = vadd.f32 %v361, %v555
      %557 = vmatmul.f32.gmra.mxu0 %v422
      %v558 = vpop.f32.mrf.mxu0
      %v559 = vadd.f32 %v361, %v558
      %560 = vmatmul.f32.gmra.mxu0 %v425
      %v561 = vpop.f32.mrf.mxu0
      %v562 = vadd.f32 %v361, %v561
      %563 = vmatmul.f32.gmra.mxu0 %v428
      %v564 = vpop.f32.mrf.mxu0
      %v565 = vadd.f32 %v361, %v564
      %566 = vmatmul.f32.gmra.mxu0 %v431
      %v567 = vpop.f32.mrf.mxu0
      %v568 = vadd.f32 %v361, %v567
      %569 = vmatmul.f32.gmra.mxu0 %v434
      %v570 = vpop.f32.mrf.mxu0
      %v571 = vadd.f32 %v361, %v570
      %572 = vmatmul.f32.gmra.mxu0 %v437
      %v573 = vpop.f32.mrf.mxu0
      %v574 = vadd.f32 %v361, %v573
      %575 = vmatmul.f32.gmra.mxu0 %v440
      %v576 = vpop.f32.mrf.mxu0
      %v577 = vadd.f32 %v361, %v576
      %578 = vmatmul.f32.gmra.mxu0 %v443
      %v579 = vpop.f32.mrf.mxu0
      %v580 = vadd.f32 %v361, %v579
      %581 = vmatmul.f32.gmra.mxu0 %v446
      %v582 = vpop.f32.mrf.mxu0
      %v583 = vadd.f32 %v361, %v582
      %584 = vmatmul.f32.gmra.mxu0 %v449
      %v585 = vpop.f32.mrf.mxu0
      %v586 = vadd.f32 %v361, %v585
      %587 = vmatmul.f32.gmra.mxu0 %v452
      %v588 = vpop.f32.mrf.mxu0
      %v589 = vadd.f32 %v361, %v588
      %590 = vmatmul.f32.gmra.mxu0 %v455
      %v591 = vpop.f32.mrf.mxu0
      %v592 = vadd.f32 %v361, %v591
      %593 = vmatmul.f32.gmra.mxu0 %v458
      %v594 = vpop.f32.mrf.mxu0
      %v595 = vadd.f32 %v361, %v594
      %596 = vmatmul.f32.gmra.mxu0 %v461
      %v597 = vpop.f32.mrf.mxu0
      %v598 = vadd.f32 %v361, %v597
      %599 = vmatmul.f32.gmra.mxu0 %v464
      %v600 = vpop.f32.mrf.mxu0
      %v601 = vadd.f32 %v361, %v600
      %602 = vmatmul.f32.gmra.mxu0 %v467
      %v603 = vpop.f32.mrf.mxu0
      %v604 = vadd.f32 %v361, %v603
      %605 = vmatmul.f32.gmra.mxu0 %v470
      %v606 = vpop.f32.mrf.mxu0
      %v607 = vadd.f32 %v361, %v606
      %608 = vmatmul.f32.gmra.mxu0 %v473
      %v609 = vpop.f32.mrf.mxu0
      %v610 = vadd.f32 %v361, %v609
      %611 = vmatmul.f32.gmra.mxu0 %v476
      %v612 = vpop.f32.mrf.mxu0
      %v613 = vadd.f32 %v361, %v612
      %614 = vmatmul.f32.gmra.mxu0 %v479
      %v615 = vpop.f32.mrf.mxu0
      %v616 = vadd.f32 %v361, %v615
      %617 = vmatmul.f32.gmra.mxu0 %v482
      %v618 = vpop.f32.mrf.mxu0
      %v619 = vadd.f32 %v361, %v618
      %620 = vdwg.mxu0
      %v621 = vxor.u32 %v502, 2147483648
      %v622 = vxor.u32 %v505, 2147483648
      %v623 = vxor.u32 %v508, 2147483648
      %v624 = vxor.u32 %v511, 2147483648
      %v625 = vxor.u32 %v514, 2147483648
      %v626 = vxor.u32 %v517, 2147483648
      %v627 = vxor.u32 %v520, 2147483648
      %v628 = vxor.u32 %v523, 2147483648
      %v629 = vxor.u32 %v526, 2147483648
      %v630 = vxor.u32 %v529, 2147483648
      %v631 = vxor.u32 %v532, 2147483648
      %v632 = vxor.u32 %v535, 2147483648
      %v633 = vxor.u32 %v538, 2147483648
      %v634 = vxor.u32 %v541, 2147483648
      %v635 = vxor.u32 %v544, 2147483648
      %v636 = vxor.u32 %v547, 2147483648
      %v637 = vxor.u32 %v550, 2147483648
      %v638 = vxor.u32 %v553, 2147483648
      %v639 = vxor.u32 %v556, 2147483648
      %v640 = vxor.u32 %v559, 2147483648
      %v641 = vxor.u32 %v562, 2147483648
      %v642 = vxor.u32 %v565, 2147483648
      %v643 = vxor.u32 %v568, 2147483648
      %v644 = vxor.u32 %v571, 2147483648
      %v645 = vxor.u32 %v574, 2147483648
      %v646 = vxor.u32 %v577, 2147483648
      %v647 = vxor.u32 %v580, 2147483648
      %v648 = vxor.u32 %v583, 2147483648
      %v649 = vxor.u32 %v586, 2147483648
      %v650 = vxor.u32 %v589, 2147483648
      %v651 = vxor.u32 %v592, 2147483648
      %v652 = vxor.u32 %v595, 2147483648
      %v653 = vxor.u32 %v598, 2147483648
      %v654 = vxor.u32 %v601, 2147483648
      %v655 = vxor.u32 %v604, 2147483648
      %v656 = vxor.u32 %v607, 2147483648
      %v657 = vxor.u32 %v610, 2147483648
      %v658 = vxor.u32 %v613, 2147483648
      %v659 = vxor.u32 %v616, 2147483648
      %v660 = vxor.u32 %v619, 2147483648
      %v661 = vmul.f32 %v621, 1.442695
      %v662 = vpow.pop %v661
      %v663 = vmul.f32 %v622, 1.442695
      %v664 = vpow.pop %v663
      %v665 = vmul.f32 %v623, 1.442695
      %v666 = vpow.pop %v665
      %v667 = vmul.f32 %v624, 1.442695
      %v668 = vpow.pop %v667
      %v669 = vmul.f32 %v625, 1.442695
      %v670 = vpow.pop %v669
      %v671 = vmul.f32 %v626, 1.442695
      %v672 = vpow.pop %v671
      %v673 = vmul.f32 %v627, 1.442695
      %v674 = vpow.pop %v673
      %v675 = vmul.f32 %v628, 1.442695
      %v676 = vpow.pop %v675
      %v677 = vmul.f32 %v629, 1.442695
      %v678 = vpow.pop %v677
      %v679 = vmul.f32 %v630, 1.442695
      %v680 = vpow.pop %v679
      %v681 = vmul.f32 %v631, 1.442695
      %v682 = vpow.pop %v681
      %v683 = vmul.f32 %v632, 1.442695
      %v684 = vpow.pop %v683
      %v685 = vmul.f32 %v633, 1.442695
      %v686 = vpow.pop %v685
      %v687 = vmul.f32 %v634, 1.442695
      %v688 = vpow.pop %v687
      %v689 = vmul.f32 %v635, 1.442695
      %v690 = vpow.pop %v689
      %v691 = vmul.f32 %v636, 1.442695
      %v692 = vpow.pop %v691
      %v693 = vmul.f32 %v637, 1.442695
      %v694 = vpow.pop %v693
      %v695 = vmul.f32 %v638, 1.442695
      %v696 = vpow.pop %v695
      %v697 = vmul.f32 %v639, 1.442695
      %v698 = vpow.pop %v697
      %v699 = vmul.f32 %v640, 1.442695
      %v700 = vpow.pop %v699
      %v701 = vmul.f32 %v641, 1.442695
      %v702 = vpow.pop %v701
      %v703 = vmul.f32 %v642, 1.442695
      %v704 = vpow.pop %v703
      %v705 = vmul.f32 %v643, 1.442695
      %v706 = vpow.pop %v705
      %v707 = vmul.f32 %v644, 1.442695
      %v708 = vpow.pop %v707
      %v709 = vmul.f32 %v645, 1.442695
      %v710 = vpow.pop %v709
      %v711 = vmul.f32 %v646, 1.442695
      %v712 = vpow.pop %v711
      %v713 = vmul.f32 %v647, 1.442695
      %v714 = vpow.pop %v713
      %v715 = vmul.f32 %v648, 1.442695
      %v716 = vpow.pop %v715
      %v717 = vmul.f32 %v649, 1.442695
      %v718 = vpow.pop %v717
      %v719 = vmul.f32 %v650, 1.442695
      %v720 = vpow.pop %v719
      %v721 = vmul.f32 %v651, 1.442695
      %v722 = vpow.pop %v721
      %v723 = vmul.f32 %v652, 1.442695
      %v724 = vpow.pop %v723
      %v725 = vmul.f32 %v653, 1.442695
      %v726 = vpow.pop %v725
      %v727 = vmul.f32 %v654, 1.442695
      %v728 = vpow.pop %v727
      %v729 = vmul.f32 %v655, 1.442695
      %v730 = vpow.pop %v729
      %v731 = vmul.f32 %v656, 1.442695
      %v732 = vpow.pop %v731
      %v733 = vmul.f32 %v657, 1.442695
      %v734 = vpow.pop %v733
      %v735 = vmul.f32 %v658, 1.442695
      %v736 = vpow.pop %v735
      %v737 = vmul.f32 %v659, 1.442695
      %v738 = vpow.pop %v737
      %v739 = vmul.f32 %v660, 1.442695
      %v740 = vpow.pop %v739
      %v741 = vadd.f32 %v662, 1.0
      %v742 = vadd.f32 %v664, 1.0
      %v743 = vadd.f32 %v666, 1.0
      %v744 = vadd.f32 %v668, 1.0
      %v745 = vadd.f32 %v670, 1.0
      %v746 = vadd.f32 %v672, 1.0
      %v747 = vadd.f32 %v674, 1.0
      %v748 = vadd.f32 %v676, 1.0
      %v749 = vadd.f32 %v678, 1.0
      %v750 = vadd.f32 %v680, 1.0
      %v751 = vadd.f32 %v682, 1.0
      %v752 = vadd.f32 %v684, 1.0
      %v753 = vadd.f32 %v686, 1.0
      %v754 = vadd.f32 %v688, 1.0
      %v755 = vadd.f32 %v690, 1.0
      %v756 = vadd.f32 %v692, 1.0
      %v757 = vadd.f32 %v694, 1.0
      %v758 = vadd.f32 %v696, 1.0
      %v759 = vadd.f32 %v698, 1.0
      %v760 = vadd.f32 %v700, 1.0
      %v761 = vadd.f32 %v702, 1.0
      %v762 = vadd.f32 %v704, 1.0
      %v763 = vadd.f32 %v706, 1.0
      %v764 = vadd.f32 %v708, 1.0
      %v765 = vadd.f32 %v710, 1.0
      %v766 = vadd.f32 %v712, 1.0
      %v767 = vadd.f32 %v714, 1.0
      %v768 = vadd.f32 %v716, 1.0
      %v769 = vadd.f32 %v718, 1.0
      %v770 = vadd.f32 %v720, 1.0
      %v771 = vadd.f32 %v722, 1.0
      %v772 = vadd.f32 %v724, 1.0
      %v773 = vadd.f32 %v726, 1.0
      %v774 = vadd.f32 %v728, 1.0
      %v775 = vadd.f32 %v730, 1.0
      %v776 = vadd.f32 %v732, 1.0
      %v777 = vadd.f32 %v734, 1.0
      %v778 = vadd.f32 %v736, 1.0
      %v779 = vadd.f32 %v738, 1.0
      %v780 = vadd.f32 %v740, 1.0
      %v781 = vrcp.pop %v741
      %v782 = vmul.f32 %v741, %v781
      %v783 = vsub.f32 1.0, %v782
      %v784 = vmul.f32 %v781, %v783
      %v785 = vadd.f32 %v781, %v784
      %vm786 = vweird.f32 %v741
      %vm787 = vweird.f32 %v781
      %vm788 = vmor %vm786, %vm787
      %v789 = vsel %vm788, %v781, %v785
      %v790 = vand.u32 2147483647, %v741
      %vm791 = vcmp.eq.f32.partialorder %v790, 8.507059e+37
      %v792 = vand.u32 %v741, 2147483648
      %v793 = vor.u32 1.1754944e-38, %v792
      %v794 = vsel %vm791, %v793, %v789
      %v795 = vmul.f32 1.0, %v794
      %v796 = vrcp.pop %v742
      %v797 = vmul.f32 %v742, %v796
      %v798 = vsub.f32 1.0, %v797
      %v799 = vmul.f32 %v796, %v798
      %v800 = vadd.f32 %v796, %v799
      %vm801 = vweird.f32 %v742
      %vm802 = vweird.f32 %v796
      %vm803 = vmor %vm801, %vm802
      %v804 = vsel %vm803, %v796, %v800
      %v805 = vand.u32 2147483647, %v742
      %vm806 = vcmp.eq.f32.partialorder %v805, 8.507059e+37
      %v807 = vand.u32 %v742, 2147483648
      %v808 = vor.u32 1.1754944e-38, %v807
      %v809 = vsel %vm806, %v808, %v804
      %v810 = vmul.f32 1.0, %v809
      %v811 = vrcp.pop %v743
      %v812 = vmul.f32 %v743, %v811
      %v813 = vsub.f32 1.0, %v812
      %v814 = vmul.f32 %v811, %v813
      %v815 = vadd.f32 %v811, %v814
      %vm816 = vweird.f32 %v743
      %vm817 = vweird.f32 %v811
      %vm818 = vmor %vm816, %vm817
      %v819 = vsel %vm818, %v811, %v815
      %v820 = vand.u32 2147483647, %v743
      %vm821 = vcmp.eq.f32.partialorder %v820, 8.507059e+37
      %v822 = vand.u32 %v743, 2147483648
      %v823 = vor.u32 1.1754944e-38, %v822
      %v824 = vsel %vm821, %v823, %v819
      %v825 = vmul.f32 1.0, %v824
      %v826 = vrcp.pop %v744
      %v827 = vmul.f32 %v744, %v826
      %v828 = vsub.f32 1.0, %v827
      %v829 = vmul.f32 %v826, %v828
      %v830 = vadd.f32 %v826, %v829
      %vm831 = vweird.f32 %v744
      %vm832 = vweird.f32 %v826
      %vm833 = vmor %vm831, %vm832
      %v834 = vsel %vm833, %v826, %v830
      %v835 = vand.u32 2147483647, %v744
      %vm836 = vcmp.eq.f32.partialorder %v835, 8.507059e+37
      %v837 = vand.u32 %v744, 2147483648
      %v838 = vor.u32 1.1754944e-38, %v837
      %v839 = vsel %vm836, %v838, %v834
      %v840 = vmul.f32 1.0, %v839
      %v841 = vrcp.pop %v745
      %v842 = vmul.f32 %v745, %v841
      %v843 = vsub.f32 1.0, %v842
      %v844 = vmul.f32 %v841, %v843
      %v845 = vadd.f32 %v841, %v844
      %vm846 = vweird.f32 %v745
      %vm847 = vweird.f32 %v841
      %vm848 = vmor %vm846, %vm847
      %v849 = vsel %vm848, %v841, %v845
      %v850 = vand.u32 2147483647, %v745
      %vm851 = vcmp.eq.f32.partialorder %v850, 8.507059e+37
      %v852 = vand.u32 %v745, 2147483648
      %v853 = vor.u32 1.1754944e-38, %v852
      %v854 = vsel %vm851, %v853, %v849
      %v855 = vmul.f32 1.0, %v854
      %v856 = vrcp.pop %v746
      %v857 = vmul.f32 %v746, %v856
      %v858 = vsub.f32 1.0, %v857
      %v859 = vmul.f32 %v856, %v858
      %v860 = vadd.f32 %v856, %v859
      %vm861 = vweird.f32 %v746
      %vm862 = vweird.f32 %v856
      %vm863 = vmor %vm861, %vm862
      %v864 = vsel %vm863, %v856, %v860
      %v865 = vand.u32 2147483647, %v746
      %vm866 = vcmp.eq.f32.partialorder %v865, 8.507059e+37
      %v867 = vand.u32 %v746, 2147483648
      %v868 = vor.u32 1.1754944e-38, %v867
      %v869 = vsel %vm866, %v868, %v864
      %v870 = vmul.f32 1.0, %v869
      %v871 = vrcp.pop %v747
      %v872 = vmul.f32 %v747, %v871
      %v873 = vsub.f32 1.0, %v872
      %v874 = vmul.f32 %v871, %v873
      %v875 = vadd.f32 %v871, %v874
      %vm876 = vweird.f32 %v747
      %vm877 = vweird.f32 %v871
      %vm878 = vmor %vm876, %vm877
      %v879 = vsel %vm878, %v871, %v875
      %v880 = vand.u32 2147483647, %v747
      %vm881 = vcmp.eq.f32.partialorder %v880, 8.507059e+37
      %v882 = vand.u32 %v747, 2147483648
      %v883 = vor.u32 1.1754944e-38, %v882
      %v884 = vsel %vm881, %v883, %v879
      %v885 = vmul.f32 1.0, %v884
      %v886 = vrcp.pop %v748
      %v887 = vmul.f32 %v748, %v886
      %v888 = vsub.f32 1.0, %v887
      %v889 = vmul.f32 %v886, %v888
      %v890 = vadd.f32 %v886, %v889
      %vm891 = vweird.f32 %v748
      %vm892 = vweird.f32 %v886
      %vm893 = vmor %vm891, %vm892
      %v894 = vsel %vm893, %v886, %v890
      %v895 = vand.u32 2147483647, %v748
      %vm896 = vcmp.eq.f32.partialorder %v895, 8.507059e+37
      %v897 = vand.u32 %v748, 2147483648
      %v898 = vor.u32 1.1754944e-38, %v897
      %v899 = vsel %vm896, %v898, %v894
      %v900 = vmul.f32 1.0, %v899
      %v901 = vrcp.pop %v749
      %v902 = vmul.f32 %v749, %v901
      %v903 = vsub.f32 1.0, %v902
      %v904 = vmul.f32 %v901, %v903
      %v905 = vadd.f32 %v901, %v904
      %vm906 = vweird.f32 %v749
      %vm907 = vweird.f32 %v901
      %vm908 = vmor %vm906, %vm907
      %v909 = vsel %vm908, %v901, %v905
      %v910 = vand.u32 2147483647, %v749
      %vm911 = vcmp.eq.f32.partialorder %v910, 8.507059e+37
      %v912 = vand.u32 %v749, 2147483648
      %v913 = vor.u32 1.1754944e-38, %v912
      %v914 = vsel %vm911, %v913, %v909
      %v915 = vmul.f32 1.0, %v914
      %v916 = vrcp.pop %v750
      %v917 = vmul.f32 %v750, %v916
      %v918 = vsub.f32 1.0, %v917
      %v919 = vmul.f32 %v916, %v918
      %v920 = vadd.f32 %v916, %v919
      %vm921 = vweird.f32 %v750
      %vm922 = vweird.f32 %v916
      %vm923 = vmor %vm921, %vm922
      %v924 = vsel %vm923, %v916, %v920
      %v925 = vand.u32 2147483647, %v750
      %vm926 = vcmp.eq.f32.partialorder %v925, 8.507059e+37
      %v927 = vand.u32 %v750, 2147483648
      %v928 = vor.u32 1.1754944e-38, %v927
      %v929 = vsel %vm926, %v928, %v924
      %v930 = vmul.f32 1.0, %v929
      %v931 = vrcp.pop %v751
      %v932 = vmul.f32 %v751, %v931
      %v933 = vsub.f32 1.0, %v932
      %v934 = vmul.f32 %v931, %v933
      %v935 = vadd.f32 %v931, %v934
      %vm936 = vweird.f32 %v751
      %vm937 = vweird.f32 %v931
      %vm938 = vmor %vm936, %vm937
      %v939 = vsel %vm938, %v931, %v935
      %v940 = vand.u32 2147483647, %v751
      %vm941 = vcmp.eq.f32.partialorder %v940, 8.507059e+37
      %v942 = vand.u32 %v751, 2147483648
      %v943 = vor.u32 1.1754944e-38, %v942
      %v944 = vsel %vm941, %v943, %v939
      %v945 = vmul.f32 1.0, %v944
      %v946 = vrcp.pop %v752
      %v947 = vmul.f32 %v752, %v946
      %v948 = vsub.f32 1.0, %v947
      %v949 = vmul.f32 %v946, %v948
      %v950 = vadd.f32 %v946, %v949
      %vm951 = vweird.f32 %v752
      %vm952 = vweird.f32 %v946
      %vm953 = vmor %vm951, %vm952
      %v954 = vsel %vm953, %v946, %v950
      %v955 = vand.u32 2147483647, %v752
      %vm956 = vcmp.eq.f32.partialorder %v955, 8.507059e+37
      %v957 = vand.u32 %v752, 2147483648
      %v958 = vor.u32 1.1754944e-38, %v957
      %v959 = vsel %vm956, %v958, %v954
      %v960 = vmul.f32 1.0, %v959
      %v961 = vrcp.pop %v753
      %v962 = vmul.f32 %v753, %v961
      %v963 = vsub.f32 1.0, %v962
      %v964 = vmul.f32 %v961, %v963
      %v965 = vadd.f32 %v961, %v964
      %vm966 = vweird.f32 %v753
      %vm967 = vweird.f32 %v961
      %vm968 = vmor %vm966, %vm967
      %v969 = vsel %vm968, %v961, %v965
      %v970 = vand.u32 2147483647, %v753
      %vm971 = vcmp.eq.f32.partialorder %v970, 8.507059e+37
      %v972 = vand.u32 %v753, 2147483648
      %v973 = vor.u32 1.1754944e-38, %v972
      %v974 = vsel %vm971, %v973, %v969
      %v975 = vmul.f32 1.0, %v974
      %v976 = vrcp.pop %v754
      %v977 = vmul.f32 %v754, %v976
      %v978 = vsub.f32 1.0, %v977
      %v979 = vmul.f32 %v976, %v978
      %v980 = vadd.f32 %v976, %v979
      %vm981 = vweird.f32 %v754
      %vm982 = vweird.f32 %v976
      %vm983 = vmor %vm981, %vm982
      %v984 = vsel %vm983, %v976, %v980
      %v985 = vand.u32 2147483647, %v754
      %vm986 = vcmp.eq.f32.partialorder %v985, 8.507059e+37
      %v987 = vand.u32 %v754, 2147483648
      %v988 = vor.u32 1.1754944e-38, %v987
      %v989 = vsel %vm986, %v988, %v984
      %v990 = vmul.f32 1.0, %v989
      %v991 = vrcp.pop %v755
      %v992 = vmul.f32 %v755, %v991
      %v993 = vsub.f32 1.0, %v992
      %v994 = vmul.f32 %v991, %v993
      %v995 = vadd.f32 %v991, %v994
      %vm996 = vweird.f32 %v755
      %vm997 = vweird.f32 %v991
      %vm998 = vmor %vm996, %vm997
      %v999 = vsel %vm998, %v991, %v995
      %v1000 = vand.u32 2147483647, %v755
      %vm1001 = vcmp.eq.f32.partialorder %v1000, 8.507059e+37
      %v1002 = vand.u32 %v755, 2147483648
      %v1003 = vor.u32 1.1754944e-38, %v1002
      %v1004 = vsel %vm1001, %v1003, %v999
      %v1005 = vmul.f32 1.0, %v1004
      %v1006 = vrcp.pop %v756
      %v1007 = vmul.f32 %v756, %v1006
      %v1008 = vsub.f32 1.0, %v1007
      %v1009 = vmul.f32 %v1006, %v1008
      %v1010 = vadd.f32 %v1006, %v1009
      %vm1011 = vweird.f32 %v756
      %vm1012 = vweird.f32 %v1006
      %vm1013 = vmor %vm1011, %vm1012
      %v1014 = vsel %vm1013, %v1006, %v1010
      %v1015 = vand.u32 2147483647, %v756
      %vm1016 = vcmp.eq.f32.partialorder %v1015, 8.507059e+37
      %v1017 = vand.u32 %v756, 2147483648
      %v1018 = vor.u32 1.1754944e-38, %v1017
      %v1019 = vsel %vm1016, %v1018, %v1014
      %v1020 = vmul.f32 1.0, %v1019
      %v1021 = vrcp.pop %v757
      %v1022 = vmul.f32 %v757, %v1021
      %v1023 = vsub.f32 1.0, %v1022
      %v1024 = vmul.f32 %v1021, %v1023
      %v1025 = vadd.f32 %v1021, %v1024
      %vm1026 = vweird.f32 %v757
      %vm1027 = vweird.f32 %v1021
      %vm1028 = vmor %vm1026, %vm1027
      %v1029 = vsel %vm1028, %v1021, %v1025
      %v1030 = vand.u32 2147483647, %v757
      %vm1031 = vcmp.eq.f32.partialorder %v1030, 8.507059e+37
      %v1032 = vand.u32 %v757, 2147483648
      %v1033 = vor.u32 1.1754944e-38, %v1032
      %v1034 = vsel %vm1031, %v1033, %v1029
      %v1035 = vmul.f32 1.0, %v1034
      %v1036 = vrcp.pop %v758
      %v1037 = vmul.f32 %v758, %v1036
      %v1038 = vsub.f32 1.0, %v1037
      %v1039 = vmul.f32 %v1036, %v1038
      %v1040 = vadd.f32 %v1036, %v1039
      %vm1041 = vweird.f32 %v758
      %vm1042 = vweird.f32 %v1036
      %vm1043 = vmor %vm1041, %vm1042
      %v1044 = vsel %vm1043, %v1036, %v1040
      %v1045 = vand.u32 2147483647, %v758
      %vm1046 = vcmp.eq.f32.partialorder %v1045, 8.507059e+37
      %v1047 = vand.u32 %v758, 2147483648
      %v1048 = vor.u32 1.1754944e-38, %v1047
      %v1049 = vsel %vm1046, %v1048, %v1044
      %v1050 = vmul.f32 1.0, %v1049
      %v1051 = vrcp.pop %v759
      %v1052 = vmul.f32 %v759, %v1051
      %v1053 = vsub.f32 1.0, %v1052
      %v1054 = vmul.f32 %v1051, %v1053
      %v1055 = vadd.f32 %v1051, %v1054
      %vm1056 = vweird.f32 %v759
      %vm1057 = vweird.f32 %v1051
      %vm1058 = vmor %vm1056, %vm1057
      %v1059 = vsel %vm1058, %v1051, %v1055
      %v1060 = vand.u32 2147483647, %v759
      %vm1061 = vcmp.eq.f32.partialorder %v1060, 8.507059e+37
      %v1062 = vand.u32 %v759, 2147483648
      %v1063 = vor.u32 1.1754944e-38, %v1062
      %v1064 = vsel %vm1061, %v1063, %v1059
      %v1065 = vmul.f32 1.0, %v1064
      %v1066 = vrcp.pop %v760
      %v1067 = vmul.f32 %v760, %v1066
      %v1068 = vsub.f32 1.0, %v1067
      %v1069 = vmul.f32 %v1066, %v1068
      %v1070 = vadd.f32 %v1066, %v1069
      %vm1071 = vweird.f32 %v760
      %vm1072 = vweird.f32 %v1066
      %vm1073 = vmor %vm1071, %vm1072
      %v1074 = vsel %vm1073, %v1066, %v1070
      %v1075 = vand.u32 2147483647, %v760
      %vm1076 = vcmp.eq.f32.partialorder %v1075, 8.507059e+37
      %v1077 = vand.u32 %v760, 2147483648
      %v1078 = vor.u32 1.1754944e-38, %v1077
      %v1079 = vsel %vm1076, %v1078, %v1074
      %v1080 = vmul.f32 1.0, %v1079
      %v1081 = vrcp.pop %v761
      %v1082 = vmul.f32 %v761, %v1081
      %v1083 = vsub.f32 1.0, %v1082
      %v1084 = vmul.f32 %v1081, %v1083
      %v1085 = vadd.f32 %v1081, %v1084
      %vm1086 = vweird.f32 %v761
      %vm1087 = vweird.f32 %v1081
      %vm1088 = vmor %vm1086, %vm1087
      %v1089 = vsel %vm1088, %v1081, %v1085
      %v1090 = vand.u32 2147483647, %v761
      %vm1091 = vcmp.eq.f32.partialorder %v1090, 8.507059e+37
      %v1092 = vand.u32 %v761, 2147483648
      %v1093 = vor.u32 1.1754944e-38, %v1092
      %v1094 = vsel %vm1091, %v1093, %v1089
      %v1095 = vmul.f32 1.0, %v1094
      %v1096 = vrcp.pop %v762
      %v1097 = vmul.f32 %v762, %v1096
      %v1098 = vsub.f32 1.0, %v1097
      %v1099 = vmul.f32 %v1096, %v1098
      %v1100 = vadd.f32 %v1096, %v1099
      %vm1101 = vweird.f32 %v762
      %vm1102 = vweird.f32 %v1096
      %vm1103 = vmor %vm1101, %vm1102
      %v1104 = vsel %vm1103, %v1096, %v1100
      %v1105 = vand.u32 2147483647, %v762
      %vm1106 = vcmp.eq.f32.partialorder %v1105, 8.507059e+37
      %v1107 = vand.u32 %v762, 2147483648
      %v1108 = vor.u32 1.1754944e-38, %v1107
      %v1109 = vsel %vm1106, %v1108, %v1104
      %v1110 = vmul.f32 1.0, %v1109
      %v1111 = vrcp.pop %v763
      %v1112 = vmul.f32 %v763, %v1111
      %v1113 = vsub.f32 1.0, %v1112
      %v1114 = vmul.f32 %v1111, %v1113
      %v1115 = vadd.f32 %v1111, %v1114
      %vm1116 = vweird.f32 %v763
      %vm1117 = vweird.f32 %v1111
      %vm1118 = vmor %vm1116, %vm1117
      %v1119 = vsel %vm1118, %v1111, %v1115
      %v1120 = vand.u32 2147483647, %v763
      %vm1121 = vcmp.eq.f32.partialorder %v1120, 8.507059e+37
      %v1122 = vand.u32 %v763, 2147483648
      %v1123 = vor.u32 1.1754944e-38, %v1122
      %v1124 = vsel %vm1121, %v1123, %v1119
      %v1125 = vmul.f32 1.0, %v1124
      %v1126 = vrcp.pop %v764
      %v1127 = vmul.f32 %v764, %v1126
      %v1128 = vsub.f32 1.0, %v1127
      %v1129 = vmul.f32 %v1126, %v1128
      %v1130 = vadd.f32 %v1126, %v1129
      %vm1131 = vweird.f32 %v764
      %vm1132 = vweird.f32 %v1126
      %vm1133 = vmor %vm1131, %vm1132
      %v1134 = vsel %vm1133, %v1126, %v1130
      %v1135 = vand.u32 2147483647, %v764
      %vm1136 = vcmp.eq.f32.partialorder %v1135, 8.507059e+37
      %v1137 = vand.u32 %v764, 2147483648
      %v1138 = vor.u32 1.1754944e-38, %v1137
      %v1139 = vsel %vm1136, %v1138, %v1134
      %v1140 = vmul.f32 1.0, %v1139
      %v1141 = vrcp.pop %v765
      %v1142 = vmul.f32 %v765, %v1141
      %v1143 = vsub.f32 1.0, %v1142
      %v1144 = vmul.f32 %v1141, %v1143
      %v1145 = vadd.f32 %v1141, %v1144
      %vm1146 = vweird.f32 %v765
      %vm1147 = vweird.f32 %v1141
      %vm1148 = vmor %vm1146, %vm1147
      %v1149 = vsel %vm1148, %v1141, %v1145
      %v1150 = vand.u32 2147483647, %v765
      %vm1151 = vcmp.eq.f32.partialorder %v1150, 8.507059e+37
      %v1152 = vand.u32 %v765, 2147483648
      %v1153 = vor.u32 1.1754944e-38, %v1152
      %v1154 = vsel %vm1151, %v1153, %v1149
      %v1155 = vmul.f32 1.0, %v1154
      %v1156 = vrcp.pop %v766
      %v1157 = vmul.f32 %v766, %v1156
      %v1158 = vsub.f32 1.0, %v1157
      %v1159 = vmul.f32 %v1156, %v1158
      %v1160 = vadd.f32 %v1156, %v1159
      %vm1161 = vweird.f32 %v766
      %vm1162 = vweird.f32 %v1156
      %vm1163 = vmor %vm1161, %vm1162
      %v1164 = vsel %vm1163, %v1156, %v1160
      %v1165 = vand.u32 2147483647, %v766
      %vm1166 = vcmp.eq.f32.partialorder %v1165, 8.507059e+37
      %v1167 = vand.u32 %v766, 2147483648
      %v1168 = vor.u32 1.1754944e-38, %v1167
      %v1169 = vsel %vm1166, %v1168, %v1164
      %v1170 = vmul.f32 1.0, %v1169
      %v1171 = vrcp.pop %v767
      %v1172 = vmul.f32 %v767, %v1171
      %v1173 = vsub.f32 1.0, %v1172
      %v1174 = vmul.f32 %v1171, %v1173
      %v1175 = vadd.f32 %v1171, %v1174
      %vm1176 = vweird.f32 %v767
      %vm1177 = vweird.f32 %v1171
      %vm1178 = vmor %vm1176, %vm1177
      %v1179 = vsel %vm1178, %v1171, %v1175
      %v1180 = vand.u32 2147483647, %v767
      %vm1181 = vcmp.eq.f32.partialorder %v1180, 8.507059e+37
      %v1182 = vand.u32 %v767, 2147483648
      %v1183 = vor.u32 1.1754944e-38, %v1182
      %v1184 = vsel %vm1181, %v1183, %v1179
      %v1185 = vmul.f32 1.0, %v1184
      %v1186 = vrcp.pop %v768
      %v1187 = vmul.f32 %v768, %v1186
      %v1188 = vsub.f32 1.0, %v1187
      %v1189 = vmul.f32 %v1186, %v1188
      %v1190 = vadd.f32 %v1186, %v1189
      %vm1191 = vweird.f32 %v768
      %vm1192 = vweird.f32 %v1186
      %vm1193 = vmor %vm1191, %vm1192
      %v1194 = vsel %vm1193, %v1186, %v1190
      %v1195 = vand.u32 2147483647, %v768
      %vm1196 = vcmp.eq.f32.partialorder %v1195, 8.507059e+37
      %v1197 = vand.u32 %v768, 2147483648
      %v1198 = vor.u32 1.1754944e-38, %v1197
      %v1199 = vsel %vm1196, %v1198, %v1194
      %v1200 = vmul.f32 1.0, %v1199
      %v1201 = vrcp.pop %v769
      %v1202 = vmul.f32 %v769, %v1201
      %v1203 = vsub.f32 1.0, %v1202
      %v1204 = vmul.f32 %v1201, %v1203
      %v1205 = vadd.f32 %v1201, %v1204
      %vm1206 = vweird.f32 %v769
      %vm1207 = vweird.f32 %v1201
      %vm1208 = vmor %vm1206, %vm1207
      %v1209 = vsel %vm1208, %v1201, %v1205
      %v1210 = vand.u32 2147483647, %v769
      %vm1211 = vcmp.eq.f32.partialorder %v1210, 8.507059e+37
      %v1212 = vand.u32 %v769, 2147483648
      %v1213 = vor.u32 1.1754944e-38, %v1212
      %v1214 = vsel %vm1211, %v1213, %v1209
      %v1215 = vmul.f32 1.0, %v1214
      %v1216 = vrcp.pop %v770
      %v1217 = vmul.f32 %v770, %v1216
      %v1218 = vsub.f32 1.0, %v1217
      %v1219 = vmul.f32 %v1216, %v1218
      %v1220 = vadd.f32 %v1216, %v1219
      %vm1221 = vweird.f32 %v770
      %vm1222 = vweird.f32 %v1216
      %vm1223 = vmor %vm1221, %vm1222
      %v1224 = vsel %vm1223, %v1216, %v1220
      %v1225 = vand.u32 2147483647, %v770
      %vm1226 = vcmp.eq.f32.partialorder %v1225, 8.507059e+37
      %v1227 = vand.u32 %v770, 2147483648
      %v1228 = vor.u32 1.1754944e-38, %v1227
      %v1229 = vsel %vm1226, %v1228, %v1224
      %v1230 = vmul.f32 1.0, %v1229
      %v1231 = vrcp.pop %v771
      %v1232 = vmul.f32 %v771, %v1231
      %v1233 = vsub.f32 1.0, %v1232
      %v1234 = vmul.f32 %v1231, %v1233
      %v1235 = vadd.f32 %v1231, %v1234
      %vm1236 = vweird.f32 %v771
      %vm1237 = vweird.f32 %v1231
      %vm1238 = vmor %vm1236, %vm1237
      %v1239 = vsel %vm1238, %v1231, %v1235
      %v1240 = vand.u32 2147483647, %v771
      %vm1241 = vcmp.eq.f32.partialorder %v1240, 8.507059e+37
      %v1242 = vand.u32 %v771, 2147483648
      %v1243 = vor.u32 1.1754944e-38, %v1242
      %v1244 = vsel %vm1241, %v1243, %v1239
      %v1245 = vmul.f32 1.0, %v1244
      %v1246 = vrcp.pop %v772
      %v1247 = vmul.f32 %v772, %v1246
      %v1248 = vsub.f32 1.0, %v1247
      %v1249 = vmul.f32 %v1246, %v1248
      %v1250 = vadd.f32 %v1246, %v1249
      %vm1251 = vweird.f32 %v772
      %vm1252 = vweird.f32 %v1246
      %vm1253 = vmor %vm1251, %vm1252
      %v1254 = vsel %vm1253, %v1246, %v1250
      %v1255 = vand.u32 2147483647, %v772
      %vm1256 = vcmp.eq.f32.partialorder %v1255, 8.507059e+37
      %v1257 = vand.u32 %v772, 2147483648
      %v1258 = vor.u32 1.1754944e-38, %v1257
      %v1259 = vsel %vm1256, %v1258, %v1254
      %v1260 = vmul.f32 1.0, %v1259
      %v1261 = vrcp.pop %v773
      %v1262 = vmul.f32 %v773, %v1261
      %v1263 = vsub.f32 1.0, %v1262
      %v1264 = vmul.f32 %v1261, %v1263
      %v1265 = vadd.f32 %v1261, %v1264
      %vm1266 = vweird.f32 %v773
      %vm1267 = vweird.f32 %v1261
      %vm1268 = vmor %vm1266, %vm1267
      %v1269 = vsel %vm1268, %v1261, %v1265
      %v1270 = vand.u32 2147483647, %v773
      %vm1271 = vcmp.eq.f32.partialorder %v1270, 8.507059e+37
      %v1272 = vand.u32 %v773, 2147483648
      %v1273 = vor.u32 1.1754944e-38, %v1272
      %v1274 = vsel %vm1271, %v1273, %v1269
      %v1275 = vmul.f32 1.0, %v1274
      %v1276 = vrcp.pop %v774
      %v1277 = vmul.f32 %v774, %v1276
      %v1278 = vsub.f32 1.0, %v1277
      %v1279 = vmul.f32 %v1276, %v1278
      %v1280 = vadd.f32 %v1276, %v1279
      %vm1281 = vweird.f32 %v774
      %vm1282 = vweird.f32 %v1276
      %vm1283 = vmor %vm1281, %vm1282
      %v1284 = vsel %vm1283, %v1276, %v1280
      %v1285 = vand.u32 2147483647, %v774
      %vm1286 = vcmp.eq.f32.partialorder %v1285, 8.507059e+37
      %v1287 = vand.u32 %v774, 2147483648
      %v1288 = vor.u32 1.1754944e-38, %v1287
      %v1289 = vsel %vm1286, %v1288, %v1284
      %v1290 = vmul.f32 1.0, %v1289
      %v1291 = vrcp.pop %v775
      %v1292 = vmul.f32 %v775, %v1291
      %v1293 = vsub.f32 1.0, %v1292
      %v1294 = vmul.f32 %v1291, %v1293
      %v1295 = vadd.f32 %v1291, %v1294
      %vm1296 = vweird.f32 %v775
      %vm1297 = vweird.f32 %v1291
      %vm1298 = vmor %vm1296, %vm1297
      %v1299 = vsel %vm1298, %v1291, %v1295
      %v1300 = vand.u32 2147483647, %v775
      %vm1301 = vcmp.eq.f32.partialorder %v1300, 8.507059e+37
      %v1302 = vand.u32 %v775, 2147483648
      %v1303 = vor.u32 1.1754944e-38, %v1302
      %v1304 = vsel %vm1301, %v1303, %v1299
      %v1305 = vmul.f32 1.0, %v1304
      %v1306 = vrcp.pop %v776
      %v1307 = vmul.f32 %v776, %v1306
      %v1308 = vsub.f32 1.0, %v1307
      %v1309 = vmul.f32 %v1306, %v1308
      %v1310 = vadd.f32 %v1306, %v1309
      %vm1311 = vweird.f32 %v776
      %vm1312 = vweird.f32 %v1306
      %vm1313 = vmor %vm1311, %vm1312
      %v1314 = vsel %vm1313, %v1306, %v1310
      %v1315 = vand.u32 2147483647, %v776
      %vm1316 = vcmp.eq.f32.partialorder %v1315, 8.507059e+37
      %v1317 = vand.u32 %v776, 2147483648
      %v1318 = vor.u32 1.1754944e-38, %v1317
      %v1319 = vsel %vm1316, %v1318, %v1314
      %v1320 = vmul.f32 1.0, %v1319
      %v1321 = vrcp.pop %v777
      %v1322 = vmul.f32 %v777, %v1321
      %v1323 = vsub.f32 1.0, %v1322
      %v1324 = vmul.f32 %v1321, %v1323
      %v1325 = vadd.f32 %v1321, %v1324
      %vm1326 = vweird.f32 %v777
      %vm1327 = vweird.f32 %v1321
      %vm1328 = vmor %vm1326, %vm1327
      %v1329 = vsel %vm1328, %v1321, %v1325
      %v1330 = vand.u32 2147483647, %v777
      %vm1331 = vcmp.eq.f32.partialorder %v1330, 8.507059e+37
      %v1332 = vand.u32 %v777, 2147483648
      %v1333 = vor.u32 1.1754944e-38, %v1332
      %v1334 = vsel %vm1331, %v1333, %v1329
      %v1335 = vmul.f32 1.0, %v1334
      %v1336 = vrcp.pop %v778
      %v1337 = vmul.f32 %v778, %v1336
      %v1338 = vsub.f32 1.0, %v1337
      %v1339 = vmul.f32 %v1336, %v1338
      %v1340 = vadd.f32 %v1336, %v1339
      %vm1341 = vweird.f32 %v778
      %vm1342 = vweird.f32 %v1336
      %vm1343 = vmor %vm1341, %vm1342
      %v1344 = vsel %vm1343, %v1336, %v1340
      %v1345 = vand.u32 2147483647, %v778
      %vm1346 = vcmp.eq.f32.partialorder %v1345, 8.507059e+37
      %v1347 = vand.u32 %v778, 2147483648
      %v1348 = vor.u32 1.1754944e-38, %v1347
      %v1349 = vsel %vm1346, %v1348, %v1344
      %v1350 = vmul.f32 1.0, %v1349
      %v1351 = vrcp.pop %v779
      %v1352 = vmul.f32 %v779, %v1351
      %v1353 = vsub.f32 1.0, %v1352
      %v1354 = vmul.f32 %v1351, %v1353
      %v1355 = vadd.f32 %v1351, %v1354
      %vm1356 = vweird.f32 %v779
      %vm1357 = vweird.f32 %v1351
      %vm1358 = vmor %vm1356, %vm1357
      %v1359 = vsel %vm1358, %v1351, %v1355
      %v1360 = vand.u32 2147483647, %v779
      %vm1361 = vcmp.eq.f32.partialorder %v1360, 8.507059e+37
      %v1362 = vand.u32 %v779, 2147483648
      %v1363 = vor.u32 1.1754944e-38, %v1362
      %v1364 = vsel %vm1361, %v1363, %v1359
      %v1365 = vmul.f32 1.0, %v1364
      %v1366 = vrcp.pop %v780
      %v1367 = vmul.f32 %v780, %v1366
      %v1368 = vsub.f32 1.0, %v1367
      %v1369 = vmul.f32 %v1366, %v1368
      %v1370 = vadd.f32 %v1366, %v1369
      %vm1371 = vweird.f32 %v780
      %vm1372 = vweird.f32 %v1366
      %vm1373 = vmor %vm1371, %vm1372
      %v1374 = vsel %vm1373, %v1366, %v1370
      %v1375 = vand.u32 2147483647, %v780
      %vm1376 = vcmp.eq.f32.partialorder %v1375, 8.507059e+37
      %v1377 = vand.u32 %v780, 2147483648
      %v1378 = vor.u32 1.1754944e-38, %v1377
      %v1379 = vsel %vm1376, %v1378, %v1374
      %v1380 = vmul.f32 1.0, %v1379
      %v1381 = vmul.f32 %v502, %v795
      %v1382 = vmul.f32 %v505, %v810
      %v1383 = vmul.f32 %v508, %v825
      %v1384 = vmul.f32 %v511, %v840
      %v1385 = vmul.f32 %v514, %v855
      %v1386 = vmul.f32 %v517, %v870
      %v1387 = vmul.f32 %v520, %v885
      %v1388 = vmul.f32 %v523, %v900
      %v1389 = vmul.f32 %v526, %v915
      %v1390 = vmul.f32 %v529, %v930
      %v1391 = vmul.f32 %v532, %v945
      %v1392 = vmul.f32 %v535, %v960
      %v1393 = vmul.f32 %v538, %v975
      %v1394 = vmul.f32 %v541, %v990
      %v1395 = vmul.f32 %v544, %v1005
      %v1396 = vmul.f32 %v547, %v1020
      %v1397 = vmul.f32 %v550, %v1035
      %v1398 = vmul.f32 %v553, %v1050
      %v1399 = vmul.f32 %v556, %v1065
      %v1400 = vmul.f32 %v559, %v1080
      %v1401 = vmul.f32 %v562, %v1095
      %v1402 = vmul.f32 %v565, %v1110
      %v1403 = vmul.f32 %v568, %v1125
      %v1404 = vmul.f32 %v571, %v1140
      %v1405 = vmul.f32 %v574, %v1155
      %v1406 = vmul.f32 %v577, %v1170
      %v1407 = vmul.f32 %v580, %v1185
      %v1408 = vmul.f32 %v583, %v1200
      %v1409 = vmul.f32 %v586, %v1215
      %v1410 = vmul.f32 %v589, %v1230
      %v1411 = vmul.f32 %v592, %v1245
      %v1412 = vmul.f32 %v595, %v1260
      %v1413 = vmul.f32 %v598, %v1275
      %v1414 = vmul.f32 %v601, %v1290
      %v1415 = vmul.f32 %v604, %v1305
      %v1416 = vmul.f32 %v607, %v1320
      %v1417 = vmul.f32 %v610, %v1335
      %v1418 = vmul.f32 %v613, %v1350
      %v1419 = vmul.f32 %v616, %v1365
      %v1420 = vmul.f32 %v619, %v1380
      %v1421 = vlaneseq
      %v1422 = vshrl.u32 %v1421, 7
      %v1423 = vadd.s32 %v1422, 8
      %v1424 = vadd.s32 %v1422, 16
      %v1425 = vadd.s32 %v1422, 24
      %v1426 = vadd.s32 %v1422, 32
      %v1427 = vadd.s32 %v1422, 40
      %v1428 = vadd.s32 %v1422, 48
      %v1429 = vadd.s32 %v1422, 56
      %v1430 = vadd.s32 %v1422, 64
      %v1431 = vadd.s32 %v1422, 72
      %v1432 = vadd.s32 %v1422, 80
      %v1433 = vadd.s32 %v1422, 88
      %v1434 = vadd.s32 %v1422, 96
      %v1435 = vadd.s32 %v1422, 104
      %v1436 = vadd.s32 %v1422, 112
      %v1437 = vadd.s32 %v1422, 120
      %v1438 = vadd.s32 %v1422, 128
      %v1439 = vadd.s32 %v1422, 136
      %v1440 = vadd.s32 %v1422, 144
      %v1441 = vadd.s32 %v1422, 152
      %v1442 = vadd.s32 %v1422, 160
      %v1443 = vadd.s32 %v1422, 168
      %v1444 = vadd.s32 %v1422, 176
      %v1445 = vadd.s32 %v1422, 184
      %v1446 = vadd.s32 %v1422, 192
      %v1447 = vadd.s32 %v1422, 200
      %v1448 = vadd.s32 %v1422, 208
      %v1449 = vadd.s32 %v1422, 216
      %v1450 = vadd.s32 %v1422, 224
      %v1451 = vadd.s32 %v1422, 232
      %v1452 = vadd.s32 %v1422, 240
      %v1453 = vadd.s32 %v1422, 248
      %v1454 = vadd.s32 %v1422, 256
      %v1455 = vadd.s32 %v1422, 264
      %v1456 = vadd.s32 %v1422, 272
      %v1457 = vadd.s32 %v1422, 280
      %v1458 = vadd.s32 %v1422, 288
      %v1459 = vadd.s32 %v1422, 296
      %v1460 = vadd.s32 %v1422, 304
      %v1461 = vadd.s32 %v1422, 312
      %v1462 = vstv %s275
      %v1463 = vadd.s32 %v1422, %v1462
      %v1464 = vadd.s32 %v1423, %v1462
      %v1465 = vadd.s32 %v1424, %v1462
      %v1466 = vadd.s32 %v1425, %v1462
      %v1467 = vadd.s32 %v1426, %v1462
      %v1468 = vadd.s32 %v1427, %v1462
      %v1469 = vadd.s32 %v1428, %v1462
      %v1470 = vadd.s32 %v1429, %v1462
      %v1471 = vadd.s32 %v1430, %v1462
      %v1472 = vadd.s32 %v1431, %v1462
      %v1473 = vadd.s32 %v1432, %v1462
      %v1474 = vadd.s32 %v1433, %v1462
      %v1475 = vadd.s32 %v1434, %v1462
      %v1476 = vadd.s32 %v1435, %v1462
      %v1477 = vadd.s32 %v1436, %v1462
      %v1478 = vadd.s32 %v1437, %v1462
      %v1479 = vadd.s32 %v1438, %v1462
      %v1480 = vadd.s32 %v1439, %v1462
      %v1481 = vadd.s32 %v1440, %v1462
      %v1482 = vadd.s32 %v1441, %v1462
      %v1483 = vadd.s32 %v1442, %v1462
      %v1484 = vadd.s32 %v1443, %v1462
      %v1485 = vadd.s32 %v1444, %v1462
      %v1486 = vadd.s32 %v1445, %v1462
      %v1487 = vadd.s32 %v1446, %v1462
      %v1488 = vadd.s32 %v1447, %v1462
      %v1489 = vadd.s32 %v1448, %v1462
      %v1490 = vadd.s32 %v1449, %v1462
      %v1491 = vadd.s32 %v1450, %v1462
      %v1492 = vadd.s32 %v1451, %v1462
      %v1493 = vadd.s32 %v1452, %v1462
      %v1494 = vadd.s32 %v1453, %v1462
      %v1495 = vadd.s32 %v1454, %v1462
      %v1496 = vadd.s32 %v1455, %v1462
      %v1497 = vadd.s32 %v1456, %v1462
      %v1498 = vadd.s32 %v1457, %v1462
      %v1499 = vadd.s32 %v1458, %v1462
      %v1500 = vadd.s32 %v1459, %v1462
      %v1501 = vadd.s32 %v1460, %v1462
      %v1502 = vadd.s32 %v1461, %v1462
      %vm1503 = vcmp.ge.s32.totalorder %v1463, 96
      %vm1504 = vcmp.ge.s32.totalorder %v1464, 96
      %vm1505 = vcmp.ge.s32.totalorder %v1465, 96
      %vm1506 = vcmp.ge.s32.totalorder %v1466, 96
      %vm1507 = vcmp.ge.s32.totalorder %v1467, 96
      %vm1508 = vcmp.ge.s32.totalorder %v1468, 96
      %vm1509 = vcmp.ge.s32.totalorder %v1469, 96
      %vm1510 = vcmp.ge.s32.totalorder %v1470, 96
      %vm1511 = vcmp.ge.s32.totalorder %v1471, 96
      %vm1512 = vcmp.ge.s32.totalorder %v1472, 96
      %vm1513 = vcmp.ge.s32.totalorder %v1473, 96
      %vm1514 = vcmp.ge.s32.totalorder %v1474, 96
      %vm1515 = vcmp.ge.s32.totalorder %v1475, 96
      %vm1516 = vcmp.ge.s32.totalorder %v1476, 96
      %vm1517 = vcmp.ge.s32.totalorder %v1477, 96
      %vm1518 = vcmp.ge.s32.totalorder %v1478, 96
      %vm1519 = vcmp.ge.s32.totalorder %v1479, 96
      %vm1520 = vcmp.ge.s32.totalorder %v1480, 96
      %vm1521 = vcmp.ge.s32.totalorder %v1481, 96
      %vm1522 = vcmp.ge.s32.totalorder %v1482, 96
      %vm1523 = vcmp.ge.s32.totalorder %v1483, 96
      %vm1524 = vcmp.ge.s32.totalorder %v1484, 96
      %vm1525 = vcmp.ge.s32.totalorder %v1485, 96
      %vm1526 = vcmp.ge.s32.totalorder %v1486, 96
      %vm1527 = vcmp.ge.s32.totalorder %v1487, 96
      %vm1528 = vcmp.ge.s32.totalorder %v1488, 96
      %vm1529 = vcmp.ge.s32.totalorder %v1489, 96
      %vm1530 = vcmp.ge.s32.totalorder %v1490, 96
      %vm1531 = vcmp.ge.s32.totalorder %v1491, 96
      %vm1532 = vcmp.ge.s32.totalorder %v1492, 96
      %vm1533 = vcmp.ge.s32.totalorder %v1493, 96
      %vm1534 = vcmp.ge.s32.totalorder %v1494, 96
      %vm1535 = vcmp.ge.s32.totalorder %v1495, 96
      %vm1536 = vcmp.ge.s32.totalorder %v1496, 96
      %vm1537 = vcmp.ge.s32.totalorder %v1497, 96
      %vm1538 = vcmp.ge.s32.totalorder %v1498, 96
      %vm1539 = vcmp.ge.s32.totalorder %v1499, 96
      %vm1540 = vcmp.ge.s32.totalorder %v1500, 96
      %vm1541 = vcmp.ge.s32.totalorder %v1501, 96
      %vm1542 = vcmp.ge.s32.totalorder %v1502, 96
      %vm1543 = vcmp.lt.s32.totalorder %v1463, 352
      %vm1544 = vcmp.lt.s32.totalorder %v1464, 352
      %vm1545 = vcmp.lt.s32.totalorder %v1465, 352
      %vm1546 = vcmp.lt.s32.totalorder %v1466, 352
      %vm1547 = vcmp.lt.s32.totalorder %v1467, 352
      %vm1548 = vcmp.lt.s32.totalorder %v1468, 352
      %vm1549 = vcmp.lt.s32.totalorder %v1469, 352
      %vm1550 = vcmp.lt.s32.totalorder %v1470, 352
      %vm1551 = vcmp.lt.s32.totalorder %v1471, 352
      %vm1552 = vcmp.lt.s32.totalorder %v1472, 352
      %vm1553 = vcmp.lt.s32.totalorder %v1473, 352
      %vm1554 = vcmp.lt.s32.totalorder %v1474, 352
      %vm1555 = vcmp.lt.s32.totalorder %v1475, 352
      %vm1556 = vcmp.lt.s32.totalorder %v1476, 352
      %vm1557 = vcmp.lt.s32.totalorder %v1477, 352
      %vm1558 = vcmp.lt.s32.totalorder %v1478, 352
      %vm1559 = vcmp.lt.s32.totalorder %v1479, 352
      %vm1560 = vcmp.lt.s32.totalorder %v1480, 352
      %vm1561 = vcmp.lt.s32.totalorder %v1481, 352
      %vm1562 = vcmp.lt.s32.totalorder %v1482, 352
      %vm1563 = vcmp.lt.s32.totalorder %v1483, 352
      %vm1564 = vcmp.lt.s32.totalorder %v1484, 352
      %vm1565 = vcmp.lt.s32.totalorder %v1485, 352
      %vm1566 = vcmp.lt.s32.totalorder %v1486, 352
      %vm1567 = vcmp.lt.s32.totalorder %v1487, 352
      %vm1568 = vcmp.lt.s32.totalorder %v1488, 352
      %vm1569 = vcmp.lt.s32.totalorder %v1489, 352
      %vm1570 = vcmp.lt.s32.totalorder %v1490, 352
      %vm1571 = vcmp.lt.s32.totalorder %v1491, 352
      %vm1572 = vcmp.lt.s32.totalorder %v1492, 352
      %vm1573 = vcmp.lt.s32.totalorder %v1493, 352
      %vm1574 = vcmp.lt.s32.totalorder %v1494, 352
      %vm1575 = vcmp.lt.s32.totalorder %v1495, 352
      %vm1576 = vcmp.lt.s32.totalorder %v1496, 352
      %vm1577 = vcmp.lt.s32.totalorder %v1497, 352
      %vm1578 = vcmp.lt.s32.totalorder %v1498, 352
      %vm1579 = vcmp.lt.s32.totalorder %v1499, 352
      %vm1580 = vcmp.lt.s32.totalorder %v1500, 352
      %vm1581 = vcmp.lt.s32.totalorder %v1501, 352
      %vm1582 = vcmp.lt.s32.totalorder %v1502, 352
      %vm1583 = vmand %vm1503, %vm1543
      %vm1584 = vmand %vm1504, %vm1544
      %vm1585 = vmand %vm1505, %vm1545
      %vm1586 = vmand %vm1506, %vm1546
      %vm1587 = vmand %vm1507, %vm1547
      %vm1588 = vmand %vm1508, %vm1548
      %vm1589 = vmand %vm1509, %vm1549
      %vm1590 = vmand %vm1510, %vm1550
      %vm1591 = vmand %vm1511, %vm1551
      %vm1592 = vmand %vm1512, %vm1552
      %vm1593 = vmand %vm1513, %vm1553
      %vm1594 = vmand %vm1514, %vm1554
      %vm1595 = vmand %vm1515, %vm1555
      %vm1596 = vmand %vm1516, %vm1556
      %vm1597 = vmand %vm1517, %vm1557
      %vm1598 = vmand %vm1518, %vm1558
      %vm1599 = vmand %vm1519, %vm1559
      %vm1600 = vmand %vm1520, %vm1560
      %vm1601 = vmand %vm1521, %vm1561
      %vm1602 = vmand %vm1522, %vm1562
      %vm1603 = vmand %vm1523, %vm1563
      %vm1604 = vmand %vm1524, %vm1564
      %vm1605 = vmand %vm1525, %vm1565
      %vm1606 = vmand %vm1526, %vm1566
      %vm1607 = vmand %vm1527, %vm1567
      %vm1608 = vmand %vm1528, %vm1568
      %vm1609 = vmand %vm1529, %vm1569
      %vm1610 = vmand %vm1530, %vm1570
      %vm1611 = vmand %vm1531, %vm1571
      %vm1612 = vmand %vm1532, %vm1572
      %vm1613 = vmand %vm1533, %vm1573
      %vm1614 = vmand %vm1534, %vm1574
      %vm1615 = vmand %vm1535, %vm1575
      %vm1616 = vmand %vm1536, %vm1576
      %vm1617 = vmand %vm1537, %vm1577
      %vm1618 = vmand %vm1538, %vm1578
      %vm1619 = vmand %vm1539, %vm1579
      %vm1620 = vmand %vm1540, %vm1580
      %vm1621 = vmand %vm1541, %vm1581
      %vm1622 = vmand %vm1542, %vm1582
      %v1623 = vsel %vm1583, 1, 0
      %v1624 = vsel %vm1584, 1, 0
      %v1625 = vsel %vm1585, 1, 0
      %v1626 = vsel %vm1586, 1, 0
      %v1627 = vsel %vm1587, 1, 0
      %v1628 = vsel %vm1588, 1, 0
      %v1629 = vsel %vm1589, 1, 0
      %v1630 = vsel %vm1590, 1, 0
      %v1631 = vsel %vm1591, 1, 0
      %v1632 = vsel %vm1592, 1, 0
      %v1633 = vsel %vm1593, 1, 0
      %v1634 = vsel %vm1594, 1, 0
      %v1635 = vsel %vm1595, 1, 0
      %v1636 = vsel %vm1596, 1, 0
      %v1637 = vsel %vm1597, 1, 0
      %v1638 = vsel %vm1598, 1, 0
      %v1639 = vsel %vm1599, 1, 0
      %v1640 = vsel %vm1600, 1, 0
      %v1641 = vsel %vm1601, 1, 0
      %v1642 = vsel %vm1602, 1, 0
      %v1643 = vsel %vm1603, 1, 0
      %v1644 = vsel %vm1604, 1, 0
      %v1645 = vsel %vm1605, 1, 0
      %v1646 = vsel %vm1606, 1, 0
      %v1647 = vsel %vm1607, 1, 0
      %v1648 = vsel %vm1608, 1, 0
      %v1649 = vsel %vm1609, 1, 0
      %v1650 = vsel %vm1610, 1, 0
      %v1651 = vsel %vm1611, 1, 0
      %v1652 = vsel %vm1612, 1, 0
      %v1653 = vsel %vm1613, 1, 0
      %v1654 = vsel %vm1614, 1, 0
      %v1655 = vsel %vm1615, 1, 0
      %v1656 = vsel %vm1616, 1, 0
      %v1657 = vsel %vm1617, 1, 0
      %v1658 = vsel %vm1618, 1, 0
      %v1659 = vsel %vm1619, 1, 0
      %v1660 = vsel %vm1620, 1, 0
      %v1661 = vsel %vm1621, 1, 0
      %v1662 = vsel %vm1622, 1, 0
      %vm1663 = vcmp.eq.s32.totalorder %v1623, 1
      %vm1664 = vcmp.eq.s32.totalorder %v1624, 1
      %vm1665 = vcmp.eq.s32.totalorder %v1625, 1
      %vm1666 = vcmp.eq.s32.totalorder %v1626, 1
      %vm1667 = vcmp.eq.s32.totalorder %v1627, 1
      %vm1668 = vcmp.eq.s32.totalorder %v1628, 1
      %vm1669 = vcmp.eq.s32.totalorder %v1629, 1
      %vm1670 = vcmp.eq.s32.totalorder %v1630, 1
      %vm1671 = vcmp.eq.s32.totalorder %v1631, 1
      %vm1672 = vcmp.eq.s32.totalorder %v1632, 1
      %vm1673 = vcmp.eq.s32.totalorder %v1633, 1
      %vm1674 = vcmp.eq.s32.totalorder %v1634, 1
      %vm1675 = vcmp.eq.s32.totalorder %v1635, 1
      %vm1676 = vcmp.eq.s32.totalorder %v1636, 1
      %vm1677 = vcmp.eq.s32.totalorder %v1637, 1
      %vm1678 = vcmp.eq.s32.totalorder %v1638, 1
      %vm1679 = vcmp.eq.s32.totalorder %v1639, 1
      %vm1680 = vcmp.eq.s32.totalorder %v1640, 1
      %vm1681 = vcmp.eq.s32.totalorder %v1641, 1
      %vm1682 = vcmp.eq.s32.totalorder %v1642, 1
      %vm1683 = vcmp.eq.s32.totalorder %v1643, 1
      %vm1684 = vcmp.eq.s32.totalorder %v1644, 1
      %vm1685 = vcmp.eq.s32.totalorder %v1645, 1
      %vm1686 = vcmp.eq.s32.totalorder %v1646, 1
      %vm1687 = vcmp.eq.s32.totalorder %v1647, 1
      %vm1688 = vcmp.eq.s32.totalorder %v1648, 1
      %vm1689 = vcmp.eq.s32.totalorder %v1649, 1
      %vm1690 = vcmp.eq.s32.totalorder %v1650, 1
      %vm1691 = vcmp.eq.s32.totalorder %v1651, 1
      %vm1692 = vcmp.eq.s32.totalorder %v1652, 1
      %vm1693 = vcmp.eq.s32.totalorder %v1653, 1
      %vm1694 = vcmp.eq.s32.totalorder %v1654, 1
      %vm1695 = vcmp.eq.s32.totalorder %v1655, 1
      %vm1696 = vcmp.eq.s32.totalorder %v1656, 1
      %vm1697 = vcmp.eq.s32.totalorder %v1657, 1
      %vm1698 = vcmp.eq.s32.totalorder %v1658, 1
      %vm1699 = vcmp.eq.s32.totalorder %v1659, 1
      %vm1700 = vcmp.eq.s32.totalorder %v1660, 1
      %vm1701 = vcmp.eq.s32.totalorder %v1661, 1
      %vm1702 = vcmp.eq.s32.totalorder %v1662, 1
      %v1703 = vsel %vm1663, %v1381, -1e+30
      %v1704 = vsel %vm1664, %v1382, -1e+30
      %v1705 = vsel %vm1665, %v1383, -1e+30
      %v1706 = vsel %vm1666, %v1384, -1e+30
      %v1707 = vsel %vm1667, %v1385, -1e+30
      %v1708 = vsel %vm1668, %v1386, -1e+30
      %v1709 = vsel %vm1669, %v1387, -1e+30
      %v1710 = vsel %vm1670, %v1388, -1e+30
      %v1711 = vsel %vm1671, %v1389, -1e+30
      %v1712 = vsel %vm1672, %v1390, -1e+30
      %v1713 = vsel %vm1673, %v1391, -1e+30
      %v1714 = vsel %vm1674, %v1392, -1e+30
      %v1715 = vsel %vm1675, %v1393, -1e+30
      %v1716 = vsel %vm1676, %v1394, -1e+30
      %v1717 = vsel %vm1677, %v1395, -1e+30
      %v1718 = vsel %vm1678, %v1396, -1e+30
      %v1719 = vsel %vm1679, %v1397, -1e+30
      %v1720 = vsel %vm1680, %v1398, -1e+30
      %v1721 = vsel %vm1681, %v1399, -1e+30
      %v1722 = vsel %vm1682, %v1400, -1e+30
      %v1723 = vsel %vm1683, %v1401, -1e+30
      %v1724 = vsel %vm1684, %v1402, -1e+30
      %v1725 = vsel %vm1685, %v1403, -1e+30
      %v1726 = vsel %vm1686, %v1404, -1e+30
      %v1727 = vsel %vm1687, %v1405, -1e+30
      %v1728 = vsel %vm1688, %v1406, -1e+30
      %v1729 = vsel %vm1689, %v1407, -1e+30
      %v1730 = vsel %vm1690, %v1408, -1e+30
      %v1731 = vsel %vm1691, %v1409, -1e+30
      %v1732 = vsel %vm1692, %v1410, -1e+30
      %v1733 = vsel %vm1693, %v1411, -1e+30
      %v1734 = vsel %vm1694, %v1412, -1e+30
      %v1735 = vsel %vm1695, %v1413, -1e+30
      %v1736 = vsel %vm1696, %v1414, -1e+30
      %v1737 = vsel %vm1697, %v1415, -1e+30
      %v1738 = vsel %vm1698, %v1416, -1e+30
      %v1739 = vsel %vm1699, %v1417, -1e+30
      %v1740 = vsel %vm1700, %v1418, -1e+30
      %v1741 = vsel %vm1701, %v1419, -1e+30
      %v1742 = vsel %vm1702, %v1420, -1e+30
      %vm1743 = vcmp.lt.s32.totalorder %v318, 15
      %vm1744 = vcmp.lt.s32.totalorder %v319, 15
      %vm1745 = vcmp.lt.s32.totalorder %v320, 15
      %vm1746 = vcmp.lt.s32.totalorder %v321, 15
      %vm1747 = vcmp.lt.s32.totalorder %v322, 15
      %vm1748 = vcmp.lt.s32.totalorder %v323, 15
      %vm1749 = vcmp.lt.s32.totalorder %v324, 15
      %vm1750 = vcmp.lt.s32.totalorder %v325, 15
      %vm1751 = vcmp.lt.s32.totalorder %v326, 15
      %vm1752 = vcmp.lt.s32.totalorder %v327, 15
      %vm1753 = vcmp.lt.s32.totalorder %v328, 15
      %vm1754 = vcmp.lt.s32.totalorder %v329, 15
      %vm1755 = vcmp.lt.s32.totalorder %v330, 15
      %vm1756 = vcmp.lt.s32.totalorder %v331, 15
      %vm1757 = vcmp.lt.s32.totalorder %v332, 15
      %vm1758 = vcmp.lt.s32.totalorder %v333, 15
      %vm1759 = vcmp.lt.s32.totalorder %v334, 15
      %vm1760 = vcmp.lt.s32.totalorder %v335, 15
      %vm1761 = vcmp.lt.s32.totalorder %v336, 15
      %vm1762 = vcmp.lt.s32.totalorder %v337, 15
      %vm1763 = vcmp.lt.s32.totalorder %v338, 15
      %vm1764 = vcmp.lt.s32.totalorder %v339, 15
      %vm1765 = vcmp.lt.s32.totalorder %v340, 15
      %vm1766 = vcmp.lt.s32.totalorder %v341, 15
      %vm1767 = vcmp.lt.s32.totalorder %v342, 15
      %vm1768 = vcmp.lt.s32.totalorder %v343, 15
      %vm1769 = vcmp.lt.s32.totalorder %v344, 15
      %vm1770 = vcmp.lt.s32.totalorder %v345, 15
      %vm1771 = vcmp.lt.s32.totalorder %v346, 15
      %vm1772 = vcmp.lt.s32.totalorder %v347, 15
      %vm1773 = vcmp.lt.s32.totalorder %v348, 15
      %vm1774 = vcmp.lt.s32.totalorder %v349, 15
      %vm1775 = vcmp.lt.s32.totalorder %v350, 15
      %vm1776 = vcmp.lt.s32.totalorder %v351, 15
      %vm1777 = vcmp.lt.s32.totalorder %v352, 15
      %vm1778 = vcmp.lt.s32.totalorder %v353, 15
      %vm1779 = vcmp.lt.s32.totalorder %v354, 15
      %vm1780 = vcmp.lt.s32.totalorder %v355, 15
      %vm1781 = vcmp.lt.s32.totalorder %v356, 15
      %vm1782 = vcmp.lt.s32.totalorder %v357, 15
      %v1783 = vsel %vm1743, 1, 0
      %v1784 = vsel %vm1744, 1, 0
      %v1785 = vsel %vm1745, 1, 0
      %v1786 = vsel %vm1746, 1, 0
      %v1787 = vsel %vm1747, 1, 0
      %v1788 = vsel %vm1748, 1, 0
      %v1789 = vsel %vm1749, 1, 0
      %v1790 = vsel %vm1750, 1, 0
      %v1791 = vsel %vm1751, 1, 0
      %v1792 = vsel %vm1752, 1, 0
      %v1793 = vsel %vm1753, 1, 0
      %v1794 = vsel %vm1754, 1, 0
      %v1795 = vsel %vm1755, 1, 0
      %v1796 = vsel %vm1756, 1, 0
      %v1797 = vsel %vm1757, 1, 0
      %v1798 = vsel %vm1758, 1, 0
      %v1799 = vsel %vm1759, 1, 0
      %v1800 = vsel %vm1760, 1, 0
      %v1801 = vsel %vm1761, 1, 0
      %v1802 = vsel %vm1762, 1, 0
      %v1803 = vsel %vm1763, 1, 0
      %v1804 = vsel %vm1764, 1, 0
      %v1805 = vsel %vm1765, 1, 0
      %v1806 = vsel %vm1766, 1, 0
      %v1807 = vsel %vm1767, 1, 0
      %v1808 = vsel %vm1768, 1, 0
      %v1809 = vsel %vm1769, 1, 0
      %v1810 = vsel %vm1770, 1, 0
      %v1811 = vsel %vm1771, 1, 0
      %v1812 = vsel %vm1772, 1, 0
      %v1813 = vsel %vm1773, 1, 0
      %v1814 = vsel %vm1774, 1, 0
      %v1815 = vsel %vm1775, 1, 0
      %v1816 = vsel %vm1776, 1, 0
      %v1817 = vsel %vm1777, 1, 0
      %v1818 = vsel %vm1778, 1, 0
      %v1819 = vsel %vm1779, 1, 0
      %v1820 = vsel %vm1780, 1, 0
      %v1821 = vsel %vm1781, 1, 0
      %v1822 = vsel %vm1782, 1, 0
      %1823 = vset.pattern.permute.xlu0 0
      %1824 = vperm.xlu0 %1823, %v1783
      %v1825 = vpop.permute.xlu0 %1824
      %1826 = vset.pattern.permute.xlu0 0
      %1827 = vperm.xlu0 %1826, %v1784
      %v1828 = vpop.permute.xlu0 %1827
      %1829 = vset.pattern.permute.xlu0 0
      %1830 = vperm.xlu0 %1829, %v1785
      %v1831 = vpop.permute.xlu0 %1830
      %1832 = vset.pattern.permute.xlu0 0
      %1833 = vperm.xlu0 %1832, %v1786
      %v1834 = vpop.permute.xlu0 %1833
      %1835 = vset.pattern.permute.xlu0 0
      %1836 = vperm.xlu0 %1835, %v1787
      %v1837 = vpop.permute.xlu0 %1836
      %1838 = vset.pattern.permute.xlu0 0
      %1839 = vperm.xlu0 %1838, %v1788
      %v1840 = vpop.permute.xlu0 %1839
      %1841 = vset.pattern.permute.xlu0 0
      %1842 = vperm.xlu0 %1841, %v1789
      %v1843 = vpop.permute.xlu0 %1842
      %1844 = vset.pattern.permute.xlu0 0
      %1845 = vperm.xlu0 %1844, %v1790
      %v1846 = vpop.permute.xlu0 %1845
      %1847 = vset.pattern.permute.xlu0 0
      %1848 = vperm.xlu0 %1847, %v1791
      %v1849 = vpop.permute.xlu0 %1848
      %1850 = vset.pattern.permute.xlu0 0
      %1851 = vperm.xlu0 %1850, %v1792
      %v1852 = vpop.permute.xlu0 %1851
      %1853 = vset.pattern.permute.xlu0 0
      %1854 = vperm.xlu0 %1853, %v1793
      %v1855 = vpop.permute.xlu0 %1854
      %1856 = vset.pattern.permute.xlu0 0
      %1857 = vperm.xlu0 %1856, %v1794
      %v1858 = vpop.permute.xlu0 %1857
      %1859 = vset.pattern.permute.xlu0 0
      %1860 = vperm.xlu0 %1859, %v1795
      %v1861 = vpop.permute.xlu0 %1860
      %1862 = vset.pattern.permute.xlu0 0
      %1863 = vperm.xlu0 %1862, %v1796
      %v1864 = vpop.permute.xlu0 %1863
      %1865 = vset.pattern.permute.xlu0 0
      %1866 = vperm.xlu0 %1865, %v1797
      %v1867 = vpop.permute.xlu0 %1866
      %1868 = vset.pattern.permute.xlu0 0
      %1869 = vperm.xlu0 %1868, %v1798
      %v1870 = vpop.permute.xlu0 %1869
      %1871 = vset.pattern.permute.xlu0 0
      %1872 = vperm.xlu0 %1871, %v1799
      %v1873 = vpop.permute.xlu0 %1872
      %1874 = vset.pattern.permute.xlu0 0
      %1875 = vperm.xlu0 %1874, %v1800
      %v1876 = vpop.permute.xlu0 %1875
      %1877 = vset.pattern.permute.xlu0 0
      %1878 = vperm.xlu0 %1877, %v1801
      %v1879 = vpop.permute.xlu0 %1878
      %1880 = vset.pattern.permute.xlu0 0
      %1881 = vperm.xlu0 %1880, %v1802
      %v1882 = vpop.permute.xlu0 %1881
      %1883 = vset.pattern.permute.xlu0 0
      %1884 = vperm.xlu0 %1883, %v1803
      %v1885 = vpop.permute.xlu0 %1884
      %1886 = vset.pattern.permute.xlu0 0
      %1887 = vperm.xlu0 %1886, %v1804
      %v1888 = vpop.permute.xlu0 %1887
      %1889 = vset.pattern.permute.xlu0 0
      %1890 = vperm.xlu0 %1889, %v1805
      %v1891 = vpop.permute.xlu0 %1890
      %1892 = vset.pattern.permute.xlu0 0
      %1893 = vperm.xlu0 %1892, %v1806
      %v1894 = vpop.permute.xlu0 %1893
      %1895 = vset.pattern.permute.xlu0 0
      %1896 = vperm.xlu0 %1895, %v1807
      %v1897 = vpop.permute.xlu0 %1896
      %1898 = vset.pattern.permute.xlu0 0
      %1899 = vperm.xlu0 %1898, %v1808
      %v1900 = vpop.permute.xlu0 %1899
      %1901 = vset.pattern.permute.xlu0 0
      %1902 = vperm.xlu0 %1901, %v1809
      %v1903 = vpop.permute.xlu0 %1902
      %1904 = vset.pattern.permute.xlu0 0
      %1905 = vperm.xlu0 %1904, %v1810
      %v1906 = vpop.permute.xlu0 %1905
      %1907 = vset.pattern.permute.xlu0 0
      %1908 = vperm.xlu0 %1907, %v1811
      %v1909 = vpop.permute.xlu0 %1908
      %1910 = vset.pattern.permute.xlu0 0
      %1911 = vperm.xlu0 %1910, %v1812
      %v1912 = vpop.permute.xlu0 %1911
      %1913 = vset.pattern.permute.xlu0 0
      %1914 = vperm.xlu0 %1913, %v1813
      %v1915 = vpop.permute.xlu0 %1914
      %1916 = vset.pattern.permute.xlu0 0
      %1917 = vperm.xlu0 %1916, %v1814
      %v1918 = vpop.permute.xlu0 %1917
      %1919 = vset.pattern.permute.xlu0 0
      %1920 = vperm.xlu0 %1919, %v1815
      %v1921 = vpop.permute.xlu0 %1920
      %1922 = vset.pattern.permute.xlu0 0
      %1923 = vperm.xlu0 %1922, %v1816
      %v1924 = vpop.permute.xlu0 %1923
      %1925 = vset.pattern.permute.xlu0 0
      %1926 = vperm.xlu0 %1925, %v1817
      %v1927 = vpop.permute.xlu0 %1926
      %1928 = vset.pattern.permute.xlu0 0
      %1929 = vperm.xlu0 %1928, %v1818
      %v1930 = vpop.permute.xlu0 %1929
      %1931 = vset.pattern.permute.xlu0 0
      %1932 = vperm.xlu0 %1931, %v1819
      %v1933 = vpop.permute.xlu0 %1932
      %1934 = vset.pattern.permute.xlu0 0
      %1935 = vperm.xlu0 %1934, %v1820
      %v1936 = vpop.permute.xlu0 %1935
      %1937 = vset.pattern.permute.xlu0 0
      %1938 = vperm.xlu0 %1937, %v1821
      %v1939 = vpop.permute.xlu0 %1938
      %1940 = vset.pattern.permute.xlu0 0
      %1941 = vperm.xlu0 %1940, %v1822
      %v1942 = vpop.permute.xlu0 %1941
      %vm1943 = vcmp.eq.s32.totalorder %v1825, 1
      %vm1944 = vcmp.eq.s32.totalorder %v1828, 1
      %vm1945 = vcmp.eq.s32.totalorder %v1831, 1
      %vm1946 = vcmp.eq.s32.totalorder %v1834, 1
      %vm1947 = vcmp.eq.s32.totalorder %v1837, 1
      %vm1948 = vcmp.eq.s32.totalorder %v1840, 1
      %vm1949 = vcmp.eq.s32.totalorder %v1843, 1
      %vm1950 = vcmp.eq.s32.totalorder %v1846, 1
      %vm1951 = vcmp.eq.s32.totalorder %v1849, 1
      %vm1952 = vcmp.eq.s32.totalorder %v1852, 1
      %vm1953 = vcmp.eq.s32.totalorder %v1855, 1
      %vm1954 = vcmp.eq.s32.totalorder %v1858, 1
      %vm1955 = vcmp.eq.s32.totalorder %v1861, 1
      %vm1956 = vcmp.eq.s32.totalorder %v1864, 1
      %vm1957 = vcmp.eq.s32.totalorder %v1867, 1
      %vm1958 = vcmp.eq.s32.totalorder %v1870, 1
      %vm1959 = vcmp.eq.s32.totalorder %v1873, 1
      %vm1960 = vcmp.eq.s32.totalorder %v1876, 1
      %vm1961 = vcmp.eq.s32.totalorder %v1879, 1
      %vm1962 = vcmp.eq.s32.totalorder %v1882, 1
      %vm1963 = vcmp.eq.s32.totalorder %v1885, 1
      %vm1964 = vcmp.eq.s32.totalorder %v1888, 1
      %vm1965 = vcmp.eq.s32.totalorder %v1891, 1
      %vm1966 = vcmp.eq.s32.totalorder %v1894, 1
      %vm1967 = vcmp.eq.s32.totalorder %v1897, 1
      %vm1968 = vcmp.eq.s32.totalorder %v1900, 1
      %vm1969 = vcmp.eq.s32.totalorder %v1903, 1
      %vm1970 = vcmp.eq.s32.totalorder %v1906, 1
      %vm1971 = vcmp.eq.s32.totalorder %v1909, 1
      %vm1972 = vcmp.eq.s32.totalorder %v1912, 1
      %vm1973 = vcmp.eq.s32.totalorder %v1915, 1
      %vm1974 = vcmp.eq.s32.totalorder %v1918, 1
      %vm1975 = vcmp.eq.s32.totalorder %v1921, 1
      %vm1976 = vcmp.eq.s32.totalorder %v1924, 1
      %vm1977 = vcmp.eq.s32.totalorder %v1927, 1
      %vm1978 = vcmp.eq.s32.totalorder %v1930, 1
      %vm1979 = vcmp.eq.s32.totalorder %v1933, 1
      %vm1980 = vcmp.eq.s32.totalorder %v1936, 1
      %vm1981 = vcmp.eq.s32.totalorder %v1939, 1
      %vm1982 = vcmp.eq.s32.totalorder %v1942, 1
      %vm2024 = vcmask 1046528
      %v2025 = vrot.slane %v1703, 1
      %v2026 = vrot.slane %v1704, 1
      %v2027 = vsel %vm2024, %v2025, %v2026
      %v2028 = vrot.slane %v1705, 1
      %v2029 = vsel %vm2024, %v2026, %v2028
      %v2030 = vrot.slane %v1706, 1
      %v2031 = vsel %vm2024, %v2028, %v2030
      %v2032 = vrot.slane %v1707, 1
      %v2033 = vsel %vm2024, %v2030, %v2032
      %v2034 = vrot.slane %v1708, 1
      %v2035 = vsel %vm2024, %v2032, %v2034
      %v2036 = vrot.slane %v1709, 1
      %v2037 = vsel %vm2024, %v2034, %v2036
      %v2038 = vrot.slane %v1710, 1
      %v2039 = vsel %vm2024, %v2036, %v2038
      %v2040 = vrot.slane %v1711, 1
      %v2041 = vsel %vm2024, %v2038, %v2040
      %v2042 = vrot.slane %v1712, 1
      %v2043 = vsel %vm2024, %v2040, %v2042
      %v2044 = vrot.slane %v1713, 1
      %v2045 = vsel %vm2024, %v2042, %v2044
      %v2046 = vrot.slane %v1714, 1
      %v2047 = vsel %vm2024, %v2044, %v2046
      %v2048 = vrot.slane %v1715, 1
      %v2049 = vsel %vm2024, %v2046, %v2048
      %v2050 = vrot.slane %v1716, 1
      %v2051 = vsel %vm2024, %v2048, %v2050
      %v2052 = vrot.slane %v1717, 1
      %v2053 = vsel %vm2024, %v2050, %v2052
      %v2054 = vrot.slane %v1718, 1
      %v2055 = vsel %vm2024, %v2052, %v2054
      %v2056 = vrot.slane %v1719, 1
      %v2057 = vsel %vm2024, %v2054, %v2056
      %v2058 = vrot.slane %v1720, 1
      %v2059 = vsel %vm2024, %v2056, %v2058
      %v2060 = vrot.slane %v1721, 1
      %v2061 = vsel %vm2024, %v2058, %v2060
      %v2062 = vrot.slane %v1722, 1
      %v2063 = vsel %vm2024, %v2060, %v2062
      %v2064 = vrot.slane %v1723, 1
      %v2065 = vsel %vm2024, %v2062, %v2064
      %v2066 = vrot.slane %v1724, 1
      %v2067 = vsel %vm2024, %v2064, %v2066
      %v2068 = vrot.slane %v1725, 1
      %v2069 = vsel %vm2024, %v2066, %v2068
      %v2070 = vrot.slane %v1726, 1
      %v2071 = vsel %vm2024, %v2068, %v2070
      %v2072 = vrot.slane %v1727, 1
      %v2073 = vsel %vm2024, %v2070, %v2072
      %v2074 = vrot.slane %v1728, 1
      %v2075 = vsel %vm2024, %v2072, %v2074
      %v2076 = vrot.slane %v1729, 1
      %v2077 = vsel %vm2024, %v2074, %v2076
      %v2078 = vrot.slane %v1730, 1
      %v2079 = vsel %vm2024, %v2076, %v2078
      %v2080 = vrot.slane %v1731, 1
      %v2081 = vsel %vm2024, %v2078, %v2080
      %v2082 = vrot.slane %v1732, 1
      %v2083 = vsel %vm2024, %v2080, %v2082
      %v2084 = vrot.slane %v1733, 1
      %v2085 = vsel %vm2024, %v2082, %v2084
      %v2086 = vrot.slane %v1734, 1
      %v2087 = vsel %vm2024, %v2084, %v2086
      %v2088 = vrot.slane %v1735, 1
      %v2089 = vsel %vm2024, %v2086, %v2088
      %v2090 = vrot.slane %v1736, 1
      %v2091 = vsel %vm2024, %v2088, %v2090
      %v2092 = vrot.slane %v1737, 1
      %v2093 = vsel %vm2024, %v2090, %v2092
      %v2094 = vrot.slane %v1738, 1
      %v2095 = vsel %vm2024, %v2092, %v2094
      %v2096 = vrot.slane %v1739, 1
      %v2097 = vsel %vm2024, %v2094, %v2096
      %v2098 = vrot.slane %v1740, 1
      %v2099 = vsel %vm2024, %v2096, %v2098
      %v2100 = vrot.slane %v1741, 1
      %v2101 = vsel %vm2024, %v2098, %v2100
      %v2102 = vrot.slane %v1742, 1
      %v2103 = vsel %vm2024, %v2100, %v2102
      %v2104 = vrot.slane -1e+30, 1
      %v2105 = vsel %vm2024, %v2102, %v2104
      %v2146 = vsel %vm1943, %v2027, -1e+30
      %v2147 = vsel %vm1944, %v2029, -1e+30
      %v2148 = vsel %vm1945, %v2031, -1e+30
      %v2149 = vsel %vm1946, %v2033, -1e+30
      %v2150 = vsel %vm1947, %v2035, -1e+30
      %v2151 = vsel %vm1948, %v2037, -1e+30
      %v2152 = vsel %vm1949, %v2039, -1e+30
      %v2153 = vsel %vm1950, %v2041, -1e+30
      %v2154 = vsel %vm1951, %v2043, -1e+30
      %v2155 = vsel %vm1952, %v2045, -1e+30
      %v2156 = vsel %vm1953, %v2047, -1e+30
      %v2157 = vsel %vm1954, %v2049, -1e+30
      %v2158 = vsel %vm1955, %v2051, -1e+30
      %v2159 = vsel %vm1956, %v2053, -1e+30
      %v2160 = vsel %vm1957, %v2055, -1e+30
      %v2161 = vsel %vm1958, %v2057, -1e+30
      %v2162 = vsel %vm1959, %v2059, -1e+30
      %v2163 = vsel %vm1960, %v2061, -1e+30
      %v2164 = vsel %vm1961, %v2063, -1e+30
      %v2165 = vsel %vm1962, %v2065, -1e+30
      %v2166 = vsel %vm1963, %v2067, -1e+30
      %v2167 = vsel %vm1964, %v2069, -1e+30
      %v2168 = vsel %vm1965, %v2071, -1e+30
      %v2169 = vsel %vm1966, %v2073, -1e+30
      %v2170 = vsel %vm1967, %v2075, -1e+30
      %v2171 = vsel %vm1968, %v2077, -1e+30
      %v2172 = vsel %vm1969, %v2079, -1e+30
      %v2173 = vsel %vm1970, %v2081, -1e+30
      %v2174 = vsel %vm1971, %v2083, -1e+30
      %v2175 = vsel %vm1972, %v2085, -1e+30
      %v2176 = vsel %vm1973, %v2087, -1e+30
      %v2177 = vsel %vm1974, %v2089, -1e+30
      %v2178 = vsel %vm1975, %v2091, -1e+30
      %v2179 = vsel %vm1976, %v2093, -1e+30
      %v2180 = vsel %vm1977, %v2095, -1e+30
      %v2181 = vsel %vm1978, %v2097, -1e+30
      %v2182 = vsel %vm1979, %v2099, -1e+30
      %v2183 = vsel %vm1980, %v2101, -1e+30
      %v2184 = vsel %vm1981, %v2103, -1e+30
      %v2185 = vsel %vm1982, %v2105, -1e+30
      %v2186 = vmax.f32 %v1703, %v2146
      %v2187 = vmax.f32 %v1704, %v2147
      %v2188 = vmax.f32 %v1705, %v2148
      %v2189 = vmax.f32 %v1706, %v2149
      %v2190 = vmax.f32 %v1707, %v2150
      %v2191 = vmax.f32 %v1708, %v2151
      %v2192 = vmax.f32 %v1709, %v2152
      %v2193 = vmax.f32 %v1710, %v2153
      %v2194 = vmax.f32 %v1711, %v2154
      %v2195 = vmax.f32 %v1712, %v2155
      %v2196 = vmax.f32 %v1713, %v2156
      %v2197 = vmax.f32 %v1714, %v2157
      %v2198 = vmax.f32 %v1715, %v2158
      %v2199 = vmax.f32 %v1716, %v2159
      %v2200 = vmax.f32 %v1717, %v2160
      %v2201 = vmax.f32 %v1718, %v2161
      %v2202 = vmax.f32 %v1719, %v2162
      %v2203 = vmax.f32 %v1720, %v2163
      %v2204 = vmax.f32 %v1721, %v2164
      %v2205 = vmax.f32 %v1722, %v2165
      %v2206 = vmax.f32 %v1723, %v2166
      %v2207 = vmax.f32 %v1724, %v2167
      %v2208 = vmax.f32 %v1725, %v2168
      %v2209 = vmax.f32 %v1726, %v2169
      %v2210 = vmax.f32 %v1727, %v2170
      %v2211 = vmax.f32 %v1728, %v2171
      %v2212 = vmax.f32 %v1729, %v2172
      %v2213 = vmax.f32 %v1730, %v2173
      %v2214 = vmax.f32 %v1731, %v2174
      %v2215 = vmax.f32 %v1732, %v2175
      %v2216 = vmax.f32 %v1733, %v2176
      %v2217 = vmax.f32 %v1734, %v2177
      %v2218 = vmax.f32 %v1735, %v2178
      %v2219 = vmax.f32 %v1736, %v2179
      %v2220 = vmax.f32 %v1737, %v2180
      %v2221 = vmax.f32 %v1738, %v2181
      %v2222 = vmax.f32 %v1739, %v2182
      %v2223 = vmax.f32 %v1740, %v2183
      %v2224 = vmax.f32 %v1741, %v2184
      %v2225 = vmax.f32 %v1742, %v2185
      %vm2226 = vcmp.ge.s32.totalorder %v318, 1
      %vm2227 = vcmp.ge.s32.totalorder %v319, 1
      %vm2228 = vcmp.ge.s32.totalorder %v320, 1
      %vm2229 = vcmp.ge.s32.totalorder %v321, 1
      %vm2230 = vcmp.ge.s32.totalorder %v322, 1
      %vm2231 = vcmp.ge.s32.totalorder %v323, 1
      %vm2232 = vcmp.ge.s32.totalorder %v324, 1
      %vm2233 = vcmp.ge.s32.totalorder %v325, 1
      %vm2234 = vcmp.ge.s32.totalorder %v326, 1
      %vm2235 = vcmp.ge.s32.totalorder %v327, 1
      %vm2236 = vcmp.ge.s32.totalorder %v328, 1
      %vm2237 = vcmp.ge.s32.totalorder %v329, 1
      %vm2238 = vcmp.ge.s32.totalorder %v330, 1
      %vm2239 = vcmp.ge.s32.totalorder %v331, 1
      %vm2240 = vcmp.ge.s32.totalorder %v332, 1
      %vm2241 = vcmp.ge.s32.totalorder %v333, 1
      %vm2242 = vcmp.ge.s32.totalorder %v334, 1
      %vm2243 = vcmp.ge.s32.totalorder %v335, 1
      %vm2244 = vcmp.ge.s32.totalorder %v336, 1
      %vm2245 = vcmp.ge.s32.totalorder %v337, 1
      %vm2246 = vcmp.ge.s32.totalorder %v338, 1
      %vm2247 = vcmp.ge.s32.totalorder %v339, 1
      %vm2248 = vcmp.ge.s32.totalorder %v340, 1
      %vm2249 = vcmp.ge.s32.totalorder %v341, 1
      %vm2250 = vcmp.ge.s32.totalorder %v342, 1
      %vm2251 = vcmp.ge.s32.totalorder %v343, 1
      %vm2252 = vcmp.ge.s32.totalorder %v344, 1
      %vm2253 = vcmp.ge.s32.totalorder %v345, 1
      %vm2254 = vcmp.ge.s32.totalorder %v346, 1
      %vm2255 = vcmp.ge.s32.totalorder %v347, 1
      %vm2256 = vcmp.ge.s32.totalorder %v348, 1
      %vm2257 = vcmp.ge.s32.totalorder %v349, 1
      %vm2258 = vcmp.ge.s32.totalorder %v350, 1
      %vm2259 = vcmp.ge.s32.totalorder %v351, 1
      %vm2260 = vcmp.ge.s32.totalorder %v352, 1
      %vm2261 = vcmp.ge.s32.totalorder %v353, 1
      %vm2262 = vcmp.ge.s32.totalorder %v354, 1
      %vm2263 = vcmp.ge.s32.totalorder %v355, 1
      %vm2264 = vcmp.ge.s32.totalorder %v356, 1
      %vm2265 = vcmp.ge.s32.totalorder %v357, 1
      %v2266 = vsel %vm2226, 1, 0
      %v2267 = vsel %vm2227, 1, 0
      %v2268 = vsel %vm2228, 1, 0
      %v2269 = vsel %vm2229, 1, 0
      %v2270 = vsel %vm2230, 1, 0
      %v2271 = vsel %vm2231, 1, 0
      %v2272 = vsel %vm2232, 1, 0
      %v2273 = vsel %vm2233, 1, 0
      %v2274 = vsel %vm2234, 1, 0
      %v2275 = vsel %vm2235, 1, 0
      %v2276 = vsel %vm2236, 1, 0
      %v2277 = vsel %vm2237, 1, 0
      %v2278 = vsel %vm2238, 1, 0
      %v2279 = vsel %vm2239, 1, 0
      %v2280 = vsel %vm2240, 1, 0
      %v2281 = vsel %vm2241, 1, 0
      %v2282 = vsel %vm2242, 1, 0
      %v2283 = vsel %vm2243, 1, 0
      %v2284 = vsel %vm2244, 1, 0
      %v2285 = vsel %vm2245, 1, 0
      %v2286 = vsel %vm2246, 1, 0
      %v2287 = vsel %vm2247, 1, 0
      %v2288 = vsel %vm2248, 1, 0
      %v2289 = vsel %vm2249, 1, 0
      %v2290 = vsel %vm2250, 1, 0
      %v2291 = vsel %vm2251, 1, 0
      %v2292 = vsel %vm2252, 1, 0
      %v2293 = vsel %vm2253, 1, 0
      %v2294 = vsel %vm2254, 1, 0
      %v2295 = vsel %vm2255, 1, 0
      %v2296 = vsel %vm2256, 1, 0
      %v2297 = vsel %vm2257, 1, 0
      %v2298 = vsel %vm2258, 1, 0
      %v2299 = vsel %vm2259, 1, 0
      %v2300 = vsel %vm2260, 1, 0
      %v2301 = vsel %vm2261, 1, 0
      %v2302 = vsel %vm2262, 1, 0
      %v2303 = vsel %vm2263, 1, 0
      %v2304 = vsel %vm2264, 1, 0
      %v2305 = vsel %vm2265, 1, 0
      %2306 = vset.pattern.permute.xlu0 0
      %2307 = vperm.xlu0 %2306, %v2266
      %v2308 = vpop.permute.xlu0 %2307
      %2309 = vset.pattern.permute.xlu0 0
      %2310 = vperm.xlu0 %2309, %v2267
      %v2311 = vpop.permute.xlu0 %2310
      %2312 = vset.pattern.permute.xlu0 0
      %2313 = vperm.xlu0 %2312, %v2268
      %v2314 = vpop.permute.xlu0 %2313
      %2315 = vset.pattern.permute.xlu0 0
      %2316 = vperm.xlu0 %2315, %v2269
      %v2317 = vpop.permute.xlu0 %2316
      %2318 = vset.pattern.permute.xlu0 0
      %2319 = vperm.xlu0 %2318, %v2270
      %v2320 = vpop.permute.xlu0 %2319
      %2321 = vset.pattern.permute.xlu0 0
      %2322 = vperm.xlu0 %2321, %v2271
      %v2323 = vpop.permute.xlu0 %2322
      %2324 = vset.pattern.permute.xlu0 0
      %2325 = vperm.xlu0 %2324, %v2272
      %v2326 = vpop.permute.xlu0 %2325
      %2327 = vset.pattern.permute.xlu0 0
      %2328 = vperm.xlu0 %2327, %v2273
      %v2329 = vpop.permute.xlu0 %2328
      %2330 = vset.pattern.permute.xlu0 0
      %2331 = vperm.xlu0 %2330, %v2274
      %v2332 = vpop.permute.xlu0 %2331
      %2333 = vset.pattern.permute.xlu0 0
      %2334 = vperm.xlu0 %2333, %v2275
      %v2335 = vpop.permute.xlu0 %2334
      %2336 = vset.pattern.permute.xlu0 0
      %2337 = vperm.xlu0 %2336, %v2276
      %v2338 = vpop.permute.xlu0 %2337
      %2339 = vset.pattern.permute.xlu0 0
      %2340 = vperm.xlu0 %2339, %v2277
      %v2341 = vpop.permute.xlu0 %2340
      %2342 = vset.pattern.permute.xlu0 0
      %2343 = vperm.xlu0 %2342, %v2278
      %v2344 = vpop.permute.xlu0 %2343
      %2345 = vset.pattern.permute.xlu0 0
      %2346 = vperm.xlu0 %2345, %v2279
      %v2347 = vpop.permute.xlu0 %2346
      %2348 = vset.pattern.permute.xlu0 0
      %2349 = vperm.xlu0 %2348, %v2280
      %v2350 = vpop.permute.xlu0 %2349
      %2351 = vset.pattern.permute.xlu0 0
      %2352 = vperm.xlu0 %2351, %v2281
      %v2353 = vpop.permute.xlu0 %2352
      %2354 = vset.pattern.permute.xlu0 0
      %2355 = vperm.xlu0 %2354, %v2282
      %v2356 = vpop.permute.xlu0 %2355
      %2357 = vset.pattern.permute.xlu0 0
      %2358 = vperm.xlu0 %2357, %v2283
      %v2359 = vpop.permute.xlu0 %2358
      %2360 = vset.pattern.permute.xlu0 0
      %2361 = vperm.xlu0 %2360, %v2284
      %v2362 = vpop.permute.xlu0 %2361
      %2363 = vset.pattern.permute.xlu0 0
      %2364 = vperm.xlu0 %2363, %v2285
      %v2365 = vpop.permute.xlu0 %2364
      %2366 = vset.pattern.permute.xlu0 0
      %2367 = vperm.xlu0 %2366, %v2286
      %v2368 = vpop.permute.xlu0 %2367
      %2369 = vset.pattern.permute.xlu0 0
      %2370 = vperm.xlu0 %2369, %v2287
      %v2371 = vpop.permute.xlu0 %2370
      %2372 = vset.pattern.permute.xlu0 0
      %2373 = vperm.xlu0 %2372, %v2288
      %v2374 = vpop.permute.xlu0 %2373
      %2375 = vset.pattern.permute.xlu0 0
      %2376 = vperm.xlu0 %2375, %v2289
      %v2377 = vpop.permute.xlu0 %2376
      %2378 = vset.pattern.permute.xlu0 0
      %2379 = vperm.xlu0 %2378, %v2290
      %v2380 = vpop.permute.xlu0 %2379
      %2381 = vset.pattern.permute.xlu0 0
      %2382 = vperm.xlu0 %2381, %v2291
      %v2383 = vpop.permute.xlu0 %2382
      %2384 = vset.pattern.permute.xlu0 0
      %2385 = vperm.xlu0 %2384, %v2292
      %v2386 = vpop.permute.xlu0 %2385
      %2387 = vset.pattern.permute.xlu0 0
      %2388 = vperm.xlu0 %2387, %v2293
      %v2389 = vpop.permute.xlu0 %2388
      %2390 = vset.pattern.permute.xlu0 0
      %2391 = vperm.xlu0 %2390, %v2294
      %v2392 = vpop.permute.xlu0 %2391
      %2393 = vset.pattern.permute.xlu0 0
      %2394 = vperm.xlu0 %2393, %v2295
      %v2395 = vpop.permute.xlu0 %2394
      %2396 = vset.pattern.permute.xlu0 0
      %2397 = vperm.xlu0 %2396, %v2296
      %v2398 = vpop.permute.xlu0 %2397
      %2399 = vset.pattern.permute.xlu0 0
      %2400 = vperm.xlu0 %2399, %v2297
      %v2401 = vpop.permute.xlu0 %2400
      %2402 = vset.pattern.permute.xlu0 0
      %2403 = vperm.xlu0 %2402, %v2298
      %v2404 = vpop.permute.xlu0 %2403
      %2405 = vset.pattern.permute.xlu0 0
      %2406 = vperm.xlu0 %2405, %v2299
      %v2407 = vpop.permute.xlu0 %2406
      %2408 = vset.pattern.permute.xlu0 0
      %2409 = vperm.xlu0 %2408, %v2300
      %v2410 = vpop.permute.xlu0 %2409
      %2411 = vset.pattern.permute.xlu0 0
      %2412 = vperm.xlu0 %2411, %v2301
      %v2413 = vpop.permute.xlu0 %2412
      %2414 = vset.pattern.permute.xlu0 0
      %2415 = vperm.xlu0 %2414, %v2302
      %v2416 = vpop.permute.xlu0 %2415
      %2417 = vset.pattern.permute.xlu0 0
      %2418 = vperm.xlu0 %2417, %v2303
      %v2419 = vpop.permute.xlu0 %2418
      %2420 = vset.pattern.permute.xlu0 0
      %2421 = vperm.xlu0 %2420, %v2304
      %v2422 = vpop.permute.xlu0 %2421
      %2423 = vset.pattern.permute.xlu0 0
      %2424 = vperm.xlu0 %2423, %v2305
      %v2425 = vpop.permute.xlu0 %2424
      %vm2426 = vcmp.eq.s32.totalorder %v2308, 1
      %vm2427 = vcmp.eq.s32.totalorder %v2311, 1
      %vm2428 = vcmp.eq.s32.totalorder %v2314, 1
      %vm2429 = vcmp.eq.s32.totalorder %v2317, 1
      %vm2430 = vcmp.eq.s32.totalorder %v2320, 1
      %vm2431 = vcmp.eq.s32.totalorder %v2323, 1
      %vm2432 = vcmp.eq.s32.totalorder %v2326, 1
      %vm2433 = vcmp.eq.s32.totalorder %v2329, 1
      %vm2434 = vcmp.eq.s32.totalorder %v2332, 1
      %vm2435 = vcmp.eq.s32.totalorder %v2335, 1
      %vm2436 = vcmp.eq.s32.totalorder %v2338, 1
      %vm2437 = vcmp.eq.s32.totalorder %v2341, 1
      %vm2438 = vcmp.eq.s32.totalorder %v2344, 1
      %vm2439 = vcmp.eq.s32.totalorder %v2347, 1
      %vm2440 = vcmp.eq.s32.totalorder %v2350, 1
      %vm2441 = vcmp.eq.s32.totalorder %v2353, 1
      %vm2442 = vcmp.eq.s32.totalorder %v2356, 1
      %vm2443 = vcmp.eq.s32.totalorder %v2359, 1
      %vm2444 = vcmp.eq.s32.totalorder %v2362, 1
      %vm2445 = vcmp.eq.s32.totalorder %v2365, 1
      %vm2446 = vcmp.eq.s32.totalorder %v2368, 1
      %vm2447 = vcmp.eq.s32.totalorder %v2371, 1
      %vm2448 = vcmp.eq.s32.totalorder %v2374, 1
      %vm2449 = vcmp.eq.s32.totalorder %v2377, 1
      %vm2450 = vcmp.eq.s32.totalorder %v2380, 1
      %vm2451 = vcmp.eq.s32.totalorder %v2383, 1
      %vm2452 = vcmp.eq.s32.totalorder %v2386, 1
      %vm2453 = vcmp.eq.s32.totalorder %v2389, 1
      %vm2454 = vcmp.eq.s32.totalorder %v2392, 1
      %vm2455 = vcmp.eq.s32.totalorder %v2395, 1
      %vm2456 = vcmp.eq.s32.totalorder %v2398, 1
      %vm2457 = vcmp.eq.s32.totalorder %v2401, 1
      %vm2458 = vcmp.eq.s32.totalorder %v2404, 1
      %vm2459 = vcmp.eq.s32.totalorder %v2407, 1
      %vm2460 = vcmp.eq.s32.totalorder %v2410, 1
      %vm2461 = vcmp.eq.s32.totalorder %v2413, 1
      %vm2462 = vcmp.eq.s32.totalorder %v2416, 1
      %vm2463 = vcmp.eq.s32.totalorder %v2419, 1
      %vm2464 = vcmp.eq.s32.totalorder %v2422, 1
      %vm2465 = vcmp.eq.s32.totalorder %v2425, 1
      %vm2466 = vcmask 1040384
      %v2467 = vrot.slane -1e+30, 7
      %v2468 = vrot.slane %v1703, 7
      %v2469 = vsel %vm2466, %v2467, %v2468
      %v2470 = vrot.slane %v1704, 7
      %v2471 = vsel %vm2466, %v2468, %v2470
      %v2472 = vrot.slane %v1705, 7
      %v2473 = vsel %vm2466, %v2470, %v2472
      %v2474 = vrot.slane %v1706, 7
      %v2475 = vsel %vm2466, %v2472, %v2474
      %v2476 = vrot.slane %v1707, 7
      %v2477 = vsel %vm2466, %v2474, %v2476
      %v2478 = vrot.slane %v1708, 7
      %v2479 = vsel %vm2466, %v2476, %v2478
      %v2480 = vrot.slane %v1709, 7
      %v2481 = vsel %vm2466, %v2478, %v2480
      %v2482 = vrot.slane %v1710, 7
      %v2483 = vsel %vm2466, %v2480, %v2482
      %v2484 = vrot.slane %v1711, 7
      %v2485 = vsel %vm2466, %v2482, %v2484
      %v2486 = vrot.slane %v1712, 7
      %v2487 = vsel %vm2466, %v2484, %v2486
      %v2488 = vrot.slane %v1713, 7
      %v2489 = vsel %vm2466, %v2486, %v2488
      %v2490 = vrot.slane %v1714, 7
      %v2491 = vsel %vm2466, %v2488, %v2490
      %v2492 = vrot.slane %v1715, 7
      %v2493 = vsel %vm2466, %v2490, %v2492
      %v2494 = vrot.slane %v1716, 7
      %v2495 = vsel %vm2466, %v2492, %v2494
      %v2496 = vrot.slane %v1717, 7
      %v2497 = vsel %vm2466, %v2494, %v2496
      %v2498 = vrot.slane %v1718, 7
      %v2499 = vsel %vm2466, %v2496, %v2498
      %v2500 = vrot.slane %v1719, 7
      %v2501 = vsel %vm2466, %v2498, %v2500
      %v2502 = vrot.slane %v1720, 7
      %v2503 = vsel %vm2466, %v2500, %v2502
      %v2504 = vrot.slane %v1721, 7
      %v2505 = vsel %vm2466, %v2502, %v2504
      %v2506 = vrot.slane %v1722, 7
      %v2507 = vsel %vm2466, %v2504, %v2506
      %v2508 = vrot.slane %v1723, 7
      %v2509 = vsel %vm2466, %v2506, %v2508
      %v2510 = vrot.slane %v1724, 7
      %v2511 = vsel %vm2466, %v2508, %v2510
      %v2512 = vrot.slane %v1725, 7
      %v2513 = vsel %vm2466, %v2510, %v2512
      %v2514 = vrot.slane %v1726, 7
      %v2515 = vsel %vm2466, %v2512, %v2514
      %v2516 = vrot.slane %v1727, 7
      %v2517 = vsel %vm2466, %v2514, %v2516
      %v2518 = vrot.slane %v1728, 7
      %v2519 = vsel %vm2466, %v2516, %v2518
      %v2520 = vrot.slane %v1729, 7
      %v2521 = vsel %vm2466, %v2518, %v2520
      %v2522 = vrot.slane %v1730, 7
      %v2523 = vsel %vm2466, %v2520, %v2522
      %v2524 = vrot.slane %v1731, 7
      %v2525 = vsel %vm2466, %v2522, %v2524
      %v2526 = vrot.slane %v1732, 7
      %v2527 = vsel %vm2466, %v2524, %v2526
      %v2528 = vrot.slane %v1733, 7
      %v2529 = vsel %vm2466, %v2526, %v2528
      %v2530 = vrot.slane %v1734, 7
      %v2531 = vsel %vm2466, %v2528, %v2530
      %v2532 = vrot.slane %v1735, 7
      %v2533 = vsel %vm2466, %v2530, %v2532
      %v2534 = vrot.slane %v1736, 7
      %v2535 = vsel %vm2466, %v2532, %v2534
      %v2536 = vrot.slane %v1737, 7
      %v2537 = vsel %vm2466, %v2534, %v2536
      %v2538 = vrot.slane %v1738, 7
      %v2539 = vsel %vm2466, %v2536, %v2538
      %v2540 = vrot.slane %v1739, 7
      %v2541 = vsel %vm2466, %v2538, %v2540
      %v2542 = vrot.slane %v1740, 7
      %v2543 = vsel %vm2466, %v2540, %v2542
      %v2544 = vrot.slane %v1741, 7
      %v2545 = vsel %vm2466, %v2542, %v2544
      %v2546 = vrot.slane %v1742, 7
      %v2547 = vsel %vm2466, %v2544, %v2546
      %v2588 = vsel %vm2426, %v2469, -1e+30
      %v2589 = vsel %vm2427, %v2471, -1e+30
      %v2590 = vsel %vm2428, %v2473, -1e+30
      %v2591 = vsel %vm2429, %v2475, -1e+30
      %v2592 = vsel %vm2430, %v2477, -1e+30
      %v2593 = vsel %vm2431, %v2479, -1e+30
      %v2594 = vsel %vm2432, %v2481, -1e+30
      %v2595 = vsel %vm2433, %v2483, -1e+30
      %v2596 = vsel %vm2434, %v2485, -1e+30
      %v2597 = vsel %vm2435, %v2487, -1e+30
      %v2598 = vsel %vm2436, %v2489, -1e+30
      %v2599 = vsel %vm2437, %v2491, -1e+30
      %v2600 = vsel %vm2438, %v2493, -1e+30
      %v2601 = vsel %vm2439, %v2495, -1e+30
      %v2602 = vsel %vm2440, %v2497, -1e+30
      %v2603 = vsel %vm2441, %v2499, -1e+30
      %v2604 = vsel %vm2442, %v2501, -1e+30
      %v2605 = vsel %vm2443, %v2503, -1e+30
      %v2606 = vsel %vm2444, %v2505, -1e+30
      %v2607 = vsel %vm2445, %v2507, -1e+30
      %v2608 = vsel %vm2446, %v2509, -1e+30
      %v2609 = vsel %vm2447, %v2511, -1e+30
      %v2610 = vsel %vm2448, %v2513, -1e+30
      %v2611 = vsel %vm2449, %v2515, -1e+30
      %v2612 = vsel %vm2450, %v2517, -1e+30
      %v2613 = vsel %vm2451, %v2519, -1e+30
      %v2614 = vsel %vm2452, %v2521, -1e+30
      %v2615 = vsel %vm2453, %v2523, -1e+30
      %v2616 = vsel %vm2454, %v2525, -1e+30
      %v2617 = vsel %vm2455, %v2527, -1e+30
      %v2618 = vsel %vm2456, %v2529, -1e+30
      %v2619 = vsel %vm2457, %v2531, -1e+30
      %v2620 = vsel %vm2458, %v2533, -1e+30
      %v2621 = vsel %vm2459, %v2535, -1e+30
      %v2622 = vsel %vm2460, %v2537, -1e+30
      %v2623 = vsel %vm2461, %v2539, -1e+30
      %v2624 = vsel %vm2462, %v2541, -1e+30
      %v2625 = vsel %vm2463, %v2543, -1e+30
      %v2626 = vsel %vm2464, %v2545, -1e+30
      %v2627 = vsel %vm2465, %v2547, -1e+30
      %v2628 = vmax.f32 %v2186, %v2588
      %v2629 = vmax.f32 %v2187, %v2589
      %v2630 = vmax.f32 %v2188, %v2590
      %v2631 = vmax.f32 %v2189, %v2591
      %v2632 = vmax.f32 %v2190, %v2592
      %v2633 = vmax.f32 %v2191, %v2593
      %v2634 = vmax.f32 %v2192, %v2594
      %v2635 = vmax.f32 %v2193, %v2595
      %v2636 = vmax.f32 %v2194, %v2596
      %v2637 = vmax.f32 %v2195, %v2597
      %v2638 = vmax.f32 %v2196, %v2598
      %v2639 = vmax.f32 %v2197, %v2599
      %v2640 = vmax.f32 %v2198, %v2600
      %v2641 = vmax.f32 %v2199, %v2601
      %v2642 = vmax.f32 %v2200, %v2602
      %v2643 = vmax.f32 %v2201, %v2603
      %v2644 = vmax.f32 %v2202, %v2604
      %v2645 = vmax.f32 %v2203, %v2605
      %v2646 = vmax.f32 %v2204, %v2606
      %v2647 = vmax.f32 %v2205, %v2607
      %v2648 = vmax.f32 %v2206, %v2608
      %v2649 = vmax.f32 %v2207, %v2609
      %v2650 = vmax.f32 %v2208, %v2610
      %v2651 = vmax.f32 %v2209, %v2611
      %v2652 = vmax.f32 %v2210, %v2612
      %v2653 = vmax.f32 %v2211, %v2613
      %v2654 = vmax.f32 %v2212, %v2614
      %v2655 = vmax.f32 %v2213, %v2615
      %v2656 = vmax.f32 %v2214, %v2616
      %v2657 = vmax.f32 %v2215, %v2617
      %v2658 = vmax.f32 %v2216, %v2618
      %v2659 = vmax.f32 %v2217, %v2619
      %v2660 = vmax.f32 %v2218, %v2620
      %v2661 = vmax.f32 %v2219, %v2621
      %v2662 = vmax.f32 %v2220, %v2622
      %v2663 = vmax.f32 %v2221, %v2623
      %v2664 = vmax.f32 %v2222, %v2624
      %v2665 = vmax.f32 %v2223, %v2625
      %v2666 = vmax.f32 %v2224, %v2626
      %v2667 = vmax.f32 %v2225, %v2627
      %vm2668 = vcmp.lt.s32.totalorder %v318, 14
      %vm2669 = vcmp.lt.s32.totalorder %v319, 14
      %vm2670 = vcmp.lt.s32.totalorder %v320, 14
      %vm2671 = vcmp.lt.s32.totalorder %v321, 14
      %vm2672 = vcmp.lt.s32.totalorder %v322, 14
      %vm2673 = vcmp.lt.s32.totalorder %v323, 14
      %vm2674 = vcmp.lt.s32.totalorder %v324, 14
      %vm2675 = vcmp.lt.s32.totalorder %v325, 14
      %vm2676 = vcmp.lt.s32.totalorder %v326, 14
      %vm2677 = vcmp.lt.s32.totalorder %v327, 14
      %vm2678 = vcmp.lt.s32.totalorder %v328, 14
      %vm2679 = vcmp.lt.s32.totalorder %v329, 14
      %vm2680 = vcmp.lt.s32.totalorder %v330, 14
      %vm2681 = vcmp.lt.s32.totalorder %v331, 14
      %vm2682 = vcmp.lt.s32.totalorder %v332, 14
      %vm2683 = vcmp.lt.s32.totalorder %v333, 14
      %vm2684 = vcmp.lt.s32.totalorder %v334, 14
      %vm2685 = vcmp.lt.s32.totalorder %v335, 14
      %vm2686 = vcmp.lt.s32.totalorder %v336, 14
      %vm2687 = vcmp.lt.s32.totalorder %v337, 14
      %vm2688 = vcmp.lt.s32.totalorder %v338, 14
      %vm2689 = vcmp.lt.s32.totalorder %v339, 14
      %vm2690 = vcmp.lt.s32.totalorder %v340, 14
      %vm2691 = vcmp.lt.s32.totalorder %v341, 14
      %vm2692 = vcmp.lt.s32.totalorder %v342, 14
      %vm2693 = vcmp.lt.s32.totalorder %v343, 14
      %vm2694 = vcmp.lt.s32.totalorder %v344, 14
      %vm2695 = vcmp.lt.s32.totalorder %v345, 14
      %vm2696 = vcmp.lt.s32.totalorder %v346, 14
      %vm2697 = vcmp.lt.s32.totalorder %v347, 14
      %vm2698 = vcmp.lt.s32.totalorder %v348, 14
      %vm2699 = vcmp.lt.s32.totalorder %v349, 14
      %vm2700 = vcmp.lt.s32.totalorder %v350, 14
      %vm2701 = vcmp.lt.s32.totalorder %v351, 14
      %vm2702 = vcmp.lt.s32.totalorder %v352, 14
      %vm2703 = vcmp.lt.s32.totalorder %v353, 14
      %vm2704 = vcmp.lt.s32.totalorder %v354, 14
      %vm2705 = vcmp.lt.s32.totalorder %v355, 14
      %vm2706 = vcmp.lt.s32.totalorder %v356, 14
      %vm2707 = vcmp.lt.s32.totalorder %v357, 14
      %v2708 = vsel %vm2668, 1, 0
      %v2709 = vsel %vm2669, 1, 0
      %v2710 = vsel %vm2670, 1, 0
      %v2711 = vsel %vm2671, 1, 0
      %v2712 = vsel %vm2672, 1, 0
      %v2713 = vsel %vm2673, 1, 0
      %v2714 = vsel %vm2674, 1, 0
      %v2715 = vsel %vm2675, 1, 0
      %v2716 = vsel %vm2676, 1, 0
      %v2717 = vsel %vm2677, 1, 0
      %v2718 = vsel %vm2678, 1, 0
      %v2719 = vsel %vm2679, 1, 0
      %v2720 = vsel %vm2680, 1, 0
      %v2721 = vsel %vm2681, 1, 0
      %v2722 = vsel %vm2682, 1, 0
      %v2723 = vsel %vm2683, 1, 0
      %v2724 = vsel %vm2684, 1, 0
      %v2725 = vsel %vm2685, 1, 0
      %v2726 = vsel %vm2686, 1, 0
      %v2727 = vsel %vm2687, 1, 0
      %v2728 = vsel %vm2688, 1, 0
      %v2729 = vsel %vm2689, 1, 0
      %v2730 = vsel %vm2690, 1, 0
      %v2731 = vsel %vm2691, 1, 0
      %v2732 = vsel %vm2692, 1, 0
      %v2733 = vsel %vm2693, 1, 0
      %v2734 = vsel %vm2694, 1, 0
      %v2735 = vsel %vm2695, 1, 0
      %v2736 = vsel %vm2696, 1, 0
      %v2737 = vsel %vm2697, 1, 0
      %v2738 = vsel %vm2698, 1, 0
      %v2739 = vsel %vm2699, 1, 0
      %v2740 = vsel %vm2700, 1, 0
      %v2741 = vsel %vm2701, 1, 0
      %v2742 = vsel %vm2702, 1, 0
      %v2743 = vsel %vm2703, 1, 0
      %v2744 = vsel %vm2704, 1, 0
      %v2745 = vsel %vm2705, 1, 0
      %v2746 = vsel %vm2706, 1, 0
      %v2747 = vsel %vm2707, 1, 0
      %2748 = vset.pattern.permute.xlu0 0
      %2749 = vperm.xlu0 %2748, %v2708
      %v2750 = vpop.permute.xlu0 %2749
      %2751 = vset.pattern.permute.xlu0 0
      %2752 = vperm.xlu0 %2751, %v2709
      %v2753 = vpop.permute.xlu0 %2752
      %2754 = vset.pattern.permute.xlu0 0
      %2755 = vperm.xlu0 %2754, %v2710
      %v2756 = vpop.permute.xlu0 %2755
      %2757 = vset.pattern.permute.xlu0 0
      %2758 = vperm.xlu0 %2757, %v2711
      %v2759 = vpop.permute.xlu0 %2758
      %2760 = vset.pattern.permute.xlu0 0
      %2761 = vperm.xlu0 %2760, %v2712
      %v2762 = vpop.permute.xlu0 %2761
      %2763 = vset.pattern.permute.xlu0 0
      %2764 = vperm.xlu0 %2763, %v2713
      %v2765 = vpop.permute.xlu0 %2764
      %2766 = vset.pattern.permute.xlu0 0
      %2767 = vperm.xlu0 %2766, %v2714
      %v2768 = vpop.permute.xlu0 %2767
      %2769 = vset.pattern.permute.xlu0 0
      %2770 = vperm.xlu0 %2769, %v2715
      %v2771 = vpop.permute.xlu0 %2770
      %2772 = vset.pattern.permute.xlu0 0
      %2773 = vperm.xlu0 %2772, %v2716
      %v2774 = vpop.permute.xlu0 %2773
      %2775 = vset.pattern.permute.xlu0 0
      %2776 = vperm.xlu0 %2775, %v2717
      %v2777 = vpop.permute.xlu0 %2776
      %2778 = vset.pattern.permute.xlu0 0
      %2779 = vperm.xlu0 %2778, %v2718
      %v2780 = vpop.permute.xlu0 %2779
      %2781 = vset.pattern.permute.xlu0 0
      %2782 = vperm.xlu0 %2781, %v2719
      %v2783 = vpop.permute.xlu0 %2782
      %2784 = vset.pattern.permute.xlu0 0
      %2785 = vperm.xlu0 %2784, %v2720
      %v2786 = vpop.permute.xlu0 %2785
      %2787 = vset.pattern.permute.xlu0 0
      %2788 = vperm.xlu0 %2787, %v2721
      %v2789 = vpop.permute.xlu0 %2788
      %2790 = vset.pattern.permute.xlu0 0
      %2791 = vperm.xlu0 %2790, %v2722
      %v2792 = vpop.permute.xlu0 %2791
      %2793 = vset.pattern.permute.xlu0 0
      %2794 = vperm.xlu0 %2793, %v2723
      %v2795 = vpop.permute.xlu0 %2794
      %2796 = vset.pattern.permute.xlu0 0
      %2797 = vperm.xlu0 %2796, %v2724
      %v2798 = vpop.permute.xlu0 %2797
      %2799 = vset.pattern.permute.xlu0 0
      %2800 = vperm.xlu0 %2799, %v2725
      %v2801 = vpop.permute.xlu0 %2800
      %2802 = vset.pattern.permute.xlu0 0
      %2803 = vperm.xlu0 %2802, %v2726
      %v2804 = vpop.permute.xlu0 %2803
      %2805 = vset.pattern.permute.xlu0 0
      %2806 = vperm.xlu0 %2805, %v2727
      %v2807 = vpop.permute.xlu0 %2806
      %2808 = vset.pattern.permute.xlu0 0
      %2809 = vperm.xlu0 %2808, %v2728
      %v2810 = vpop.permute.xlu0 %2809
      %2811 = vset.pattern.permute.xlu0 0
      %2812 = vperm.xlu0 %2811, %v2729
      %v2813 = vpop.permute.xlu0 %2812
      %2814 = vset.pattern.permute.xlu0 0
      %2815 = vperm.xlu0 %2814, %v2730
      %v2816 = vpop.permute.xlu0 %2815
      %2817 = vset.pattern.permute.xlu0 0
      %2818 = vperm.xlu0 %2817, %v2731
      %v2819 = vpop.permute.xlu0 %2818
      %2820 = vset.pattern.permute.xlu0 0
      %2821 = vperm.xlu0 %2820, %v2732
      %v2822 = vpop.permute.xlu0 %2821
      %2823 = vset.pattern.permute.xlu0 0
      %2824 = vperm.xlu0 %2823, %v2733
      %v2825 = vpop.permute.xlu0 %2824
      %2826 = vset.pattern.permute.xlu0 0
      %2827 = vperm.xlu0 %2826, %v2734
      %v2828 = vpop.permute.xlu0 %2827
      %2829 = vset.pattern.permute.xlu0 0
      %2830 = vperm.xlu0 %2829, %v2735
      %v2831 = vpop.permute.xlu0 %2830
      %2832 = vset.pattern.permute.xlu0 0
      %2833 = vperm.xlu0 %2832, %v2736
      %v2834 = vpop.permute.xlu0 %2833
      %2835 = vset.pattern.permute.xlu0 0
      %2836 = vperm.xlu0 %2835, %v2737
      %v2837 = vpop.permute.xlu0 %2836
      %2838 = vset.pattern.permute.xlu0 0
      %2839 = vperm.xlu0 %2838, %v2738
      %v2840 = vpop.permute.xlu0 %2839
      %2841 = vset.pattern.permute.xlu0 0
      %2842 = vperm.xlu0 %2841, %v2739
      %v2843 = vpop.permute.xlu0 %2842
      %2844 = vset.pattern.permute.xlu0 0
      %2845 = vperm.xlu0 %2844, %v2740
      %v2846 = vpop.permute.xlu0 %2845
      %2847 = vset.pattern.permute.xlu0 0
      %2848 = vperm.xlu0 %2847, %v2741
      %v2849 = vpop.permute.xlu0 %2848
      %2850 = vset.pattern.permute.xlu0 0
      %2851 = vperm.xlu0 %2850, %v2742
      %v2852 = vpop.permute.xlu0 %2851
      %2853 = vset.pattern.permute.xlu0 0
      %2854 = vperm.xlu0 %2853, %v2743
      %v2855 = vpop.permute.xlu0 %2854
      %2856 = vset.pattern.permute.xlu0 0
      %2857 = vperm.xlu0 %2856, %v2744
      %v2858 = vpop.permute.xlu0 %2857
      %2859 = vset.pattern.permute.xlu0 0
      %2860 = vperm.xlu0 %2859, %v2745
      %v2861 = vpop.permute.xlu0 %2860
      %2862 = vset.pattern.permute.xlu0 0
      %2863 = vperm.xlu0 %2862, %v2746
      %v2864 = vpop.permute.xlu0 %2863
      %2865 = vset.pattern.permute.xlu0 0
      %2866 = vperm.xlu0 %2865, %v2747
      %v2867 = vpop.permute.xlu0 %2866
      %vm2868 = vcmp.eq.s32.totalorder %v2750, 1
      %vm2869 = vcmp.eq.s32.totalorder %v2753, 1
      %vm2870 = vcmp.eq.s32.totalorder %v2756, 1
      %vm2871 = vcmp.eq.s32.totalorder %v2759, 1
      %vm2872 = vcmp.eq.s32.totalorder %v2762, 1
      %vm2873 = vcmp.eq.s32.totalorder %v2765, 1
      %vm2874 = vcmp.eq.s32.totalorder %v2768, 1
      %vm2875 = vcmp.eq.s32.totalorder %v2771, 1
      %vm2876 = vcmp.eq.s32.totalorder %v2774, 1
      %vm2877 = vcmp.eq.s32.totalorder %v2777, 1
      %vm2878 = vcmp.eq.s32.totalorder %v2780, 1
      %vm2879 = vcmp.eq.s32.totalorder %v2783, 1
      %vm2880 = vcmp.eq.s32.totalorder %v2786, 1
      %vm2881 = vcmp.eq.s32.totalorder %v2789, 1
      %vm2882 = vcmp.eq.s32.totalorder %v2792, 1
      %vm2883 = vcmp.eq.s32.totalorder %v2795, 1
      %vm2884 = vcmp.eq.s32.totalorder %v2798, 1
      %vm2885 = vcmp.eq.s32.totalorder %v2801, 1
      %vm2886 = vcmp.eq.s32.totalorder %v2804, 1
      %vm2887 = vcmp.eq.s32.totalorder %v2807, 1
      %vm2888 = vcmp.eq.s32.totalorder %v2810, 1
      %vm2889 = vcmp.eq.s32.totalorder %v2813, 1
      %vm2890 = vcmp.eq.s32.totalorder %v2816, 1
      %vm2891 = vcmp.eq.s32.totalorder %v2819, 1
      %vm2892 = vcmp.eq.s32.totalorder %v2822, 1
      %vm2893 = vcmp.eq.s32.totalorder %v2825, 1
      %vm2894 = vcmp.eq.s32.totalorder %v2828, 1
      %vm2895 = vcmp.eq.s32.totalorder %v2831, 1
      %vm2896 = vcmp.eq.s32.totalorder %v2834, 1
      %vm2897 = vcmp.eq.s32.totalorder %v2837, 1
      %vm2898 = vcmp.eq.s32.totalorder %v2840, 1
      %vm2899 = vcmp.eq.s32.totalorder %v2843, 1
      %vm2900 = vcmp.eq.s32.totalorder %v2846, 1
      %vm2901 = vcmp.eq.s32.totalorder %v2849, 1
      %vm2902 = vcmp.eq.s32.totalorder %v2852, 1
      %vm2903 = vcmp.eq.s32.totalorder %v2855, 1
      %vm2904 = vcmp.eq.s32.totalorder %v2858, 1
      %vm2905 = vcmp.eq.s32.totalorder %v2861, 1
      %vm2906 = vcmp.eq.s32.totalorder %v2864, 1
      %vm2907 = vcmp.eq.s32.totalorder %v2867, 1
      %vm2908 = vcmask 1045504
      %v2909 = vrot.slane %v1703, 2
      %v2910 = vrot.slane %v1704, 2
      %v2911 = vsel %vm2908, %v2909, %v2910
      %v2912 = vrot.slane %v1705, 2
      %v2913 = vsel %vm2908, %v2910, %v2912
      %v2914 = vrot.slane %v1706, 2
      %v2915 = vsel %vm2908, %v2912, %v2914
      %v2916 = vrot.slane %v1707, 2
      %v2917 = vsel %vm2908, %v2914, %v2916
      %v2918 = vrot.slane %v1708, 2
      %v2919 = vsel %vm2908, %v2916, %v2918
      %v2920 = vrot.slane %v1709, 2
      %v2921 = vsel %vm2908, %v2918, %v2920
      %v2922 = vrot.slane %v1710, 2
      %v2923 = vsel %vm2908, %v2920, %v2922
      %v2924 = vrot.slane %v1711, 2
      %v2925 = vsel %vm2908, %v2922, %v2924
      %v2926 = vrot.slane %v1712, 2
      %v2927 = vsel %vm2908, %v2924, %v2926
      %v2928 = vrot.slane %v1713, 2
      %v2929 = vsel %vm2908, %v2926, %v2928
      %v2930 = vrot.slane %v1714, 2
      %v2931 = vsel %vm2908, %v2928, %v2930
      %v2932 = vrot.slane %v1715, 2
      %v2933 = vsel %vm2908, %v2930, %v2932
      %v2934 = vrot.slane %v1716, 2
      %v2935 = vsel %vm2908, %v2932, %v2934
      %v2936 = vrot.slane %v1717, 2
      %v2937 = vsel %vm2908, %v2934, %v2936
      %v2938 = vrot.slane %v1718, 2
      %v2939 = vsel %vm2908, %v2936, %v2938
      %v2940 = vrot.slane %v1719, 2
      %v2941 = vsel %vm2908, %v2938, %v2940
      %v2942 = vrot.slane %v1720, 2
      %v2943 = vsel %vm2908, %v2940, %v2942
      %v2944 = vrot.slane %v1721, 2
      %v2945 = vsel %vm2908, %v2942, %v2944
      %v2946 = vrot.slane %v1722, 2
      %v2947 = vsel %vm2908, %v2944, %v2946
      %v2948 = vrot.slane %v1723, 2
      %v2949 = vsel %vm2908, %v2946, %v2948
      %v2950 = vrot.slane %v1724, 2
      %v2951 = vsel %vm2908, %v2948, %v2950
      %v2952 = vrot.slane %v1725, 2
      %v2953 = vsel %vm2908, %v2950, %v2952
      %v2954 = vrot.slane %v1726, 2
      %v2955 = vsel %vm2908, %v2952, %v2954
      %v2956 = vrot.slane %v1727, 2
      %v2957 = vsel %vm2908, %v2954, %v2956
      %v2958 = vrot.slane %v1728, 2
      %v2959 = vsel %vm2908, %v2956, %v2958
      %v2960 = vrot.slane %v1729, 2
      %v2961 = vsel %vm2908, %v2958, %v2960
      %v2962 = vrot.slane %v1730, 2
      %v2963 = vsel %vm2908, %v2960, %v2962
      %v2964 = vrot.slane %v1731, 2
      %v2965 = vsel %vm2908, %v2962, %v2964
      %v2966 = vrot.slane %v1732, 2
      %v2967 = vsel %vm2908, %v2964, %v2966
      %v2968 = vrot.slane %v1733, 2
      %v2969 = vsel %vm2908, %v2966, %v2968
      %v2970 = vrot.slane %v1734, 2
      %v2971 = vsel %vm2908, %v2968, %v2970
      %v2972 = vrot.slane %v1735, 2
      %v2973 = vsel %vm2908, %v2970, %v2972
      %v2974 = vrot.slane %v1736, 2
      %v2975 = vsel %vm2908, %v2972, %v2974
      %v2976 = vrot.slane %v1737, 2
      %v2977 = vsel %vm2908, %v2974, %v2976
      %v2978 = vrot.slane %v1738, 2
      %v2979 = vsel %vm2908, %v2976, %v2978
      %v2980 = vrot.slane %v1739, 2
      %v2981 = vsel %vm2908, %v2978, %v2980
      %v2982 = vrot.slane %v1740, 2
      %v2983 = vsel %vm2908, %v2980, %v2982
      %v2984 = vrot.slane %v1741, 2
      %v2985 = vsel %vm2908, %v2982, %v2984
      %v2986 = vrot.slane %v1742, 2
      %v2987 = vsel %vm2908, %v2984, %v2986
      %v2988 = vrot.slane -1e+30, 2
      %v2989 = vsel %vm2908, %v2986, %v2988
      %v3030 = vsel %vm2868, %v2911, -1e+30
      %v3031 = vsel %vm2869, %v2913, -1e+30
      %v3032 = vsel %vm2870, %v2915, -1e+30
      %v3033 = vsel %vm2871, %v2917, -1e+30
      %v3034 = vsel %vm2872, %v2919, -1e+30
      %v3035 = vsel %vm2873, %v2921, -1e+30
      %v3036 = vsel %vm2874, %v2923, -1e+30
      %v3037 = vsel %vm2875, %v2925, -1e+30
      %v3038 = vsel %vm2876, %v2927, -1e+30
      %v3039 = vsel %vm2877, %v2929, -1e+30
      %v3040 = vsel %vm2878, %v2931, -1e+30
      %v3041 = vsel %vm2879, %v2933, -1e+30
      %v3042 = vsel %vm2880, %v2935, -1e+30
      %v3043 = vsel %vm2881, %v2937, -1e+30
      %v3044 = vsel %vm2882, %v2939, -1e+30
      %v3045 = vsel %vm2883, %v2941, -1e+30
      %v3046 = vsel %vm2884, %v2943, -1e+30
      %v3047 = vsel %vm2885, %v2945, -1e+30
      %v3048 = vsel %vm2886, %v2947, -1e+30
      %v3049 = vsel %vm2887, %v2949, -1e+30
      %v3050 = vsel %vm2888, %v2951, -1e+30
      %v3051 = vsel %vm2889, %v2953, -1e+30
      %v3052 = vsel %vm2890, %v2955, -1e+30
      %v3053 = vsel %vm2891, %v2957, -1e+30
      %v3054 = vsel %vm2892, %v2959, -1e+30
      %v3055 = vsel %vm2893, %v2961, -1e+30
      %v3056 = vsel %vm2894, %v2963, -1e+30
      %v3057 = vsel %vm2895, %v2965, -1e+30
      %v3058 = vsel %vm2896, %v2967, -1e+30
      %v3059 = vsel %vm2897, %v2969, -1e+30
      %v3060 = vsel %vm2898, %v2971, -1e+30
      %v3061 = vsel %vm2899, %v2973, -1e+30
      %v3062 = vsel %vm2900, %v2975, -1e+30
      %v3063 = vsel %vm2901, %v2977, -1e+30
      %v3064 = vsel %vm2902, %v2979, -1e+30
      %v3065 = vsel %vm2903, %v2981, -1e+30
      %v3066 = vsel %vm2904, %v2983, -1e+30
      %v3067 = vsel %vm2905, %v2985, -1e+30
      %v3068 = vsel %vm2906, %v2987, -1e+30
      %v3069 = vsel %vm2907, %v2989, -1e+30
      %v3070 = vmax.f32 %v2628, %v3030
      %v3071 = vmax.f32 %v2629, %v3031
      %v3072 = vmax.f32 %v2630, %v3032
      %v3073 = vmax.f32 %v2631, %v3033
      %v3074 = vmax.f32 %v2632, %v3034
      %v3075 = vmax.f32 %v2633, %v3035
      %v3076 = vmax.f32 %v2634, %v3036
      %v3077 = vmax.f32 %v2635, %v3037
      %v3078 = vmax.f32 %v2636, %v3038
      %v3079 = vmax.f32 %v2637, %v3039
      %v3080 = vmax.f32 %v2638, %v3040
      %v3081 = vmax.f32 %v2639, %v3041
      %v3082 = vmax.f32 %v2640, %v3042
      %v3083 = vmax.f32 %v2641, %v3043
      %v3084 = vmax.f32 %v2642, %v3044
      %v3085 = vmax.f32 %v2643, %v3045
      %v3086 = vmax.f32 %v2644, %v3046
      %v3087 = vmax.f32 %v2645, %v3047
      %v3088 = vmax.f32 %v2646, %v3048
      %v3089 = vmax.f32 %v2647, %v3049
      %v3090 = vmax.f32 %v2648, %v3050
      %v3091 = vmax.f32 %v2649, %v3051
      %v3092 = vmax.f32 %v2650, %v3052
      %v3093 = vmax.f32 %v2651, %v3053
      %v3094 = vmax.f32 %v2652, %v3054
      %v3095 = vmax.f32 %v2653, %v3055
      %v3096 = vmax.f32 %v2654, %v3056
      %v3097 = vmax.f32 %v2655, %v3057
      %v3098 = vmax.f32 %v2656, %v3058
      %v3099 = vmax.f32 %v2657, %v3059
      %v3100 = vmax.f32 %v2658, %v3060
      %v3101 = vmax.f32 %v2659, %v3061
      %v3102 = vmax.f32 %v2660, %v3062
      %v3103 = vmax.f32 %v2661, %v3063
      %v3104 = vmax.f32 %v2662, %v3064
      %v3105 = vmax.f32 %v2663, %v3065
      %v3106 = vmax.f32 %v2664, %v3066
      %v3107 = vmax.f32 %v2665, %v3067
      %v3108 = vmax.f32 %v2666, %v3068
      %v3109 = vmax.f32 %v2667, %v3069
      %vm3110 = vcmp.ge.s32.totalorder %v318, 2
      %vm3111 = vcmp.ge.s32.totalorder %v319, 2
      %vm3112 = vcmp.ge.s32.totalorder %v320, 2
      %vm3113 = vcmp.ge.s32.totalorder %v321, 2
      %vm3114 = vcmp.ge.s32.totalorder %v322, 2
      %vm3115 = vcmp.ge.s32.totalorder %v323, 2
      %vm3116 = vcmp.ge.s32.totalorder %v324, 2
      %vm3117 = vcmp.ge.s32.totalorder %v325, 2
      %vm3118 = vcmp.ge.s32.totalorder %v326, 2
      %vm3119 = vcmp.ge.s32.totalorder %v327, 2
      %vm3120 = vcmp.ge.s32.totalorder %v328, 2
      %vm3121 = vcmp.ge.s32.totalorder %v329, 2
      %vm3122 = vcmp.ge.s32.totalorder %v330, 2
      %vm3123 = vcmp.ge.s32.totalorder %v331, 2
      %vm3124 = vcmp.ge.s32.totalorder %v332, 2
      %vm3125 = vcmp.ge.s32.totalorder %v333, 2
      %vm3126 = vcmp.ge.s32.totalorder %v334, 2
      %vm3127 = vcmp.ge.s32.totalorder %v335, 2
      %vm3128 = vcmp.ge.s32.totalorder %v336, 2
      %vm3129 = vcmp.ge.s32.totalorder %v337, 2
      %vm3130 = vcmp.ge.s32.totalorder %v338, 2
      %vm3131 = vcmp.ge.s32.totalorder %v339, 2
      %vm3132 = vcmp.ge.s32.totalorder %v340, 2
      %vm3133 = vcmp.ge.s32.totalorder %v341, 2
      %vm3134 = vcmp.ge.s32.totalorder %v342, 2
      %vm3135 = vcmp.ge.s32.totalorder %v343, 2
      %vm3136 = vcmp.ge.s32.totalorder %v344, 2
      %vm3137 = vcmp.ge.s32.totalorder %v345, 2
      %vm3138 = vcmp.ge.s32.totalorder %v346, 2
      %vm3139 = vcmp.ge.s32.totalorder %v347, 2
      %vm3140 = vcmp.ge.s32.totalorder %v348, 2
      %vm3141 = vcmp.ge.s32.totalorder %v349, 2
      %vm3142 = vcmp.ge.s32.totalorder %v350, 2
      %vm3143 = vcmp.ge.s32.totalorder %v351, 2
      %vm3144 = vcmp.ge.s32.totalorder %v352, 2
      %vm3145 = vcmp.ge.s32.totalorder %v353, 2
      %vm3146 = vcmp.ge.s32.totalorder %v354, 2
      %vm3147 = vcmp.ge.s32.totalorder %v355, 2
      %vm3148 = vcmp.ge.s32.totalorder %v356, 2
      %vm3149 = vcmp.ge.s32.totalorder %v357, 2
      %v3150 = vsel %vm3110, 1, 0
      %v3151 = vsel %vm3111, 1, 0
      %v3152 = vsel %vm3112, 1, 0
      %v3153 = vsel %vm3113, 1, 0
      %v3154 = vsel %vm3114, 1, 0
      %v3155 = vsel %vm3115, 1, 0
      %v3156 = vsel %vm3116, 1, 0
      %v3157 = vsel %vm3117, 1, 0
      %v3158 = vsel %vm3118, 1, 0
      %v3159 = vsel %vm3119, 1, 0
      %v3160 = vsel %vm3120, 1, 0
      %v3161 = vsel %vm3121, 1, 0
      %v3162 = vsel %vm3122, 1, 0
      %v3163 = vsel %vm3123, 1, 0
      %v3164 = vsel %vm3124, 1, 0
      %v3165 = vsel %vm3125, 1, 0
      %v3166 = vsel %vm3126, 1, 0
      %v3167 = vsel %vm3127, 1, 0
      %v3168 = vsel %vm3128, 1, 0
      %v3169 = vsel %vm3129, 1, 0
      %v3170 = vsel %vm3130, 1, 0
      %v3171 = vsel %vm3131, 1, 0
      %v3172 = vsel %vm3132, 1, 0
      %v3173 = vsel %vm3133, 1, 0
      %v3174 = vsel %vm3134, 1, 0
      %v3175 = vsel %vm3135, 1, 0
      %v3176 = vsel %vm3136, 1, 0
      %v3177 = vsel %vm3137, 1, 0
      %v3178 = vsel %vm3138, 1, 0
      %v3179 = vsel %vm3139, 1, 0
      %v3180 = vsel %vm3140, 1, 0
      %v3181 = vsel %vm3141, 1, 0
      %v3182 = vsel %vm3142, 1, 0
      %v3183 = vsel %vm3143, 1, 0
      %v3184 = vsel %vm3144, 1, 0
      %v3185 = vsel %vm3145, 1, 0
      %v3186 = vsel %vm3146, 1, 0
      %v3187 = vsel %vm3147, 1, 0
      %v3188 = vsel %vm3148, 1, 0
      %v3189 = vsel %vm3149, 1, 0
      %3190 = vset.pattern.permute.xlu0 0
      %3191 = vperm.xlu0 %3190, %v3150
      %v3192 = vpop.permute.xlu0 %3191
      %3193 = vset.pattern.permute.xlu0 0
      %3194 = vperm.xlu0 %3193, %v3151
      %v3195 = vpop.permute.xlu0 %3194
      %3196 = vset.pattern.permute.xlu0 0
      %3197 = vperm.xlu0 %3196, %v3152
      %v3198 = vpop.permute.xlu0 %3197
      %3199 = vset.pattern.permute.xlu0 0
      %3200 = vperm.xlu0 %3199, %v3153
      %v3201 = vpop.permute.xlu0 %3200
      %3202 = vset.pattern.permute.xlu0 0
      %3203 = vperm.xlu0 %3202, %v3154
      %v3204 = vpop.permute.xlu0 %3203
      %3205 = vset.pattern.permute.xlu0 0
      %3206 = vperm.xlu0 %3205, %v3155
      %v3207 = vpop.permute.xlu0 %3206
      %3208 = vset.pattern.permute.xlu0 0
      %3209 = vperm.xlu0 %3208, %v3156
      %v3210 = vpop.permute.xlu0 %3209
      %3211 = vset.pattern.permute.xlu0 0
      %3212 = vperm.xlu0 %3211, %v3157
      %v3213 = vpop.permute.xlu0 %3212
      %3214 = vset.pattern.permute.xlu0 0
      %3215 = vperm.xlu0 %3214, %v3158
      %v3216 = vpop.permute.xlu0 %3215
      %3217 = vset.pattern.permute.xlu0 0
      %3218 = vperm.xlu0 %3217, %v3159
      %v3219 = vpop.permute.xlu0 %3218
      %3220 = vset.pattern.permute.xlu0 0
      %3221 = vperm.xlu0 %3220, %v3160
      %v3222 = vpop.permute.xlu0 %3221
      %3223 = vset.pattern.permute.xlu0 0
      %3224 = vperm.xlu0 %3223, %v3161
      %v3225 = vpop.permute.xlu0 %3224
      %3226 = vset.pattern.permute.xlu0 0
      %3227 = vperm.xlu0 %3226, %v3162
      %v3228 = vpop.permute.xlu0 %3227
      %3229 = vset.pattern.permute.xlu0 0
      %3230 = vperm.xlu0 %3229, %v3163
      %v3231 = vpop.permute.xlu0 %3230
      %3232 = vset.pattern.permute.xlu0 0
      %3233 = vperm.xlu0 %3232, %v3164
      %v3234 = vpop.permute.xlu0 %3233
      %3235 = vset.pattern.permute.xlu0 0
      %3236 = vperm.xlu0 %3235, %v3165
      %v3237 = vpop.permute.xlu0 %3236
      %3238 = vset.pattern.permute.xlu0 0
      %3239 = vperm.xlu0 %3238, %v3166
      %v3240 = vpop.permute.xlu0 %3239
      %3241 = vset.pattern.permute.xlu0 0
      %3242 = vperm.xlu0 %3241, %v3167
      %v3243 = vpop.permute.xlu0 %3242
      %3244 = vset.pattern.permute.xlu0 0
      %3245 = vperm.xlu0 %3244, %v3168
      %v3246 = vpop.permute.xlu0 %3245
      %3247 = vset.pattern.permute.xlu0 0
      %3248 = vperm.xlu0 %3247, %v3169
      %v3249 = vpop.permute.xlu0 %3248
      %3250 = vset.pattern.permute.xlu0 0
      %3251 = vperm.xlu0 %3250, %v3170
      %v3252 = vpop.permute.xlu0 %3251
      %3253 = vset.pattern.permute.xlu0 0
      %3254 = vperm.xlu0 %3253, %v3171
      %v3255 = vpop.permute.xlu0 %3254
      %3256 = vset.pattern.permute.xlu0 0
      %3257 = vperm.xlu0 %3256, %v3172
      %v3258 = vpop.permute.xlu0 %3257
      %3259 = vset.pattern.permute.xlu0 0
      %3260 = vperm.xlu0 %3259, %v3173
      %v3261 = vpop.permute.xlu0 %3260
      %3262 = vset.pattern.permute.xlu0 0
      %3263 = vperm.xlu0 %3262, %v3174
      %v3264 = vpop.permute.xlu0 %3263
      %3265 = vset.pattern.permute.xlu0 0
      %3266 = vperm.xlu0 %3265, %v3175
      %v3267 = vpop.permute.xlu0 %3266
      %3268 = vset.pattern.permute.xlu0 0
      %3269 = vperm.xlu0 %3268, %v3176
      %v3270 = vpop.permute.xlu0 %3269
      %3271 = vset.pattern.permute.xlu0 0
      %3272 = vperm.xlu0 %3271, %v3177
      %v3273 = vpop.permute.xlu0 %3272
      %3274 = vset.pattern.permute.xlu0 0
      %3275 = vperm.xlu0 %3274, %v3178
      %v3276 = vpop.permute.xlu0 %3275
      %3277 = vset.pattern.permute.xlu0 0
      %3278 = vperm.xlu0 %3277, %v3179
      %v3279 = vpop.permute.xlu0 %3278
      %3280 = vset.pattern.permute.xlu0 0
      %3281 = vperm.xlu0 %3280, %v3180
      %v3282 = vpop.permute.xlu0 %3281
      %3283 = vset.pattern.permute.xlu0 0
      %3284 = vperm.xlu0 %3283, %v3181
      %v3285 = vpop.permute.xlu0 %3284
      %3286 = vset.pattern.permute.xlu0 0
      %3287 = vperm.xlu0 %3286, %v3182
      %v3288 = vpop.permute.xlu0 %3287
      %3289 = vset.pattern.permute.xlu0 0
      %3290 = vperm.xlu0 %3289, %v3183
      %v3291 = vpop.permute.xlu0 %3290
      %3292 = vset.pattern.permute.xlu0 0
      %3293 = vperm.xlu0 %3292, %v3184
      %v3294 = vpop.permute.xlu0 %3293
      %3295 = vset.pattern.permute.xlu0 0
      %3296 = vperm.xlu0 %3295, %v3185
      %v3297 = vpop.permute.xlu0 %3296
      %3298 = vset.pattern.permute.xlu0 0
      %3299 = vperm.xlu0 %3298, %v3186
      %v3300 = vpop.permute.xlu0 %3299
      %3301 = vset.pattern.permute.xlu0 0
      %3302 = vperm.xlu0 %3301, %v3187
      %v3303 = vpop.permute.xlu0 %3302
      %3304 = vset.pattern.permute.xlu0 0
      %3305 = vperm.xlu0 %3304, %v3188
      %v3306 = vpop.permute.xlu0 %3305
      %3307 = vset.pattern.permute.xlu0 0
      %3308 = vperm.xlu0 %3307, %v3189
      %v3309 = vpop.permute.xlu0 %3308
      %vm3310 = vcmp.eq.s32.totalorder %v3192, 1
      %vm3311 = vcmp.eq.s32.totalorder %v3195, 1
      %vm3312 = vcmp.eq.s32.totalorder %v3198, 1
      %vm3313 = vcmp.eq.s32.totalorder %v3201, 1
      %vm3314 = vcmp.eq.s32.totalorder %v3204, 1
      %vm3315 = vcmp.eq.s32.totalorder %v3207, 1
      %vm3316 = vcmp.eq.s32.totalorder %v3210, 1
      %vm3317 = vcmp.eq.s32.totalorder %v3213, 1
      %vm3318 = vcmp.eq.s32.totalorder %v3216, 1
      %vm3319 = vcmp.eq.s32.totalorder %v3219, 1
      %vm3320 = vcmp.eq.s32.totalorder %v3222, 1
      %vm3321 = vcmp.eq.s32.totalorder %v3225, 1
      %vm3322 = vcmp.eq.s32.totalorder %v3228, 1
      %vm3323 = vcmp.eq.s32.totalorder %v3231, 1
      %vm3324 = vcmp.eq.s32.totalorder %v3234, 1
      %vm3325 = vcmp.eq.s32.totalorder %v3237, 1
      %vm3326 = vcmp.eq.s32.totalorder %v3240, 1
      %vm3327 = vcmp.eq.s32.totalorder %v3243, 1
      %vm3328 = vcmp.eq.s32.totalorder %v3246, 1
      %vm3329 = vcmp.eq.s32.totalorder %v3249, 1
      %vm3330 = vcmp.eq.s32.totalorder %v3252, 1
      %vm3331 = vcmp.eq.s32.totalorder %v3255, 1
      %vm3332 = vcmp.eq.s32.totalorder %v3258, 1
      %vm3333 = vcmp.eq.s32.totalorder %v3261, 1
      %vm3334 = vcmp.eq.s32.totalorder %v3264, 1
      %vm3335 = vcmp.eq.s32.totalorder %v3267, 1
      %vm3336 = vcmp.eq.s32.totalorder %v3270, 1
      %vm3337 = vcmp.eq.s32.totalorder %v3273, 1
      %vm3338 = vcmp.eq.s32.totalorder %v3276, 1
      %vm3339 = vcmp.eq.s32.totalorder %v3279, 1
      %vm3340 = vcmp.eq.s32.totalorder %v3282, 1
      %vm3341 = vcmp.eq.s32.totalorder %v3285, 1
      %vm3342 = vcmp.eq.s32.totalorder %v3288, 1
      %vm3343 = vcmp.eq.s32.totalorder %v3291, 1
      %vm3344 = vcmp.eq.s32.totalorder %v3294, 1
      %vm3345 = vcmp.eq.s32.totalorder %v3297, 1
      %vm3346 = vcmp.eq.s32.totalorder %v3300, 1
      %vm3347 = vcmp.eq.s32.totalorder %v3303, 1
      %vm3348 = vcmp.eq.s32.totalorder %v3306, 1
      %vm3349 = vcmp.eq.s32.totalorder %v3309, 1
      %vm3350 = vcmask 1041408
      %v3351 = vrot.slane -1e+30, 6
      %v3352 = vrot.slane %v1703, 6
      %v3353 = vsel %vm3350, %v3351, %v3352
      %v3354 = vrot.slane %v1704, 6
      %v3355 = vsel %vm3350, %v3352, %v3354
      %v3356 = vrot.slane %v1705, 6
      %v3357 = vsel %vm3350, %v3354, %v3356
      %v3358 = vrot.slane %v1706, 6
      %v3359 = vsel %vm3350, %v3356, %v3358
      %v3360 = vrot.slane %v1707, 6
      %v3361 = vsel %vm3350, %v3358, %v3360
      %v3362 = vrot.slane %v1708, 6
      %v3363 = vsel %vm3350, %v3360, %v3362
      %v3364 = vrot.slane %v1709, 6
      %v3365 = vsel %vm3350, %v3362, %v3364
      %v3366 = vrot.slane %v1710, 6
      %v3367 = vsel %vm3350, %v3364, %v3366
      %v3368 = vrot.slane %v1711, 6
      %v3369 = vsel %vm3350, %v3366, %v3368
      %v3370 = vrot.slane %v1712, 6
      %v3371 = vsel %vm3350, %v3368, %v3370
      %v3372 = vrot.slane %v1713, 6
      %v3373 = vsel %vm3350, %v3370, %v3372
      %v3374 = vrot.slane %v1714, 6
      %v3375 = vsel %vm3350, %v3372, %v3374
      %v3376 = vrot.slane %v1715, 6
      %v3377 = vsel %vm3350, %v3374, %v3376
      %v3378 = vrot.slane %v1716, 6
      %v3379 = vsel %vm3350, %v3376, %v3378
      %v3380 = vrot.slane %v1717, 6
      %v3381 = vsel %vm3350, %v3378, %v3380
      %v3382 = vrot.slane %v1718, 6
      %v3383 = vsel %vm3350, %v3380, %v3382
      %v3384 = vrot.slane %v1719, 6
      %v3385 = vsel %vm3350, %v3382, %v3384
      %v3386 = vrot.slane %v1720, 6
      %v3387 = vsel %vm3350, %v3384, %v3386
      %v3388 = vrot.slane %v1721, 6
      %v3389 = vsel %vm3350, %v3386, %v3388
      %v3390 = vrot.slane %v1722, 6
      %v3391 = vsel %vm3350, %v3388, %v3390
      %v3392 = vrot.slane %v1723, 6
      %v3393 = vsel %vm3350, %v3390, %v3392
      %v3394 = vrot.slane %v1724, 6
      %v3395 = vsel %vm3350, %v3392, %v3394
      %v3396 = vrot.slane %v1725, 6
      %v3397 = vsel %vm3350, %v3394, %v3396
      %v3398 = vrot.slane %v1726, 6
      %v3399 = vsel %vm3350, %v3396, %v3398
      %v3400 = vrot.slane %v1727, 6
      %v3401 = vsel %vm3350, %v3398, %v3400
      %v3402 = vrot.slane %v1728, 6
      %v3403 = vsel %vm3350, %v3400, %v3402
      %v3404 = vrot.slane %v1729, 6
      %v3405 = vsel %vm3350, %v3402, %v3404
      %v3406 = vrot.slane %v1730, 6
      %v3407 = vsel %vm3350, %v3404, %v3406
      %v3408 = vrot.slane %v1731, 6
      %v3409 = vsel %vm3350, %v3406, %v3408
      %v3410 = vrot.slane %v1732, 6
      %v3411 = vsel %vm3350, %v3408, %v3410
      %v3412 = vrot.slane %v1733, 6
      %v3413 = vsel %vm3350, %v3410, %v3412
      %v3414 = vrot.slane %v1734, 6
      %v3415 = vsel %vm3350, %v3412, %v3414
      %v3416 = vrot.slane %v1735, 6
      %v3417 = vsel %vm3350, %v3414, %v3416
      %v3418 = vrot.slane %v1736, 6
      %v3419 = vsel %vm3350, %v3416, %v3418
      %v3420 = vrot.slane %v1737, 6
      %v3421 = vsel %vm3350, %v3418, %v3420
      %v3422 = vrot.slane %v1738, 6
      %v3423 = vsel %vm3350, %v3420, %v3422
      %v3424 = vrot.slane %v1739, 6
      %v3425 = vsel %vm3350, %v3422, %v3424
      %v3426 = vrot.slane %v1740, 6
      %v3427 = vsel %vm3350, %v3424, %v3426
      %v3428 = vrot.slane %v1741, 6
      %v3429 = vsel %vm3350, %v3426, %v3428
      %v3430 = vrot.slane %v1742, 6
      %v3431 = vsel %vm3350, %v3428, %v3430
      %v3472 = vsel %vm3310, %v3353, -1e+30
      %v3473 = vsel %vm3311, %v3355, -1e+30
      %v3474 = vsel %vm3312, %v3357, -1e+30
      %v3475 = vsel %vm3313, %v3359, -1e+30
      %v3476 = vsel %vm3314, %v3361, -1e+30
      %v3477 = vsel %vm3315, %v3363, -1e+30
      %v3478 = vsel %vm3316, %v3365, -1e+30
      %v3479 = vsel %vm3317, %v3367, -1e+30
      %v3480 = vsel %vm3318, %v3369, -1e+30
      %v3481 = vsel %vm3319, %v3371, -1e+30
      %v3482 = vsel %vm3320, %v3373, -1e+30
      %v3483 = vsel %vm3321, %v3375, -1e+30
      %v3484 = vsel %vm3322, %v3377, -1e+30
      %v3485 = vsel %vm3323, %v3379, -1e+30
      %v3486 = vsel %vm3324, %v3381, -1e+30
      %v3487 = vsel %vm3325, %v3383, -1e+30
      %v3488 = vsel %vm3326, %v3385, -1e+30
      %v3489 = vsel %vm3327, %v3387, -1e+30
      %v3490 = vsel %vm3328, %v3389, -1e+30
      %v3491 = vsel %vm3329, %v3391, -1e+30
      %v3492 = vsel %vm3330, %v3393, -1e+30
      %v3493 = vsel %vm3331, %v3395, -1e+30
      %v3494 = vsel %vm3332, %v3397, -1e+30
      %v3495 = vsel %vm3333, %v3399, -1e+30
      %v3496 = vsel %vm3334, %v3401, -1e+30
      %v3497 = vsel %vm3335, %v3403, -1e+30
      %v3498 = vsel %vm3336, %v3405, -1e+30
      %v3499 = vsel %vm3337, %v3407, -1e+30
      %v3500 = vsel %vm3338, %v3409, -1e+30
      %v3501 = vsel %vm3339, %v3411, -1e+30
      %v3502 = vsel %vm3340, %v3413, -1e+30
      %v3503 = vsel %vm3341, %v3415, -1e+30
      %v3504 = vsel %vm3342, %v3417, -1e+30
      %v3505 = vsel %vm3343, %v3419, -1e+30
      %v3506 = vsel %vm3344, %v3421, -1e+30
      %v3507 = vsel %vm3345, %v3423, -1e+30
      %v3508 = vsel %vm3346, %v3425, -1e+30
      %v3509 = vsel %vm3347, %v3427, -1e+30
      %v3510 = vsel %vm3348, %v3429, -1e+30
      %v3511 = vsel %vm3349, %v3431, -1e+30
      %v3512 = vmax.f32 %v3070, %v3472
      %v3513 = vmax.f32 %v3071, %v3473
      %v3514 = vmax.f32 %v3072, %v3474
      %v3515 = vmax.f32 %v3073, %v3475
      %v3516 = vmax.f32 %v3074, %v3476
      %v3517 = vmax.f32 %v3075, %v3477
      %v3518 = vmax.f32 %v3076, %v3478
      %v3519 = vmax.f32 %v3077, %v3479
      %v3520 = vmax.f32 %v3078, %v3480
      %v3521 = vmax.f32 %v3079, %v3481
      %v3522 = vmax.f32 %v3080, %v3482
      %v3523 = vmax.f32 %v3081, %v3483
      %v3524 = vmax.f32 %v3082, %v3484
      %v3525 = vmax.f32 %v3083, %v3485
      %v3526 = vmax.f32 %v3084, %v3486
      %v3527 = vmax.f32 %v3085, %v3487
      %v3528 = vmax.f32 %v3086, %v3488
      %v3529 = vmax.f32 %v3087, %v3489
      %v3530 = vmax.f32 %v3088, %v3490
      %v3531 = vmax.f32 %v3089, %v3491
      %v3532 = vmax.f32 %v3090, %v3492
      %v3533 = vmax.f32 %v3091, %v3493
      %v3534 = vmax.f32 %v3092, %v3494
      %v3535 = vmax.f32 %v3093, %v3495
      %v3536 = vmax.f32 %v3094, %v3496
      %v3537 = vmax.f32 %v3095, %v3497
      %v3538 = vmax.f32 %v3096, %v3498
      %v3539 = vmax.f32 %v3097, %v3499
      %v3540 = vmax.f32 %v3098, %v3500
      %v3541 = vmax.f32 %v3099, %v3501
      %v3542 = vmax.f32 %v3100, %v3502
      %v3543 = vmax.f32 %v3101, %v3503
      %v3544 = vmax.f32 %v3102, %v3504
      %v3545 = vmax.f32 %v3103, %v3505
      %v3546 = vmax.f32 %v3104, %v3506
      %v3547 = vmax.f32 %v3105, %v3507
      %v3548 = vmax.f32 %v3106, %v3508
      %v3549 = vmax.f32 %v3107, %v3509
      %v3550 = vmax.f32 %v3108, %v3510
      %v3551 = vmax.f32 %v3109, %v3511
      %vm3552 = vcmp.lt.s32.totalorder %v318, 13
      %vm3553 = vcmp.lt.s32.totalorder %v319, 13
      %vm3554 = vcmp.lt.s32.totalorder %v320, 13
      %vm3555 = vcmp.lt.s32.totalorder %v321, 13
      %vm3556 = vcmp.lt.s32.totalorder %v322, 13
      %vm3557 = vcmp.lt.s32.totalorder %v323, 13
      %vm3558 = vcmp.lt.s32.totalorder %v324, 13
      %vm3559 = vcmp.lt.s32.totalorder %v325, 13
      %vm3560 = vcmp.lt.s32.totalorder %v326, 13
      %vm3561 = vcmp.lt.s32.totalorder %v327, 13
      %vm3562 = vcmp.lt.s32.totalorder %v328, 13
      %vm3563 = vcmp.lt.s32.totalorder %v329, 13
      %vm3564 = vcmp.lt.s32.totalorder %v330, 13
      %vm3565 = vcmp.lt.s32.totalorder %v331, 13
      %vm3566 = vcmp.lt.s32.totalorder %v332, 13
      %vm3567 = vcmp.lt.s32.totalorder %v333, 13
      %vm3568 = vcmp.lt.s32.totalorder %v334, 13
      %vm3569 = vcmp.lt.s32.totalorder %v335, 13
      %vm3570 = vcmp.lt.s32.totalorder %v336, 13
      %vm3571 = vcmp.lt.s32.totalorder %v337, 13
      %vm3572 = vcmp.lt.s32.totalorder %v338, 13
      %vm3573 = vcmp.lt.s32.totalorder %v339, 13
      %vm3574 = vcmp.lt.s32.totalorder %v340, 13
      %vm3575 = vcmp.lt.s32.totalorder %v341, 13
      %vm3576 = vcmp.lt.s32.totalorder %v342, 13
      %vm3577 = vcmp.lt.s32.totalorder %v343, 13
      %vm3578 = vcmp.lt.s32.totalorder %v344, 13
      %vm3579 = vcmp.lt.s32.totalorder %v345, 13
      %vm3580 = vcmp.lt.s32.totalorder %v346, 13
      %vm3581 = vcmp.lt.s32.totalorder %v347, 13
      %vm3582 = vcmp.lt.s32.totalorder %v348, 13
      %vm3583 = vcmp.lt.s32.totalorder %v349, 13
      %vm3584 = vcmp.lt.s32.totalorder %v350, 13
      %vm3585 = vcmp.lt.s32.totalorder %v351, 13
      %vm3586 = vcmp.lt.s32.totalorder %v352, 13
      %vm3587 = vcmp.lt.s32.totalorder %v353, 13
      %vm3588 = vcmp.lt.s32.totalorder %v354, 13
      %vm3589 = vcmp.lt.s32.totalorder %v355, 13
      %vm3590 = vcmp.lt.s32.totalorder %v356, 13
      %vm3591 = vcmp.lt.s32.totalorder %v357, 13
      %v3592 = vsel %vm3552, 1, 0
      %v3593 = vsel %vm3553, 1, 0
      %v3594 = vsel %vm3554, 1, 0
      %v3595 = vsel %vm3555, 1, 0
      %v3596 = vsel %vm3556, 1, 0
      %v3597 = vsel %vm3557, 1, 0
      %v3598 = vsel %vm3558, 1, 0
      %v3599 = vsel %vm3559, 1, 0
      %v3600 = vsel %vm3560, 1, 0
      %v3601 = vsel %vm3561, 1, 0
      %v3602 = vsel %vm3562, 1, 0
      %v3603 = vsel %vm3563, 1, 0
      %v3604 = vsel %vm3564, 1, 0
      %v3605 = vsel %vm3565, 1, 0
      %v3606 = vsel %vm3566, 1, 0
      %v3607 = vsel %vm3567, 1, 0
      %v3608 = vsel %vm3568, 1, 0
      %v3609 = vsel %vm3569, 1, 0
      %v3610 = vsel %vm3570, 1, 0
      %v3611 = vsel %vm3571, 1, 0
      %v3612 = vsel %vm3572, 1, 0
      %v3613 = vsel %vm3573, 1, 0
      %v3614 = vsel %vm3574, 1, 0
      %v3615 = vsel %vm3575, 1, 0
      %v3616 = vsel %vm3576, 1, 0
      %v3617 = vsel %vm3577, 1, 0
      %v3618 = vsel %vm3578, 1, 0
      %v3619 = vsel %vm3579, 1, 0
      %v3620 = vsel %vm3580, 1, 0
      %v3621 = vsel %vm3581, 1, 0
      %v3622 = vsel %vm3582, 1, 0
      %v3623 = vsel %vm3583, 1, 0
      %v3624 = vsel %vm3584, 1, 0
      %v3625 = vsel %vm3585, 1, 0
      %v3626 = vsel %vm3586, 1, 0
      %v3627 = vsel %vm3587, 1, 0
      %v3628 = vsel %vm3588, 1, 0
      %v3629 = vsel %vm3589, 1, 0
      %v3630 = vsel %vm3590, 1, 0
      %v3631 = vsel %vm3591, 1, 0
      %3632 = vset.pattern.permute.xlu0 0
      %3633 = vperm.xlu0 %3632, %v3592
      %v3634 = vpop.permute.xlu0 %3633
      %3635 = vset.pattern.permute.xlu0 0
      %3636 = vperm.xlu0 %3635, %v3593
      %v3637 = vpop.permute.xlu0 %3636
      %3638 = vset.pattern.permute.xlu0 0
      %3639 = vperm.xlu0 %3638, %v3594
      %v3640 = vpop.permute.xlu0 %3639
      %3641 = vset.pattern.permute.xlu0 0
      %3642 = vperm.xlu0 %3641, %v3595
      %v3643 = vpop.permute.xlu0 %3642
      %3644 = vset.pattern.permute.xlu0 0
      %3645 = vperm.xlu0 %3644, %v3596
      %v3646 = vpop.permute.xlu0 %3645
      %3647 = vset.pattern.permute.xlu0 0
      %3648 = vperm.xlu0 %3647, %v3597
      %v3649 = vpop.permute.xlu0 %3648
      %3650 = vset.pattern.permute.xlu0 0
      %3651 = vperm.xlu0 %3650, %v3598
      %v3652 = vpop.permute.xlu0 %3651
      %3653 = vset.pattern.permute.xlu0 0
      %3654 = vperm.xlu0 %3653, %v3599
      %v3655 = vpop.permute.xlu0 %3654
      %3656 = vset.pattern.permute.xlu0 0
      %3657 = vperm.xlu0 %3656, %v3600
      %v3658 = vpop.permute.xlu0 %3657
      %3659 = vset.pattern.permute.xlu0 0
      %3660 = vperm.xlu0 %3659, %v3601
      %v3661 = vpop.permute.xlu0 %3660
      %3662 = vset.pattern.permute.xlu0 0
      %3663 = vperm.xlu0 %3662, %v3602
      %v3664 = vpop.permute.xlu0 %3663
      %3665 = vset.pattern.permute.xlu0 0
      %3666 = vperm.xlu0 %3665, %v3603
      %v3667 = vpop.permute.xlu0 %3666
      %3668 = vset.pattern.permute.xlu0 0
      %3669 = vperm.xlu0 %3668, %v3604
      %v3670 = vpop.permute.xlu0 %3669
      %3671 = vset.pattern.permute.xlu0 0
      %3672 = vperm.xlu0 %3671, %v3605
      %v3673 = vpop.permute.xlu0 %3672
      %3674 = vset.pattern.permute.xlu0 0
      %3675 = vperm.xlu0 %3674, %v3606
      %v3676 = vpop.permute.xlu0 %3675
      %3677 = vset.pattern.permute.xlu0 0
      %3678 = vperm.xlu0 %3677, %v3607
      %v3679 = vpop.permute.xlu0 %3678
      %3680 = vset.pattern.permute.xlu0 0
      %3681 = vperm.xlu0 %3680, %v3608
      %v3682 = vpop.permute.xlu0 %3681
      %3683 = vset.pattern.permute.xlu0 0
      %3684 = vperm.xlu0 %3683, %v3609
      %v3685 = vpop.permute.xlu0 %3684
      %3686 = vset.pattern.permute.xlu0 0
      %3687 = vperm.xlu0 %3686, %v3610
      %v3688 = vpop.permute.xlu0 %3687
      %3689 = vset.pattern.permute.xlu0 0
      %3690 = vperm.xlu0 %3689, %v3611
      %v3691 = vpop.permute.xlu0 %3690
      %3692 = vset.pattern.permute.xlu0 0
      %3693 = vperm.xlu0 %3692, %v3612
      %v3694 = vpop.permute.xlu0 %3693
      %3695 = vset.pattern.permute.xlu0 0
      %3696 = vperm.xlu0 %3695, %v3613
      %v3697 = vpop.permute.xlu0 %3696
      %3698 = vset.pattern.permute.xlu0 0
      %3699 = vperm.xlu0 %3698, %v3614
      %v3700 = vpop.permute.xlu0 %3699
      %3701 = vset.pattern.permute.xlu0 0
      %3702 = vperm.xlu0 %3701, %v3615
      %v3703 = vpop.permute.xlu0 %3702
      %3704 = vset.pattern.permute.xlu0 0
      %3705 = vperm.xlu0 %3704, %v3616
      %v3706 = vpop.permute.xlu0 %3705
      %3707 = vset.pattern.permute.xlu0 0
      %3708 = vperm.xlu0 %3707, %v3617
      %v3709 = vpop.permute.xlu0 %3708
      %3710 = vset.pattern.permute.xlu0 0
      %3711 = vperm.xlu0 %3710, %v3618
      %v3712 = vpop.permute.xlu0 %3711
      %3713 = vset.pattern.permute.xlu0 0
      %3714 = vperm.xlu0 %3713, %v3619
      %v3715 = vpop.permute.xlu0 %3714
      %3716 = vset.pattern.permute.xlu0 0
      %3717 = vperm.xlu0 %3716, %v3620
      %v3718 = vpop.permute.xlu0 %3717
      %3719 = vset.pattern.permute.xlu0 0
      %3720 = vperm.xlu0 %3719, %v3621
      %v3721 = vpop.permute.xlu0 %3720
      %3722 = vset.pattern.permute.xlu0 0
      %3723 = vperm.xlu0 %3722, %v3622
      %v3724 = vpop.permute.xlu0 %3723
      %3725 = vset.pattern.permute.xlu0 0
      %3726 = vperm.xlu0 %3725, %v3623
      %v3727 = vpop.permute.xlu0 %3726
      %3728 = vset.pattern.permute.xlu0 0
      %3729 = vperm.xlu0 %3728, %v3624
      %v3730 = vpop.permute.xlu0 %3729
      %3731 = vset.pattern.permute.xlu0 0
      %3732 = vperm.xlu0 %3731, %v3625
      %v3733 = vpop.permute.xlu0 %3732
      %3734 = vset.pattern.permute.xlu0 0
      %3735 = vperm.xlu0 %3734, %v3626
      %v3736 = vpop.permute.xlu0 %3735
      %3737 = vset.pattern.permute.xlu0 0
      %3738 = vperm.xlu0 %3737, %v3627
      %v3739 = vpop.permute.xlu0 %3738
      %3740 = vset.pattern.permute.xlu0 0
      %3741 = vperm.xlu0 %3740, %v3628
      %v3742 = vpop.permute.xlu0 %3741
      %3743 = vset.pattern.permute.xlu0 0
      %3744 = vperm.xlu0 %3743, %v3629
      %v3745 = vpop.permute.xlu0 %3744
      %3746 = vset.pattern.permute.xlu0 0
      %3747 = vperm.xlu0 %3746, %v3630
      %v3748 = vpop.permute.xlu0 %3747
      %3749 = vset.pattern.permute.xlu0 0
      %3750 = vperm.xlu0 %3749, %v3631
      %v3751 = vpop.permute.xlu0 %3750
      %vm3752 = vcmp.eq.s32.totalorder %v3634, 1
      %vm3753 = vcmp.eq.s32.totalorder %v3637, 1
      %vm3754 = vcmp.eq.s32.totalorder %v3640, 1
      %vm3755 = vcmp.eq.s32.totalorder %v3643, 1
      %vm3756 = vcmp.eq.s32.totalorder %v3646, 1
      %vm3757 = vcmp.eq.s32.totalorder %v3649, 1
      %vm3758 = vcmp.eq.s32.totalorder %v3652, 1
      %vm3759 = vcmp.eq.s32.totalorder %v3655, 1
      %vm3760 = vcmp.eq.s32.totalorder %v3658, 1
      %vm3761 = vcmp.eq.s32.totalorder %v3661, 1
      %vm3762 = vcmp.eq.s32.totalorder %v3664, 1
      %vm3763 = vcmp.eq.s32.totalorder %v3667, 1
      %vm3764 = vcmp.eq.s32.totalorder %v3670, 1
      %vm3765 = vcmp.eq.s32.totalorder %v3673, 1
      %vm3766 = vcmp.eq.s32.totalorder %v3676, 1
      %vm3767 = vcmp.eq.s32.totalorder %v3679, 1
      %vm3768 = vcmp.eq.s32.totalorder %v3682, 1
      %vm3769 = vcmp.eq.s32.totalorder %v3685, 1
      %vm3770 = vcmp.eq.s32.totalorder %v3688, 1
      %vm3771 = vcmp.eq.s32.totalorder %v3691, 1
      %vm3772 = vcmp.eq.s32.totalorder %v3694, 1
      %vm3773 = vcmp.eq.s32.totalorder %v3697, 1
      %vm3774 = vcmp.eq.s32.totalorder %v3700, 1
      %vm3775 = vcmp.eq.s32.totalorder %v3703, 1
      %vm3776 = vcmp.eq.s32.totalorder %v3706, 1
      %vm3777 = vcmp.eq.s32.totalorder %v3709, 1
      %vm3778 = vcmp.eq.s32.totalorder %v3712, 1
      %vm3779 = vcmp.eq.s32.totalorder %v3715, 1
      %vm3780 = vcmp.eq.s32.totalorder %v3718, 1
      %vm3781 = vcmp.eq.s32.totalorder %v3721, 1
      %vm3782 = vcmp.eq.s32.totalorder %v3724, 1
      %vm3783 = vcmp.eq.s32.totalorder %v3727, 1
      %vm3784 = vcmp.eq.s32.totalorder %v3730, 1
      %vm3785 = vcmp.eq.s32.totalorder %v3733, 1
      %vm3786 = vcmp.eq.s32.totalorder %v3736, 1
      %vm3787 = vcmp.eq.s32.totalorder %v3739, 1
      %vm3788 = vcmp.eq.s32.totalorder %v3742, 1
      %vm3789 = vcmp.eq.s32.totalorder %v3745, 1
      %vm3790 = vcmp.eq.s32.totalorder %v3748, 1
      %vm3791 = vcmp.eq.s32.totalorder %v3751, 1
      %vm3792 = vcmask 1044480
      %v3793 = vrot.slane %v1703, 3
      %v3794 = vrot.slane %v1704, 3
      %v3795 = vsel %vm3792, %v3793, %v3794
      %v3796 = vrot.slane %v1705, 3
      %v3797 = vsel %vm3792, %v3794, %v3796
      %v3798 = vrot.slane %v1706, 3
      %v3799 = vsel %vm3792, %v3796, %v3798
      %v3800 = vrot.slane %v1707, 3
      %v3801 = vsel %vm3792, %v3798, %v3800
      %v3802 = vrot.slane %v1708, 3
      %v3803 = vsel %vm3792, %v3800, %v3802
      %v3804 = vrot.slane %v1709, 3
      %v3805 = vsel %vm3792, %v3802, %v3804
      %v3806 = vrot.slane %v1710, 3
      %v3807 = vsel %vm3792, %v3804, %v3806
      %v3808 = vrot.slane %v1711, 3
      %v3809 = vsel %vm3792, %v3806, %v3808
      %v3810 = vrot.slane %v1712, 3
      %v3811 = vsel %vm3792, %v3808, %v3810
      %v3812 = vrot.slane %v1713, 3
      %v3813 = vsel %vm3792, %v3810, %v3812
      %v3814 = vrot.slane %v1714, 3
      %v3815 = vsel %vm3792, %v3812, %v3814
      %v3816 = vrot.slane %v1715, 3
      %v3817 = vsel %vm3792, %v3814, %v3816
      %v3818 = vrot.slane %v1716, 3
      %v3819 = vsel %vm3792, %v3816, %v3818
      %v3820 = vrot.slane %v1717, 3
      %v3821 = vsel %vm3792, %v3818, %v3820
      %v3822 = vrot.slane %v1718, 3
      %v3823 = vsel %vm3792, %v3820, %v3822
      %v3824 = vrot.slane %v1719, 3
      %v3825 = vsel %vm3792, %v3822, %v3824
      %v3826 = vrot.slane %v1720, 3
      %v3827 = vsel %vm3792, %v3824, %v3826
      %v3828 = vrot.slane %v1721, 3
      %v3829 = vsel %vm3792, %v3826, %v3828
      %v3830 = vrot.slane %v1722, 3
      %v3831 = vsel %vm3792, %v3828, %v3830
      %v3832 = vrot.slane %v1723, 3
      %v3833 = vsel %vm3792, %v3830, %v3832
      %v3834 = vrot.slane %v1724, 3
      %v3835 = vsel %vm3792, %v3832, %v3834
      %v3836 = vrot.slane %v1725, 3
      %v3837 = vsel %vm3792, %v3834, %v3836
      %v3838 = vrot.slane %v1726, 3
      %v3839 = vsel %vm3792, %v3836, %v3838
      %v3840 = vrot.slane %v1727, 3
      %v3841 = vsel %vm3792, %v3838, %v3840
      %v3842 = vrot.slane %v1728, 3
      %v3843 = vsel %vm3792, %v3840, %v3842
      %v3844 = vrot.slane %v1729, 3
      %v3845 = vsel %vm3792, %v3842, %v3844
      %v3846 = vrot.slane %v1730, 3
      %v3847 = vsel %vm3792, %v3844, %v3846
      %v3848 = vrot.slane %v1731, 3
      %v3849 = vsel %vm3792, %v3846, %v3848
      %v3850 = vrot.slane %v1732, 3
      %v3851 = vsel %vm3792, %v3848, %v3850
      %v3852 = vrot.slane %v1733, 3
      %v3853 = vsel %vm3792, %v3850, %v3852
      %v3854 = vrot.slane %v1734, 3
      %v3855 = vsel %vm3792, %v3852, %v3854
      %v3856 = vrot.slane %v1735, 3
      %v3857 = vsel %vm3792, %v3854, %v3856
      %v3858 = vrot.slane %v1736, 3
      %v3859 = vsel %vm3792, %v3856, %v3858
      %v3860 = vrot.slane %v1737, 3
      %v3861 = vsel %vm3792, %v3858, %v3860
      %v3862 = vrot.slane %v1738, 3
      %v3863 = vsel %vm3792, %v3860, %v3862
      %v3864 = vrot.slane %v1739, 3
      %v3865 = vsel %vm3792, %v3862, %v3864
      %v3866 = vrot.slane %v1740, 3
      %v3867 = vsel %vm3792, %v3864, %v3866
      %v3868 = vrot.slane %v1741, 3
      %v3869 = vsel %vm3792, %v3866, %v3868
      %v3870 = vrot.slane %v1742, 3
      %v3871 = vsel %vm3792, %v3868, %v3870
      %v3872 = vrot.slane -1e+30, 3
      %v3873 = vsel %vm3792, %v3870, %v3872
      %v3914 = vsel %vm3752, %v3795, -1e+30
      %v3915 = vsel %vm3753, %v3797, -1e+30
      %v3916 = vsel %vm3754, %v3799, -1e+30
      %v3917 = vsel %vm3755, %v3801, -1e+30
      %v3918 = vsel %vm3756, %v3803, -1e+30
      %v3919 = vsel %vm3757, %v3805, -1e+30
      %v3920 = vsel %vm3758, %v3807, -1e+30
      %v3921 = vsel %vm3759, %v3809, -1e+30
      %v3922 = vsel %vm3760, %v3811, -1e+30
      %v3923 = vsel %vm3761, %v3813, -1e+30
      %v3924 = vsel %vm3762, %v3815, -1e+30
      %v3925 = vsel %vm3763, %v3817, -1e+30
      %v3926 = vsel %vm3764, %v3819, -1e+30
      %v3927 = vsel %vm3765, %v3821, -1e+30
      %v3928 = vsel %vm3766, %v3823, -1e+30
      %v3929 = vsel %vm3767, %v3825, -1e+30
      %v3930 = vsel %vm3768, %v3827, -1e+30
      %v3931 = vsel %vm3769, %v3829, -1e+30
      %v3932 = vsel %vm3770, %v3831, -1e+30
      %v3933 = vsel %vm3771, %v3833, -1e+30
      %v3934 = vsel %vm3772, %v3835, -1e+30
      %v3935 = vsel %vm3773, %v3837, -1e+30
      %v3936 = vsel %vm3774, %v3839, -1e+30
      %v3937 = vsel %vm3775, %v3841, -1e+30
      %v3938 = vsel %vm3776, %v3843, -1e+30
      %v3939 = vsel %vm3777, %v3845, -1e+30
      %v3940 = vsel %vm3778, %v3847, -1e+30
      %v3941 = vsel %vm3779, %v3849, -1e+30
      %v3942 = vsel %vm3780, %v3851, -1e+30
      %v3943 = vsel %vm3781, %v3853, -1e+30
      %v3944 = vsel %vm3782, %v3855, -1e+30
      %v3945 = vsel %vm3783, %v3857, -1e+30
      %v3946 = vsel %vm3784, %v3859, -1e+30
      %v3947 = vsel %vm3785, %v3861, -1e+30
      %v3948 = vsel %vm3786, %v3863, -1e+30
      %v3949 = vsel %vm3787, %v3865, -1e+30
      %v3950 = vsel %vm3788, %v3867, -1e+30
      %v3951 = vsel %vm3789, %v3869, -1e+30
      %v3952 = vsel %vm3790, %v3871, -1e+30
      %v3953 = vsel %vm3791, %v3873, -1e+30
      %v3954 = vmax.f32 %v3512, %v3914
      %v3955 = vmax.f32 %v3513, %v3915
      %v3956 = vmax.f32 %v3514, %v3916
      %v3957 = vmax.f32 %v3515, %v3917
      %v3958 = vmax.f32 %v3516, %v3918
      %v3959 = vmax.f32 %v3517, %v3919
      %v3960 = vmax.f32 %v3518, %v3920
      %v3961 = vmax.f32 %v3519, %v3921
      %v3962 = vmax.f32 %v3520, %v3922
      %v3963 = vmax.f32 %v3521, %v3923
      %v3964 = vmax.f32 %v3522, %v3924
      %v3965 = vmax.f32 %v3523, %v3925
      %v3966 = vmax.f32 %v3524, %v3926
      %v3967 = vmax.f32 %v3525, %v3927
      %v3968 = vmax.f32 %v3526, %v3928
      %v3969 = vmax.f32 %v3527, %v3929
      %v3970 = vmax.f32 %v3528, %v3930
      %v3971 = vmax.f32 %v3529, %v3931
      %v3972 = vmax.f32 %v3530, %v3932
      %v3973 = vmax.f32 %v3531, %v3933
      %v3974 = vmax.f32 %v3532, %v3934
      %v3975 = vmax.f32 %v3533, %v3935
      %v3976 = vmax.f32 %v3534, %v3936
      %v3977 = vmax.f32 %v3535, %v3937
      %v3978 = vmax.f32 %v3536, %v3938
      %v3979 = vmax.f32 %v3537, %v3939
      %v3980 = vmax.f32 %v3538, %v3940
      %v3981 = vmax.f32 %v3539, %v3941
      %v3982 = vmax.f32 %v3540, %v3942
      %v3983 = vmax.f32 %v3541, %v3943
      %v3984 = vmax.f32 %v3542, %v3944
      %v3985 = vmax.f32 %v3543, %v3945
      %v3986 = vmax.f32 %v3544, %v3946
      %v3987 = vmax.f32 %v3545, %v3947
      %v3988 = vmax.f32 %v3546, %v3948
      %v3989 = vmax.f32 %v3547, %v3949
      %v3990 = vmax.f32 %v3548, %v3950
      %v3991 = vmax.f32 %v3549, %v3951
      %v3992 = vmax.f32 %v3550, %v3952
      %v3993 = vmax.f32 %v3551, %v3953
      %vm3994 = vcmp.ge.s32.totalorder %v318, 3
      %vm3995 = vcmp.ge.s32.totalorder %v319, 3
      %vm3996 = vcmp.ge.s32.totalorder %v320, 3
      %vm3997 = vcmp.ge.s32.totalorder %v321, 3
      %vm3998 = vcmp.ge.s32.totalorder %v322, 3
      %vm3999 = vcmp.ge.s32.totalorder %v323, 3
      %vm4000 = vcmp.ge.s32.totalorder %v324, 3
      %vm4001 = vcmp.ge.s32.totalorder %v325, 3
      %vm4002 = vcmp.ge.s32.totalorder %v326, 3
      %vm4003 = vcmp.ge.s32.totalorder %v327, 3
      %vm4004 = vcmp.ge.s32.totalorder %v328, 3
      %vm4005 = vcmp.ge.s32.totalorder %v329, 3
      %vm4006 = vcmp.ge.s32.totalorder %v330, 3
      %vm4007 = vcmp.ge.s32.totalorder %v331, 3
      %vm4008 = vcmp.ge.s32.totalorder %v332, 3
      %vm4009 = vcmp.ge.s32.totalorder %v333, 3
      %vm4010 = vcmp.ge.s32.totalorder %v334, 3
      %vm4011 = vcmp.ge.s32.totalorder %v335, 3
      %vm4012 = vcmp.ge.s32.totalorder %v336, 3
      %vm4013 = vcmp.ge.s32.totalorder %v337, 3
      %vm4014 = vcmp.ge.s32.totalorder %v338, 3
      %vm4015 = vcmp.ge.s32.totalorder %v339, 3
      %vm4016 = vcmp.ge.s32.totalorder %v340, 3
      %vm4017 = vcmp.ge.s32.totalorder %v341, 3
      %vm4018 = vcmp.ge.s32.totalorder %v342, 3
      %vm4019 = vcmp.ge.s32.totalorder %v343, 3
      %vm4020 = vcmp.ge.s32.totalorder %v344, 3
      %vm4021 = vcmp.ge.s32.totalorder %v345, 3
      %vm4022 = vcmp.ge.s32.totalorder %v346, 3
      %vm4023 = vcmp.ge.s32.totalorder %v347, 3
      %vm4024 = vcmp.ge.s32.totalorder %v348, 3
      %vm4025 = vcmp.ge.s32.totalorder %v349, 3
      %vm4026 = vcmp.ge.s32.totalorder %v350, 3
      %vm4027 = vcmp.ge.s32.totalorder %v351, 3
      %vm4028 = vcmp.ge.s32.totalorder %v352, 3
      %vm4029 = vcmp.ge.s32.totalorder %v353, 3
      %vm4030 = vcmp.ge.s32.totalorder %v354, 3
      %vm4031 = vcmp.ge.s32.totalorder %v355, 3
      %vm4032 = vcmp.ge.s32.totalorder %v356, 3
      %vm4033 = vcmp.ge.s32.totalorder %v357, 3
      %v4034 = vsel %vm3994, 1, 0
      %v4035 = vsel %vm3995, 1, 0
      %v4036 = vsel %vm3996, 1, 0
      %v4037 = vsel %vm3997, 1, 0
      %v4038 = vsel %vm3998, 1, 0
      %v4039 = vsel %vm3999, 1, 0
      %v4040 = vsel %vm4000, 1, 0
      %v4041 = vsel %vm4001, 1, 0
      %v4042 = vsel %vm4002, 1, 0
      %v4043 = vsel %vm4003, 1, 0
      %v4044 = vsel %vm4004, 1, 0
      %v4045 = vsel %vm4005, 1, 0
      %v4046 = vsel %vm4006, 1, 0
      %v4047 = vsel %vm4007, 1, 0
      %v4048 = vsel %vm4008, 1, 0
      %v4049 = vsel %vm4009, 1, 0
      %v4050 = vsel %vm4010, 1, 0
      %v4051 = vsel %vm4011, 1, 0
      %v4052 = vsel %vm4012, 1, 0
      %v4053 = vsel %vm4013, 1, 0
      %v4054 = vsel %vm4014, 1, 0
      %v4055 = vsel %vm4015, 1, 0
      %v4056 = vsel %vm4016, 1, 0
      %v4057 = vsel %vm4017, 1, 0
      %v4058 = vsel %vm4018, 1, 0
      %v4059 = vsel %vm4019, 1, 0
      %v4060 = vsel %vm4020, 1, 0
      %v4061 = vsel %vm4021, 1, 0
      %v4062 = vsel %vm4022, 1, 0
      %v4063 = vsel %vm4023, 1, 0
      %v4064 = vsel %vm4024, 1, 0
      %v4065 = vsel %vm4025, 1, 0
      %v4066 = vsel %vm4026, 1, 0
      %v4067 = vsel %vm4027, 1, 0
      %v4068 = vsel %vm4028, 1, 0
      %v4069 = vsel %vm4029, 1, 0
      %v4070 = vsel %vm4030, 1, 0
      %v4071 = vsel %vm4031, 1, 0
      %v4072 = vsel %vm4032, 1, 0
      %v4073 = vsel %vm4033, 1, 0
      %4074 = vset.pattern.permute.xlu0 0
      %4075 = vperm.xlu0 %4074, %v4034
      %v4076 = vpop.permute.xlu0 %4075
      %4077 = vset.pattern.permute.xlu0 0
      %4078 = vperm.xlu0 %4077, %v4035
      %v4079 = vpop.permute.xlu0 %4078
      %4080 = vset.pattern.permute.xlu0 0
      %4081 = vperm.xlu0 %4080, %v4036
      %v4082 = vpop.permute.xlu0 %4081
      %4083 = vset.pattern.permute.xlu0 0
      %4084 = vperm.xlu0 %4083, %v4037
      %v4085 = vpop.permute.xlu0 %4084
      %4086 = vset.pattern.permute.xlu0 0
      %4087 = vperm.xlu0 %4086, %v4038
      %v4088 = vpop.permute.xlu0 %4087
      %4089 = vset.pattern.permute.xlu0 0
      %4090 = vperm.xlu0 %4089, %v4039
      %v4091 = vpop.permute.xlu0 %4090
      %4092 = vset.pattern.permute.xlu0 0
      %4093 = vperm.xlu0 %4092, %v4040
      %v4094 = vpop.permute.xlu0 %4093
      %4095 = vset.pattern.permute.xlu0 0
      %4096 = vperm.xlu0 %4095, %v4041
      %v4097 = vpop.permute.xlu0 %4096
      %4098 = vset.pattern.permute.xlu0 0
      %4099 = vperm.xlu0 %4098, %v4042
      %v4100 = vpop.permute.xlu0 %4099
      %4101 = vset.pattern.permute.xlu0 0
      %4102 = vperm.xlu0 %4101, %v4043
      %v4103 = vpop.permute.xlu0 %4102
      %4104 = vset.pattern.permute.xlu0 0
      %4105 = vperm.xlu0 %4104, %v4044
      %v4106 = vpop.permute.xlu0 %4105
      %4107 = vset.pattern.permute.xlu0 0
      %4108 = vperm.xlu0 %4107, %v4045
      %v4109 = vpop.permute.xlu0 %4108
      %4110 = vset.pattern.permute.xlu0 0
      %4111 = vperm.xlu0 %4110, %v4046
      %v4112 = vpop.permute.xlu0 %4111
      %4113 = vset.pattern.permute.xlu0 0
      %4114 = vperm.xlu0 %4113, %v4047
      %v4115 = vpop.permute.xlu0 %4114
      %4116 = vset.pattern.permute.xlu0 0
      %4117 = vperm.xlu0 %4116, %v4048
      %v4118 = vpop.permute.xlu0 %4117
      %4119 = vset.pattern.permute.xlu0 0
      %4120 = vperm.xlu0 %4119, %v4049
      %v4121 = vpop.permute.xlu0 %4120
      %4122 = vset.pattern.permute.xlu0 0
      %4123 = vperm.xlu0 %4122, %v4050
      %v4124 = vpop.permute.xlu0 %4123
      %4125 = vset.pattern.permute.xlu0 0
      %4126 = vperm.xlu0 %4125, %v4051
      %v4127 = vpop.permute.xlu0 %4126
      %4128 = vset.pattern.permute.xlu0 0
      %4129 = vperm.xlu0 %4128, %v4052
      %v4130 = vpop.permute.xlu0 %4129
      %4131 = vset.pattern.permute.xlu0 0
      %4132 = vperm.xlu0 %4131, %v4053
      %v4133 = vpop.permute.xlu0 %4132
      %4134 = vset.pattern.permute.xlu0 0
      %4135 = vperm.xlu0 %4134, %v4054
      %v4136 = vpop.permute.xlu0 %4135
      %4137 = vset.pattern.permute.xlu0 0
      %4138 = vperm.xlu0 %4137, %v4055
      %v4139 = vpop.permute.xlu0 %4138
      %4140 = vset.pattern.permute.xlu0 0
      %4141 = vperm.xlu0 %4140, %v4056
      %v4142 = vpop.permute.xlu0 %4141
      %4143 = vset.pattern.permute.xlu0 0
      %4144 = vperm.xlu0 %4143, %v4057
      %v4145 = vpop.permute.xlu0 %4144
      %4146 = vset.pattern.permute.xlu0 0
      %4147 = vperm.xlu0 %4146, %v4058
      %v4148 = vpop.permute.xlu0 %4147
      %4149 = vset.pattern.permute.xlu0 0
      %4150 = vperm.xlu0 %4149, %v4059
      %v4151 = vpop.permute.xlu0 %4150
      %4152 = vset.pattern.permute.xlu0 0
      %4153 = vperm.xlu0 %4152, %v4060
      %v4154 = vpop.permute.xlu0 %4153
      %4155 = vset.pattern.permute.xlu0 0
      %4156 = vperm.xlu0 %4155, %v4061
      %v4157 = vpop.permute.xlu0 %4156
      %4158 = vset.pattern.permute.xlu0 0
      %4159 = vperm.xlu0 %4158, %v4062
      %v4160 = vpop.permute.xlu0 %4159
      %4161 = vset.pattern.permute.xlu0 0
      %4162 = vperm.xlu0 %4161, %v4063
      %v4163 = vpop.permute.xlu0 %4162
      %4164 = vset.pattern.permute.xlu0 0
      %4165 = vperm.xlu0 %4164, %v4064
      %v4166 = vpop.permute.xlu0 %4165
      %4167 = vset.pattern.permute.xlu0 0
      %4168 = vperm.xlu0 %4167, %v4065
      %v4169 = vpop.permute.xlu0 %4168
      %4170 = vset.pattern.permute.xlu0 0
      %4171 = vperm.xlu0 %4170, %v4066
      %v4172 = vpop.permute.xlu0 %4171
      %4173 = vset.pattern.permute.xlu0 0
      %4174 = vperm.xlu0 %4173, %v4067
      %v4175 = vpop.permute.xlu0 %4174
      %4176 = vset.pattern.permute.xlu0 0
      %4177 = vperm.xlu0 %4176, %v4068
      %v4178 = vpop.permute.xlu0 %4177
      %4179 = vset.pattern.permute.xlu0 0
      %4180 = vperm.xlu0 %4179, %v4069
      %v4181 = vpop.permute.xlu0 %4180
      %4182 = vset.pattern.permute.xlu0 0
      %4183 = vperm.xlu0 %4182, %v4070
      %v4184 = vpop.permute.xlu0 %4183
      %4185 = vset.pattern.permute.xlu0 0
      %4186 = vperm.xlu0 %4185, %v4071
      %v4187 = vpop.permute.xlu0 %4186
      %4188 = vset.pattern.permute.xlu0 0
      %4189 = vperm.xlu0 %4188, %v4072
      %v4190 = vpop.permute.xlu0 %4189
      %4191 = vset.pattern.permute.xlu0 0
      %4192 = vperm.xlu0 %4191, %v4073
      %v4193 = vpop.permute.xlu0 %4192
      %vm4194 = vcmp.eq.s32.totalorder %v4076, 1
      %vm4195 = vcmp.eq.s32.totalorder %v4079, 1
      %vm4196 = vcmp.eq.s32.totalorder %v4082, 1
      %vm4197 = vcmp.eq.s32.totalorder %v4085, 1
      %vm4198 = vcmp.eq.s32.totalorder %v4088, 1
      %vm4199 = vcmp.eq.s32.totalorder %v4091, 1
      %vm4200 = vcmp.eq.s32.totalorder %v4094, 1
      %vm4201 = vcmp.eq.s32.totalorder %v4097, 1
      %vm4202 = vcmp.eq.s32.totalorder %v4100, 1
      %vm4203 = vcmp.eq.s32.totalorder %v4103, 1
      %vm4204 = vcmp.eq.s32.totalorder %v4106, 1
      %vm4205 = vcmp.eq.s32.totalorder %v4109, 1
      %vm4206 = vcmp.eq.s32.totalorder %v4112, 1
      %vm4207 = vcmp.eq.s32.totalorder %v4115, 1
      %vm4208 = vcmp.eq.s32.totalorder %v4118, 1
      %vm4209 = vcmp.eq.s32.totalorder %v4121, 1
      %vm4210 = vcmp.eq.s32.totalorder %v4124, 1
      %vm4211 = vcmp.eq.s32.totalorder %v4127, 1
      %vm4212 = vcmp.eq.s32.totalorder %v4130, 1
      %vm4213 = vcmp.eq.s32.totalorder %v4133, 1
      %vm4214 = vcmp.eq.s32.totalorder %v4136, 1
      %vm4215 = vcmp.eq.s32.totalorder %v4139, 1
      %vm4216 = vcmp.eq.s32.totalorder %v4142, 1
      %vm4217 = vcmp.eq.s32.totalorder %v4145, 1
      %vm4218 = vcmp.eq.s32.totalorder %v4148, 1
      %vm4219 = vcmp.eq.s32.totalorder %v4151, 1
      %vm4220 = vcmp.eq.s32.totalorder %v4154, 1
      %vm4221 = vcmp.eq.s32.totalorder %v4157, 1
      %vm4222 = vcmp.eq.s32.totalorder %v4160, 1
      %vm4223 = vcmp.eq.s32.totalorder %v4163, 1
      %vm4224 = vcmp.eq.s32.totalorder %v4166, 1
      %vm4225 = vcmp.eq.s32.totalorder %v4169, 1
      %vm4226 = vcmp.eq.s32.totalorder %v4172, 1
      %vm4227 = vcmp.eq.s32.totalorder %v4175, 1
      %vm4228 = vcmp.eq.s32.totalorder %v4178, 1
      %vm4229 = vcmp.eq.s32.totalorder %v4181, 1
      %vm4230 = vcmp.eq.s32.totalorder %v4184, 1
      %vm4231 = vcmp.eq.s32.totalorder %v4187, 1
      %vm4232 = vcmp.eq.s32.totalorder %v4190, 1
      %vm4233 = vcmp.eq.s32.totalorder %v4193, 1
      %vm4234 = vcmask 1042432
      %v4235 = vrot.slane -1e+30, 5
      %v4236 = vrot.slane %v1703, 5
      %v4237 = vsel %vm4234, %v4235, %v4236
      %v4238 = vrot.slane %v1704, 5
      %v4239 = vsel %vm4234, %v4236, %v4238
      %v4240 = vrot.slane %v1705, 5
      %v4241 = vsel %vm4234, %v4238, %v4240
      %v4242 = vrot.slane %v1706, 5
      %v4243 = vsel %vm4234, %v4240, %v4242
      %v4244 = vrot.slane %v1707, 5
      %v4245 = vsel %vm4234, %v4242, %v4244
      %v4246 = vrot.slane %v1708, 5
      %v4247 = vsel %vm4234, %v4244, %v4246
      %v4248 = vrot.slane %v1709, 5
      %v4249 = vsel %vm4234, %v4246, %v4248
      %v4250 = vrot.slane %v1710, 5
      %v4251 = vsel %vm4234, %v4248, %v4250
      %v4252 = vrot.slane %v1711, 5
      %v4253 = vsel %vm4234, %v4250, %v4252
      %v4254 = vrot.slane %v1712, 5
      %v4255 = vsel %vm4234, %v4252, %v4254
      %v4256 = vrot.slane %v1713, 5
      %v4257 = vsel %vm4234, %v4254, %v4256
      %v4258 = vrot.slane %v1714, 5
      %v4259 = vsel %vm4234, %v4256, %v4258
      %v4260 = vrot.slane %v1715, 5
      %v4261 = vsel %vm4234, %v4258, %v4260
      %v4262 = vrot.slane %v1716, 5
      %v4263 = vsel %vm4234, %v4260, %v4262
      %v4264 = vrot.slane %v1717, 5
      %v4265 = vsel %vm4234, %v4262, %v4264
      %v4266 = vrot.slane %v1718, 5
      %v4267 = vsel %vm4234, %v4264, %v4266
      %v4268 = vrot.slane %v1719, 5
      %v4269 = vsel %vm4234, %v4266, %v4268
      %v4270 = vrot.slane %v1720, 5
      %v4271 = vsel %vm4234, %v4268, %v4270
      %v4272 = vrot.slane %v1721, 5
      %v4273 = vsel %vm4234, %v4270, %v4272
      %v4274 = vrot.slane %v1722, 5
      %v4275 = vsel %vm4234, %v4272, %v4274
      %v4276 = vrot.slane %v1723, 5
      %v4277 = vsel %vm4234, %v4274, %v4276
      %v4278 = vrot.slane %v1724, 5
      %v4279 = vsel %vm4234, %v4276, %v4278
      %v4280 = vrot.slane %v1725, 5
      %v4281 = vsel %vm4234, %v4278, %v4280
      %v4282 = vrot.slane %v1726, 5
      %v4283 = vsel %vm4234, %v4280, %v4282
      %v4284 = vrot.slane %v1727, 5
      %v4285 = vsel %vm4234, %v4282, %v4284
      %v4286 = vrot.slane %v1728, 5
      %v4287 = vsel %vm4234, %v4284, %v4286
      %v4288 = vrot.slane %v1729, 5
      %v4289 = vsel %vm4234, %v4286, %v4288
      %v4290 = vrot.slane %v1730, 5
      %v4291 = vsel %vm4234, %v4288, %v4290
      %v4292 = vrot.slane %v1731, 5
      %v4293 = vsel %vm4234, %v4290, %v4292
      %v4294 = vrot.slane %v1732, 5
      %v4295 = vsel %vm4234, %v4292, %v4294
      %v4296 = vrot.slane %v1733, 5
      %v4297 = vsel %vm4234, %v4294, %v4296
      %v4298 = vrot.slane %v1734, 5
      %v4299 = vsel %vm4234, %v4296, %v4298
      %v4300 = vrot.slane %v1735, 5
      %v4301 = vsel %vm4234, %v4298, %v4300
      %v4302 = vrot.slane %v1736, 5
      %v4303 = vsel %vm4234, %v4300, %v4302
      %v4304 = vrot.slane %v1737, 5
      %v4305 = vsel %vm4234, %v4302, %v4304
      %v4306 = vrot.slane %v1738, 5
      %v4307 = vsel %vm4234, %v4304, %v4306
      %v4308 = vrot.slane %v1739, 5
      %v4309 = vsel %vm4234, %v4306, %v4308
      %v4310 = vrot.slane %v1740, 5
      %v4311 = vsel %vm4234, %v4308, %v4310
      %v4312 = vrot.slane %v1741, 5
      %v4313 = vsel %vm4234, %v4310, %v4312
      %v4314 = vrot.slane %v1742, 5
      %v4315 = vsel %vm4234, %v4312, %v4314
      %v4356 = vsel %vm4194, %v4237, -1e+30
      %v4357 = vsel %vm4195, %v4239, -1e+30
      %v4358 = vsel %vm4196, %v4241, -1e+30
      %v4359 = vsel %vm4197, %v4243, -1e+30
      %v4360 = vsel %vm4198, %v4245, -1e+30
      %v4361 = vsel %vm4199, %v4247, -1e+30
      %v4362 = vsel %vm4200, %v4249, -1e+30
      %v4363 = vsel %vm4201, %v4251, -1e+30
      %v4364 = vsel %vm4202, %v4253, -1e+30
      %v4365 = vsel %vm4203, %v4255, -1e+30
      %v4366 = vsel %vm4204, %v4257, -1e+30
      %v4367 = vsel %vm4205, %v4259, -1e+30
      %v4368 = vsel %vm4206, %v4261, -1e+30
      %v4369 = vsel %vm4207, %v4263, -1e+30
      %v4370 = vsel %vm4208, %v4265, -1e+30
      %v4371 = vsel %vm4209, %v4267, -1e+30
      %v4372 = vsel %vm4210, %v4269, -1e+30
      %v4373 = vsel %vm4211, %v4271, -1e+30
      %v4374 = vsel %vm4212, %v4273, -1e+30
      %v4375 = vsel %vm4213, %v4275, -1e+30
      %v4376 = vsel %vm4214, %v4277, -1e+30
      %v4377 = vsel %vm4215, %v4279, -1e+30
      %v4378 = vsel %vm4216, %v4281, -1e+30
      %v4379 = vsel %vm4217, %v4283, -1e+30
      %v4380 = vsel %vm4218, %v4285, -1e+30
      %v4381 = vsel %vm4219, %v4287, -1e+30
      %v4382 = vsel %vm4220, %v4289, -1e+30
      %v4383 = vsel %vm4221, %v4291, -1e+30
      %v4384 = vsel %vm4222, %v4293, -1e+30
      %v4385 = vsel %vm4223, %v4295, -1e+30
      %v4386 = vsel %vm4224, %v4297, -1e+30
      %v4387 = vsel %vm4225, %v4299, -1e+30
      %v4388 = vsel %vm4226, %v4301, -1e+30
      %v4389 = vsel %vm4227, %v4303, -1e+30
      %v4390 = vsel %vm4228, %v4305, -1e+30
      %v4391 = vsel %vm4229, %v4307, -1e+30
      %v4392 = vsel %vm4230, %v4309, -1e+30
      %v4393 = vsel %vm4231, %v4311, -1e+30
      %v4394 = vsel %vm4232, %v4313, -1e+30
      %v4395 = vsel %vm4233, %v4315, -1e+30
      %v4396 = vmax.f32 %v3954, %v4356
      %v4397 = vmax.f32 %v3955, %v4357
      %v4398 = vmax.f32 %v3956, %v4358
      %v4399 = vmax.f32 %v3957, %v4359
      %v4400 = vmax.f32 %v3958, %v4360
      %v4401 = vmax.f32 %v3959, %v4361
      %v4402 = vmax.f32 %v3960, %v4362
      %v4403 = vmax.f32 %v3961, %v4363
      %v4404 = vmax.f32 %v3962, %v4364
      %v4405 = vmax.f32 %v3963, %v4365
      %v4406 = vmax.f32 %v3964, %v4366
      %v4407 = vmax.f32 %v3965, %v4367
      %v4408 = vmax.f32 %v3966, %v4368
      %v4409 = vmax.f32 %v3967, %v4369
      %v4410 = vmax.f32 %v3968, %v4370
      %v4411 = vmax.f32 %v3969, %v4371
      %v4412 = vmax.f32 %v3970, %v4372
      %v4413 = vmax.f32 %v3971, %v4373
      %v4414 = vmax.f32 %v3972, %v4374
      %v4415 = vmax.f32 %v3973, %v4375
      %v4416 = vmax.f32 %v3974, %v4376
      %v4417 = vmax.f32 %v3975, %v4377
      %v4418 = vmax.f32 %v3976, %v4378
      %v4419 = vmax.f32 %v3977, %v4379
      %v4420 = vmax.f32 %v3978, %v4380
      %v4421 = vmax.f32 %v3979, %v4381
      %v4422 = vmax.f32 %v3980, %v4382
      %v4423 = vmax.f32 %v3981, %v4383
      %v4424 = vmax.f32 %v3982, %v4384
      %v4425 = vmax.f32 %v3983, %v4385
      %v4426 = vmax.f32 %v3984, %v4386
      %v4427 = vmax.f32 %v3985, %v4387
      %v4428 = vmax.f32 %v3986, %v4388
      %v4429 = vmax.f32 %v3987, %v4389
      %v4430 = vmax.f32 %v3988, %v4390
      %v4431 = vmax.f32 %v3989, %v4391
      %v4432 = vmax.f32 %v3990, %v4392
      %v4433 = vmax.f32 %v3991, %v4393
      %v4434 = vmax.f32 %v3992, %v4394
      %v4435 = vmax.f32 %v3993, %v4395
      %vm4436 = vcmp.lt.s32.totalorder %v318, 12
      %vm4437 = vcmp.lt.s32.totalorder %v319, 12
      %vm4438 = vcmp.lt.s32.totalorder %v320, 12
      %vm4439 = vcmp.lt.s32.totalorder %v321, 12
      %vm4440 = vcmp.lt.s32.totalorder %v322, 12
      %vm4441 = vcmp.lt.s32.totalorder %v323, 12
      %vm4442 = vcmp.lt.s32.totalorder %v324, 12
      %vm4443 = vcmp.lt.s32.totalorder %v325, 12
      %vm4444 = vcmp.lt.s32.totalorder %v326, 12
      %vm4445 = vcmp.lt.s32.totalorder %v327, 12
      %vm4446 = vcmp.lt.s32.totalorder %v328, 12
      %vm4447 = vcmp.lt.s32.totalorder %v329, 12
      %vm4448 = vcmp.lt.s32.totalorder %v330, 12
      %vm4449 = vcmp.lt.s32.totalorder %v331, 12
      %vm4450 = vcmp.lt.s32.totalorder %v332, 12
      %vm4451 = vcmp.lt.s32.totalorder %v333, 12
      %vm4452 = vcmp.lt.s32.totalorder %v334, 12
      %vm4453 = vcmp.lt.s32.totalorder %v335, 12
      %vm4454 = vcmp.lt.s32.totalorder %v336, 12
      %vm4455 = vcmp.lt.s32.totalorder %v337, 12
      %vm4456 = vcmp.lt.s32.totalorder %v338, 12
      %vm4457 = vcmp.lt.s32.totalorder %v339, 12
      %vm4458 = vcmp.lt.s32.totalorder %v340, 12
      %vm4459 = vcmp.lt.s32.totalorder %v341, 12
      %vm4460 = vcmp.lt.s32.totalorder %v342, 12
      %vm4461 = vcmp.lt.s32.totalorder %v343, 12
      %vm4462 = vcmp.lt.s32.totalorder %v344, 12
      %vm4463 = vcmp.lt.s32.totalorder %v345, 12
      %vm4464 = vcmp.lt.s32.totalorder %v346, 12
      %vm4465 = vcmp.lt.s32.totalorder %v347, 12
      %vm4466 = vcmp.lt.s32.totalorder %v348, 12
      %vm4467 = vcmp.lt.s32.totalorder %v349, 12
      %vm4468 = vcmp.lt.s32.totalorder %v350, 12
      %vm4469 = vcmp.lt.s32.totalorder %v351, 12
      %vm4470 = vcmp.lt.s32.totalorder %v352, 12
      %vm4471 = vcmp.lt.s32.totalorder %v353, 12
      %vm4472 = vcmp.lt.s32.totalorder %v354, 12
      %vm4473 = vcmp.lt.s32.totalorder %v355, 12
      %vm4474 = vcmp.lt.s32.totalorder %v356, 12
      %vm4475 = vcmp.lt.s32.totalorder %v357, 12
      %v4476 = vsel %vm4436, 1, 0
      %v4477 = vsel %vm4437, 1, 0
      %v4478 = vsel %vm4438, 1, 0
      %v4479 = vsel %vm4439, 1, 0
      %v4480 = vsel %vm4440, 1, 0
      %v4481 = vsel %vm4441, 1, 0
      %v4482 = vsel %vm4442, 1, 0
      %v4483 = vsel %vm4443, 1, 0
      %v4484 = vsel %vm4444, 1, 0
      %v4485 = vsel %vm4445, 1, 0
      %v4486 = vsel %vm4446, 1, 0
      %v4487 = vsel %vm4447, 1, 0
      %v4488 = vsel %vm4448, 1, 0
      %v4489 = vsel %vm4449, 1, 0
      %v4490 = vsel %vm4450, 1, 0
      %v4491 = vsel %vm4451, 1, 0
      %v4492 = vsel %vm4452, 1, 0
      %v4493 = vsel %vm4453, 1, 0
      %v4494 = vsel %vm4454, 1, 0
      %v4495 = vsel %vm4455, 1, 0
      %v4496 = vsel %vm4456, 1, 0
      %v4497 = vsel %vm4457, 1, 0
      %v4498 = vsel %vm4458, 1, 0
      %v4499 = vsel %vm4459, 1, 0
      %v4500 = vsel %vm4460, 1, 0
      %v4501 = vsel %vm4461, 1, 0
      %v4502 = vsel %vm4462, 1, 0
      %v4503 = vsel %vm4463, 1, 0
      %v4504 = vsel %vm4464, 1, 0
      %v4505 = vsel %vm4465, 1, 0
      %v4506 = vsel %vm4466, 1, 0
      %v4507 = vsel %vm4467, 1, 0
      %v4508 = vsel %vm4468, 1, 0
      %v4509 = vsel %vm4469, 1, 0
      %v4510 = vsel %vm4470, 1, 0
      %v4511 = vsel %vm4471, 1, 0
      %v4512 = vsel %vm4472, 1, 0
      %v4513 = vsel %vm4473, 1, 0
      %v4514 = vsel %vm4474, 1, 0
      %v4515 = vsel %vm4475, 1, 0
      %4516 = vset.pattern.permute.xlu0 0
      %4517 = vperm.xlu0 %4516, %v4476
      %v4518 = vpop.permute.xlu0 %4517
      %4519 = vset.pattern.permute.xlu0 0
      %4520 = vperm.xlu0 %4519, %v4477
      %v4521 = vpop.permute.xlu0 %4520
      %4522 = vset.pattern.permute.xlu0 0
      %4523 = vperm.xlu0 %4522, %v4478
      %v4524 = vpop.permute.xlu0 %4523
      %4525 = vset.pattern.permute.xlu0 0
      %4526 = vperm.xlu0 %4525, %v4479
      %v4527 = vpop.permute.xlu0 %4526
      %4528 = vset.pattern.permute.xlu0 0
      %4529 = vperm.xlu0 %4528, %v4480
      %v4530 = vpop.permute.xlu0 %4529
      %4531 = vset.pattern.permute.xlu0 0
      %4532 = vperm.xlu0 %4531, %v4481
      %v4533 = vpop.permute.xlu0 %4532
      %4534 = vset.pattern.permute.xlu0 0
      %4535 = vperm.xlu0 %4534, %v4482
      %v4536 = vpop.permute.xlu0 %4535
      %4537 = vset.pattern.permute.xlu0 0
      %4538 = vperm.xlu0 %4537, %v4483
      %v4539 = vpop.permute.xlu0 %4538
      %4540 = vset.pattern.permute.xlu0 0
      %4541 = vperm.xlu0 %4540, %v4484
      %v4542 = vpop.permute.xlu0 %4541
      %4543 = vset.pattern.permute.xlu0 0
      %4544 = vperm.xlu0 %4543, %v4485
      %v4545 = vpop.permute.xlu0 %4544
      %4546 = vset.pattern.permute.xlu0 0
      %4547 = vperm.xlu0 %4546, %v4486
      %v4548 = vpop.permute.xlu0 %4547
      %4549 = vset.pattern.permute.xlu0 0
      %4550 = vperm.xlu0 %4549, %v4487
      %v4551 = vpop.permute.xlu0 %4550
      %4552 = vset.pattern.permute.xlu0 0
      %4553 = vperm.xlu0 %4552, %v4488
      %v4554 = vpop.permute.xlu0 %4553
      %4555 = vset.pattern.permute.xlu0 0
      %4556 = vperm.xlu0 %4555, %v4489
      %v4557 = vpop.permute.xlu0 %4556
      %4558 = vset.pattern.permute.xlu0 0
      %4559 = vperm.xlu0 %4558, %v4490
      %v4560 = vpop.permute.xlu0 %4559
      %4561 = vset.pattern.permute.xlu0 0
      %4562 = vperm.xlu0 %4561, %v4491
      %v4563 = vpop.permute.xlu0 %4562
      %4564 = vset.pattern.permute.xlu0 0
      %4565 = vperm.xlu0 %4564, %v4492
      %v4566 = vpop.permute.xlu0 %4565
      %4567 = vset.pattern.permute.xlu0 0
      %4568 = vperm.xlu0 %4567, %v4493
      %v4569 = vpop.permute.xlu0 %4568
      %4570 = vset.pattern.permute.xlu0 0
      %4571 = vperm.xlu0 %4570, %v4494
      %v4572 = vpop.permute.xlu0 %4571
      %4573 = vset.pattern.permute.xlu0 0
      %4574 = vperm.xlu0 %4573, %v4495
      %v4575 = vpop.permute.xlu0 %4574
      %4576 = vset.pattern.permute.xlu0 0
      %4577 = vperm.xlu0 %4576, %v4496
      %v4578 = vpop.permute.xlu0 %4577
      %4579 = vset.pattern.permute.xlu0 0
      %4580 = vperm.xlu0 %4579, %v4497
      %v4581 = vpop.permute.xlu0 %4580
      %4582 = vset.pattern.permute.xlu0 0
      %4583 = vperm.xlu0 %4582, %v4498
      %v4584 = vpop.permute.xlu0 %4583
      %4585 = vset.pattern.permute.xlu0 0
      %4586 = vperm.xlu0 %4585, %v4499
      %v4587 = vpop.permute.xlu0 %4586
      %4588 = vset.pattern.permute.xlu0 0
      %4589 = vperm.xlu0 %4588, %v4500
      %v4590 = vpop.permute.xlu0 %4589
      %4591 = vset.pattern.permute.xlu0 0
      %4592 = vperm.xlu0 %4591, %v4501
      %v4593 = vpop.permute.xlu0 %4592
      %4594 = vset.pattern.permute.xlu0 0
      %4595 = vperm.xlu0 %4594, %v4502
      %v4596 = vpop.permute.xlu0 %4595
      %4597 = vset.pattern.permute.xlu0 0
      %4598 = vperm.xlu0 %4597, %v4503
      %v4599 = vpop.permute.xlu0 %4598
      %4600 = vset.pattern.permute.xlu0 0
      %4601 = vperm.xlu0 %4600, %v4504
      %v4602 = vpop.permute.xlu0 %4601
      %4603 = vset.pattern.permute.xlu0 0
      %4604 = vperm.xlu0 %4603, %v4505
      %v4605 = vpop.permute.xlu0 %4604
      %4606 = vset.pattern.permute.xlu0 0
      %4607 = vperm.xlu0 %4606, %v4506
      %v4608 = vpop.permute.xlu0 %4607
      %4609 = vset.pattern.permute.xlu0 0
      %4610 = vperm.xlu0 %4609, %v4507
      %v4611 = vpop.permute.xlu0 %4610
      %4612 = vset.pattern.permute.xlu0 0
      %4613 = vperm.xlu0 %4612, %v4508
      %v4614 = vpop.permute.xlu0 %4613
      %4615 = vset.pattern.permute.xlu0 0
      %4616 = vperm.xlu0 %4615, %v4509
      %v4617 = vpop.permute.xlu0 %4616
      %4618 = vset.pattern.permute.xlu0 0
      %4619 = vperm.xlu0 %4618, %v4510
      %v4620 = vpop.permute.xlu0 %4619
      %4621 = vset.pattern.permute.xlu0 0
      %4622 = vperm.xlu0 %4621, %v4511
      %v4623 = vpop.permute.xlu0 %4622
      %4624 = vset.pattern.permute.xlu0 0
      %4625 = vperm.xlu0 %4624, %v4512
      %v4626 = vpop.permute.xlu0 %4625
      %4627 = vset.pattern.permute.xlu0 0
      %4628 = vperm.xlu0 %4627, %v4513
      %v4629 = vpop.permute.xlu0 %4628
      %4630 = vset.pattern.permute.xlu0 0
      %4631 = vperm.xlu0 %4630, %v4514
      %v4632 = vpop.permute.xlu0 %4631
      %4633 = vset.pattern.permute.xlu0 0
      %4634 = vperm.xlu0 %4633, %v4515
      %v4635 = vpop.permute.xlu0 %4634
      %vm4636 = vcmp.eq.s32.totalorder %v4518, 1
      %vm4637 = vcmp.eq.s32.totalorder %v4521, 1
      %vm4638 = vcmp.eq.s32.totalorder %v4524, 1
      %vm4639 = vcmp.eq.s32.totalorder %v4527, 1
      %vm4640 = vcmp.eq.s32.totalorder %v4530, 1
      %vm4641 = vcmp.eq.s32.totalorder %v4533, 1
      %vm4642 = vcmp.eq.s32.totalorder %v4536, 1
      %vm4643 = vcmp.eq.s32.totalorder %v4539, 1
      %vm4644 = vcmp.eq.s32.totalorder %v4542, 1
      %vm4645 = vcmp.eq.s32.totalorder %v4545, 1
      %vm4646 = vcmp.eq.s32.totalorder %v4548, 1
      %vm4647 = vcmp.eq.s32.totalorder %v4551, 1
      %vm4648 = vcmp.eq.s32.totalorder %v4554, 1
      %vm4649 = vcmp.eq.s32.totalorder %v4557, 1
      %vm4650 = vcmp.eq.s32.totalorder %v4560, 1
      %vm4651 = vcmp.eq.s32.totalorder %v4563, 1
      %vm4652 = vcmp.eq.s32.totalorder %v4566, 1
      %vm4653 = vcmp.eq.s32.totalorder %v4569, 1
      %vm4654 = vcmp.eq.s32.totalorder %v4572, 1
      %vm4655 = vcmp.eq.s32.totalorder %v4575, 1
      %vm4656 = vcmp.eq.s32.totalorder %v4578, 1
      %vm4657 = vcmp.eq.s32.totalorder %v4581, 1
      %vm4658 = vcmp.eq.s32.totalorder %v4584, 1
      %vm4659 = vcmp.eq.s32.totalorder %v4587, 1
      %vm4660 = vcmp.eq.s32.totalorder %v4590, 1
      %vm4661 = vcmp.eq.s32.totalorder %v4593, 1
      %vm4662 = vcmp.eq.s32.totalorder %v4596, 1
      %vm4663 = vcmp.eq.s32.totalorder %v4599, 1
      %vm4664 = vcmp.eq.s32.totalorder %v4602, 1
      %vm4665 = vcmp.eq.s32.totalorder %v4605, 1
      %vm4666 = vcmp.eq.s32.totalorder %v4608, 1
      %vm4667 = vcmp.eq.s32.totalorder %v4611, 1
      %vm4668 = vcmp.eq.s32.totalorder %v4614, 1
      %vm4669 = vcmp.eq.s32.totalorder %v4617, 1
      %vm4670 = vcmp.eq.s32.totalorder %v4620, 1
      %vm4671 = vcmp.eq.s32.totalorder %v4623, 1
      %vm4672 = vcmp.eq.s32.totalorder %v4626, 1
      %vm4673 = vcmp.eq.s32.totalorder %v4629, 1
      %vm4674 = vcmp.eq.s32.totalorder %v4632, 1
      %vm4675 = vcmp.eq.s32.totalorder %v4635, 1
      %vm4676 = vcmask 1043456
      %v4677 = vrot.slane %v1703, 4
      %v4678 = vrot.slane %v1704, 4
      %v4679 = vsel %vm4676, %v4677, %v4678
      %v4680 = vrot.slane %v1705, 4
      %v4681 = vsel %vm4676, %v4678, %v4680
      %v4682 = vrot.slane %v1706, 4
      %v4683 = vsel %vm4676, %v4680, %v4682
      %v4684 = vrot.slane %v1707, 4
      %v4685 = vsel %vm4676, %v4682, %v4684
      %v4686 = vrot.slane %v1708, 4
      %v4687 = vsel %vm4676, %v4684, %v4686
      %v4688 = vrot.slane %v1709, 4
      %v4689 = vsel %vm4676, %v4686, %v4688
      %v4690 = vrot.slane %v1710, 4
      %v4691 = vsel %vm4676, %v4688, %v4690
      %v4692 = vrot.slane %v1711, 4
      %v4693 = vsel %vm4676, %v4690, %v4692
      %v4694 = vrot.slane %v1712, 4
      %v4695 = vsel %vm4676, %v4692, %v4694
      %v4696 = vrot.slane %v1713, 4
      %v4697 = vsel %vm4676, %v4694, %v4696
      %v4698 = vrot.slane %v1714, 4
      %v4699 = vsel %vm4676, %v4696, %v4698
      %v4700 = vrot.slane %v1715, 4
      %v4701 = vsel %vm4676, %v4698, %v4700
      %v4702 = vrot.slane %v1716, 4
      %v4703 = vsel %vm4676, %v4700, %v4702
      %v4704 = vrot.slane %v1717, 4
      %v4705 = vsel %vm4676, %v4702, %v4704
      %v4706 = vrot.slane %v1718, 4
      %v4707 = vsel %vm4676, %v4704, %v4706
      %v4708 = vrot.slane %v1719, 4
      %v4709 = vsel %vm4676, %v4706, %v4708
      %v4710 = vrot.slane %v1720, 4
      %v4711 = vsel %vm4676, %v4708, %v4710
      %v4712 = vrot.slane %v1721, 4
      %v4713 = vsel %vm4676, %v4710, %v4712
      %v4714 = vrot.slane %v1722, 4
      %v4715 = vsel %vm4676, %v4712, %v4714
      %v4716 = vrot.slane %v1723, 4
      %v4717 = vsel %vm4676, %v4714, %v4716
      %v4718 = vrot.slane %v1724, 4
      %v4719 = vsel %vm4676, %v4716, %v4718
      %v4720 = vrot.slane %v1725, 4
      %v4721 = vsel %vm4676, %v4718, %v4720
      %v4722 = vrot.slane %v1726, 4
      %v4723 = vsel %vm4676, %v4720, %v4722
      %v4724 = vrot.slane %v1727, 4
      %v4725 = vsel %vm4676, %v4722, %v4724
      %v4726 = vrot.slane %v1728, 4
      %v4727 = vsel %vm4676, %v4724, %v4726
      %v4728 = vrot.slane %v1729, 4
      %v4729 = vsel %vm4676, %v4726, %v4728
      %v4730 = vrot.slane %v1730, 4
      %v4731 = vsel %vm4676, %v4728, %v4730
      %v4732 = vrot.slane %v1731, 4
      %v4733 = vsel %vm4676, %v4730, %v4732
      %v4734 = vrot.slane %v1732, 4
      %v4735 = vsel %vm4676, %v4732, %v4734
      %v4736 = vrot.slane %v1733, 4
      %v4737 = vsel %vm4676, %v4734, %v4736
      %v4738 = vrot.slane %v1734, 4
      %v4739 = vsel %vm4676, %v4736, %v4738
      %v4740 = vrot.slane %v1735, 4
      %v4741 = vsel %vm4676, %v4738, %v4740
      %v4742 = vrot.slane %v1736, 4
      %v4743 = vsel %vm4676, %v4740, %v4742
      %v4744 = vrot.slane %v1737, 4
      %v4745 = vsel %vm4676, %v4742, %v4744
      %v4746 = vrot.slane %v1738, 4
      %v4747 = vsel %vm4676, %v4744, %v4746
      %v4748 = vrot.slane %v1739, 4
      %v4749 = vsel %vm4676, %v4746, %v4748
      %v4750 = vrot.slane %v1740, 4
      %v4751 = vsel %vm4676, %v4748, %v4750
      %v4752 = vrot.slane %v1741, 4
      %v4753 = vsel %vm4676, %v4750, %v4752
      %v4754 = vrot.slane %v1742, 4
      %v4755 = vsel %vm4676, %v4752, %v4754
      %v4756 = vrot.slane -1e+30, 4
      %v4757 = vsel %vm4676, %v4754, %v4756
      %v4798 = vsel %vm4636, %v4679, -1e+30
      %v4799 = vsel %vm4637, %v4681, -1e+30
      %v4800 = vsel %vm4638, %v4683, -1e+30
      %v4801 = vsel %vm4639, %v4685, -1e+30
      %v4802 = vsel %vm4640, %v4687, -1e+30
      %v4803 = vsel %vm4641, %v4689, -1e+30
      %v4804 = vsel %vm4642, %v4691, -1e+30
      %v4805 = vsel %vm4643, %v4693, -1e+30
      %v4806 = vsel %vm4644, %v4695, -1e+30
      %v4807 = vsel %vm4645, %v4697, -1e+30
      %v4808 = vsel %vm4646, %v4699, -1e+30
      %v4809 = vsel %vm4647, %v4701, -1e+30
      %v4810 = vsel %vm4648, %v4703, -1e+30
      %v4811 = vsel %vm4649, %v4705, -1e+30
      %v4812 = vsel %vm4650, %v4707, -1e+30
      %v4813 = vsel %vm4651, %v4709, -1e+30
      %v4814 = vsel %vm4652, %v4711, -1e+30
      %v4815 = vsel %vm4653, %v4713, -1e+30
      %v4816 = vsel %vm4654, %v4715, -1e+30
      %v4817 = vsel %vm4655, %v4717, -1e+30
      %v4818 = vsel %vm4656, %v4719, -1e+30
      %v4819 = vsel %vm4657, %v4721, -1e+30
      %v4820 = vsel %vm4658, %v4723, -1e+30
      %v4821 = vsel %vm4659, %v4725, -1e+30
      %v4822 = vsel %vm4660, %v4727, -1e+30
      %v4823 = vsel %vm4661, %v4729, -1e+30
      %v4824 = vsel %vm4662, %v4731, -1e+30
      %v4825 = vsel %vm4663, %v4733, -1e+30
      %v4826 = vsel %vm4664, %v4735, -1e+30
      %v4827 = vsel %vm4665, %v4737, -1e+30
      %v4828 = vsel %vm4666, %v4739, -1e+30
      %v4829 = vsel %vm4667, %v4741, -1e+30
      %v4830 = vsel %vm4668, %v4743, -1e+30
      %v4831 = vsel %vm4669, %v4745, -1e+30
      %v4832 = vsel %vm4670, %v4747, -1e+30
      %v4833 = vsel %vm4671, %v4749, -1e+30
      %v4834 = vsel %vm4672, %v4751, -1e+30
      %v4835 = vsel %vm4673, %v4753, -1e+30
      %v4836 = vsel %vm4674, %v4755, -1e+30
      %v4837 = vsel %vm4675, %v4757, -1e+30
      %v4838 = vmax.f32 %v4396, %v4798
      %v4839 = vmax.f32 %v4397, %v4799
      %v4840 = vmax.f32 %v4398, %v4800
      %v4841 = vmax.f32 %v4399, %v4801
      %v4842 = vmax.f32 %v4400, %v4802
      %v4843 = vmax.f32 %v4401, %v4803
      %v4844 = vmax.f32 %v4402, %v4804
      %v4845 = vmax.f32 %v4403, %v4805
      %v4846 = vmax.f32 %v4404, %v4806
      %v4847 = vmax.f32 %v4405, %v4807
      %v4848 = vmax.f32 %v4406, %v4808
      %v4849 = vmax.f32 %v4407, %v4809
      %v4850 = vmax.f32 %v4408, %v4810
      %v4851 = vmax.f32 %v4409, %v4811
      %v4852 = vmax.f32 %v4410, %v4812
      %v4853 = vmax.f32 %v4411, %v4813
      %v4854 = vmax.f32 %v4412, %v4814
      %v4855 = vmax.f32 %v4413, %v4815
      %v4856 = vmax.f32 %v4414, %v4816
      %v4857 = vmax.f32 %v4415, %v4817
      %v4858 = vmax.f32 %v4416, %v4818
      %v4859 = vmax.f32 %v4417, %v4819
      %v4860 = vmax.f32 %v4418, %v4820
      %v4861 = vmax.f32 %v4419, %v4821
      %v4862 = vmax.f32 %v4420, %v4822
      %v4863 = vmax.f32 %v4421, %v4823
      %v4864 = vmax.f32 %v4422, %v4824
      %v4865 = vmax.f32 %v4423, %v4825
      %v4866 = vmax.f32 %v4424, %v4826
      %v4867 = vmax.f32 %v4425, %v4827
      %v4868 = vmax.f32 %v4426, %v4828
      %v4869 = vmax.f32 %v4427, %v4829
      %v4870 = vmax.f32 %v4428, %v4830
      %v4871 = vmax.f32 %v4429, %v4831
      %v4872 = vmax.f32 %v4430, %v4832
      %v4873 = vmax.f32 %v4431, %v4833
      %v4874 = vmax.f32 %v4432, %v4834
      %v4875 = vmax.f32 %v4433, %v4835
      %v4876 = vmax.f32 %v4434, %v4836
      %v4877 = vmax.f32 %v4435, %v4837
      %vm4878 = vcmp.ge.s32.totalorder %v318, 4
      %vm4879 = vcmp.ge.s32.totalorder %v319, 4
      %vm4880 = vcmp.ge.s32.totalorder %v320, 4
      %vm4881 = vcmp.ge.s32.totalorder %v321, 4
      %vm4882 = vcmp.ge.s32.totalorder %v322, 4
      %vm4883 = vcmp.ge.s32.totalorder %v323, 4
      %vm4884 = vcmp.ge.s32.totalorder %v324, 4
      %vm4885 = vcmp.ge.s32.totalorder %v325, 4
      %vm4886 = vcmp.ge.s32.totalorder %v326, 4
      %vm4887 = vcmp.ge.s32.totalorder %v327, 4
      %vm4888 = vcmp.ge.s32.totalorder %v328, 4
      %vm4889 = vcmp.ge.s32.totalorder %v329, 4
      %vm4890 = vcmp.ge.s32.totalorder %v330, 4
      %vm4891 = vcmp.ge.s32.totalorder %v331, 4
      %vm4892 = vcmp.ge.s32.totalorder %v332, 4
      %vm4893 = vcmp.ge.s32.totalorder %v333, 4
      %vm4894 = vcmp.ge.s32.totalorder %v334, 4
      %vm4895 = vcmp.ge.s32.totalorder %v335, 4
      %vm4896 = vcmp.ge.s32.totalorder %v336, 4
      %vm4897 = vcmp.ge.s32.totalorder %v337, 4
      %vm4898 = vcmp.ge.s32.totalorder %v338, 4
      %vm4899 = vcmp.ge.s32.totalorder %v339, 4
      %vm4900 = vcmp.ge.s32.totalorder %v340, 4
      %vm4901 = vcmp.ge.s32.totalorder %v341, 4
      %vm4902 = vcmp.ge.s32.totalorder %v342, 4
      %vm4903 = vcmp.ge.s32.totalorder %v343, 4
      %vm4904 = vcmp.ge.s32.totalorder %v344, 4
      %vm4905 = vcmp.ge.s32.totalorder %v345, 4
      %vm4906 = vcmp.ge.s32.totalorder %v346, 4
      %vm4907 = vcmp.ge.s32.totalorder %v347, 4
      %vm4908 = vcmp.ge.s32.totalorder %v348, 4
      %vm4909 = vcmp.ge.s32.totalorder %v349, 4
      %vm4910 = vcmp.ge.s32.totalorder %v350, 4
      %vm4911 = vcmp.ge.s32.totalorder %v351, 4
      %vm4912 = vcmp.ge.s32.totalorder %v352, 4
      %vm4913 = vcmp.ge.s32.totalorder %v353, 4
      %vm4914 = vcmp.ge.s32.totalorder %v354, 4
      %vm4915 = vcmp.ge.s32.totalorder %v355, 4
      %vm4916 = vcmp.ge.s32.totalorder %v356, 4
      %vm4917 = vcmp.ge.s32.totalorder %v357, 4
      %v4918 = vsel %vm4878, 1, 0
      %v4919 = vsel %vm4879, 1, 0
      %v4920 = vsel %vm4880, 1, 0
      %v4921 = vsel %vm4881, 1, 0
      %v4922 = vsel %vm4882, 1, 0
      %v4923 = vsel %vm4883, 1, 0
      %v4924 = vsel %vm4884, 1, 0
      %v4925 = vsel %vm4885, 1, 0
      %v4926 = vsel %vm4886, 1, 0
      %v4927 = vsel %vm4887, 1, 0
      %v4928 = vsel %vm4888, 1, 0
      %v4929 = vsel %vm4889, 1, 0
      %v4930 = vsel %vm4890, 1, 0
      %v4931 = vsel %vm4891, 1, 0
      %v4932 = vsel %vm4892, 1, 0
      %v4933 = vsel %vm4893, 1, 0
      %v4934 = vsel %vm4894, 1, 0
      %v4935 = vsel %vm4895, 1, 0
      %v4936 = vsel %vm4896, 1, 0
      %v4937 = vsel %vm4897, 1, 0
      %v4938 = vsel %vm4898, 1, 0
      %v4939 = vsel %vm4899, 1, 0
      %v4940 = vsel %vm4900, 1, 0
      %v4941 = vsel %vm4901, 1, 0
      %v4942 = vsel %vm4902, 1, 0
      %v4943 = vsel %vm4903, 1, 0
      %v4944 = vsel %vm4904, 1, 0
      %v4945 = vsel %vm4905, 1, 0
      %v4946 = vsel %vm4906, 1, 0
      %v4947 = vsel %vm4907, 1, 0
      %v4948 = vsel %vm4908, 1, 0
      %v4949 = vsel %vm4909, 1, 0
      %v4950 = vsel %vm4910, 1, 0
      %v4951 = vsel %vm4911, 1, 0
      %v4952 = vsel %vm4912, 1, 0
      %v4953 = vsel %vm4913, 1, 0
      %v4954 = vsel %vm4914, 1, 0
      %v4955 = vsel %vm4915, 1, 0
      %v4956 = vsel %vm4916, 1, 0
      %v4957 = vsel %vm4917, 1, 0
      %4958 = vset.pattern.permute.xlu0 0
      %4959 = vperm.xlu0 %4958, %v4918
      %v4960 = vpop.permute.xlu0 %4959
      %4961 = vset.pattern.permute.xlu0 0
      %4962 = vperm.xlu0 %4961, %v4919
      %v4963 = vpop.permute.xlu0 %4962
      %4964 = vset.pattern.permute.xlu0 0
      %4965 = vperm.xlu0 %4964, %v4920
      %v4966 = vpop.permute.xlu0 %4965
      %4967 = vset.pattern.permute.xlu0 0
      %4968 = vperm.xlu0 %4967, %v4921
      %v4969 = vpop.permute.xlu0 %4968
      %4970 = vset.pattern.permute.xlu0 0
      %4971 = vperm.xlu0 %4970, %v4922
      %v4972 = vpop.permute.xlu0 %4971
      %4973 = vset.pattern.permute.xlu0 0
      %4974 = vperm.xlu0 %4973, %v4923
      %v4975 = vpop.permute.xlu0 %4974
      %4976 = vset.pattern.permute.xlu0 0
      %4977 = vperm.xlu0 %4976, %v4924
      %v4978 = vpop.permute.xlu0 %4977
      %4979 = vset.pattern.permute.xlu0 0
      %4980 = vperm.xlu0 %4979, %v4925
      %v4981 = vpop.permute.xlu0 %4980
      %4982 = vset.pattern.permute.xlu0 0
      %4983 = vperm.xlu0 %4982, %v4926
      %v4984 = vpop.permute.xlu0 %4983
      %4985 = vset.pattern.permute.xlu0 0
      %4986 = vperm.xlu0 %4985, %v4927
      %v4987 = vpop.permute.xlu0 %4986
      %4988 = vset.pattern.permute.xlu0 0
      %4989 = vperm.xlu0 %4988, %v4928
      %v4990 = vpop.permute.xlu0 %4989
      %4991 = vset.pattern.permute.xlu0 0
      %4992 = vperm.xlu0 %4991, %v4929
      %v4993 = vpop.permute.xlu0 %4992
      %4994 = vset.pattern.permute.xlu0 0
      %4995 = vperm.xlu0 %4994, %v4930
      %v4996 = vpop.permute.xlu0 %4995
      %4997 = vset.pattern.permute.xlu0 0
      %4998 = vperm.xlu0 %4997, %v4931
      %v4999 = vpop.permute.xlu0 %4998
      %5000 = vset.pattern.permute.xlu0 0
      %5001 = vperm.xlu0 %5000, %v4932
      %v5002 = vpop.permute.xlu0 %5001
      %5003 = vset.pattern.permute.xlu0 0
      %5004 = vperm.xlu0 %5003, %v4933
      %v5005 = vpop.permute.xlu0 %5004
      %5006 = vset.pattern.permute.xlu0 0
      %5007 = vperm.xlu0 %5006, %v4934
      %v5008 = vpop.permute.xlu0 %5007
      %5009 = vset.pattern.permute.xlu0 0
      %5010 = vperm.xlu0 %5009, %v4935
      %v5011 = vpop.permute.xlu0 %5010
      %5012 = vset.pattern.permute.xlu0 0
      %5013 = vperm.xlu0 %5012, %v4936
      %v5014 = vpop.permute.xlu0 %5013
      %5015 = vset.pattern.permute.xlu0 0
      %5016 = vperm.xlu0 %5015, %v4937
      %v5017 = vpop.permute.xlu0 %5016
      %5018 = vset.pattern.permute.xlu0 0
      %5019 = vperm.xlu0 %5018, %v4938
      %v5020 = vpop.permute.xlu0 %5019
      %5021 = vset.pattern.permute.xlu0 0
      %5022 = vperm.xlu0 %5021, %v4939
      %v5023 = vpop.permute.xlu0 %5022
      %5024 = vset.pattern.permute.xlu0 0
      %5025 = vperm.xlu0 %5024, %v4940
      %v5026 = vpop.permute.xlu0 %5025
      %5027 = vset.pattern.permute.xlu0 0
      %5028 = vperm.xlu0 %5027, %v4941
      %v5029 = vpop.permute.xlu0 %5028
      %5030 = vset.pattern.permute.xlu0 0
      %5031 = vperm.xlu0 %5030, %v4942
      %v5032 = vpop.permute.xlu0 %5031
      %5033 = vset.pattern.permute.xlu0 0
      %5034 = vperm.xlu0 %5033, %v4943
      %v5035 = vpop.permute.xlu0 %5034
      %5036 = vset.pattern.permute.xlu0 0
      %5037 = vperm.xlu0 %5036, %v4944
      %v5038 = vpop.permute.xlu0 %5037
      %5039 = vset.pattern.permute.xlu0 0
      %5040 = vperm.xlu0 %5039, %v4945
      %v5041 = vpop.permute.xlu0 %5040
      %5042 = vset.pattern.permute.xlu0 0
      %5043 = vperm.xlu0 %5042, %v4946
      %v5044 = vpop.permute.xlu0 %5043
      %5045 = vset.pattern.permute.xlu0 0
      %5046 = vperm.xlu0 %5045, %v4947
      %v5047 = vpop.permute.xlu0 %5046
      %5048 = vset.pattern.permute.xlu0 0
      %5049 = vperm.xlu0 %5048, %v4948
      %v5050 = vpop.permute.xlu0 %5049
      %5051 = vset.pattern.permute.xlu0 0
      %5052 = vperm.xlu0 %5051, %v4949
      %v5053 = vpop.permute.xlu0 %5052
      %5054 = vset.pattern.permute.xlu0 0
      %5055 = vperm.xlu0 %5054, %v4950
      %v5056 = vpop.permute.xlu0 %5055
      %5057 = vset.pattern.permute.xlu0 0
      %5058 = vperm.xlu0 %5057, %v4951
      %v5059 = vpop.permute.xlu0 %5058
      %5060 = vset.pattern.permute.xlu0 0
      %5061 = vperm.xlu0 %5060, %v4952
      %v5062 = vpop.permute.xlu0 %5061
      %5063 = vset.pattern.permute.xlu0 0
      %5064 = vperm.xlu0 %5063, %v4953
      %v5065 = vpop.permute.xlu0 %5064
      %5066 = vset.pattern.permute.xlu0 0
      %5067 = vperm.xlu0 %5066, %v4954
      %v5068 = vpop.permute.xlu0 %5067
      %5069 = vset.pattern.permute.xlu0 0
      %5070 = vperm.xlu0 %5069, %v4955
      %v5071 = vpop.permute.xlu0 %5070
      %5072 = vset.pattern.permute.xlu0 0
      %5073 = vperm.xlu0 %5072, %v4956
      %v5074 = vpop.permute.xlu0 %5073
      %5075 = vset.pattern.permute.xlu0 0
      %5076 = vperm.xlu0 %5075, %v4957
      %v5077 = vpop.permute.xlu0 %5076
      %vm5078 = vcmp.eq.s32.totalorder %v4960, 1
      %vm5079 = vcmp.eq.s32.totalorder %v4963, 1
      %vm5080 = vcmp.eq.s32.totalorder %v4966, 1
      %vm5081 = vcmp.eq.s32.totalorder %v4969, 1
      %vm5082 = vcmp.eq.s32.totalorder %v4972, 1
      %vm5083 = vcmp.eq.s32.totalorder %v4975, 1
      %vm5084 = vcmp.eq.s32.totalorder %v4978, 1
      %vm5085 = vcmp.eq.s32.totalorder %v4981, 1
      %vm5086 = vcmp.eq.s32.totalorder %v4984, 1
      %vm5087 = vcmp.eq.s32.totalorder %v4987, 1
      %vm5088 = vcmp.eq.s32.totalorder %v4990, 1
      %vm5089 = vcmp.eq.s32.totalorder %v4993, 1
      %vm5090 = vcmp.eq.s32.totalorder %v4996, 1
      %vm5091 = vcmp.eq.s32.totalorder %v4999, 1
      %vm5092 = vcmp.eq.s32.totalorder %v5002, 1
      %vm5093 = vcmp.eq.s32.totalorder %v5005, 1
      %vm5094 = vcmp.eq.s32.totalorder %v5008, 1
      %vm5095 = vcmp.eq.s32.totalorder %v5011, 1
      %vm5096 = vcmp.eq.s32.totalorder %v5014, 1
      %vm5097 = vcmp.eq.s32.totalorder %v5017, 1
      %vm5098 = vcmp.eq.s32.totalorder %v5020, 1
      %vm5099 = vcmp.eq.s32.totalorder %v5023, 1
      %vm5100 = vcmp.eq.s32.totalorder %v5026, 1
      %vm5101 = vcmp.eq.s32.totalorder %v5029, 1
      %vm5102 = vcmp.eq.s32.totalorder %v5032, 1
      %vm5103 = vcmp.eq.s32.totalorder %v5035, 1
      %vm5104 = vcmp.eq.s32.totalorder %v5038, 1
      %vm5105 = vcmp.eq.s32.totalorder %v5041, 1
      %vm5106 = vcmp.eq.s32.totalorder %v5044, 1
      %vm5107 = vcmp.eq.s32.totalorder %v5047, 1
      %vm5108 = vcmp.eq.s32.totalorder %v5050, 1
      %vm5109 = vcmp.eq.s32.totalorder %v5053, 1
      %vm5110 = vcmp.eq.s32.totalorder %v5056, 1
      %vm5111 = vcmp.eq.s32.totalorder %v5059, 1
      %vm5112 = vcmp.eq.s32.totalorder %v5062, 1
      %vm5113 = vcmp.eq.s32.totalorder %v5065, 1
      %vm5114 = vcmp.eq.s32.totalorder %v5068, 1
      %vm5115 = vcmp.eq.s32.totalorder %v5071, 1
      %vm5116 = vcmp.eq.s32.totalorder %v5074, 1
      %vm5117 = vcmp.eq.s32.totalorder %v5077, 1
      %v5118 = vsel %vm4676, %v4756, %v4677
      %v5120 = vsel %vm5078, %v5118, -1e+30
      %v5121 = vsel %vm5079, %v4679, -1e+30
      %v5122 = vsel %vm5080, %v4681, -1e+30
      %v5123 = vsel %vm5081, %v4683, -1e+30
      %v5124 = vsel %vm5082, %v4685, -1e+30
      %v5125 = vsel %vm5083, %v4687, -1e+30
      %v5126 = vsel %vm5084, %v4689, -1e+30
      %v5127 = vsel %vm5085, %v4691, -1e+30
      %v5128 = vsel %vm5086, %v4693, -1e+30
      %v5129 = vsel %vm5087, %v4695, -1e+30
      %v5130 = vsel %vm5088, %v4697, -1e+30
      %v5131 = vsel %vm5089, %v4699, -1e+30
      %v5132 = vsel %vm5090, %v4701, -1e+30
      %v5133 = vsel %vm5091, %v4703, -1e+30
      %v5134 = vsel %vm5092, %v4705, -1e+30
      %v5135 = vsel %vm5093, %v4707, -1e+30
      %v5136 = vsel %vm5094, %v4709, -1e+30
      %v5137 = vsel %vm5095, %v4711, -1e+30
      %v5138 = vsel %vm5096, %v4713, -1e+30
      %v5139 = vsel %vm5097, %v4715, -1e+30
      %v5140 = vsel %vm5098, %v4717, -1e+30
      %v5141 = vsel %vm5099, %v4719, -1e+30
      %v5142 = vsel %vm5100, %v4721, -1e+30
      %v5143 = vsel %vm5101, %v4723, -1e+30
      %v5144 = vsel %vm5102, %v4725, -1e+30
      %v5145 = vsel %vm5103, %v4727, -1e+30
      %v5146 = vsel %vm5104, %v4729, -1e+30
      %v5147 = vsel %vm5105, %v4731, -1e+30
      %v5148 = vsel %vm5106, %v4733, -1e+30
      %v5149 = vsel %vm5107, %v4735, -1e+30
      %v5150 = vsel %vm5108, %v4737, -1e+30
      %v5151 = vsel %vm5109, %v4739, -1e+30
      %v5152 = vsel %vm5110, %v4741, -1e+30
      %v5153 = vsel %vm5111, %v4743, -1e+30
      %v5154 = vsel %vm5112, %v4745, -1e+30
      %v5155 = vsel %vm5113, %v4747, -1e+30
      %v5156 = vsel %vm5114, %v4749, -1e+30
      %v5157 = vsel %vm5115, %v4751, -1e+30
      %v5158 = vsel %vm5116, %v4753, -1e+30
      %v5159 = vsel %vm5117, %v4755, -1e+30
      %v5160 = vmax.f32 %v4838, %v5120
      %v5161 = vmax.f32 %v4839, %v5121
      %v5162 = vmax.f32 %v4840, %v5122
      %v5163 = vmax.f32 %v4841, %v5123
      %v5164 = vmax.f32 %v4842, %v5124
      %v5165 = vmax.f32 %v4843, %v5125
      %v5166 = vmax.f32 %v4844, %v5126
      %v5167 = vmax.f32 %v4845, %v5127
      %v5168 = vmax.f32 %v4846, %v5128
      %v5169 = vmax.f32 %v4847, %v5129
      %v5170 = vmax.f32 %v4848, %v5130
      %v5171 = vmax.f32 %v4849, %v5131
      %v5172 = vmax.f32 %v4850, %v5132
      %v5173 = vmax.f32 %v4851, %v5133
      %v5174 = vmax.f32 %v4852, %v5134
      %v5175 = vmax.f32 %v4853, %v5135
      %v5176 = vmax.f32 %v4854, %v5136
      %v5177 = vmax.f32 %v4855, %v5137
      %v5178 = vmax.f32 %v4856, %v5138
      %v5179 = vmax.f32 %v4857, %v5139
      %v5180 = vmax.f32 %v4858, %v5140
      %v5181 = vmax.f32 %v4859, %v5141
      %v5182 = vmax.f32 %v4860, %v5142
      %v5183 = vmax.f32 %v4861, %v5143
      %v5184 = vmax.f32 %v4862, %v5144
      %v5185 = vmax.f32 %v4863, %v5145
      %v5186 = vmax.f32 %v4864, %v5146
      %v5187 = vmax.f32 %v4865, %v5147
      %v5188 = vmax.f32 %v4866, %v5148
      %v5189 = vmax.f32 %v4867, %v5149
      %v5190 = vmax.f32 %v4868, %v5150
      %v5191 = vmax.f32 %v4869, %v5151
      %v5192 = vmax.f32 %v4870, %v5152
      %v5193 = vmax.f32 %v4871, %v5153
      %v5194 = vmax.f32 %v4872, %v5154
      %v5195 = vmax.f32 %v4873, %v5155
      %v5196 = vmax.f32 %v4874, %v5156
      %v5197 = vmax.f32 %v4875, %v5157
      %v5198 = vmax.f32 %v4876, %v5158
      %v5199 = vmax.f32 %v4877, %v5159
      %vm5200 = vcmp.lt.s32.totalorder %v318, 11
      %vm5201 = vcmp.lt.s32.totalorder %v319, 11
      %vm5202 = vcmp.lt.s32.totalorder %v320, 11
      %vm5203 = vcmp.lt.s32.totalorder %v321, 11
      %vm5204 = vcmp.lt.s32.totalorder %v322, 11
      %vm5205 = vcmp.lt.s32.totalorder %v323, 11
      %vm5206 = vcmp.lt.s32.totalorder %v324, 11
      %vm5207 = vcmp.lt.s32.totalorder %v325, 11
      %vm5208 = vcmp.lt.s32.totalorder %v326, 11
      %vm5209 = vcmp.lt.s32.totalorder %v327, 11
      %vm5210 = vcmp.lt.s32.totalorder %v328, 11
      %vm5211 = vcmp.lt.s32.totalorder %v329, 11
      %vm5212 = vcmp.lt.s32.totalorder %v330, 11
      %vm5213 = vcmp.lt.s32.totalorder %v331, 11
      %vm5214 = vcmp.lt.s32.totalorder %v332, 11
      %vm5215 = vcmp.lt.s32.totalorder %v333, 11
      %vm5216 = vcmp.lt.s32.totalorder %v334, 11
      %vm5217 = vcmp.lt.s32.totalorder %v335, 11
      %vm5218 = vcmp.lt.s32.totalorder %v336, 11
      %vm5219 = vcmp.lt.s32.totalorder %v337, 11
      %vm5220 = vcmp.lt.s32.totalorder %v338, 11
      %vm5221 = vcmp.lt.s32.totalorder %v339, 11
      %vm5222 = vcmp.lt.s32.totalorder %v340, 11
      %vm5223 = vcmp.lt.s32.totalorder %v341, 11
      %vm5224 = vcmp.lt.s32.totalorder %v342, 11
      %vm5225 = vcmp.lt.s32.totalorder %v343, 11
      %vm5226 = vcmp.lt.s32.totalorder %v344, 11
      %vm5227 = vcmp.lt.s32.totalorder %v345, 11
      %vm5228 = vcmp.lt.s32.totalorder %v346, 11
      %vm5229 = vcmp.lt.s32.totalorder %v347, 11
      %vm5230 = vcmp.lt.s32.totalorder %v348, 11
      %vm5231 = vcmp.lt.s32.totalorder %v349, 11
      %vm5232 = vcmp.lt.s32.totalorder %v350, 11
      %vm5233 = vcmp.lt.s32.totalorder %v351, 11
      %vm5234 = vcmp.lt.s32.totalorder %v352, 11
      %vm5235 = vcmp.lt.s32.totalorder %v353, 11
      %vm5236 = vcmp.lt.s32.totalorder %v354, 11
      %vm5237 = vcmp.lt.s32.totalorder %v355, 11
      %vm5238 = vcmp.lt.s32.totalorder %v356, 11
      %vm5239 = vcmp.lt.s32.totalorder %v357, 11
      %v5240 = vsel %vm5200, 1, 0
      %v5241 = vsel %vm5201, 1, 0
      %v5242 = vsel %vm5202, 1, 0
      %v5243 = vsel %vm5203, 1, 0
      %v5244 = vsel %vm5204, 1, 0
      %v5245 = vsel %vm5205, 1, 0
      %v5246 = vsel %vm5206, 1, 0
      %v5247 = vsel %vm5207, 1, 0
      %v5248 = vsel %vm5208, 1, 0
      %v5249 = vsel %vm5209, 1, 0
      %v5250 = vsel %vm5210, 1, 0
      %v5251 = vsel %vm5211, 1, 0
      %v5252 = vsel %vm5212, 1, 0
      %v5253 = vsel %vm5213, 1, 0
      %v5254 = vsel %vm5214, 1, 0
      %v5255 = vsel %vm5215, 1, 0
      %v5256 = vsel %vm5216, 1, 0
      %v5257 = vsel %vm5217, 1, 0
      %v5258 = vsel %vm5218, 1, 0
      %v5259 = vsel %vm5219, 1, 0
      %v5260 = vsel %vm5220, 1, 0
      %v5261 = vsel %vm5221, 1, 0
      %v5262 = vsel %vm5222, 1, 0
      %v5263 = vsel %vm5223, 1, 0
      %v5264 = vsel %vm5224, 1, 0
      %v5265 = vsel %vm5225, 1, 0
      %v5266 = vsel %vm5226, 1, 0
      %v5267 = vsel %vm5227, 1, 0
      %v5268 = vsel %vm5228, 1, 0
      %v5269 = vsel %vm5229, 1, 0
      %v5270 = vsel %vm5230, 1, 0
      %v5271 = vsel %vm5231, 1, 0
      %v5272 = vsel %vm5232, 1, 0
      %v5273 = vsel %vm5233, 1, 0
      %v5274 = vsel %vm5234, 1, 0
      %v5275 = vsel %vm5235, 1, 0
      %v5276 = vsel %vm5236, 1, 0
      %v5277 = vsel %vm5237, 1, 0
      %v5278 = vsel %vm5238, 1, 0
      %v5279 = vsel %vm5239, 1, 0
      %5280 = vset.pattern.permute.xlu0 0
      %5281 = vperm.xlu0 %5280, %v5240
      %v5282 = vpop.permute.xlu0 %5281
      %5283 = vset.pattern.permute.xlu0 0
      %5284 = vperm.xlu0 %5283, %v5241
      %v5285 = vpop.permute.xlu0 %5284
      %5286 = vset.pattern.permute.xlu0 0
      %5287 = vperm.xlu0 %5286, %v5242
      %v5288 = vpop.permute.xlu0 %5287
      %5289 = vset.pattern.permute.xlu0 0
      %5290 = vperm.xlu0 %5289, %v5243
      %v5291 = vpop.permute.xlu0 %5290
      %5292 = vset.pattern.permute.xlu0 0
      %5293 = vperm.xlu0 %5292, %v5244
      %v5294 = vpop.permute.xlu0 %5293
      %5295 = vset.pattern.permute.xlu0 0
      %5296 = vperm.xlu0 %5295, %v5245
      %v5297 = vpop.permute.xlu0 %5296
      %5298 = vset.pattern.permute.xlu0 0
      %5299 = vperm.xlu0 %5298, %v5246
      %v5300 = vpop.permute.xlu0 %5299
      %5301 = vset.pattern.permute.xlu0 0
      %5302 = vperm.xlu0 %5301, %v5247
      %v5303 = vpop.permute.xlu0 %5302
      %5304 = vset.pattern.permute.xlu0 0
      %5305 = vperm.xlu0 %5304, %v5248
      %v5306 = vpop.permute.xlu0 %5305
      %5307 = vset.pattern.permute.xlu0 0
      %5308 = vperm.xlu0 %5307, %v5249
      %v5309 = vpop.permute.xlu0 %5308
      %5310 = vset.pattern.permute.xlu0 0
      %5311 = vperm.xlu0 %5310, %v5250
      %v5312 = vpop.permute.xlu0 %5311
      %5313 = vset.pattern.permute.xlu0 0
      %5314 = vperm.xlu0 %5313, %v5251
      %v5315 = vpop.permute.xlu0 %5314
      %5316 = vset.pattern.permute.xlu0 0
      %5317 = vperm.xlu0 %5316, %v5252
      %v5318 = vpop.permute.xlu0 %5317
      %5319 = vset.pattern.permute.xlu0 0
      %5320 = vperm.xlu0 %5319, %v5253
      %v5321 = vpop.permute.xlu0 %5320
      %5322 = vset.pattern.permute.xlu0 0
      %5323 = vperm.xlu0 %5322, %v5254
      %v5324 = vpop.permute.xlu0 %5323
      %5325 = vset.pattern.permute.xlu0 0
      %5326 = vperm.xlu0 %5325, %v5255
      %v5327 = vpop.permute.xlu0 %5326
      %5328 = vset.pattern.permute.xlu0 0
      %5329 = vperm.xlu0 %5328, %v5256
      %v5330 = vpop.permute.xlu0 %5329
      %5331 = vset.pattern.permute.xlu0 0
      %5332 = vperm.xlu0 %5331, %v5257
      %v5333 = vpop.permute.xlu0 %5332
      %5334 = vset.pattern.permute.xlu0 0
      %5335 = vperm.xlu0 %5334, %v5258
      %v5336 = vpop.permute.xlu0 %5335
      %5337 = vset.pattern.permute.xlu0 0
      %5338 = vperm.xlu0 %5337, %v5259
      %v5339 = vpop.permute.xlu0 %5338
      %5340 = vset.pattern.permute.xlu0 0
      %5341 = vperm.xlu0 %5340, %v5260
      %v5342 = vpop.permute.xlu0 %5341
      %5343 = vset.pattern.permute.xlu0 0
      %5344 = vperm.xlu0 %5343, %v5261
      %v5345 = vpop.permute.xlu0 %5344
      %5346 = vset.pattern.permute.xlu0 0
      %5347 = vperm.xlu0 %5346, %v5262
      %v5348 = vpop.permute.xlu0 %5347
      %5349 = vset.pattern.permute.xlu0 0
      %5350 = vperm.xlu0 %5349, %v5263
      %v5351 = vpop.permute.xlu0 %5350
      %5352 = vset.pattern.permute.xlu0 0
      %5353 = vperm.xlu0 %5352, %v5264
      %v5354 = vpop.permute.xlu0 %5353
      %5355 = vset.pattern.permute.xlu0 0
      %5356 = vperm.xlu0 %5355, %v5265
      %v5357 = vpop.permute.xlu0 %5356
      %5358 = vset.pattern.permute.xlu0 0
      %5359 = vperm.xlu0 %5358, %v5266
      %v5360 = vpop.permute.xlu0 %5359
      %5361 = vset.pattern.permute.xlu0 0
      %5362 = vperm.xlu0 %5361, %v5267
      %v5363 = vpop.permute.xlu0 %5362
      %5364 = vset.pattern.permute.xlu0 0
      %5365 = vperm.xlu0 %5364, %v5268
      %v5366 = vpop.permute.xlu0 %5365
      %5367 = vset.pattern.permute.xlu0 0
      %5368 = vperm.xlu0 %5367, %v5269
      %v5369 = vpop.permute.xlu0 %5368
      %5370 = vset.pattern.permute.xlu0 0
      %5371 = vperm.xlu0 %5370, %v5270
      %v5372 = vpop.permute.xlu0 %5371
      %5373 = vset.pattern.permute.xlu0 0
      %5374 = vperm.xlu0 %5373, %v5271
      %v5375 = vpop.permute.xlu0 %5374
      %5376 = vset.pattern.permute.xlu0 0
      %5377 = vperm.xlu0 %5376, %v5272
      %v5378 = vpop.permute.xlu0 %5377
      %5379 = vset.pattern.permute.xlu0 0
      %5380 = vperm.xlu0 %5379, %v5273
      %v5381 = vpop.permute.xlu0 %5380
      %5382 = vset.pattern.permute.xlu0 0
      %5383 = vperm.xlu0 %5382, %v5274
      %v5384 = vpop.permute.xlu0 %5383
      %5385 = vset.pattern.permute.xlu0 0
      %5386 = vperm.xlu0 %5385, %v5275
      %v5387 = vpop.permute.xlu0 %5386
      %5388 = vset.pattern.permute.xlu0 0
      %5389 = vperm.xlu0 %5388, %v5276
      %v5390 = vpop.permute.xlu0 %5389
      %5391 = vset.pattern.permute.xlu0 0
      %5392 = vperm.xlu0 %5391, %v5277
      %v5393 = vpop.permute.xlu0 %5392
      %5394 = vset.pattern.permute.xlu0 0
      %5395 = vperm.xlu0 %5394, %v5278
      %v5396 = vpop.permute.xlu0 %5395
      %5397 = vset.pattern.permute.xlu0 0
      %5398 = vperm.xlu0 %5397, %v5279
      %v5399 = vpop.permute.xlu0 %5398
      %vm5400 = vcmp.eq.s32.totalorder %v5282, 1
      %vm5401 = vcmp.eq.s32.totalorder %v5285, 1
      %vm5402 = vcmp.eq.s32.totalorder %v5288, 1
      %vm5403 = vcmp.eq.s32.totalorder %v5291, 1
      %vm5404 = vcmp.eq.s32.totalorder %v5294, 1
      %vm5405 = vcmp.eq.s32.totalorder %v5297, 1
      %vm5406 = vcmp.eq.s32.totalorder %v5300, 1
      %vm5407 = vcmp.eq.s32.totalorder %v5303, 1
      %vm5408 = vcmp.eq.s32.totalorder %v5306, 1
      %vm5409 = vcmp.eq.s32.totalorder %v5309, 1
      %vm5410 = vcmp.eq.s32.totalorder %v5312, 1
      %vm5411 = vcmp.eq.s32.totalorder %v5315, 1
      %vm5412 = vcmp.eq.s32.totalorder %v5318, 1
      %vm5413 = vcmp.eq.s32.totalorder %v5321, 1
      %vm5414 = vcmp.eq.s32.totalorder %v5324, 1
      %vm5415 = vcmp.eq.s32.totalorder %v5327, 1
      %vm5416 = vcmp.eq.s32.totalorder %v5330, 1
      %vm5417 = vcmp.eq.s32.totalorder %v5333, 1
      %vm5418 = vcmp.eq.s32.totalorder %v5336, 1
      %vm5419 = vcmp.eq.s32.totalorder %v5339, 1
      %vm5420 = vcmp.eq.s32.totalorder %v5342, 1
      %vm5421 = vcmp.eq.s32.totalorder %v5345, 1
      %vm5422 = vcmp.eq.s32.totalorder %v5348, 1
      %vm5423 = vcmp.eq.s32.totalorder %v5351, 1
      %vm5424 = vcmp.eq.s32.totalorder %v5354, 1
      %vm5425 = vcmp.eq.s32.totalorder %v5357, 1
      %vm5426 = vcmp.eq.s32.totalorder %v5360, 1
      %vm5427 = vcmp.eq.s32.totalorder %v5363, 1
      %vm5428 = vcmp.eq.s32.totalorder %v5366, 1
      %vm5429 = vcmp.eq.s32.totalorder %v5369, 1
      %vm5430 = vcmp.eq.s32.totalorder %v5372, 1
      %vm5431 = vcmp.eq.s32.totalorder %v5375, 1
      %vm5432 = vcmp.eq.s32.totalorder %v5378, 1
      %vm5433 = vcmp.eq.s32.totalorder %v5381, 1
      %vm5434 = vcmp.eq.s32.totalorder %v5384, 1
      %vm5435 = vcmp.eq.s32.totalorder %v5387, 1
      %vm5436 = vcmp.eq.s32.totalorder %v5390, 1
      %vm5437 = vcmp.eq.s32.totalorder %v5393, 1
      %vm5438 = vcmp.eq.s32.totalorder %v5396, 1
      %vm5439 = vcmp.eq.s32.totalorder %v5399, 1
      %v5440 = vsel %vm4234, %v4314, %v4235
      %v5442 = vsel %vm5400, %v4239, -1e+30
      %v5443 = vsel %vm5401, %v4241, -1e+30
      %v5444 = vsel %vm5402, %v4243, -1e+30
      %v5445 = vsel %vm5403, %v4245, -1e+30
      %v5446 = vsel %vm5404, %v4247, -1e+30
      %v5447 = vsel %vm5405, %v4249, -1e+30
      %v5448 = vsel %vm5406, %v4251, -1e+30
      %v5449 = vsel %vm5407, %v4253, -1e+30
      %v5450 = vsel %vm5408, %v4255, -1e+30
      %v5451 = vsel %vm5409, %v4257, -1e+30
      %v5452 = vsel %vm5410, %v4259, -1e+30
      %v5453 = vsel %vm5411, %v4261, -1e+30
      %v5454 = vsel %vm5412, %v4263, -1e+30
      %v5455 = vsel %vm5413, %v4265, -1e+30
      %v5456 = vsel %vm5414, %v4267, -1e+30
      %v5457 = vsel %vm5415, %v4269, -1e+30
      %v5458 = vsel %vm5416, %v4271, -1e+30
      %v5459 = vsel %vm5417, %v4273, -1e+30
      %v5460 = vsel %vm5418, %v4275, -1e+30
      %v5461 = vsel %vm5419, %v4277, -1e+30
      %v5462 = vsel %vm5420, %v4279, -1e+30
      %v5463 = vsel %vm5421, %v4281, -1e+30
      %v5464 = vsel %vm5422, %v4283, -1e+30
      %v5465 = vsel %vm5423, %v4285, -1e+30
      %v5466 = vsel %vm5424, %v4287, -1e+30
      %v5467 = vsel %vm5425, %v4289, -1e+30
      %v5468 = vsel %vm5426, %v4291, -1e+30
      %v5469 = vsel %vm5427, %v4293, -1e+30
      %v5470 = vsel %vm5428, %v4295, -1e+30
      %v5471 = vsel %vm5429, %v4297, -1e+30
      %v5472 = vsel %vm5430, %v4299, -1e+30
      %v5473 = vsel %vm5431, %v4301, -1e+30
      %v5474 = vsel %vm5432, %v4303, -1e+30
      %v5475 = vsel %vm5433, %v4305, -1e+30
      %v5476 = vsel %vm5434, %v4307, -1e+30
      %v5477 = vsel %vm5435, %v4309, -1e+30
      %v5478 = vsel %vm5436, %v4311, -1e+30
      %v5479 = vsel %vm5437, %v4313, -1e+30
      %v5480 = vsel %vm5438, %v4315, -1e+30
      %v5481 = vsel %vm5439, %v5440, -1e+30
      %v5482 = vmax.f32 %v5160, %v5442
      %v5483 = vmax.f32 %v5161, %v5443
      %v5484 = vmax.f32 %v5162, %v5444
      %v5485 = vmax.f32 %v5163, %v5445
      %v5486 = vmax.f32 %v5164, %v5446
      %v5487 = vmax.f32 %v5165, %v5447
      %v5488 = vmax.f32 %v5166, %v5448
      %v5489 = vmax.f32 %v5167, %v5449
      %v5490 = vmax.f32 %v5168, %v5450
      %v5491 = vmax.f32 %v5169, %v5451
      %v5492 = vmax.f32 %v5170, %v5452
      %v5493 = vmax.f32 %v5171, %v5453
      %v5494 = vmax.f32 %v5172, %v5454
      %v5495 = vmax.f32 %v5173, %v5455
      %v5496 = vmax.f32 %v5174, %v5456
      %v5497 = vmax.f32 %v5175, %v5457
      %v5498 = vmax.f32 %v5176, %v5458
      %v5499 = vmax.f32 %v5177, %v5459
      %v5500 = vmax.f32 %v5178, %v5460
      %v5501 = vmax.f32 %v5179, %v5461
      %v5502 = vmax.f32 %v5180, %v5462
      %v5503 = vmax.f32 %v5181, %v5463
      %v5504 = vmax.f32 %v5182, %v5464
      %v5505 = vmax.f32 %v5183, %v5465
      %v5506 = vmax.f32 %v5184, %v5466
      %v5507 = vmax.f32 %v5185, %v5467
      %v5508 = vmax.f32 %v5186, %v5468
      %v5509 = vmax.f32 %v5187, %v5469
      %v5510 = vmax.f32 %v5188, %v5470
      %v5511 = vmax.f32 %v5189, %v5471
      %v5512 = vmax.f32 %v5190, %v5472
      %v5513 = vmax.f32 %v5191, %v5473
      %v5514 = vmax.f32 %v5192, %v5474
      %v5515 = vmax.f32 %v5193, %v5475
      %v5516 = vmax.f32 %v5194, %v5476
      %v5517 = vmax.f32 %v5195, %v5477
      %v5518 = vmax.f32 %v5196, %v5478
      %v5519 = vmax.f32 %v5197, %v5479
      %v5520 = vmax.f32 %v5198, %v5480
      %v5521 = vmax.f32 %v5199, %v5481
      %vm5522 = vcmp.ge.s32.totalorder %v318, 5
      %vm5523 = vcmp.ge.s32.totalorder %v319, 5
      %vm5524 = vcmp.ge.s32.totalorder %v320, 5
      %vm5525 = vcmp.ge.s32.totalorder %v321, 5
      %vm5526 = vcmp.ge.s32.totalorder %v322, 5
      %vm5527 = vcmp.ge.s32.totalorder %v323, 5
      %vm5528 = vcmp.ge.s32.totalorder %v324, 5
      %vm5529 = vcmp.ge.s32.totalorder %v325, 5
      %vm5530 = vcmp.ge.s32.totalorder %v326, 5
      %vm5531 = vcmp.ge.s32.totalorder %v327, 5
      %vm5532 = vcmp.ge.s32.totalorder %v328, 5
      %vm5533 = vcmp.ge.s32.totalorder %v329, 5
      %vm5534 = vcmp.ge.s32.totalorder %v330, 5
      %vm5535 = vcmp.ge.s32.totalorder %v331, 5
      %vm5536 = vcmp.ge.s32.totalorder %v332, 5
      %vm5537 = vcmp.ge.s32.totalorder %v333, 5
      %vm5538 = vcmp.ge.s32.totalorder %v334, 5
      %vm5539 = vcmp.ge.s32.totalorder %v335, 5
      %vm5540 = vcmp.ge.s32.totalorder %v336, 5
      %vm5541 = vcmp.ge.s32.totalorder %v337, 5
      %vm5542 = vcmp.ge.s32.totalorder %v338, 5
      %vm5543 = vcmp.ge.s32.totalorder %v339, 5
      %vm5544 = vcmp.ge.s32.totalorder %v340, 5
      %vm5545 = vcmp.ge.s32.totalorder %v341, 5
      %vm5546 = vcmp.ge.s32.totalorder %v342, 5
      %vm5547 = vcmp.ge.s32.totalorder %v343, 5
      %vm5548 = vcmp.ge.s32.totalorder %v344, 5
      %vm5549 = vcmp.ge.s32.totalorder %v345, 5
      %vm5550 = vcmp.ge.s32.totalorder %v346, 5
      %vm5551 = vcmp.ge.s32.totalorder %v347, 5
      %vm5552 = vcmp.ge.s32.totalorder %v348, 5
      %vm5553 = vcmp.ge.s32.totalorder %v349, 5
      %vm5554 = vcmp.ge.s32.totalorder %v350, 5
      %vm5555 = vcmp.ge.s32.totalorder %v351, 5
      %vm5556 = vcmp.ge.s32.totalorder %v352, 5
      %vm5557 = vcmp.ge.s32.totalorder %v353, 5
      %vm5558 = vcmp.ge.s32.totalorder %v354, 5
      %vm5559 = vcmp.ge.s32.totalorder %v355, 5
      %vm5560 = vcmp.ge.s32.totalorder %v356, 5
      %vm5561 = vcmp.ge.s32.totalorder %v357, 5
      %v5562 = vsel %vm5522, 1, 0
      %v5563 = vsel %vm5523, 1, 0
      %v5564 = vsel %vm5524, 1, 0
      %v5565 = vsel %vm5525, 1, 0
      %v5566 = vsel %vm5526, 1, 0
      %v5567 = vsel %vm5527, 1, 0
      %v5568 = vsel %vm5528, 1, 0
      %v5569 = vsel %vm5529, 1, 0
      %v5570 = vsel %vm5530, 1, 0
      %v5571 = vsel %vm5531, 1, 0
      %v5572 = vsel %vm5532, 1, 0
      %v5573 = vsel %vm5533, 1, 0
      %v5574 = vsel %vm5534, 1, 0
      %v5575 = vsel %vm5535, 1, 0
      %v5576 = vsel %vm5536, 1, 0
      %v5577 = vsel %vm5537, 1, 0
      %v5578 = vsel %vm5538, 1, 0
      %v5579 = vsel %vm5539, 1, 0
      %v5580 = vsel %vm5540, 1, 0
      %v5581 = vsel %vm5541, 1, 0
      %v5582 = vsel %vm5542, 1, 0
      %v5583 = vsel %vm5543, 1, 0
      %v5584 = vsel %vm5544, 1, 0
      %v5585 = vsel %vm5545, 1, 0
      %v5586 = vsel %vm5546, 1, 0
      %v5587 = vsel %vm5547, 1, 0
      %v5588 = vsel %vm5548, 1, 0
      %v5589 = vsel %vm5549, 1, 0
      %v5590 = vsel %vm5550, 1, 0
      %v5591 = vsel %vm5551, 1, 0
      %v5592 = vsel %vm5552, 1, 0
      %v5593 = vsel %vm5553, 1, 0
      %v5594 = vsel %vm5554, 1, 0
      %v5595 = vsel %vm5555, 1, 0
      %v5596 = vsel %vm5556, 1, 0
      %v5597 = vsel %vm5557, 1, 0
      %v5598 = vsel %vm5558, 1, 0
      %v5599 = vsel %vm5559, 1, 0
      %v5600 = vsel %vm5560, 1, 0
      %v5601 = vsel %vm5561, 1, 0
      %5602 = vset.pattern.permute.xlu0 0
      %5603 = vperm.xlu0 %5602, %v5562
      %v5604 = vpop.permute.xlu0 %5603
      %5605 = vset.pattern.permute.xlu0 0
      %5606 = vperm.xlu0 %5605, %v5563
      %v5607 = vpop.permute.xlu0 %5606
      %5608 = vset.pattern.permute.xlu0 0
      %5609 = vperm.xlu0 %5608, %v5564
      %v5610 = vpop.permute.xlu0 %5609
      %5611 = vset.pattern.permute.xlu0 0
      %5612 = vperm.xlu0 %5611, %v5565
      %v5613 = vpop.permute.xlu0 %5612
      %5614 = vset.pattern.permute.xlu0 0
      %5615 = vperm.xlu0 %5614, %v5566
      %v5616 = vpop.permute.xlu0 %5615
      %5617 = vset.pattern.permute.xlu0 0
      %5618 = vperm.xlu0 %5617, %v5567
      %v5619 = vpop.permute.xlu0 %5618
      %5620 = vset.pattern.permute.xlu0 0
      %5621 = vperm.xlu0 %5620, %v5568
      %v5622 = vpop.permute.xlu0 %5621
      %5623 = vset.pattern.permute.xlu0 0
      %5624 = vperm.xlu0 %5623, %v5569
      %v5625 = vpop.permute.xlu0 %5624
      %5626 = vset.pattern.permute.xlu0 0
      %5627 = vperm.xlu0 %5626, %v5570
      %v5628 = vpop.permute.xlu0 %5627
      %5629 = vset.pattern.permute.xlu0 0
      %5630 = vperm.xlu0 %5629, %v5571
      %v5631 = vpop.permute.xlu0 %5630
      %5632 = vset.pattern.permute.xlu0 0
      %5633 = vperm.xlu0 %5632, %v5572
      %v5634 = vpop.permute.xlu0 %5633
      %5635 = vset.pattern.permute.xlu0 0
      %5636 = vperm.xlu0 %5635, %v5573
      %v5637 = vpop.permute.xlu0 %5636
      %5638 = vset.pattern.permute.xlu0 0
      %5639 = vperm.xlu0 %5638, %v5574
      %v5640 = vpop.permute.xlu0 %5639
      %5641 = vset.pattern.permute.xlu0 0
      %5642 = vperm.xlu0 %5641, %v5575
      %v5643 = vpop.permute.xlu0 %5642
      %5644 = vset.pattern.permute.xlu0 0
      %5645 = vperm.xlu0 %5644, %v5576
      %v5646 = vpop.permute.xlu0 %5645
      %5647 = vset.pattern.permute.xlu0 0
      %5648 = vperm.xlu0 %5647, %v5577
      %v5649 = vpop.permute.xlu0 %5648
      %5650 = vset.pattern.permute.xlu0 0
      %5651 = vperm.xlu0 %5650, %v5578
      %v5652 = vpop.permute.xlu0 %5651
      %5653 = vset.pattern.permute.xlu0 0
      %5654 = vperm.xlu0 %5653, %v5579
      %v5655 = vpop.permute.xlu0 %5654
      %5656 = vset.pattern.permute.xlu0 0
      %5657 = vperm.xlu0 %5656, %v5580
      %v5658 = vpop.permute.xlu0 %5657
      %5659 = vset.pattern.permute.xlu0 0
      %5660 = vperm.xlu0 %5659, %v5581
      %v5661 = vpop.permute.xlu0 %5660
      %5662 = vset.pattern.permute.xlu0 0
      %5663 = vperm.xlu0 %5662, %v5582
      %v5664 = vpop.permute.xlu0 %5663
      %5665 = vset.pattern.permute.xlu0 0
      %5666 = vperm.xlu0 %5665, %v5583
      %v5667 = vpop.permute.xlu0 %5666
      %5668 = vset.pattern.permute.xlu0 0
      %5669 = vperm.xlu0 %5668, %v5584
      %v5670 = vpop.permute.xlu0 %5669
      %5671 = vset.pattern.permute.xlu0 0
      %5672 = vperm.xlu0 %5671, %v5585
      %v5673 = vpop.permute.xlu0 %5672
      %5674 = vset.pattern.permute.xlu0 0
      %5675 = vperm.xlu0 %5674, %v5586
      %v5676 = vpop.permute.xlu0 %5675
      %5677 = vset.pattern.permute.xlu0 0
      %5678 = vperm.xlu0 %5677, %v5587
      %v5679 = vpop.permute.xlu0 %5678
      %5680 = vset.pattern.permute.xlu0 0
      %5681 = vperm.xlu0 %5680, %v5588
      %v5682 = vpop.permute.xlu0 %5681
      %5683 = vset.pattern.permute.xlu0 0
      %5684 = vperm.xlu0 %5683, %v5589
      %v5685 = vpop.permute.xlu0 %5684
      %5686 = vset.pattern.permute.xlu0 0
      %5687 = vperm.xlu0 %5686, %v5590
      %v5688 = vpop.permute.xlu0 %5687
      %5689 = vset.pattern.permute.xlu0 0
      %5690 = vperm.xlu0 %5689, %v5591
      %v5691 = vpop.permute.xlu0 %5690
      %5692 = vset.pattern.permute.xlu0 0
      %5693 = vperm.xlu0 %5692, %v5592
      %v5694 = vpop.permute.xlu0 %5693
      %5695 = vset.pattern.permute.xlu0 0
      %5696 = vperm.xlu0 %5695, %v5593
      %v5697 = vpop.permute.xlu0 %5696
      %5698 = vset.pattern.permute.xlu0 0
      %5699 = vperm.xlu0 %5698, %v5594
      %v5700 = vpop.permute.xlu0 %5699
      %5701 = vset.pattern.permute.xlu0 0
      %5702 = vperm.xlu0 %5701, %v5595
      %v5703 = vpop.permute.xlu0 %5702
      %5704 = vset.pattern.permute.xlu0 0
      %5705 = vperm.xlu0 %5704, %v5596
      %v5706 = vpop.permute.xlu0 %5705
      %5707 = vset.pattern.permute.xlu0 0
      %5708 = vperm.xlu0 %5707, %v5597
      %v5709 = vpop.permute.xlu0 %5708
      %5710 = vset.pattern.permute.xlu0 0
      %5711 = vperm.xlu0 %5710, %v5598
      %v5712 = vpop.permute.xlu0 %5711
      %5713 = vset.pattern.permute.xlu0 0
      %5714 = vperm.xlu0 %5713, %v5599
      %v5715 = vpop.permute.xlu0 %5714
      %5716 = vset.pattern.permute.xlu0 0
      %5717 = vperm.xlu0 %5716, %v5600
      %v5718 = vpop.permute.xlu0 %5717
      %5719 = vset.pattern.permute.xlu0 0
      %5720 = vperm.xlu0 %5719, %v5601
      %v5721 = vpop.permute.xlu0 %5720
      %vm5722 = vcmp.eq.s32.totalorder %v5604, 1
      %vm5723 = vcmp.eq.s32.totalorder %v5607, 1
      %vm5724 = vcmp.eq.s32.totalorder %v5610, 1
      %vm5725 = vcmp.eq.s32.totalorder %v5613, 1
      %vm5726 = vcmp.eq.s32.totalorder %v5616, 1
      %vm5727 = vcmp.eq.s32.totalorder %v5619, 1
      %vm5728 = vcmp.eq.s32.totalorder %v5622, 1
      %vm5729 = vcmp.eq.s32.totalorder %v5625, 1
      %vm5730 = vcmp.eq.s32.totalorder %v5628, 1
      %vm5731 = vcmp.eq.s32.totalorder %v5631, 1
      %vm5732 = vcmp.eq.s32.totalorder %v5634, 1
      %vm5733 = vcmp.eq.s32.totalorder %v5637, 1
      %vm5734 = vcmp.eq.s32.totalorder %v5640, 1
      %vm5735 = vcmp.eq.s32.totalorder %v5643, 1
      %vm5736 = vcmp.eq.s32.totalorder %v5646, 1
      %vm5737 = vcmp.eq.s32.totalorder %v5649, 1
      %vm5738 = vcmp.eq.s32.totalorder %v5652, 1
      %vm5739 = vcmp.eq.s32.totalorder %v5655, 1
      %vm5740 = vcmp.eq.s32.totalorder %v5658, 1
      %vm5741 = vcmp.eq.s32.totalorder %v5661, 1
      %vm5742 = vcmp.eq.s32.totalorder %v5664, 1
      %vm5743 = vcmp.eq.s32.totalorder %v5667, 1
      %vm5744 = vcmp.eq.s32.totalorder %v5670, 1
      %vm5745 = vcmp.eq.s32.totalorder %v5673, 1
      %vm5746 = vcmp.eq.s32.totalorder %v5676, 1
      %vm5747 = vcmp.eq.s32.totalorder %v5679, 1
      %vm5748 = vcmp.eq.s32.totalorder %v5682, 1
      %vm5749 = vcmp.eq.s32.totalorder %v5685, 1
      %vm5750 = vcmp.eq.s32.totalorder %v5688, 1
      %vm5751 = vcmp.eq.s32.totalorder %v5691, 1
      %vm5752 = vcmp.eq.s32.totalorder %v5694, 1
      %vm5753 = vcmp.eq.s32.totalorder %v5697, 1
      %vm5754 = vcmp.eq.s32.totalorder %v5700, 1
      %vm5755 = vcmp.eq.s32.totalorder %v5703, 1
      %vm5756 = vcmp.eq.s32.totalorder %v5706, 1
      %vm5757 = vcmp.eq.s32.totalorder %v5709, 1
      %vm5758 = vcmp.eq.s32.totalorder %v5712, 1
      %vm5759 = vcmp.eq.s32.totalorder %v5715, 1
      %vm5760 = vcmp.eq.s32.totalorder %v5718, 1
      %vm5761 = vcmp.eq.s32.totalorder %v5721, 1
      %v5762 = vsel %vm3792, %v3872, %v3793
      %v5764 = vsel %vm5722, %v5762, -1e+30
      %v5765 = vsel %vm5723, %v3795, -1e+30
      %v5766 = vsel %vm5724, %v3797, -1e+30
      %v5767 = vsel %vm5725, %v3799, -1e+30
      %v5768 = vsel %vm5726, %v3801, -1e+30
      %v5769 = vsel %vm5727, %v3803, -1e+30
      %v5770 = vsel %vm5728, %v3805, -1e+30
      %v5771 = vsel %vm5729, %v3807, -1e+30
      %v5772 = vsel %vm5730, %v3809, -1e+30
      %v5773 = vsel %vm5731, %v3811, -1e+30
      %v5774 = vsel %vm5732, %v3813, -1e+30
      %v5775 = vsel %vm5733, %v3815, -1e+30
      %v5776 = vsel %vm5734, %v3817, -1e+30
      %v5777 = vsel %vm5735, %v3819, -1e+30
      %v5778 = vsel %vm5736, %v3821, -1e+30
      %v5779 = vsel %vm5737, %v3823, -1e+30
      %v5780 = vsel %vm5738, %v3825, -1e+30
      %v5781 = vsel %vm5739, %v3827, -1e+30
      %v5782 = vsel %vm5740, %v3829, -1e+30
      %v5783 = vsel %vm5741, %v3831, -1e+30
      %v5784 = vsel %vm5742, %v3833, -1e+30
      %v5785 = vsel %vm5743, %v3835, -1e+30
      %v5786 = vsel %vm5744, %v3837, -1e+30
      %v5787 = vsel %vm5745, %v3839, -1e+30
      %v5788 = vsel %vm5746, %v3841, -1e+30
      %v5789 = vsel %vm5747, %v3843, -1e+30
      %v5790 = vsel %vm5748, %v3845, -1e+30
      %v5791 = vsel %vm5749, %v3847, -1e+30
      %v5792 = vsel %vm5750, %v3849, -1e+30
      %v5793 = vsel %vm5751, %v3851, -1e+30
      %v5794 = vsel %vm5752, %v3853, -1e+30
      %v5795 = vsel %vm5753, %v3855, -1e+30
      %v5796 = vsel %vm5754, %v3857, -1e+30
      %v5797 = vsel %vm5755, %v3859, -1e+30
      %v5798 = vsel %vm5756, %v3861, -1e+30
      %v5799 = vsel %vm5757, %v3863, -1e+30
      %v5800 = vsel %vm5758, %v3865, -1e+30
      %v5801 = vsel %vm5759, %v3867, -1e+30
      %v5802 = vsel %vm5760, %v3869, -1e+30
      %v5803 = vsel %vm5761, %v3871, -1e+30
      %v5804 = vmax.f32 %v5482, %v5764
      %v5805 = vmax.f32 %v5483, %v5765
      %v5806 = vmax.f32 %v5484, %v5766
      %v5807 = vmax.f32 %v5485, %v5767
      %v5808 = vmax.f32 %v5486, %v5768
      %v5809 = vmax.f32 %v5487, %v5769
      %v5810 = vmax.f32 %v5488, %v5770
      %v5811 = vmax.f32 %v5489, %v5771
      %v5812 = vmax.f32 %v5490, %v5772
      %v5813 = vmax.f32 %v5491, %v5773
      %v5814 = vmax.f32 %v5492, %v5774
      %v5815 = vmax.f32 %v5493, %v5775
      %v5816 = vmax.f32 %v5494, %v5776
      %v5817 = vmax.f32 %v5495, %v5777
      %v5818 = vmax.f32 %v5496, %v5778
      %v5819 = vmax.f32 %v5497, %v5779
      %v5820 = vmax.f32 %v5498, %v5780
      %v5821 = vmax.f32 %v5499, %v5781
      %v5822 = vmax.f32 %v5500, %v5782
      %v5823 = vmax.f32 %v5501, %v5783
      %v5824 = vmax.f32 %v5502, %v5784
      %v5825 = vmax.f32 %v5503, %v5785
      %v5826 = vmax.f32 %v5504, %v5786
      %v5827 = vmax.f32 %v5505, %v5787
      %v5828 = vmax.f32 %v5506, %v5788
      %v5829 = vmax.f32 %v5507, %v5789
      %v5830 = vmax.f32 %v5508, %v5790
      %v5831 = vmax.f32 %v5509, %v5791
      %v5832 = vmax.f32 %v5510, %v5792
      %v5833 = vmax.f32 %v5511, %v5793
      %v5834 = vmax.f32 %v5512, %v5794
      %v5835 = vmax.f32 %v5513, %v5795
      %v5836 = vmax.f32 %v5514, %v5796
      %v5837 = vmax.f32 %v5515, %v5797
      %v5838 = vmax.f32 %v5516, %v5798
      %v5839 = vmax.f32 %v5517, %v5799
      %v5840 = vmax.f32 %v5518, %v5800
      %v5841 = vmax.f32 %v5519, %v5801
      %v5842 = vmax.f32 %v5520, %v5802
      %v5843 = vmax.f32 %v5521, %v5803
      %vm5844 = vcmp.lt.s32.totalorder %v318, 10
      %vm5845 = vcmp.lt.s32.totalorder %v319, 10
      %vm5846 = vcmp.lt.s32.totalorder %v320, 10
      %vm5847 = vcmp.lt.s32.totalorder %v321, 10
      %vm5848 = vcmp.lt.s32.totalorder %v322, 10
      %vm5849 = vcmp.lt.s32.totalorder %v323, 10
      %vm5850 = vcmp.lt.s32.totalorder %v324, 10
      %vm5851 = vcmp.lt.s32.totalorder %v325, 10
      %vm5852 = vcmp.lt.s32.totalorder %v326, 10
      %vm5853 = vcmp.lt.s32.totalorder %v327, 10
      %vm5854 = vcmp.lt.s32.totalorder %v328, 10
      %vm5855 = vcmp.lt.s32.totalorder %v329, 10
      %vm5856 = vcmp.lt.s32.totalorder %v330, 10
      %vm5857 = vcmp.lt.s32.totalorder %v331, 10
      %vm5858 = vcmp.lt.s32.totalorder %v332, 10
      %vm5859 = vcmp.lt.s32.totalorder %v333, 10
      %vm5860 = vcmp.lt.s32.totalorder %v334, 10
      %vm5861 = vcmp.lt.s32.totalorder %v335, 10
      %vm5862 = vcmp.lt.s32.totalorder %v336, 10
      %vm5863 = vcmp.lt.s32.totalorder %v337, 10
      %vm5864 = vcmp.lt.s32.totalorder %v338, 10
      %vm5865 = vcmp.lt.s32.totalorder %v339, 10
      %vm5866 = vcmp.lt.s32.totalorder %v340, 10
      %vm5867 = vcmp.lt.s32.totalorder %v341, 10
      %vm5868 = vcmp.lt.s32.totalorder %v342, 10
      %vm5869 = vcmp.lt.s32.totalorder %v343, 10
      %vm5870 = vcmp.lt.s32.totalorder %v344, 10
      %vm5871 = vcmp.lt.s32.totalorder %v345, 10
      %vm5872 = vcmp.lt.s32.totalorder %v346, 10
      %vm5873 = vcmp.lt.s32.totalorder %v347, 10
      %vm5874 = vcmp.lt.s32.totalorder %v348, 10
      %vm5875 = vcmp.lt.s32.totalorder %v349, 10
      %vm5876 = vcmp.lt.s32.totalorder %v350, 10
      %vm5877 = vcmp.lt.s32.totalorder %v351, 10
      %vm5878 = vcmp.lt.s32.totalorder %v352, 10
      %vm5879 = vcmp.lt.s32.totalorder %v353, 10
      %vm5880 = vcmp.lt.s32.totalorder %v354, 10
      %vm5881 = vcmp.lt.s32.totalorder %v355, 10
      %vm5882 = vcmp.lt.s32.totalorder %v356, 10
      %vm5883 = vcmp.lt.s32.totalorder %v357, 10
      %v5884 = vsel %vm5844, 1, 0
      %v5885 = vsel %vm5845, 1, 0
      %v5886 = vsel %vm5846, 1, 0
      %v5887 = vsel %vm5847, 1, 0
      %v5888 = vsel %vm5848, 1, 0
      %v5889 = vsel %vm5849, 1, 0
      %v5890 = vsel %vm5850, 1, 0
      %v5891 = vsel %vm5851, 1, 0
      %v5892 = vsel %vm5852, 1, 0
      %v5893 = vsel %vm5853, 1, 0
      %v5894 = vsel %vm5854, 1, 0
      %v5895 = vsel %vm5855, 1, 0
      %v5896 = vsel %vm5856, 1, 0
      %v5897 = vsel %vm5857, 1, 0
      %v5898 = vsel %vm5858, 1, 0
      %v5899 = vsel %vm5859, 1, 0
      %v5900 = vsel %vm5860, 1, 0
      %v5901 = vsel %vm5861, 1, 0
      %v5902 = vsel %vm5862, 1, 0
      %v5903 = vsel %vm5863, 1, 0
      %v5904 = vsel %vm5864, 1, 0
      %v5905 = vsel %vm5865, 1, 0
      %v5906 = vsel %vm5866, 1, 0
      %v5907 = vsel %vm5867, 1, 0
      %v5908 = vsel %vm5868, 1, 0
      %v5909 = vsel %vm5869, 1, 0
      %v5910 = vsel %vm5870, 1, 0
      %v5911 = vsel %vm5871, 1, 0
      %v5912 = vsel %vm5872, 1, 0
      %v5913 = vsel %vm5873, 1, 0
      %v5914 = vsel %vm5874, 1, 0
      %v5915 = vsel %vm5875, 1, 0
      %v5916 = vsel %vm5876, 1, 0
      %v5917 = vsel %vm5877, 1, 0
      %v5918 = vsel %vm5878, 1, 0
      %v5919 = vsel %vm5879, 1, 0
      %v5920 = vsel %vm5880, 1, 0
      %v5921 = vsel %vm5881, 1, 0
      %v5922 = vsel %vm5882, 1, 0
      %v5923 = vsel %vm5883, 1, 0
      %5924 = vset.pattern.permute.xlu0 0
      %5925 = vperm.xlu0 %5924, %v5884
      %v5926 = vpop.permute.xlu0 %5925
      %5927 = vset.pattern.permute.xlu0 0
      %5928 = vperm.xlu0 %5927, %v5885
      %v5929 = vpop.permute.xlu0 %5928
      %5930 = vset.pattern.permute.xlu0 0
      %5931 = vperm.xlu0 %5930, %v5886
      %v5932 = vpop.permute.xlu0 %5931
      %5933 = vset.pattern.permute.xlu0 0
      %5934 = vperm.xlu0 %5933, %v5887
      %v5935 = vpop.permute.xlu0 %5934
      %5936 = vset.pattern.permute.xlu0 0
      %5937 = vperm.xlu0 %5936, %v5888
      %v5938 = vpop.permute.xlu0 %5937
      %5939 = vset.pattern.permute.xlu0 0
      %5940 = vperm.xlu0 %5939, %v5889
      %v5941 = vpop.permute.xlu0 %5940
      %5942 = vset.pattern.permute.xlu0 0
      %5943 = vperm.xlu0 %5942, %v5890
      %v5944 = vpop.permute.xlu0 %5943
      %5945 = vset.pattern.permute.xlu0 0
      %5946 = vperm.xlu0 %5945, %v5891
      %v5947 = vpop.permute.xlu0 %5946
      %5948 = vset.pattern.permute.xlu0 0
      %5949 = vperm.xlu0 %5948, %v5892
      %v5950 = vpop.permute.xlu0 %5949
      %5951 = vset.pattern.permute.xlu0 0
      %5952 = vperm.xlu0 %5951, %v5893
      %v5953 = vpop.permute.xlu0 %5952
      %5954 = vset.pattern.permute.xlu0 0
      %5955 = vperm.xlu0 %5954, %v5894
      %v5956 = vpop.permute.xlu0 %5955
      %5957 = vset.pattern.permute.xlu0 0
      %5958 = vperm.xlu0 %5957, %v5895
      %v5959 = vpop.permute.xlu0 %5958
      %5960 = vset.pattern.permute.xlu0 0
      %5961 = vperm.xlu0 %5960, %v5896
      %v5962 = vpop.permute.xlu0 %5961
      %5963 = vset.pattern.permute.xlu0 0
      %5964 = vperm.xlu0 %5963, %v5897
      %v5965 = vpop.permute.xlu0 %5964
      %5966 = vset.pattern.permute.xlu0 0
      %5967 = vperm.xlu0 %5966, %v5898
      %v5968 = vpop.permute.xlu0 %5967
      %5969 = vset.pattern.permute.xlu0 0
      %5970 = vperm.xlu0 %5969, %v5899
      %v5971 = vpop.permute.xlu0 %5970
      %5972 = vset.pattern.permute.xlu0 0
      %5973 = vperm.xlu0 %5972, %v5900
      %v5974 = vpop.permute.xlu0 %5973
      %5975 = vset.pattern.permute.xlu0 0
      %5976 = vperm.xlu0 %5975, %v5901
      %v5977 = vpop.permute.xlu0 %5976
      %5978 = vset.pattern.permute.xlu0 0
      %5979 = vperm.xlu0 %5978, %v5902
      %v5980 = vpop.permute.xlu0 %5979
      %5981 = vset.pattern.permute.xlu0 0
      %5982 = vperm.xlu0 %5981, %v5903
      %v5983 = vpop.permute.xlu0 %5982
      %5984 = vset.pattern.permute.xlu0 0
      %5985 = vperm.xlu0 %5984, %v5904
      %v5986 = vpop.permute.xlu0 %5985
      %5987 = vset.pattern.permute.xlu0 0
      %5988 = vperm.xlu0 %5987, %v5905
      %v5989 = vpop.permute.xlu0 %5988
      %5990 = vset.pattern.permute.xlu0 0
      %5991 = vperm.xlu0 %5990, %v5906
      %v5992 = vpop.permute.xlu0 %5991
      %5993 = vset.pattern.permute.xlu0 0
      %5994 = vperm.xlu0 %5993, %v5907
      %v5995 = vpop.permute.xlu0 %5994
      %5996 = vset.pattern.permute.xlu0 0
      %5997 = vperm.xlu0 %5996, %v5908
      %v5998 = vpop.permute.xlu0 %5997
      %5999 = vset.pattern.permute.xlu0 0
      %6000 = vperm.xlu0 %5999, %v5909
      %v6001 = vpop.permute.xlu0 %6000
      %6002 = vset.pattern.permute.xlu0 0
      %6003 = vperm.xlu0 %6002, %v5910
      %v6004 = vpop.permute.xlu0 %6003
      %6005 = vset.pattern.permute.xlu0 0
      %6006 = vperm.xlu0 %6005, %v5911
      %v6007 = vpop.permute.xlu0 %6006
      %6008 = vset.pattern.permute.xlu0 0
      %6009 = vperm.xlu0 %6008, %v5912
      %v6010 = vpop.permute.xlu0 %6009
      %6011 = vset.pattern.permute.xlu0 0
      %6012 = vperm.xlu0 %6011, %v5913
      %v6013 = vpop.permute.xlu0 %6012
      %6014 = vset.pattern.permute.xlu0 0
      %6015 = vperm.xlu0 %6014, %v5914
      %v6016 = vpop.permute.xlu0 %6015
      %6017 = vset.pattern.permute.xlu0 0
      %6018 = vperm.xlu0 %6017, %v5915
      %v6019 = vpop.permute.xlu0 %6018
      %6020 = vset.pattern.permute.xlu0 0
      %6021 = vperm.xlu0 %6020, %v5916
      %v6022 = vpop.permute.xlu0 %6021
      %6023 = vset.pattern.permute.xlu0 0
      %6024 = vperm.xlu0 %6023, %v5917
      %v6025 = vpop.permute.xlu0 %6024
      %6026 = vset.pattern.permute.xlu0 0
      %6027 = vperm.xlu0 %6026, %v5918
      %v6028 = vpop.permute.xlu0 %6027
      %6029 = vset.pattern.permute.xlu0 0
      %6030 = vperm.xlu0 %6029, %v5919
      %v6031 = vpop.permute.xlu0 %6030
      %6032 = vset.pattern.permute.xlu0 0
      %6033 = vperm.xlu0 %6032, %v5920
      %v6034 = vpop.permute.xlu0 %6033
      %6035 = vset.pattern.permute.xlu0 0
      %6036 = vperm.xlu0 %6035, %v5921
      %v6037 = vpop.permute.xlu0 %6036
      %6038 = vset.pattern.permute.xlu0 0
      %6039 = vperm.xlu0 %6038, %v5922
      %v6040 = vpop.permute.xlu0 %6039
      %6041 = vset.pattern.permute.xlu0 0
      %6042 = vperm.xlu0 %6041, %v5923
      %v6043 = vpop.permute.xlu0 %6042
      %vm6044 = vcmp.eq.s32.totalorder %v5926, 1
      %vm6045 = vcmp.eq.s32.totalorder %v5929, 1
      %vm6046 = vcmp.eq.s32.totalorder %v5932, 1
      %vm6047 = vcmp.eq.s32.totalorder %v5935, 1
      %vm6048 = vcmp.eq.s32.totalorder %v5938, 1
      %vm6049 = vcmp.eq.s32.totalorder %v5941, 1
      %vm6050 = vcmp.eq.s32.totalorder %v5944, 1
      %vm6051 = vcmp.eq.s32.totalorder %v5947, 1
      %vm6052 = vcmp.eq.s32.totalorder %v5950, 1
      %vm6053 = vcmp.eq.s32.totalorder %v5953, 1
      %vm6054 = vcmp.eq.s32.totalorder %v5956, 1
      %vm6055 = vcmp.eq.s32.totalorder %v5959, 1
      %vm6056 = vcmp.eq.s32.totalorder %v5962, 1
      %vm6057 = vcmp.eq.s32.totalorder %v5965, 1
      %vm6058 = vcmp.eq.s32.totalorder %v5968, 1
      %vm6059 = vcmp.eq.s32.totalorder %v5971, 1
      %vm6060 = vcmp.eq.s32.totalorder %v5974, 1
      %vm6061 = vcmp.eq.s32.totalorder %v5977, 1
      %vm6062 = vcmp.eq.s32.totalorder %v5980, 1
      %vm6063 = vcmp.eq.s32.totalorder %v5983, 1
      %vm6064 = vcmp.eq.s32.totalorder %v5986, 1
      %vm6065 = vcmp.eq.s32.totalorder %v5989, 1
      %vm6066 = vcmp.eq.s32.totalorder %v5992, 1
      %vm6067 = vcmp.eq.s32.totalorder %v5995, 1
      %vm6068 = vcmp.eq.s32.totalorder %v5998, 1
      %vm6069 = vcmp.eq.s32.totalorder %v6001, 1
      %vm6070 = vcmp.eq.s32.totalorder %v6004, 1
      %vm6071 = vcmp.eq.s32.totalorder %v6007, 1
      %vm6072 = vcmp.eq.s32.totalorder %v6010, 1
      %vm6073 = vcmp.eq.s32.totalorder %v6013, 1
      %vm6074 = vcmp.eq.s32.totalorder %v6016, 1
      %vm6075 = vcmp.eq.s32.totalorder %v6019, 1
      %vm6076 = vcmp.eq.s32.totalorder %v6022, 1
      %vm6077 = vcmp.eq.s32.totalorder %v6025, 1
      %vm6078 = vcmp.eq.s32.totalorder %v6028, 1
      %vm6079 = vcmp.eq.s32.totalorder %v6031, 1
      %vm6080 = vcmp.eq.s32.totalorder %v6034, 1
      %vm6081 = vcmp.eq.s32.totalorder %v6037, 1
      %vm6082 = vcmp.eq.s32.totalorder %v6040, 1
      %vm6083 = vcmp.eq.s32.totalorder %v6043, 1
      %v6084 = vsel %vm3350, %v3430, %v3351
      %v6086 = vsel %vm6044, %v3355, -1e+30
      %v6087 = vsel %vm6045, %v3357, -1e+30
      %v6088 = vsel %vm6046, %v3359, -1e+30
      %v6089 = vsel %vm6047, %v3361, -1e+30
      %v6090 = vsel %vm6048, %v3363, -1e+30
      %v6091 = vsel %vm6049, %v3365, -1e+30
      %v6092 = vsel %vm6050, %v3367, -1e+30
      %v6093 = vsel %vm6051, %v3369, -1e+30
      %v6094 = vsel %vm6052, %v3371, -1e+30
      %v6095 = vsel %vm6053, %v3373, -1e+30
      %v6096 = vsel %vm6054, %v3375, -1e+30
      %v6097 = vsel %vm6055, %v3377, -1e+30
      %v6098 = vsel %vm6056, %v3379, -1e+30
      %v6099 = vsel %vm6057, %v3381, -1e+30
      %v6100 = vsel %vm6058, %v3383, -1e+30
      %v6101 = vsel %vm6059, %v3385, -1e+30
      %v6102 = vsel %vm6060, %v3387, -1e+30
      %v6103 = vsel %vm6061, %v3389, -1e+30
      %v6104 = vsel %vm6062, %v3391, -1e+30
      %v6105 = vsel %vm6063, %v3393, -1e+30
      %v6106 = vsel %vm6064, %v3395, -1e+30
      %v6107 = vsel %vm6065, %v3397, -1e+30
      %v6108 = vsel %vm6066, %v3399, -1e+30
      %v6109 = vsel %vm6067, %v3401, -1e+30
      %v6110 = vsel %vm6068, %v3403, -1e+30
      %v6111 = vsel %vm6069, %v3405, -1e+30
      %v6112 = vsel %vm6070, %v3407, -1e+30
      %v6113 = vsel %vm6071, %v3409, -1e+30
      %v6114 = vsel %vm6072, %v3411, -1e+30
      %v6115 = vsel %vm6073, %v3413, -1e+30
      %v6116 = vsel %vm6074, %v3415, -1e+30
      %v6117 = vsel %vm6075, %v3417, -1e+30
      %v6118 = vsel %vm6076, %v3419, -1e+30
      %v6119 = vsel %vm6077, %v3421, -1e+30
      %v6120 = vsel %vm6078, %v3423, -1e+30
      %v6121 = vsel %vm6079, %v3425, -1e+30
      %v6122 = vsel %vm6080, %v3427, -1e+30
      %v6123 = vsel %vm6081, %v3429, -1e+30
      %v6124 = vsel %vm6082, %v3431, -1e+30
      %v6125 = vsel %vm6083, %v6084, -1e+30
      %v6126 = vmax.f32 %v5804, %v6086
      %v6127 = vmax.f32 %v5805, %v6087
      %v6128 = vmax.f32 %v5806, %v6088
      %v6129 = vmax.f32 %v5807, %v6089
      %v6130 = vmax.f32 %v5808, %v6090
      %v6131 = vmax.f32 %v5809, %v6091
      %v6132 = vmax.f32 %v5810, %v6092
      %v6133 = vmax.f32 %v5811, %v6093
      %v6134 = vmax.f32 %v5812, %v6094
      %v6135 = vmax.f32 %v5813, %v6095
      %v6136 = vmax.f32 %v5814, %v6096
      %v6137 = vmax.f32 %v5815, %v6097
      %v6138 = vmax.f32 %v5816, %v6098
      %v6139 = vmax.f32 %v5817, %v6099
      %v6140 = vmax.f32 %v5818, %v6100
      %v6141 = vmax.f32 %v5819, %v6101
      %v6142 = vmax.f32 %v5820, %v6102
      %v6143 = vmax.f32 %v5821, %v6103
      %v6144 = vmax.f32 %v5822, %v6104
      %v6145 = vmax.f32 %v5823, %v6105
      %v6146 = vmax.f32 %v5824, %v6106
      %v6147 = vmax.f32 %v5825, %v6107
      %v6148 = vmax.f32 %v5826, %v6108
      %v6149 = vmax.f32 %v5827, %v6109
      %v6150 = vmax.f32 %v5828, %v6110
      %v6151 = vmax.f32 %v5829, %v6111
      %v6152 = vmax.f32 %v5830, %v6112
      %v6153 = vmax.f32 %v5831, %v6113
      %v6154 = vmax.f32 %v5832, %v6114
      %v6155 = vmax.f32 %v5833, %v6115
      %v6156 = vmax.f32 %v5834, %v6116
      %v6157 = vmax.f32 %v5835, %v6117
      %v6158 = vmax.f32 %v5836, %v6118
      %v6159 = vmax.f32 %v5837, %v6119
      %v6160 = vmax.f32 %v5838, %v6120
      %v6161 = vmax.f32 %v5839, %v6121
      %v6162 = vmax.f32 %v5840, %v6122
      %v6163 = vmax.f32 %v5841, %v6123
      %v6164 = vmax.f32 %v5842, %v6124
      %v6165 = vmax.f32 %v5843, %v6125
      %vm6166 = vcmp.ge.s32.totalorder %v318, 6
      %vm6167 = vcmp.ge.s32.totalorder %v319, 6
      %vm6168 = vcmp.ge.s32.totalorder %v320, 6
      %vm6169 = vcmp.ge.s32.totalorder %v321, 6
      %vm6170 = vcmp.ge.s32.totalorder %v322, 6
      %vm6171 = vcmp.ge.s32.totalorder %v323, 6
      %vm6172 = vcmp.ge.s32.totalorder %v324, 6
      %vm6173 = vcmp.ge.s32.totalorder %v325, 6
      %vm6174 = vcmp.ge.s32.totalorder %v326, 6
      %vm6175 = vcmp.ge.s32.totalorder %v327, 6
      %vm6176 = vcmp.ge.s32.totalorder %v328, 6
      %vm6177 = vcmp.ge.s32.totalorder %v329, 6
      %vm6178 = vcmp.ge.s32.totalorder %v330, 6
      %vm6179 = vcmp.ge.s32.totalorder %v331, 6
      %vm6180 = vcmp.ge.s32.totalorder %v332, 6
      %vm6181 = vcmp.ge.s32.totalorder %v333, 6
      %vm6182 = vcmp.ge.s32.totalorder %v334, 6
      %vm6183 = vcmp.ge.s32.totalorder %v335, 6
      %vm6184 = vcmp.ge.s32.totalorder %v336, 6
      %vm6185 = vcmp.ge.s32.totalorder %v337, 6
      %vm6186 = vcmp.ge.s32.totalorder %v338, 6
      %vm6187 = vcmp.ge.s32.totalorder %v339, 6
      %vm6188 = vcmp.ge.s32.totalorder %v340, 6
      %vm6189 = vcmp.ge.s32.totalorder %v341, 6
      %vm6190 = vcmp.ge.s32.totalorder %v342, 6
      %vm6191 = vcmp.ge.s32.totalorder %v343, 6
      %vm6192 = vcmp.ge.s32.totalorder %v344, 6
      %vm6193 = vcmp.ge.s32.totalorder %v345, 6
      %vm6194 = vcmp.ge.s32.totalorder %v346, 6
      %vm6195 = vcmp.ge.s32.totalorder %v347, 6
      %vm6196 = vcmp.ge.s32.totalorder %v348, 6
      %vm6197 = vcmp.ge.s32.totalorder %v349, 6
      %vm6198 = vcmp.ge.s32.totalorder %v350, 6
      %vm6199 = vcmp.ge.s32.totalorder %v351, 6
      %vm6200 = vcmp.ge.s32.totalorder %v352, 6
      %vm6201 = vcmp.ge.s32.totalorder %v353, 6
      %vm6202 = vcmp.ge.s32.totalorder %v354, 6
      %vm6203 = vcmp.ge.s32.totalorder %v355, 6
      %vm6204 = vcmp.ge.s32.totalorder %v356, 6
      %vm6205 = vcmp.ge.s32.totalorder %v357, 6
      %v6206 = vsel %vm6166, 1, 0
      %v6207 = vsel %vm6167, 1, 0
      %v6208 = vsel %vm6168, 1, 0
      %v6209 = vsel %vm6169, 1, 0
      %v6210 = vsel %vm6170, 1, 0
      %v6211 = vsel %vm6171, 1, 0
      %v6212 = vsel %vm6172, 1, 0
      %v6213 = vsel %vm6173, 1, 0
      %v6214 = vsel %vm6174, 1, 0
      %v6215 = vsel %vm6175, 1, 0
      %v6216 = vsel %vm6176, 1, 0
      %v6217 = vsel %vm6177, 1, 0
      %v6218 = vsel %vm6178, 1, 0
      %v6219 = vsel %vm6179, 1, 0
      %v6220 = vsel %vm6180, 1, 0
      %v6221 = vsel %vm6181, 1, 0
      %v6222 = vsel %vm6182, 1, 0
      %v6223 = vsel %vm6183, 1, 0
      %v6224 = vsel %vm6184, 1, 0
      %v6225 = vsel %vm6185, 1, 0
      %v6226 = vsel %vm6186, 1, 0
      %v6227 = vsel %vm6187, 1, 0
      %v6228 = vsel %vm6188, 1, 0
      %v6229 = vsel %vm6189, 1, 0
      %v6230 = vsel %vm6190, 1, 0
      %v6231 = vsel %vm6191, 1, 0
      %v6232 = vsel %vm6192, 1, 0
      %v6233 = vsel %vm6193, 1, 0
      %v6234 = vsel %vm6194, 1, 0
      %v6235 = vsel %vm6195, 1, 0
      %v6236 = vsel %vm6196, 1, 0
      %v6237 = vsel %vm6197, 1, 0
      %v6238 = vsel %vm6198, 1, 0
      %v6239 = vsel %vm6199, 1, 0
      %v6240 = vsel %vm6200, 1, 0
      %v6241 = vsel %vm6201, 1, 0
      %v6242 = vsel %vm6202, 1, 0
      %v6243 = vsel %vm6203, 1, 0
      %v6244 = vsel %vm6204, 1, 0
      %v6245 = vsel %vm6205, 1, 0
      %6246 = vset.pattern.permute.xlu0 0
      %6247 = vperm.xlu0 %6246, %v6206
      %v6248 = vpop.permute.xlu0 %6247
      %6249 = vset.pattern.permute.xlu0 0
      %6250 = vperm.xlu0 %6249, %v6207
      %v6251 = vpop.permute.xlu0 %6250
      %6252 = vset.pattern.permute.xlu0 0
      %6253 = vperm.xlu0 %6252, %v6208
      %v6254 = vpop.permute.xlu0 %6253
      %6255 = vset.pattern.permute.xlu0 0
      %6256 = vperm.xlu0 %6255, %v6209
      %v6257 = vpop.permute.xlu0 %6256
      %6258 = vset.pattern.permute.xlu0 0
      %6259 = vperm.xlu0 %6258, %v6210
      %v6260 = vpop.permute.xlu0 %6259
      %6261 = vset.pattern.permute.xlu0 0
      %6262 = vperm.xlu0 %6261, %v6211
      %v6263 = vpop.permute.xlu0 %6262
      %6264 = vset.pattern.permute.xlu0 0
      %6265 = vperm.xlu0 %6264, %v6212
      %v6266 = vpop.permute.xlu0 %6265
      %6267 = vset.pattern.permute.xlu0 0
      %6268 = vperm.xlu0 %6267, %v6213
      %v6269 = vpop.permute.xlu0 %6268
      %6270 = vset.pattern.permute.xlu0 0
      %6271 = vperm.xlu0 %6270, %v6214
      %v6272 = vpop.permute.xlu0 %6271
      %6273 = vset.pattern.permute.xlu0 0
      %6274 = vperm.xlu0 %6273, %v6215
      %v6275 = vpop.permute.xlu0 %6274
      %6276 = vset.pattern.permute.xlu0 0
      %6277 = vperm.xlu0 %6276, %v6216
      %v6278 = vpop.permute.xlu0 %6277
      %6279 = vset.pattern.permute.xlu0 0
      %6280 = vperm.xlu0 %6279, %v6217
      %v6281 = vpop.permute.xlu0 %6280
      %6282 = vset.pattern.permute.xlu0 0
      %6283 = vperm.xlu0 %6282, %v6218
      %v6284 = vpop.permute.xlu0 %6283
      %6285 = vset.pattern.permute.xlu0 0
      %6286 = vperm.xlu0 %6285, %v6219
      %v6287 = vpop.permute.xlu0 %6286
      %6288 = vset.pattern.permute.xlu0 0
      %6289 = vperm.xlu0 %6288, %v6220
      %v6290 = vpop.permute.xlu0 %6289
      %6291 = vset.pattern.permute.xlu0 0
      %6292 = vperm.xlu0 %6291, %v6221
      %v6293 = vpop.permute.xlu0 %6292
      %6294 = vset.pattern.permute.xlu0 0
      %6295 = vperm.xlu0 %6294, %v6222
      %v6296 = vpop.permute.xlu0 %6295
      %6297 = vset.pattern.permute.xlu0 0
      %6298 = vperm.xlu0 %6297, %v6223
      %v6299 = vpop.permute.xlu0 %6298
      %6300 = vset.pattern.permute.xlu0 0
      %6301 = vperm.xlu0 %6300, %v6224
      %v6302 = vpop.permute.xlu0 %6301
      %6303 = vset.pattern.permute.xlu0 0
      %6304 = vperm.xlu0 %6303, %v6225
      %v6305 = vpop.permute.xlu0 %6304
      %6306 = vset.pattern.permute.xlu0 0
      %6307 = vperm.xlu0 %6306, %v6226
      %v6308 = vpop.permute.xlu0 %6307
      %6309 = vset.pattern.permute.xlu0 0
      %6310 = vperm.xlu0 %6309, %v6227
      %v6311 = vpop.permute.xlu0 %6310
      %6312 = vset.pattern.permute.xlu0 0
      %6313 = vperm.xlu0 %6312, %v6228
      %v6314 = vpop.permute.xlu0 %6313
      %6315 = vset.pattern.permute.xlu0 0
      %6316 = vperm.xlu0 %6315, %v6229
      %v6317 = vpop.permute.xlu0 %6316
      %6318 = vset.pattern.permute.xlu0 0
      %6319 = vperm.xlu0 %6318, %v6230
      %v6320 = vpop.permute.xlu0 %6319
      %6321 = vset.pattern.permute.xlu0 0
      %6322 = vperm.xlu0 %6321, %v6231
      %v6323 = vpop.permute.xlu0 %6322
      %6324 = vset.pattern.permute.xlu0 0
      %6325 = vperm.xlu0 %6324, %v6232
      %v6326 = vpop.permute.xlu0 %6325
      %6327 = vset.pattern.permute.xlu0 0
      %6328 = vperm.xlu0 %6327, %v6233
      %v6329 = vpop.permute.xlu0 %6328
      %6330 = vset.pattern.permute.xlu0 0
      %6331 = vperm.xlu0 %6330, %v6234
      %v6332 = vpop.permute.xlu0 %6331
      %6333 = vset.pattern.permute.xlu0 0
      %6334 = vperm.xlu0 %6333, %v6235
      %v6335 = vpop.permute.xlu0 %6334
      %6336 = vset.pattern.permute.xlu0 0
      %6337 = vperm.xlu0 %6336, %v6236
      %v6338 = vpop.permute.xlu0 %6337
      %6339 = vset.pattern.permute.xlu0 0
      %6340 = vperm.xlu0 %6339, %v6237
      %v6341 = vpop.permute.xlu0 %6340
      %6342 = vset.pattern.permute.xlu0 0
      %6343 = vperm.xlu0 %6342, %v6238
      %v6344 = vpop.permute.xlu0 %6343
      %6345 = vset.pattern.permute.xlu0 0
      %6346 = vperm.xlu0 %6345, %v6239
      %v6347 = vpop.permute.xlu0 %6346
      %6348 = vset.pattern.permute.xlu0 0
      %6349 = vperm.xlu0 %6348, %v6240
      %v6350 = vpop.permute.xlu0 %6349
      %6351 = vset.pattern.permute.xlu0 0
      %6352 = vperm.xlu0 %6351, %v6241
      %v6353 = vpop.permute.xlu0 %6352
      %6354 = vset.pattern.permute.xlu0 0
      %6355 = vperm.xlu0 %6354, %v6242
      %v6356 = vpop.permute.xlu0 %6355
      %6357 = vset.pattern.permute.xlu0 0
      %6358 = vperm.xlu0 %6357, %v6243
      %v6359 = vpop.permute.xlu0 %6358
      %6360 = vset.pattern.permute.xlu0 0
      %6361 = vperm.xlu0 %6360, %v6244
      %v6362 = vpop.permute.xlu0 %6361
      %6363 = vset.pattern.permute.xlu0 0
      %6364 = vperm.xlu0 %6363, %v6245
      %v6365 = vpop.permute.xlu0 %6364
      %vm6366 = vcmp.eq.s32.totalorder %v6248, 1
      %vm6367 = vcmp.eq.s32.totalorder %v6251, 1
      %vm6368 = vcmp.eq.s32.totalorder %v6254, 1
      %vm6369 = vcmp.eq.s32.totalorder %v6257, 1
      %vm6370 = vcmp.eq.s32.totalorder %v6260, 1
      %vm6371 = vcmp.eq.s32.totalorder %v6263, 1
      %vm6372 = vcmp.eq.s32.totalorder %v6266, 1
      %vm6373 = vcmp.eq.s32.totalorder %v6269, 1
      %vm6374 = vcmp.eq.s32.totalorder %v6272, 1
      %vm6375 = vcmp.eq.s32.totalorder %v6275, 1
      %vm6376 = vcmp.eq.s32.totalorder %v6278, 1
      %vm6377 = vcmp.eq.s32.totalorder %v6281, 1
      %vm6378 = vcmp.eq.s32.totalorder %v6284, 1
      %vm6379 = vcmp.eq.s32.totalorder %v6287, 1
      %vm6380 = vcmp.eq.s32.totalorder %v6290, 1
      %vm6381 = vcmp.eq.s32.totalorder %v6293, 1
      %vm6382 = vcmp.eq.s32.totalorder %v6296, 1
      %vm6383 = vcmp.eq.s32.totalorder %v6299, 1
      %vm6384 = vcmp.eq.s32.totalorder %v6302, 1
      %vm6385 = vcmp.eq.s32.totalorder %v6305, 1
      %vm6386 = vcmp.eq.s32.totalorder %v6308, 1
      %vm6387 = vcmp.eq.s32.totalorder %v6311, 1
      %vm6388 = vcmp.eq.s32.totalorder %v6314, 1
      %vm6389 = vcmp.eq.s32.totalorder %v6317, 1
      %vm6390 = vcmp.eq.s32.totalorder %v6320, 1
      %vm6391 = vcmp.eq.s32.totalorder %v6323, 1
      %vm6392 = vcmp.eq.s32.totalorder %v6326, 1
      %vm6393 = vcmp.eq.s32.totalorder %v6329, 1
      %vm6394 = vcmp.eq.s32.totalorder %v6332, 1
      %vm6395 = vcmp.eq.s32.totalorder %v6335, 1
      %vm6396 = vcmp.eq.s32.totalorder %v6338, 1
      %vm6397 = vcmp.eq.s32.totalorder %v6341, 1
      %vm6398 = vcmp.eq.s32.totalorder %v6344, 1
      %vm6399 = vcmp.eq.s32.totalorder %v6347, 1
      %vm6400 = vcmp.eq.s32.totalorder %v6350, 1
      %vm6401 = vcmp.eq.s32.totalorder %v6353, 1
      %vm6402 = vcmp.eq.s32.totalorder %v6356, 1
      %vm6403 = vcmp.eq.s32.totalorder %v6359, 1
      %vm6404 = vcmp.eq.s32.totalorder %v6362, 1
      %vm6405 = vcmp.eq.s32.totalorder %v6365, 1
      %v6406 = vsel %vm2908, %v2988, %v2909
      %v6408 = vsel %vm6366, %v6406, -1e+30
      %v6409 = vsel %vm6367, %v2911, -1e+30
      %v6410 = vsel %vm6368, %v2913, -1e+30
      %v6411 = vsel %vm6369, %v2915, -1e+30
      %v6412 = vsel %vm6370, %v2917, -1e+30
      %v6413 = vsel %vm6371, %v2919, -1e+30
      %v6414 = vsel %vm6372, %v2921, -1e+30
      %v6415 = vsel %vm6373, %v2923, -1e+30
      %v6416 = vsel %vm6374, %v2925, -1e+30
      %v6417 = vsel %vm6375, %v2927, -1e+30
      %v6418 = vsel %vm6376, %v2929, -1e+30
      %v6419 = vsel %vm6377, %v2931, -1e+30
      %v6420 = vsel %vm6378, %v2933, -1e+30
      %v6421 = vsel %vm6379, %v2935, -1e+30
      %v6422 = vsel %vm6380, %v2937, -1e+30
      %v6423 = vsel %vm6381, %v2939, -1e+30
      %v6424 = vsel %vm6382, %v2941, -1e+30
      %v6425 = vsel %vm6383, %v2943, -1e+30
      %v6426 = vsel %vm6384, %v2945, -1e+30
      %v6427 = vsel %vm6385, %v2947, -1e+30
      %v6428 = vsel %vm6386, %v2949, -1e+30
      %v6429 = vsel %vm6387, %v2951, -1e+30
      %v6430 = vsel %vm6388, %v2953, -1e+30
      %v6431 = vsel %vm6389, %v2955, -1e+30
      %v6432 = vsel %vm6390, %v2957, -1e+30
      %v6433 = vsel %vm6391, %v2959, -1e+30
      %v6434 = vsel %vm6392, %v2961, -1e+30
      %v6435 = vsel %vm6393, %v2963, -1e+30
      %v6436 = vsel %vm6394, %v2965, -1e+30
      %v6437 = vsel %vm6395, %v2967, -1e+30
      %v6438 = vsel %vm6396, %v2969, -1e+30
      %v6439 = vsel %vm6397, %v2971, -1e+30
      %v6440 = vsel %vm6398, %v2973, -1e+30
      %v6441 = vsel %vm6399, %v2975, -1e+30
      %v6442 = vsel %vm6400, %v2977, -1e+30
      %v6443 = vsel %vm6401, %v2979, -1e+30
      %v6444 = vsel %vm6402, %v2981, -1e+30
      %v6445 = vsel %vm6403, %v2983, -1e+30
      %v6446 = vsel %vm6404, %v2985, -1e+30
      %v6447 = vsel %vm6405, %v2987, -1e+30
      %v6448 = vmax.f32 %v6126, %v6408
      %v6449 = vmax.f32 %v6127, %v6409
      %v6450 = vmax.f32 %v6128, %v6410
      %v6451 = vmax.f32 %v6129, %v6411
      %v6452 = vmax.f32 %v6130, %v6412
      %v6453 = vmax.f32 %v6131, %v6413
      %v6454 = vmax.f32 %v6132, %v6414
      %v6455 = vmax.f32 %v6133, %v6415
      %v6456 = vmax.f32 %v6134, %v6416
      %v6457 = vmax.f32 %v6135, %v6417
      %v6458 = vmax.f32 %v6136, %v6418
      %v6459 = vmax.f32 %v6137, %v6419
      %v6460 = vmax.f32 %v6138, %v6420
      %v6461 = vmax.f32 %v6139, %v6421
      %v6462 = vmax.f32 %v6140, %v6422
      %v6463 = vmax.f32 %v6141, %v6423
      %v6464 = vmax.f32 %v6142, %v6424
      %v6465 = vmax.f32 %v6143, %v6425
      %v6466 = vmax.f32 %v6144, %v6426
      %v6467 = vmax.f32 %v6145, %v6427
      %v6468 = vmax.f32 %v6146, %v6428
      %v6469 = vmax.f32 %v6147, %v6429
      %v6470 = vmax.f32 %v6148, %v6430
      %v6471 = vmax.f32 %v6149, %v6431
      %v6472 = vmax.f32 %v6150, %v6432
      %v6473 = vmax.f32 %v6151, %v6433
      %v6474 = vmax.f32 %v6152, %v6434
      %v6475 = vmax.f32 %v6153, %v6435
      %v6476 = vmax.f32 %v6154, %v6436
      %v6477 = vmax.f32 %v6155, %v6437
      %v6478 = vmax.f32 %v6156, %v6438
      %v6479 = vmax.f32 %v6157, %v6439
      %v6480 = vmax.f32 %v6158, %v6440
      %v6481 = vmax.f32 %v6159, %v6441
      %v6482 = vmax.f32 %v6160, %v6442
      %v6483 = vmax.f32 %v6161, %v6443
      %v6484 = vmax.f32 %v6162, %v6444
      %v6485 = vmax.f32 %v6163, %v6445
      %v6486 = vmax.f32 %v6164, %v6446
      %v6487 = vmax.f32 %v6165, %v6447
      %v6488 = vmax.f32 %v3524, %v3520
      %v6489 = vmax.f32 %v3525, %v3521
      %v6490 = vmax.f32 %v3526, %v3522
      %v6491 = vmax.f32 %v3527, %v3523
      %v6492 = vmax.f32 %v3528, %v3524
      %v6493 = vmax.f32 %v3529, %v3525
      %v6494 = vmax.f32 %v3530, %v3526
      %v6495 = vmax.f32 %v3531, %v3527
      %v6496 = vmax.f32 %v3532, %v3528
      %v6497 = vmax.f32 %v3533, %v3529
      %v6498 = vmax.f32 %v3534, %v3530
      %v6499 = vmax.f32 %v3535, %v3531
      %v6500 = vmax.f32 %v3536, %v3532
      %v6501 = vmax.f32 %v3537, %v3533
      %v6502 = vmax.f32 %v3538, %v3534
      %v6503 = vmax.f32 %v3539, %v3535
      %v6504 = vmax.f32 %v6488, %v3522
      %v6505 = vmax.f32 %v6489, %v3523
      %v6506 = vmax.f32 %v6490, %v3524
      %v6507 = vmax.f32 %v6491, %v3525
      %v6508 = vmax.f32 %v6492, %v3526
      %v6509 = vmax.f32 %v6493, %v3527
      %v6510 = vmax.f32 %v6494, %v3528
      %v6511 = vmax.f32 %v6495, %v3529
      %v6512 = vmax.f32 %v6496, %v3530
      %v6513 = vmax.f32 %v6497, %v3531
      %v6514 = vmax.f32 %v6498, %v3532
      %v6515 = vmax.f32 %v6499, %v3533
      %v6516 = vmax.f32 %v6500, %v3534
      %v6517 = vmax.f32 %v6501, %v3535
      %v6518 = vmax.f32 %v6502, %v3536
      %v6519 = vmax.f32 %v6503, %v3537
      %v6520 = vmax.f32 %v6504, %v3526
      %v6521 = vmax.f32 %v6505, %v3527
      %v6522 = vmax.f32 %v6506, %v3528
      %v6523 = vmax.f32 %v6507, %v3529
      %v6524 = vmax.f32 %v6508, %v3530
      %v6525 = vmax.f32 %v6509, %v3531
      %v6526 = vmax.f32 %v6510, %v3532
      %v6527 = vmax.f32 %v6511, %v3533
      %v6528 = vmax.f32 %v6512, %v3534
      %v6529 = vmax.f32 %v6513, %v3535
      %v6530 = vmax.f32 %v6514, %v3536
      %v6531 = vmax.f32 %v6515, %v3537
      %v6532 = vmax.f32 %v6516, %v3538
      %v6533 = vmax.f32 %v6517, %v3539
      %v6534 = vmax.f32 %v6518, %v3540
      %v6535 = vmax.f32 %v6519, %v3541
      %v6536 = vmax.f32 %v6520, %v3528
      %v6537 = vmax.f32 %v6521, %v3529
      %v6538 = vmax.f32 %v6522, %v3530
      %v6539 = vmax.f32 %v6523, %v3531
      %v6540 = vmax.f32 %v6524, %v3532
      %v6541 = vmax.f32 %v6525, %v3533
      %v6542 = vmax.f32 %v6526, %v3534
      %v6543 = vmax.f32 %v6527, %v3535
      %v6544 = vmax.f32 %v6528, %v3536
      %v6545 = vmax.f32 %v6529, %v3537
      %v6546 = vmax.f32 %v6530, %v3538
      %v6547 = vmax.f32 %v6531, %v3539
      %v6548 = vmax.f32 %v6532, %v3540
      %v6549 = vmax.f32 %v6533, %v3541
      %v6550 = vmax.f32 %v6534, %v3542
      %v6551 = vmax.f32 %v6535, %v3543
      %v6552 = vmax.f32 %v5172, %v5164
      %v6553 = vmax.f32 %v5173, %v5165
      %v6554 = vmax.f32 %v5174, %v5166
      %v6555 = vmax.f32 %v5175, %v5167
      %v6556 = vmax.f32 %v5176, %v5168
      %v6557 = vmax.f32 %v5177, %v5169
      %v6558 = vmax.f32 %v5178, %v5170
      %v6559 = vmax.f32 %v5179, %v5171
      %v6560 = vmax.f32 %v5180, %v5172
      %v6561 = vmax.f32 %v5181, %v5173
      %v6562 = vmax.f32 %v5182, %v5174
      %v6563 = vmax.f32 %v5183, %v5175
      %v6564 = vmax.f32 %v5184, %v5176
      %v6565 = vmax.f32 %v5185, %v5177
      %v6566 = vmax.f32 %v5186, %v5178
      %v6567 = vmax.f32 %v5187, %v5179
      %v6568 = vmax.f32 %v6552, %v5166
      %v6569 = vmax.f32 %v6553, %v5167
      %v6570 = vmax.f32 %v6554, %v5168
      %v6571 = vmax.f32 %v6555, %v5169
      %v6572 = vmax.f32 %v6556, %v5170
      %v6573 = vmax.f32 %v6557, %v5171
      %v6574 = vmax.f32 %v6558, %v5172
      %v6575 = vmax.f32 %v6559, %v5173
      %v6576 = vmax.f32 %v6560, %v5174
      %v6577 = vmax.f32 %v6561, %v5175
      %v6578 = vmax.f32 %v6562, %v5176
      %v6579 = vmax.f32 %v6563, %v5177
      %v6580 = vmax.f32 %v6564, %v5178
      %v6581 = vmax.f32 %v6565, %v5179
      %v6582 = vmax.f32 %v6566, %v5180
      %v6583 = vmax.f32 %v6567, %v5181
      %v6584 = vmax.f32 %v6568, %v5168
      %v6585 = vmax.f32 %v6569, %v5169
      %v6586 = vmax.f32 %v6570, %v5170
      %v6587 = vmax.f32 %v6571, %v5171
      %v6588 = vmax.f32 %v6572, %v5172
      %v6589 = vmax.f32 %v6573, %v5173
      %v6590 = vmax.f32 %v6574, %v5174
      %v6591 = vmax.f32 %v6575, %v5175
      %v6592 = vmax.f32 %v6576, %v5176
      %v6593 = vmax.f32 %v6577, %v5177
      %v6594 = vmax.f32 %v6578, %v5178
      %v6595 = vmax.f32 %v6579, %v5179
      %v6596 = vmax.f32 %v6580, %v5180
      %v6597 = vmax.f32 %v6581, %v5181
      %v6598 = vmax.f32 %v6582, %v5182
      %v6599 = vmax.f32 %v6583, %v5183
      %v6600 = vmax.f32 %v6584, %v5170
      %v6601 = vmax.f32 %v6585, %v5171
      %v6602 = vmax.f32 %v6586, %v5172
      %v6603 = vmax.f32 %v6587, %v5173
      %v6604 = vmax.f32 %v6588, %v5174
      %v6605 = vmax.f32 %v6589, %v5175
      %v6606 = vmax.f32 %v6590, %v5176
      %v6607 = vmax.f32 %v6591, %v5177
      %v6608 = vmax.f32 %v6592, %v5178
      %v6609 = vmax.f32 %v6593, %v5179
      %v6610 = vmax.f32 %v6594, %v5180
      %v6611 = vmax.f32 %v6595, %v5181
      %v6612 = vmax.f32 %v6596, %v5182
      %v6613 = vmax.f32 %v6597, %v5183
      %v6614 = vmax.f32 %v6598, %v5184
      %v6615 = vmax.f32 %v6599, %v5185
      %v6616 = vmax.f32 %v6600, %v5174
      %v6617 = vmax.f32 %v6601, %v5175
      %v6618 = vmax.f32 %v6602, %v5176
      %v6619 = vmax.f32 %v6603, %v5177
      %v6620 = vmax.f32 %v6604, %v5178
      %v6621 = vmax.f32 %v6605, %v5179
      %v6622 = vmax.f32 %v6606, %v5180
      %v6623 = vmax.f32 %v6607, %v5181
      %v6624 = vmax.f32 %v6608, %v5182
      %v6625 = vmax.f32 %v6609, %v5183
      %v6626 = vmax.f32 %v6610, %v5184
      %v6627 = vmax.f32 %v6611, %v5185
      %v6628 = vmax.f32 %v6612, %v5186
      %v6629 = vmax.f32 %v6613, %v5187
      %v6630 = vmax.f32 %v6614, %v5188
      %v6631 = vmax.f32 %v6615, %v5189
      %v6632 = vmax.f32 %v6616, %v5176
      %v6633 = vmax.f32 %v6617, %v5177
      %v6634 = vmax.f32 %v6618, %v5178
      %v6635 = vmax.f32 %v6619, %v5179
      %v6636 = vmax.f32 %v6620, %v5180
      %v6637 = vmax.f32 %v6621, %v5181
      %v6638 = vmax.f32 %v6622, %v5182
      %v6639 = vmax.f32 %v6623, %v5183
      %v6640 = vmax.f32 %v6624, %v5184
      %v6641 = vmax.f32 %v6625, %v5185
      %v6642 = vmax.f32 %v6626, %v5186
      %v6643 = vmax.f32 %v6627, %v5187
      %v6644 = vmax.f32 %v6628, %v5188
      %v6645 = vmax.f32 %v6629, %v5189
      %v6646 = vmax.f32 %v6630, %v5190
      %v6647 = vmax.f32 %v6631, %v5191
      %v6648 = vmax.f32 %v6632, %v5178
      %v6649 = vmax.f32 %v6633, %v5179
      %v6650 = vmax.f32 %v6634, %v5180
      %v6651 = vmax.f32 %v6635, %v5181
      %v6652 = vmax.f32 %v6636, %v5182
      %v6653 = vmax.f32 %v6637, %v5183
      %v6654 = vmax.f32 %v6638, %v5184
      %v6655 = vmax.f32 %v6639, %v5185
      %v6656 = vmax.f32 %v6640, %v5186
      %v6657 = vmax.f32 %v6641, %v5187
      %v6658 = vmax.f32 %v6642, %v5188
      %v6659 = vmax.f32 %v6643, %v5189
      %v6660 = vmax.f32 %v6644, %v5190
      %v6661 = vmax.f32 %v6645, %v5191
      %v6662 = vmax.f32 %v6646, %v5192
      %v6663 = vmax.f32 %v6647, %v5193
      %v6664 = vmax.f32 %v6648, %v5180
      %v6665 = vmax.f32 %v6649, %v5181
      %v6666 = vmax.f32 %v6650, %v5182
      %v6667 = vmax.f32 %v6651, %v5183
      %v6668 = vmax.f32 %v6652, %v5184
      %v6669 = vmax.f32 %v6653, %v5185
      %v6670 = vmax.f32 %v6654, %v5186
      %v6671 = vmax.f32 %v6655, %v5187
      %v6672 = vmax.f32 %v6656, %v5188
      %v6673 = vmax.f32 %v6657, %v5189
      %v6674 = vmax.f32 %v6658, %v5190
      %v6675 = vmax.f32 %v6659, %v5191
      %v6676 = vmax.f32 %v6660, %v5192
      %v6677 = vmax.f32 %v6661, %v5193
      %v6678 = vmax.f32 %v6662, %v5194
      %v6679 = vmax.f32 %v6663, %v5195
      %v6680 = vmax.f32 %v6460, %v6448
      %v6681 = vmax.f32 %v6461, %v6449
      %v6682 = vmax.f32 %v6462, %v6450
      %v6683 = vmax.f32 %v6463, %v6451
      %v6684 = vmax.f32 %v6464, %v6452
      %v6685 = vmax.f32 %v6465, %v6453
      %v6686 = vmax.f32 %v6466, %v6454
      %v6687 = vmax.f32 %v6467, %v6455
      %v6688 = vmax.f32 %v6468, %v6456
      %v6689 = vmax.f32 %v6469, %v6457
      %v6690 = vmax.f32 %v6470, %v6458
      %v6691 = vmax.f32 %v6471, %v6459
      %v6692 = vmax.f32 %v6472, %v6460
      %v6693 = vmax.f32 %v6473, %v6461
      %v6694 = vmax.f32 %v6474, %v6462
      %v6695 = vmax.f32 %v6475, %v6463
      %v6696 = vmax.f32 %v6680, %v6450
      %v6697 = vmax.f32 %v6681, %v6451
      %v6698 = vmax.f32 %v6682, %v6452
      %v6699 = vmax.f32 %v6683, %v6453
      %v6700 = vmax.f32 %v6684, %v6454
      %v6701 = vmax.f32 %v6685, %v6455
      %v6702 = vmax.f32 %v6686, %v6456
      %v6703 = vmax.f32 %v6687, %v6457
      %v6704 = vmax.f32 %v6688, %v6458
      %v6705 = vmax.f32 %v6689, %v6459
      %v6706 = vmax.f32 %v6690, %v6460
      %v6707 = vmax.f32 %v6691, %v6461
      %v6708 = vmax.f32 %v6692, %v6462
      %v6709 = vmax.f32 %v6693, %v6463
      %v6710 = vmax.f32 %v6694, %v6464
      %v6711 = vmax.f32 %v6695, %v6465
      %v6712 = vmax.f32 %v6696, %v6452
      %v6713 = vmax.f32 %v6697, %v6453
      %v6714 = vmax.f32 %v6698, %v6454
      %v6715 = vmax.f32 %v6699, %v6455
      %v6716 = vmax.f32 %v6700, %v6456
      %v6717 = vmax.f32 %v6701, %v6457
      %v6718 = vmax.f32 %v6702, %v6458
      %v6719 = vmax.f32 %v6703, %v6459
      %v6720 = vmax.f32 %v6704, %v6460
      %v6721 = vmax.f32 %v6705, %v6461
      %v6722 = vmax.f32 %v6706, %v6462
      %v6723 = vmax.f32 %v6707, %v6463
      %v6724 = vmax.f32 %v6708, %v6464
      %v6725 = vmax.f32 %v6709, %v6465
      %v6726 = vmax.f32 %v6710, %v6466
      %v6727 = vmax.f32 %v6711, %v6467
      %v6728 = vmax.f32 %v6712, %v6454
      %v6729 = vmax.f32 %v6713, %v6455
      %v6730 = vmax.f32 %v6714, %v6456
      %v6731 = vmax.f32 %v6715, %v6457
      %v6732 = vmax.f32 %v6716, %v6458
      %v6733 = vmax.f32 %v6717, %v6459
      %v6734 = vmax.f32 %v6718, %v6460
      %v6735 = vmax.f32 %v6719, %v6461
      %v6736 = vmax.f32 %v6720, %v6462
      %v6737 = vmax.f32 %v6721, %v6463
      %v6738 = vmax.f32 %v6722, %v6464
      %v6739 = vmax.f32 %v6723, %v6465
      %v6740 = vmax.f32 %v6724, %v6466
      %v6741 = vmax.f32 %v6725, %v6467
      %v6742 = vmax.f32 %v6726, %v6468
      %v6743 = vmax.f32 %v6727, %v6469
      %v6744 = vmax.f32 %v6728, %v6456
      %v6745 = vmax.f32 %v6729, %v6457
      %v6746 = vmax.f32 %v6730, %v6458
      %v6747 = vmax.f32 %v6731, %v6459
      %v6748 = vmax.f32 %v6732, %v6460
      %v6749 = vmax.f32 %v6733, %v6461
      %v6750 = vmax.f32 %v6734, %v6462
      %v6751 = vmax.f32 %v6735, %v6463
      %v6752 = vmax.f32 %v6736, %v6464
      %v6753 = vmax.f32 %v6737, %v6465
      %v6754 = vmax.f32 %v6738, %v6466
      %v6755 = vmax.f32 %v6739, %v6467
      %v6756 = vmax.f32 %v6740, %v6468
      %v6757 = vmax.f32 %v6741, %v6469
      %v6758 = vmax.f32 %v6742, %v6470
      %v6759 = vmax.f32 %v6743, %v6471
      %v6760 = vmax.f32 %v6744, %v6458
      %v6761 = vmax.f32 %v6745, %v6459
      %v6762 = vmax.f32 %v6746, %v6460
      %v6763 = vmax.f32 %v6747, %v6461
      %v6764 = vmax.f32 %v6748, %v6462
      %v6765 = vmax.f32 %v6749, %v6463
      %v6766 = vmax.f32 %v6750, %v6464
      %v6767 = vmax.f32 %v6751, %v6465
      %v6768 = vmax.f32 %v6752, %v6466
      %v6769 = vmax.f32 %v6753, %v6467
      %v6770 = vmax.f32 %v6754, %v6468
      %v6771 = vmax.f32 %v6755, %v6469
      %v6772 = vmax.f32 %v6756, %v6470
      %v6773 = vmax.f32 %v6757, %v6471
      %v6774 = vmax.f32 %v6758, %v6472
      %v6775 = vmax.f32 %v6759, %v6473
      %v6776 = vmax.f32 %v6760, %v6462
      %v6777 = vmax.f32 %v6761, %v6463
      %v6778 = vmax.f32 %v6762, %v6464
      %v6779 = vmax.f32 %v6763, %v6465
      %v6780 = vmax.f32 %v6764, %v6466
      %v6781 = vmax.f32 %v6765, %v6467
      %v6782 = vmax.f32 %v6766, %v6468
      %v6783 = vmax.f32 %v6767, %v6469
      %v6784 = vmax.f32 %v6768, %v6470
      %v6785 = vmax.f32 %v6769, %v6471
      %v6786 = vmax.f32 %v6770, %v6472
      %v6787 = vmax.f32 %v6771, %v6473
      %v6788 = vmax.f32 %v6772, %v6474
      %v6789 = vmax.f32 %v6773, %v6475
      %v6790 = vmax.f32 %v6774, %v6476
      %v6791 = vmax.f32 %v6775, %v6477
      %v6792 = vmax.f32 %v6776, %v6464
      %v6793 = vmax.f32 %v6777, %v6465
      %v6794 = vmax.f32 %v6778, %v6466
      %v6795 = vmax.f32 %v6779, %v6467
      %v6796 = vmax.f32 %v6780, %v6468
      %v6797 = vmax.f32 %v6781, %v6469
      %v6798 = vmax.f32 %v6782, %v6470
      %v6799 = vmax.f32 %v6783, %v6471
      %v6800 = vmax.f32 %v6784, %v6472
      %v6801 = vmax.f32 %v6785, %v6473
      %v6802 = vmax.f32 %v6786, %v6474
      %v6803 = vmax.f32 %v6787, %v6475
      %v6804 = vmax.f32 %v6788, %v6476
      %v6805 = vmax.f32 %v6789, %v6477
      %v6806 = vmax.f32 %v6790, %v6478
      %v6807 = vmax.f32 %v6791, %v6479
      %v6808 = vmax.f32 %v6792, %v6466
      %v6809 = vmax.f32 %v6793, %v6467
      %v6810 = vmax.f32 %v6794, %v6468
      %v6811 = vmax.f32 %v6795, %v6469
      %v6812 = vmax.f32 %v6796, %v6470
      %v6813 = vmax.f32 %v6797, %v6471
      %v6814 = vmax.f32 %v6798, %v6472
      %v6815 = vmax.f32 %v6799, %v6473
      %v6816 = vmax.f32 %v6800, %v6474
      %v6817 = vmax.f32 %v6801, %v6475
      %v6818 = vmax.f32 %v6802, %v6476
      %v6819 = vmax.f32 %v6803, %v6477
      %v6820 = vmax.f32 %v6804, %v6478
      %v6821 = vmax.f32 %v6805, %v6479
      %v6822 = vmax.f32 %v6806, %v6480
      %v6823 = vmax.f32 %v6807, %v6481
      %v6824 = vmax.f32 %v6808, %v6468
      %v6825 = vmax.f32 %v6809, %v6469
      %v6826 = vmax.f32 %v6810, %v6470
      %v6827 = vmax.f32 %v6811, %v6471
      %v6828 = vmax.f32 %v6812, %v6472
      %v6829 = vmax.f32 %v6813, %v6473
      %v6830 = vmax.f32 %v6814, %v6474
      %v6831 = vmax.f32 %v6815, %v6475
      %v6832 = vmax.f32 %v6816, %v6476
      %v6833 = vmax.f32 %v6817, %v6477
      %v6834 = vmax.f32 %v6818, %v6478
      %v6835 = vmax.f32 %v6819, %v6479
      %v6836 = vmax.f32 %v6820, %v6480
      %v6837 = vmax.f32 %v6821, %v6481
      %v6838 = vmax.f32 %v6822, %v6482
      %v6839 = vmax.f32 %v6823, %v6483
      %v6840 = vmax.f32 %v6824, %v6470
      %v6841 = vmax.f32 %v6825, %v6471
      %v6842 = vmax.f32 %v6826, %v6472
      %v6843 = vmax.f32 %v6827, %v6473
      %v6844 = vmax.f32 %v6828, %v6474
      %v6845 = vmax.f32 %v6829, %v6475
      %v6846 = vmax.f32 %v6830, %v6476
      %v6847 = vmax.f32 %v6831, %v6477
      %v6848 = vmax.f32 %v6832, %v6478
      %v6849 = vmax.f32 %v6833, %v6479
      %v6850 = vmax.f32 %v6834, %v6480
      %v6851 = vmax.f32 %v6835, %v6481
      %v6852 = vmax.f32 %v6836, %v6482
      %v6853 = vmax.f32 %v6837, %v6483
      %v6854 = vmax.f32 %v6838, %v6484
      %v6855 = vmax.f32 %v6839, %v6485
      %v6856 = vmax.f32 %v6840, %v6472
      %v6857 = vmax.f32 %v6841, %v6473
      %v6858 = vmax.f32 %v6842, %v6474
      %v6859 = vmax.f32 %v6843, %v6475
      %v6860 = vmax.f32 %v6844, %v6476
      %v6861 = vmax.f32 %v6845, %v6477
      %v6862 = vmax.f32 %v6846, %v6478
      %v6863 = vmax.f32 %v6847, %v6479
      %v6864 = vmax.f32 %v6848, %v6480
      %v6865 = vmax.f32 %v6849, %v6481
      %v6866 = vmax.f32 %v6850, %v6482
      %v6867 = vmax.f32 %v6851, %v6483
      %v6868 = vmax.f32 %v6852, %v6484
      %v6869 = vmax.f32 %v6853, %v6485
      %v6870 = vmax.f32 %v6854, %v6486
      %v6871 = vmax.f32 %v6855, %v6487
      %v6872 = vld [vmem:[%s5] sm:$0x1]
      %v6873 = vld [vmem:[%s4] sm:$0xf]
      %vm6874 = vcmask 31744
      %v6876 = vsel %vm6874, %v1393, 0
      %v6879 = vsel %vm6874, %v1394, 0
      %v6882 = vsel %vm6874, %v1395, 0
      %v6885 = vsel %vm6874, %v1396, 0
      %v6888 = vsel %vm6874, %v1397, 0
      %v6891 = vsel %vm6874, %v1398, 0
      %v6894 = vsel %vm6874, %v1399, 0
      %v6897 = vsel %vm6874, %v1400, 0
      %v6900 = vsel %vm6874, %v1401, 0
      %v6903 = vsel %vm6874, %v1402, 0
      %v6906 = vsel %vm6874, %v1403, 0
      %v6909 = vsel %vm6874, %v1404, 0
      %v6912 = vsel %vm6874, %v1405, 0
      %v6915 = vsel %vm6874, %v1406, 0
      %v6918 = vsel %vm6874, %v1407, 0
      %v6921 = vsel %vm6874, %v1408, 0
      %v6924 = vsel %vm4676, %v6873, 0
      %6926 = vmatpush.msra.mxu0 0.0
      %6927 = vmatpush.msra.mxu0 0.0
      %6928 = vmatpush.msra.mxu0 0.0
      %6929 = vmatpush.msra.mxu0 0.0
      %6930 = vmatpush.msra.mxu0 0.0
      %6931 = vmatpush.msra.mxu0 0.0
      %6932 = vmatpush.msra.mxu0 0.0
      %6933 = vmatpush.msra.mxu0 0.0
      %6934 = vmatpush.msra.mxu0 0.0
      %6935 = vmatpush.msra.mxu0 0.0
      %6936 = vmatpush.msra.mxu0 0.0
      %6937 = vmatpush.msra.mxu0 0.0
      %6938 = vmatpush.msra.mxu0 0.0
      %6939 = vmatpush.msra.mxu0 0.0
      %6940 = vmatpush.msra.mxu0 0.0
      %6941 = vmatpush.msra.mxu0 %v6924
      %6942 = vmatmul.f32.gmra.mxu0 %v6876
      %v6943 = vpop.f32.mrf.mxu0
      %v6944 = vadd.f32 0.0, %v6943
      %6945 = vmatmul.f32.gmra.mxu0 %v6879
      %v6946 = vpop.f32.mrf.mxu0
      %v6947 = vadd.f32 0.0, %v6946
      %6948 = vmatmul.f32.gmra.mxu0 %v6882
      %v6949 = vpop.f32.mrf.mxu0
      %v6950 = vadd.f32 0.0, %v6949
      %6951 = vmatmul.f32.gmra.mxu0 %v6885
      %v6952 = vpop.f32.mrf.mxu0
      %v6953 = vadd.f32 0.0, %v6952
      %6954 = vmatmul.f32.gmra.mxu0 %v6888
      %v6955 = vpop.f32.mrf.mxu0
      %v6956 = vadd.f32 0.0, %v6955
      %6957 = vmatmul.f32.gmra.mxu0 %v6891
      %v6958 = vpop.f32.mrf.mxu0
      %v6959 = vadd.f32 0.0, %v6958
      %6960 = vmatmul.f32.gmra.mxu0 %v6894
      %v6961 = vpop.f32.mrf.mxu0
      %v6962 = vadd.f32 0.0, %v6961
      %6963 = vmatmul.f32.gmra.mxu0 %v6897
      %v6964 = vpop.f32.mrf.mxu0
      %v6965 = vadd.f32 0.0, %v6964
      %6966 = vmatmul.f32.gmra.mxu0 %v6900
      %v6967 = vpop.f32.mrf.mxu0
      %v6968 = vadd.f32 0.0, %v6967
      %6969 = vmatmul.f32.gmra.mxu0 %v6903
      %v6970 = vpop.f32.mrf.mxu0
      %v6971 = vadd.f32 0.0, %v6970
      %6972 = vmatmul.f32.gmra.mxu0 %v6906
      %v6973 = vpop.f32.mrf.mxu0
      %v6974 = vadd.f32 0.0, %v6973
      %6975 = vmatmul.f32.gmra.mxu0 %v6909
      %v6976 = vpop.f32.mrf.mxu0
      %v6977 = vadd.f32 0.0, %v6976
      %6978 = vmatmul.f32.gmra.mxu0 %v6912
      %v6979 = vpop.f32.mrf.mxu0
      %v6980 = vadd.f32 0.0, %v6979
      %6981 = vmatmul.f32.gmra.mxu0 %v6915
      %v6982 = vpop.f32.mrf.mxu0
      %v6983 = vadd.f32 0.0, %v6982
      %6984 = vmatmul.f32.gmra.mxu0 %v6918
      %v6985 = vpop.f32.mrf.mxu0
      %v6986 = vadd.f32 0.0, %v6985
      %6987 = vmatmul.f32.gmra.mxu0 %v6921
      %v6988 = vpop.f32.mrf.mxu0
      %v6989 = vadd.f32 0.0, %v6988
      %6990 = vdwg.mxu0
      %v6992 = vperm.slane %v6872, 0
      %v6994 = vadd.f32 %v6992, %v6944
      %v6995 = vadd.f32 %v6992, %v6947
      %v6996 = vadd.f32 %v6992, %v6950
      %v6997 = vadd.f32 %v6992, %v6953
      %v6998 = vadd.f32 %v6992, %v6956
      %v6999 = vadd.f32 %v6992, %v6959
      %v7000 = vadd.f32 %v6992, %v6962
      %v7001 = vadd.f32 %v6992, %v6965
      %v7002 = vadd.f32 %v6992, %v6968
      %v7003 = vadd.f32 %v6992, %v6971
      %v7004 = vadd.f32 %v6992, %v6974
      %v7005 = vadd.f32 %v6992, %v6977
      %v7006 = vadd.f32 %v6992, %v6980
      %v7007 = vadd.f32 %v6992, %v6983
      %v7008 = vadd.f32 %v6992, %v6986
      %v7009 = vadd.f32 %v6992, %v6989
      %s7010 = scalar_lea.vmem %s4, 4
      %v7011 = vld [vmem:[%s7010] sm:$0xf]
      %v7013 = vsel %vm6874, %v6536, 0
      %v7016 = vsel %vm6874, %v6537, 0
      %v7019 = vsel %vm6874, %v6538, 0
      %v7022 = vsel %vm6874, %v6539, 0
      %v7025 = vsel %vm6874, %v6540, 0
      %v7028 = vsel %vm6874, %v6541, 0
      %v7031 = vsel %vm6874, %v6542, 0
      %v7034 = vsel %vm6874, %v6543, 0
      %v7037 = vsel %vm6874, %v6544, 0
      %v7040 = vsel %vm6874, %v6545, 0
      %v7043 = vsel %vm6874, %v6546, 0
      %v7046 = vsel %vm6874, %v6547, 0
      %v7049 = vsel %vm6874, %v6548, 0
      %v7052 = vsel %vm6874, %v6549, 0
      %v7055 = vsel %vm6874, %v6550, 0
      %v7058 = vsel %vm6874, %v6551, 0
      %v7061 = vsel %vm4676, %v7011, 0
      %7063 = vmatpush.msra.mxu0 0.0
      %7064 = vmatpush.msra.mxu0 0.0
      %7065 = vmatpush.msra.mxu0 0.0
      %7066 = vmatpush.msra.mxu0 0.0
      %7067 = vmatpush.msra.mxu0 0.0
      %7068 = vmatpush.msra.mxu0 0.0
      %7069 = vmatpush.msra.mxu0 0.0
      %7070 = vmatpush.msra.mxu0 0.0
      %7071 = vmatpush.msra.mxu0 0.0
      %7072 = vmatpush.msra.mxu0 0.0
      %7073 = vmatpush.msra.mxu0 0.0
      %7074 = vmatpush.msra.mxu0 0.0
      %7075 = vmatpush.msra.mxu0 0.0
      %7076 = vmatpush.msra.mxu0 0.0
      %7077 = vmatpush.msra.mxu0 0.0
      %7078 = vmatpush.msra.mxu0 %v7061
      %7079 = vmatmul.f32.gmra.mxu0 %v7013
      %v7080 = vpop.f32.mrf.mxu0
      %v7081 = vadd.f32 0.0, %v7080
      %7082 = vmatmul.f32.gmra.mxu0 %v7016
      %v7083 = vpop.f32.mrf.mxu0
      %v7084 = vadd.f32 0.0, %v7083
      %7085 = vmatmul.f32.gmra.mxu0 %v7019
      %v7086 = vpop.f32.mrf.mxu0
      %v7087 = vadd.f32 0.0, %v7086
      %7088 = vmatmul.f32.gmra.mxu0 %v7022
      %v7089 = vpop.f32.mrf.mxu0
      %v7090 = vadd.f32 0.0, %v7089
      %7091 = vmatmul.f32.gmra.mxu0 %v7025
      %v7092 = vpop.f32.mrf.mxu0
      %v7093 = vadd.f32 0.0, %v7092
      %7094 = vmatmul.f32.gmra.mxu0 %v7028
      %v7095 = vpop.f32.mrf.mxu0
      %v7096 = vadd.f32 0.0, %v7095
      %7097 = vmatmul.f32.gmra.mxu0 %v7031
      %v7098 = vpop.f32.mrf.mxu0
      %v7099 = vadd.f32 0.0, %v7098
      %7100 = vmatmul.f32.gmra.mxu0 %v7034
      %v7101 = vpop.f32.mrf.mxu0
      %v7102 = vadd.f32 0.0, %v7101
      %7103 = vmatmul.f32.gmra.mxu0 %v7037
      %v7104 = vpop.f32.mrf.mxu0
      %v7105 = vadd.f32 0.0, %v7104
      %7106 = vmatmul.f32.gmra.mxu0 %v7040
      %v7107 = vpop.f32.mrf.mxu0
      %v7108 = vadd.f32 0.0, %v7107
      %7109 = vmatmul.f32.gmra.mxu0 %v7043
      %v7110 = vpop.f32.mrf.mxu0
      %v7111 = vadd.f32 0.0, %v7110
      %7112 = vmatmul.f32.gmra.mxu0 %v7046
      %v7113 = vpop.f32.mrf.mxu0
      %v7114 = vadd.f32 0.0, %v7113
      %7115 = vmatmul.f32.gmra.mxu0 %v7049
      %v7116 = vpop.f32.mrf.mxu0
      %v7117 = vadd.f32 0.0, %v7116
      %7118 = vmatmul.f32.gmra.mxu0 %v7052
      %v7119 = vpop.f32.mrf.mxu0
      %v7120 = vadd.f32 0.0, %v7119
      %7121 = vmatmul.f32.gmra.mxu0 %v7055
      %v7122 = vpop.f32.mrf.mxu0
      %v7123 = vadd.f32 0.0, %v7122
      %7124 = vmatmul.f32.gmra.mxu0 %v7058
      %v7125 = vpop.f32.mrf.mxu0
      %v7126 = vadd.f32 0.0, %v7125
      %7127 = vdwg.mxu0
      %v7128 = vadd.f32 %v6994, %v7081
      %v7129 = vadd.f32 %v6995, %v7084
      %v7130 = vadd.f32 %v6996, %v7087
      %v7131 = vadd.f32 %v6997, %v7090
      %v7132 = vadd.f32 %v6998, %v7093
      %v7133 = vadd.f32 %v6999, %v7096
      %v7134 = vadd.f32 %v7000, %v7099
      %v7135 = vadd.f32 %v7001, %v7102
      %v7136 = vadd.f32 %v7002, %v7105
      %v7137 = vadd.f32 %v7003, %v7108
      %v7138 = vadd.f32 %v7004, %v7111
      %v7139 = vadd.f32 %v7005, %v7114
      %v7140 = vadd.f32 %v7006, %v7117
      %v7141 = vadd.f32 %v7007, %v7120
      %v7142 = vadd.f32 %v7008, %v7123
      %v7143 = vadd.f32 %v7009, %v7126
      %s7144 = scalar_lea.vmem %s4, 8
      %v7145 = vld [vmem:[%s7144] sm:$0xf]
      %v7147 = vsel %vm6874, %v6664, 0
      %v7150 = vsel %vm6874, %v6665, 0
      %v7153 = vsel %vm6874, %v6666, 0
      %v7156 = vsel %vm6874, %v6667, 0
      %v7159 = vsel %vm6874, %v6668, 0
      %v7162 = vsel %vm6874, %v6669, 0
      %v7165 = vsel %vm6874, %v6670, 0
      %v7168 = vsel %vm6874, %v6671, 0
      %v7171 = vsel %vm6874, %v6672, 0
      %v7174 = vsel %vm6874, %v6673, 0
      %v7177 = vsel %vm6874, %v6674, 0
      %v7180 = vsel %vm6874, %v6675, 0
      %v7183 = vsel %vm6874, %v6676, 0
      %v7186 = vsel %vm6874, %v6677, 0
      %v7189 = vsel %vm6874, %v6678, 0
      %v7192 = vsel %vm6874, %v6679, 0
      %v7195 = vsel %vm4676, %v7145, 0
      %7197 = vmatpush.msra.mxu0 0.0
      %7198 = vmatpush.msra.mxu0 0.0
      %7199 = vmatpush.msra.mxu0 0.0
      %7200 = vmatpush.msra.mxu0 0.0
      %7201 = vmatpush.msra.mxu0 0.0
      %7202 = vmatpush.msra.mxu0 0.0
      %7203 = vmatpush.msra.mxu0 0.0
      %7204 = vmatpush.msra.mxu0 0.0
      %7205 = vmatpush.msra.mxu0 0.0
      %7206 = vmatpush.msra.mxu0 0.0
      %7207 = vmatpush.msra.mxu0 0.0
      %7208 = vmatpush.msra.mxu0 0.0
      %7209 = vmatpush.msra.mxu0 0.0
      %7210 = vmatpush.msra.mxu0 0.0
      %7211 = vmatpush.msra.mxu0 0.0
      %7212 = vmatpush.msra.mxu0 %v7195
      %7213 = vmatmul.f32.gmra.mxu0 %v7147
      %v7214 = vpop.f32.mrf.mxu0
      %v7215 = vadd.f32 0.0, %v7214
      %7216 = vmatmul.f32.gmra.mxu0 %v7150
      %v7217 = vpop.f32.mrf.mxu0
      %v7218 = vadd.f32 0.0, %v7217
      %7219 = vmatmul.f32.gmra.mxu0 %v7153
      %v7220 = vpop.f32.mrf.mxu0
      %v7221 = vadd.f32 0.0, %v7220
      %7222 = vmatmul.f32.gmra.mxu0 %v7156
      %v7223 = vpop.f32.mrf.mxu0
      %v7224 = vadd.f32 0.0, %v7223
      %7225 = vmatmul.f32.gmra.mxu0 %v7159
      %v7226 = vpop.f32.mrf.mxu0
      %v7227 = vadd.f32 0.0, %v7226
      %7228 = vmatmul.f32.gmra.mxu0 %v7162
      %v7229 = vpop.f32.mrf.mxu0
      %v7230 = vadd.f32 0.0, %v7229
      %7231 = vmatmul.f32.gmra.mxu0 %v7165
      %v7232 = vpop.f32.mrf.mxu0
      %v7233 = vadd.f32 0.0, %v7232
      %7234 = vmatmul.f32.gmra.mxu0 %v7168
      %v7235 = vpop.f32.mrf.mxu0
      %v7236 = vadd.f32 0.0, %v7235
      %7237 = vmatmul.f32.gmra.mxu0 %v7171
      %v7238 = vpop.f32.mrf.mxu0
      %v7239 = vadd.f32 0.0, %v7238
      %7240 = vmatmul.f32.gmra.mxu0 %v7174
      %v7241 = vpop.f32.mrf.mxu0
      %v7242 = vadd.f32 0.0, %v7241
      %7243 = vmatmul.f32.gmra.mxu0 %v7177
      %v7244 = vpop.f32.mrf.mxu0
      %v7245 = vadd.f32 0.0, %v7244
      %7246 = vmatmul.f32.gmra.mxu0 %v7180
      %v7247 = vpop.f32.mrf.mxu0
      %v7248 = vadd.f32 0.0, %v7247
      %7249 = vmatmul.f32.gmra.mxu0 %v7183
      %v7250 = vpop.f32.mrf.mxu0
      %v7251 = vadd.f32 0.0, %v7250
      %7252 = vmatmul.f32.gmra.mxu0 %v7186
      %v7253 = vpop.f32.mrf.mxu0
      %v7254 = vadd.f32 0.0, %v7253
      %7255 = vmatmul.f32.gmra.mxu0 %v7189
      %v7256 = vpop.f32.mrf.mxu0
      %v7257 = vadd.f32 0.0, %v7256
      %7258 = vmatmul.f32.gmra.mxu0 %v7192
      %v7259 = vpop.f32.mrf.mxu0
      %v7260 = vadd.f32 0.0, %v7259
      %7261 = vdwg.mxu0
      %v7262 = vadd.f32 %v7128, %v7215
      %v7263 = vadd.f32 %v7129, %v7218
      %v7264 = vadd.f32 %v7130, %v7221
      %v7265 = vadd.f32 %v7131, %v7224
      %v7266 = vadd.f32 %v7132, %v7227
      %v7267 = vadd.f32 %v7133, %v7230
      %v7268 = vadd.f32 %v7134, %v7233
      %v7269 = vadd.f32 %v7135, %v7236
      %v7270 = vadd.f32 %v7136, %v7239
      %v7271 = vadd.f32 %v7137, %v7242
      %v7272 = vadd.f32 %v7138, %v7245
      %v7273 = vadd.f32 %v7139, %v7248
      %v7274 = vadd.f32 %v7140, %v7251
      %v7275 = vadd.f32 %v7141, %v7254
      %v7276 = vadd.f32 %v7142, %v7257
      %v7277 = vadd.f32 %v7143, %v7260
      %s7278 = scalar_lea.vmem %s4, 12
      %v7279 = vld [vmem:[%s7278] sm:$0xf]
      %v7281 = vsel %vm6874, %v6856, 0
      %v7284 = vsel %vm6874, %v6857, 0
      %v7287 = vsel %vm6874, %v6858, 0
      %v7290 = vsel %vm6874, %v6859, 0
      %v7293 = vsel %vm6874, %v6860, 0
      %v7296 = vsel %vm6874, %v6861, 0
      %v7299 = vsel %vm6874, %v6862, 0
      %v7302 = vsel %vm6874, %v6863, 0
      %v7305 = vsel %vm6874, %v6864, 0
      %v7308 = vsel %vm6874, %v6865, 0
      %v7311 = vsel %vm6874, %v6866, 0
      %v7314 = vsel %vm6874, %v6867, 0
      %v7317 = vsel %vm6874, %v6868, 0
      %v7320 = vsel %vm6874, %v6869, 0
      %v7323 = vsel %vm6874, %v6870, 0
      %v7326 = vsel %vm6874, %v6871, 0
      %v7329 = vsel %vm4676, %v7279, 0
      %7331 = vmatpush.msra.mxu0 0.0
      %7332 = vmatpush.msra.mxu0 0.0
      %7333 = vmatpush.msra.mxu0 0.0
      %7334 = vmatpush.msra.mxu0 0.0
      %7335 = vmatpush.msra.mxu0 0.0
      %7336 = vmatpush.msra.mxu0 0.0
      %7337 = vmatpush.msra.mxu0 0.0
      %7338 = vmatpush.msra.mxu0 0.0
      %7339 = vmatpush.msra.mxu0 0.0
      %7340 = vmatpush.msra.mxu0 0.0
      %7341 = vmatpush.msra.mxu0 0.0
      %7342 = vmatpush.msra.mxu0 0.0
      %7343 = vmatpush.msra.mxu0 0.0
      %7344 = vmatpush.msra.mxu0 0.0
      %7345 = vmatpush.msra.mxu0 0.0
      %7346 = vmatpush.msra.mxu0 %v7329
      %7347 = vmatmul.f32.gmra.mxu0 %v7281
      %v7348 = vpop.f32.mrf.mxu0
      %v7349 = vadd.f32 0.0, %v7348
      %7350 = vmatmul.f32.gmra.mxu0 %v7284
      %v7351 = vpop.f32.mrf.mxu0
      %v7352 = vadd.f32 0.0, %v7351
      %7353 = vmatmul.f32.gmra.mxu0 %v7287
      %v7354 = vpop.f32.mrf.mxu0
      %v7355 = vadd.f32 0.0, %v7354
      %7356 = vmatmul.f32.gmra.mxu0 %v7290
      %v7357 = vpop.f32.mrf.mxu0
      %v7358 = vadd.f32 0.0, %v7357
      %7359 = vmatmul.f32.gmra.mxu0 %v7293
      %v7360 = vpop.f32.mrf.mxu0
      %v7361 = vadd.f32 0.0, %v7360
      %7362 = vmatmul.f32.gmra.mxu0 %v7296
      %v7363 = vpop.f32.mrf.mxu0
      %v7364 = vadd.f32 0.0, %v7363
      %7365 = vmatmul.f32.gmra.mxu0 %v7299
      %v7366 = vpop.f32.mrf.mxu0
      %v7367 = vadd.f32 0.0, %v7366
      %7368 = vmatmul.f32.gmra.mxu0 %v7302
      %v7369 = vpop.f32.mrf.mxu0
      %v7370 = vadd.f32 0.0, %v7369
      %7371 = vmatmul.f32.gmra.mxu0 %v7305
      %v7372 = vpop.f32.mrf.mxu0
      %v7373 = vadd.f32 0.0, %v7372
      %7374 = vmatmul.f32.gmra.mxu0 %v7308
      %v7375 = vpop.f32.mrf.mxu0
      %v7376 = vadd.f32 0.0, %v7375
      %7377 = vmatmul.f32.gmra.mxu0 %v7311
      %v7378 = vpop.f32.mrf.mxu0
      %v7379 = vadd.f32 0.0, %v7378
      %7380 = vmatmul.f32.gmra.mxu0 %v7314
      %v7381 = vpop.f32.mrf.mxu0
      %v7382 = vadd.f32 0.0, %v7381
      %7383 = vmatmul.f32.gmra.mxu0 %v7317
      %v7384 = vpop.f32.mrf.mxu0
      %v7385 = vadd.f32 0.0, %v7384
      %7386 = vmatmul.f32.gmra.mxu0 %v7320
      %v7387 = vpop.f32.mrf.mxu0
      %v7388 = vadd.f32 0.0, %v7387
      %7389 = vmatmul.f32.gmra.mxu0 %v7323
      %v7390 = vpop.f32.mrf.mxu0
      %v7391 = vadd.f32 0.0, %v7390
      %7392 = vmatmul.f32.gmra.mxu0 %v7326
      %v7393 = vpop.f32.mrf.mxu0
      %v7394 = vadd.f32 0.0, %v7393
      %7395 = vdwg.mxu0
      %v7396 = vadd.f32 %v7262, %v7349
      %v7397 = vadd.f32 %v7263, %v7352
      %v7398 = vadd.f32 %v7264, %v7355
      %v7399 = vadd.f32 %v7265, %v7358
      %v7400 = vadd.f32 %v7266, %v7361
      %v7401 = vadd.f32 %v7267, %v7364
      %v7402 = vadd.f32 %v7268, %v7367
      %v7403 = vadd.f32 %v7269, %v7370
      %v7404 = vadd.f32 %v7270, %v7373
      %v7405 = vadd.f32 %v7271, %v7376
      %v7406 = vadd.f32 %v7272, %v7379
      %v7407 = vadd.f32 %v7273, %v7382
      %v7408 = vadd.f32 %v7274, %v7385
      %v7409 = vadd.f32 %v7275, %v7388
      %v7410 = vadd.f32 %v7276, %v7391
      %v7411 = vadd.f32 %v7277, %v7394
      %v7412 = vxor.u32 %v7396, 2147483648
      %v7413 = vxor.u32 %v7397, 2147483648
      %v7414 = vxor.u32 %v7398, 2147483648
      %v7415 = vxor.u32 %v7399, 2147483648
      %v7416 = vxor.u32 %v7400, 2147483648
      %v7417 = vxor.u32 %v7401, 2147483648
      %v7418 = vxor.u32 %v7402, 2147483648
      %v7419 = vxor.u32 %v7403, 2147483648
      %v7420 = vxor.u32 %v7404, 2147483648
      %v7421 = vxor.u32 %v7405, 2147483648
      %v7422 = vxor.u32 %v7406, 2147483648
      %v7423 = vxor.u32 %v7407, 2147483648
      %v7424 = vxor.u32 %v7408, 2147483648
      %v7425 = vxor.u32 %v7409, 2147483648
      %v7426 = vxor.u32 %v7410, 2147483648
      %v7427 = vxor.u32 %v7411, 2147483648
      %v7428 = vmul.f32 %v7412, 1.442695
      %v7429 = vpow.pop %v7428
      %v7430 = vmul.f32 %v7413, 1.442695
      %v7431 = vpow.pop %v7430
      %v7432 = vmul.f32 %v7414, 1.442695
      %v7433 = vpow.pop %v7432
      %v7434 = vmul.f32 %v7415, 1.442695
      %v7435 = vpow.pop %v7434
      %v7436 = vmul.f32 %v7416, 1.442695
      %v7437 = vpow.pop %v7436
      %v7438 = vmul.f32 %v7417, 1.442695
      %v7439 = vpow.pop %v7438
      %v7440 = vmul.f32 %v7418, 1.442695
      %v7441 = vpow.pop %v7440
      %v7442 = vmul.f32 %v7419, 1.442695
      %v7443 = vpow.pop %v7442
      %v7444 = vmul.f32 %v7420, 1.442695
      %v7445 = vpow.pop %v7444
      %v7446 = vmul.f32 %v7421, 1.442695
      %v7447 = vpow.pop %v7446
      %v7448 = vmul.f32 %v7422, 1.442695
      %v7449 = vpow.pop %v7448
      %v7450 = vmul.f32 %v7423, 1.442695
      %v7451 = vpow.pop %v7450
      %v7452 = vmul.f32 %v7424, 1.442695
      %v7453 = vpow.pop %v7452
      %v7454 = vmul.f32 %v7425, 1.442695
      %v7455 = vpow.pop %v7454
      %v7456 = vmul.f32 %v7426, 1.442695
      %v7457 = vpow.pop %v7456
      %v7458 = vmul.f32 %v7427, 1.442695
      %v7459 = vpow.pop %v7458
      %v7460 = vadd.f32 %v7429, 1.0
      %v7461 = vadd.f32 %v7431, 1.0
      %v7462 = vadd.f32 %v7433, 1.0
      %v7463 = vadd.f32 %v7435, 1.0
      %v7464 = vadd.f32 %v7437, 1.0
      %v7465 = vadd.f32 %v7439, 1.0
      %v7466 = vadd.f32 %v7441, 1.0
      %v7467 = vadd.f32 %v7443, 1.0
      %v7468 = vadd.f32 %v7445, 1.0
      %v7469 = vadd.f32 %v7447, 1.0
      %v7470 = vadd.f32 %v7449, 1.0
      %v7471 = vadd.f32 %v7451, 1.0
      %v7472 = vadd.f32 %v7453, 1.0
      %v7473 = vadd.f32 %v7455, 1.0
      %v7474 = vadd.f32 %v7457, 1.0
      %v7475 = vadd.f32 %v7459, 1.0
      %v7476 = vrcp.pop %v7460
      %v7477 = vmul.f32 %v7460, %v7476
      %v7478 = vsub.f32 1.0, %v7477
      %v7479 = vmul.f32 %v7476, %v7478
      %v7480 = vadd.f32 %v7476, %v7479
      %vm7481 = vweird.f32 %v7460
      %vm7482 = vweird.f32 %v7476
      %vm7483 = vmor %vm7481, %vm7482
      %v7484 = vsel %vm7483, %v7476, %v7480
      %v7485 = vand.u32 2147483647, %v7460
      %vm7486 = vcmp.eq.f32.partialorder %v7485, 8.507059e+37
      %v7487 = vand.u32 %v7460, 2147483648
      %v7488 = vor.u32 1.1754944e-38, %v7487
      %v7489 = vsel %vm7486, %v7488, %v7484
      %v7490 = vmul.f32 1.0, %v7489
      %v7491 = vrcp.pop %v7461
      %v7492 = vmul.f32 %v7461, %v7491
      %v7493 = vsub.f32 1.0, %v7492
      %v7494 = vmul.f32 %v7491, %v7493
      %v7495 = vadd.f32 %v7491, %v7494
      %vm7496 = vweird.f32 %v7461
      %vm7497 = vweird.f32 %v7491
      %vm7498 = vmor %vm7496, %vm7497
      %v7499 = vsel %vm7498, %v7491, %v7495
      %v7500 = vand.u32 2147483647, %v7461
      %vm7501 = vcmp.eq.f32.partialorder %v7500, 8.507059e+37
      %v7502 = vand.u32 %v7461, 2147483648
      %v7503 = vor.u32 1.1754944e-38, %v7502
      %v7504 = vsel %vm7501, %v7503, %v7499
      %v7505 = vmul.f32 1.0, %v7504
      %v7506 = vrcp.pop %v7462
      %v7507 = vmul.f32 %v7462, %v7506
      %v7508 = vsub.f32 1.0, %v7507
      %v7509 = vmul.f32 %v7506, %v7508
      %v7510 = vadd.f32 %v7506, %v7509
      %vm7511 = vweird.f32 %v7462
      %vm7512 = vweird.f32 %v7506
      %vm7513 = vmor %vm7511, %vm7512
      %v7514 = vsel %vm7513, %v7506, %v7510
      %v7515 = vand.u32 2147483647, %v7462
      %vm7516 = vcmp.eq.f32.partialorder %v7515, 8.507059e+37
      %v7517 = vand.u32 %v7462, 2147483648
      %v7518 = vor.u32 1.1754944e-38, %v7517
      %v7519 = vsel %vm7516, %v7518, %v7514
      %v7520 = vmul.f32 1.0, %v7519
      %v7521 = vrcp.pop %v7463
      %v7522 = vmul.f32 %v7463, %v7521
      %v7523 = vsub.f32 1.0, %v7522
      %v7524 = vmul.f32 %v7521, %v7523
      %v7525 = vadd.f32 %v7521, %v7524
      %vm7526 = vweird.f32 %v7463
      %vm7527 = vweird.f32 %v7521
      %vm7528 = vmor %vm7526, %vm7527
      %v7529 = vsel %vm7528, %v7521, %v7525
      %v7530 = vand.u32 2147483647, %v7463
      %vm7531 = vcmp.eq.f32.partialorder %v7530, 8.507059e+37
      %v7532 = vand.u32 %v7463, 2147483648
      %v7533 = vor.u32 1.1754944e-38, %v7532
      %v7534 = vsel %vm7531, %v7533, %v7529
      %v7535 = vmul.f32 1.0, %v7534
      %v7536 = vrcp.pop %v7464
      %v7537 = vmul.f32 %v7464, %v7536
      %v7538 = vsub.f32 1.0, %v7537
      %v7539 = vmul.f32 %v7536, %v7538
      %v7540 = vadd.f32 %v7536, %v7539
      %vm7541 = vweird.f32 %v7464
      %vm7542 = vweird.f32 %v7536
      %vm7543 = vmor %vm7541, %vm7542
      %v7544 = vsel %vm7543, %v7536, %v7540
      %v7545 = vand.u32 2147483647, %v7464
      %vm7546 = vcmp.eq.f32.partialorder %v7545, 8.507059e+37
      %v7547 = vand.u32 %v7464, 2147483648
      %v7548 = vor.u32 1.1754944e-38, %v7547
      %v7549 = vsel %vm7546, %v7548, %v7544
      %v7550 = vmul.f32 1.0, %v7549
      %v7551 = vrcp.pop %v7465
      %v7552 = vmul.f32 %v7465, %v7551
      %v7553 = vsub.f32 1.0, %v7552
      %v7554 = vmul.f32 %v7551, %v7553
      %v7555 = vadd.f32 %v7551, %v7554
      %vm7556 = vweird.f32 %v7465
      %vm7557 = vweird.f32 %v7551
      %vm7558 = vmor %vm7556, %vm7557
      %v7559 = vsel %vm7558, %v7551, %v7555
      %v7560 = vand.u32 2147483647, %v7465
      %vm7561 = vcmp.eq.f32.partialorder %v7560, 8.507059e+37
      %v7562 = vand.u32 %v7465, 2147483648
      %v7563 = vor.u32 1.1754944e-38, %v7562
      %v7564 = vsel %vm7561, %v7563, %v7559
      %v7565 = vmul.f32 1.0, %v7564
      %v7566 = vrcp.pop %v7466
      %v7567 = vmul.f32 %v7466, %v7566
      %v7568 = vsub.f32 1.0, %v7567
      %v7569 = vmul.f32 %v7566, %v7568
      %v7570 = vadd.f32 %v7566, %v7569
      %vm7571 = vweird.f32 %v7466
      %vm7572 = vweird.f32 %v7566
      %vm7573 = vmor %vm7571, %vm7572
      %v7574 = vsel %vm7573, %v7566, %v7570
      %v7575 = vand.u32 2147483647, %v7466
      %vm7576 = vcmp.eq.f32.partialorder %v7575, 8.507059e+37
      %v7577 = vand.u32 %v7466, 2147483648
      %v7578 = vor.u32 1.1754944e-38, %v7577
      %v7579 = vsel %vm7576, %v7578, %v7574
      %v7580 = vmul.f32 1.0, %v7579
      %v7581 = vrcp.pop %v7467
      %v7582 = vmul.f32 %v7467, %v7581
      %v7583 = vsub.f32 1.0, %v7582
      %v7584 = vmul.f32 %v7581, %v7583
      %v7585 = vadd.f32 %v7581, %v7584
      %vm7586 = vweird.f32 %v7467
      %vm7587 = vweird.f32 %v7581
      %vm7588 = vmor %vm7586, %vm7587
      %v7589 = vsel %vm7588, %v7581, %v7585
      %v7590 = vand.u32 2147483647, %v7467
      %vm7591 = vcmp.eq.f32.partialorder %v7590, 8.507059e+37
      %v7592 = vand.u32 %v7467, 2147483648
      %v7593 = vor.u32 1.1754944e-38, %v7592
      %v7594 = vsel %vm7591, %v7593, %v7589
      %v7595 = vmul.f32 1.0, %v7594
      %v7596 = vrcp.pop %v7468
      %v7597 = vmul.f32 %v7468, %v7596
      %v7598 = vsub.f32 1.0, %v7597
      %v7599 = vmul.f32 %v7596, %v7598
      %v7600 = vadd.f32 %v7596, %v7599
      %vm7601 = vweird.f32 %v7468
      %vm7602 = vweird.f32 %v7596
      %vm7603 = vmor %vm7601, %vm7602
      %v7604 = vsel %vm7603, %v7596, %v7600
      %v7605 = vand.u32 2147483647, %v7468
      %vm7606 = vcmp.eq.f32.partialorder %v7605, 8.507059e+37
      %v7607 = vand.u32 %v7468, 2147483648
      %v7608 = vor.u32 1.1754944e-38, %v7607
      %v7609 = vsel %vm7606, %v7608, %v7604
      %v7610 = vmul.f32 1.0, %v7609
      %v7611 = vrcp.pop %v7469
      %v7612 = vmul.f32 %v7469, %v7611
      %v7613 = vsub.f32 1.0, %v7612
      %v7614 = vmul.f32 %v7611, %v7613
      %v7615 = vadd.f32 %v7611, %v7614
      %vm7616 = vweird.f32 %v7469
      %vm7617 = vweird.f32 %v7611
      %vm7618 = vmor %vm7616, %vm7617
      %v7619 = vsel %vm7618, %v7611, %v7615
      %v7620 = vand.u32 2147483647, %v7469
      %vm7621 = vcmp.eq.f32.partialorder %v7620, 8.507059e+37
      %v7622 = vand.u32 %v7469, 2147483648
      %v7623 = vor.u32 1.1754944e-38, %v7622
      %v7624 = vsel %vm7621, %v7623, %v7619
      %v7625 = vmul.f32 1.0, %v7624
      %v7626 = vrcp.pop %v7470
      %v7627 = vmul.f32 %v7470, %v7626
      %v7628 = vsub.f32 1.0, %v7627
      %v7629 = vmul.f32 %v7626, %v7628
      %v7630 = vadd.f32 %v7626, %v7629
      %vm7631 = vweird.f32 %v7470
      %vm7632 = vweird.f32 %v7626
      %vm7633 = vmor %vm7631, %vm7632
      %v7634 = vsel %vm7633, %v7626, %v7630
      %v7635 = vand.u32 2147483647, %v7470
      %vm7636 = vcmp.eq.f32.partialorder %v7635, 8.507059e+37
      %v7637 = vand.u32 %v7470, 2147483648
      %v7638 = vor.u32 1.1754944e-38, %v7637
      %v7639 = vsel %vm7636, %v7638, %v7634
      %v7640 = vmul.f32 1.0, %v7639
      %v7641 = vrcp.pop %v7471
      %v7642 = vmul.f32 %v7471, %v7641
      %v7643 = vsub.f32 1.0, %v7642
      %v7644 = vmul.f32 %v7641, %v7643
      %v7645 = vadd.f32 %v7641, %v7644
      %vm7646 = vweird.f32 %v7471
      %vm7647 = vweird.f32 %v7641
      %vm7648 = vmor %vm7646, %vm7647
      %v7649 = vsel %vm7648, %v7641, %v7645
      %v7650 = vand.u32 2147483647, %v7471
      %vm7651 = vcmp.eq.f32.partialorder %v7650, 8.507059e+37
      %v7652 = vand.u32 %v7471, 2147483648
      %v7653 = vor.u32 1.1754944e-38, %v7652
      %v7654 = vsel %vm7651, %v7653, %v7649
      %v7655 = vmul.f32 1.0, %v7654
      %v7656 = vrcp.pop %v7472
      %v7657 = vmul.f32 %v7472, %v7656
      %v7658 = vsub.f32 1.0, %v7657
      %v7659 = vmul.f32 %v7656, %v7658
      %v7660 = vadd.f32 %v7656, %v7659
      %vm7661 = vweird.f32 %v7472
      %vm7662 = vweird.f32 %v7656
      %vm7663 = vmor %vm7661, %vm7662
      %v7664 = vsel %vm7663, %v7656, %v7660
      %v7665 = vand.u32 2147483647, %v7472
      %vm7666 = vcmp.eq.f32.partialorder %v7665, 8.507059e+37
      %v7667 = vand.u32 %v7472, 2147483648
      %v7668 = vor.u32 1.1754944e-38, %v7667
      %v7669 = vsel %vm7666, %v7668, %v7664
      %v7670 = vmul.f32 1.0, %v7669
      %v7671 = vrcp.pop %v7473
      %v7672 = vmul.f32 %v7473, %v7671
      %v7673 = vsub.f32 1.0, %v7672
      %v7674 = vmul.f32 %v7671, %v7673
      %v7675 = vadd.f32 %v7671, %v7674
      %vm7676 = vweird.f32 %v7473
      %vm7677 = vweird.f32 %v7671
      %vm7678 = vmor %vm7676, %vm7677
      %v7679 = vsel %vm7678, %v7671, %v7675
      %v7680 = vand.u32 2147483647, %v7473
      %vm7681 = vcmp.eq.f32.partialorder %v7680, 8.507059e+37
      %v7682 = vand.u32 %v7473, 2147483648
      %v7683 = vor.u32 1.1754944e-38, %v7682
      %v7684 = vsel %vm7681, %v7683, %v7679
      %v7685 = vmul.f32 1.0, %v7684
      %v7686 = vrcp.pop %v7474
      %v7687 = vmul.f32 %v7474, %v7686
      %v7688 = vsub.f32 1.0, %v7687
      %v7689 = vmul.f32 %v7686, %v7688
      %v7690 = vadd.f32 %v7686, %v7689
      %vm7691 = vweird.f32 %v7474
      %vm7692 = vweird.f32 %v7686
      %vm7693 = vmor %vm7691, %vm7692
      %v7694 = vsel %vm7693, %v7686, %v7690
      %v7695 = vand.u32 2147483647, %v7474
      %vm7696 = vcmp.eq.f32.partialorder %v7695, 8.507059e+37
      %v7697 = vand.u32 %v7474, 2147483648
      %v7698 = vor.u32 1.1754944e-38, %v7697
      %v7699 = vsel %vm7696, %v7698, %v7694
      %v7700 = vmul.f32 1.0, %v7699
      %v7701 = vrcp.pop %v7475
      %v7702 = vmul.f32 %v7475, %v7701
      %v7703 = vsub.f32 1.0, %v7702
      %v7704 = vmul.f32 %v7701, %v7703
      %v7705 = vadd.f32 %v7701, %v7704
      %vm7706 = vweird.f32 %v7475
      %vm7707 = vweird.f32 %v7701
      %vm7708 = vmor %vm7706, %vm7707
      %v7709 = vsel %vm7708, %v7701, %v7705
      %v7710 = vand.u32 2147483647, %v7475
      %vm7711 = vcmp.eq.f32.partialorder %v7710, 8.507059e+37
      %v7712 = vand.u32 %v7475, 2147483648
      %v7713 = vor.u32 1.1754944e-38, %v7712
      %v7714 = vsel %vm7711, %v7713, %v7709
      %v7715 = vmul.f32 1.0, %v7714
      %v7716 = vmul.f32 %v7396, %v7490
      %v7717 = vmul.f32 %v7397, %v7505
      %v7718 = vmul.f32 %v7398, %v7520
      %v7719 = vmul.f32 %v7399, %v7535
      %v7720 = vmul.f32 %v7400, %v7550
      %v7721 = vmul.f32 %v7401, %v7565
      %v7722 = vmul.f32 %v7402, %v7580
      %v7723 = vmul.f32 %v7403, %v7595
      %v7724 = vmul.f32 %v7404, %v7610
      %v7725 = vmul.f32 %v7405, %v7625
      %v7726 = vmul.f32 %v7406, %v7640
      %v7727 = vmul.f32 %v7407, %v7655
      %v7728 = vmul.f32 %v7408, %v7670
      %v7729 = vmul.f32 %v7409, %v7685
      %v7730 = vmul.f32 %v7410, %v7700
      %v7731 = vmul.f32 %v7411, %v7715
      %7732 = vst.msk [vmem:[%s273] sm:$0xff] %vm363, %v7716
      %7733 = vst.msk [vmem:[%s273 + $0x8] sm:$0xff] %vm363, %v7717
      %7734 = vst.msk [vmem:[%s273 + $0x10] sm:$0xff] %vm363, %v7718
      %7735 = vst.msk [vmem:[%s273 + $0x18] sm:$0xff] %vm363, %v7719
      %7736 = vst.msk [vmem:[%s273 + $0x20] sm:$0xff] %vm363, %v7720
      %7737 = vst.msk [vmem:[%s273 + $0x28] sm:$0xff] %vm363, %v7721
      %7738 = vst.msk [vmem:[%s273 + $0x30] sm:$0xff] %vm363, %v7722
      %7739 = vst.msk [vmem:[%s273 + $0x38] sm:$0xff] %vm363, %v7723
      %7740 = vst.msk [vmem:[%s273 + $0x40] sm:$0xff] %vm363, %v7724
      %7741 = vst.msk [vmem:[%s273 + $0x48] sm:$0xff] %vm363, %v7725
      %7742 = vst.msk [vmem:[%s273 + $0x50] sm:$0xff] %vm363, %v7726
      %7743 = vst.msk [vmem:[%s273 + $0x58] sm:$0xff] %vm363, %v7727
      %7744 = vst.msk [vmem:[%s273 + $0x60] sm:$0xff] %vm363, %v7728
      %7745 = vst.msk [vmem:[%s273 + $0x68] sm:$0xff] %vm363, %v7729
      %7746 = vst.msk [vmem:[%s273 + $0x70] sm:$0xff] %vm363, %v7730
      %7747 = vst.msk [vmem:[%s273 + $0x78] sm:$0xff] %vm363, %v7731
      %s7748 = smul.u32 16, %s22
      %p7749 = scmp.lt.s32.totalorder %s21, 1
      %s7750 = scalar_select %p7749, %s21, 1
      %p7751 = scmp.lt.s32.totalorder %s7748, 31
      %s7752 = scalar_select %p7751, %s7748, 31
      %s7753 = smul.addr %s7750, 32
      %s7754 = sadd.s32 %s7752, %s7753
      %s7755 = smul.addr %s7754, 8
      %s7756 = scalar_lea.vmem %s6, %s7755
      // Predicated region
      $region45: #{spp_forward.1} parent=43 // pred_check
        %p7757 = pneg %p180
      $region46: #{spp_forward.1} parent=43 // pred_check_branch
        %7759 = sbr.rel (%p7757) target = $region48
      $region47: #{spp_forward.1} parent=43 // pred_region
        %s7760 = smul.u32 16, %s22
      $region48: #{spp_forward.1} parent=43 // pred_fallthru
        _
    $region44: #{spp_forward.1} parent=5 // pred_fallthru
      _
    %p7761 = scmp.le.s32.totalorder 2, %s12
    // Predicated region
    $region49: #{spp_forward.1} parent=5 // pred_check
      %p7762 = pneg %p7761
    $region50: #{spp_forward.1} parent=5 // pred_check_branch
      %7764 = sbr.rel (%p7762) target = $region52
    $region51: #{spp_forward.1} parent=5 // pred_region
      %s7765 = ssub.s32 %s12, 2
      // Predicated region
      $region53: #{spp_forward.1} parent=51 // pred_check
        %p7766 = pneg %p186
      $region54: #{spp_forward.1} parent=51 // pred_check_branch
        %7768 = sbr.rel (%p7766) target = $region56
      $region55: #{spp_forward.1} parent=51 // pred_region
        %s7769 = smul.u32 16, %s24
        %p7770 = scmp.lt.s32.totalorder %s23, 1
        %s7771 = scalar_select %p7770, %s23, 1
        %p7772 = scmp.lt.s32.totalorder %s7769, 31
        %s7773 = scalar_select %p7772, %s7769, 31
        %s7774 = smul.addr %s7771, 32
        %s7775 = sadd.s32 %s7773, %s7774
        %s7776 = smul.addr %s7775, 8
        %s7777 = scalar_lea.vmem %s6, %s7776
      $region56: #{spp_forward.1} parent=51 // pred_fallthru
        _
    $region52: #{spp_forward.1} parent=5 // pred_fallthru
      _
  $region6: #{spp_forward.1} parent=0 // loop_footer
    %s16 = sadd.s32 1, %s12
  $region7: #{spp_forward.1} parent=0 // loop_footer_branch
    %11 = sbr.rel target = $region3
  $region8: #{spp_forward.1} parent=0 // loop_exit
    _

</llo_original>
